<compile_context>
chip_gen: v5e
topology: v5e:2x2
jax: 0.10.0
libtpu: 0.0.40
codegen_flags: <defaults>
</compile_context>

<pallas_src>
import functools

import jax
import jax.numpy as jnp
from jax.experimental import pallas as pl
from jax.experimental.pallas import tpu as pltpu

BN_EPS = 1e-5


def _round_up(x, m):
    return ((x + m - 1) // m) * m


def _round_down(x, m):
    return (x // m) * m


def _vmem_limit_bytes():
    """Per-generation VMEM limit (~75% of physical): ~96 MiB v5e/v6e, ~48 MiB v7x."""
    cap = 64 << 20
    try:
        info = pltpu.get_tpu_info()
        cap = int(getattr(info, "vmem_capacity_bytes", cap))
    except Exception:
        pass
    return (cap * 3) // 4


def _select_tiles(B, HW, C, feat_itemsize, vmem_budget):
    """Pick (batch_tile, hw_chunk) for the (batch, hw) grid."""
    # Batch tile: aim for >=2 grid steps when B > 8 so the "parallel" axis can
    # feed both v7x TensorCores and the pipeline has batches to overlap.
    if B <= 8:
        tb = B
    else:
        tb = min(128, _round_up((B + 1) // 2, 8))
    # HW chunk: multiple of 8 (sublane axis), sized so one feat buffer stays
    # <= ~4 MiB and there are >=2 chunks whenever the spatial extent allows.
    if HW <= 8:
        hw_chunk = HW
    else:
        by_bytes = max(8, _round_down((4 << 20) // max(1, tb * C * feat_itemsize), 8))
        by_steps = _round_up((HW + 1) // 2, 8)
        hw_chunk = min(by_bytes, by_steps)
        if hw_chunk >= HW:
            hw_chunk = HW
    # Guard: double-buffered feat tile must leave room for weights/out/scratch.
    while tb > 8 and 2 * tb * hw_chunk * C * feat_itemsize > vmem_budget // 2:
        tb = max(8, _round_down(tb // 2, 8))
    return tb, hw_chunk


def _ft_net_se_head_kernel(feat_ref, w1_ref, b1_ref, w2_ref, b2_ref, out_ref,
                           pool_ref, *, inv_hw, hw_total, hw_chunk, mask_hw):
    hw_step = pl.program_id(1)

    # ---- AdaptiveAvgPool2d((1,1)): accumulate the spatial sum chunk by chunk ----
    @pl.when(hw_step == 0)
    def _init():
        pool_ref[...] = jnp.zeros_like(pool_ref)

    feat = feat_ref[...]                                    # (tb, hw_chunk, C)
    if mask_hw:  # last HW chunk is partial: zero out-of-range spatial rows
        row = jax.lax.broadcasted_iota(jnp.int32, (1, hw_chunk, 1), 1)
        feat = jnp.where(hw_step * hw_chunk + row < hw_total, feat,
                         jnp.zeros_like(feat))
    pool_ref[...] += jnp.sum(feat, axis=1, dtype=jnp.float32)      # (tb, C)

    # ---- ClassBlock, only once per batch tile (last HW chunk) ----
    @pl.when(hw_step == pl.num_programs(1) - 1)
    def _finish():
        # x.view(B, C) + mean: single multiply by precomputed 1/(H*W)
        pooled = (pool_ref[...] * inv_hw).astype(jnp.bfloat16)     # (tb, C)
        # Linear(2048->512) with eval-mode BatchNorm1d folded into w1/b1
        h = jnp.dot(pooled, w1_ref[...],
                    preferred_element_type=jnp.float32) + b1_ref[...]
        # Dropout(p=0.5): identity in eval mode.
        # TODO(synk): training-mode stochastic dropout not implemented.
        # classifier Linear(512 -> class_num padded to a multiple of 128)
        out_ref[...] = jnp.dot(h.astype(jnp.bfloat16), w2_ref[...],
                               preferred_element_type=jnp.float32) + b2_ref[...]


def prepare_head_params(params, bn_eps=BN_EPS):
    """Fold eval-mode BatchNorm1d into the first Linear and lane-pad the classifier.

    Call once (outside the serving loop); returns (prepared_dict, class_num).
    """
    inv_std = jax.lax.rsqrt(params["var"] + bn_eps)                 # (1, NB)
    scale = params["gamma"] * inv_std
    w1 = (params["w1"] * scale).astype(jnp.bfloat16)                # (C, NB)
    b1 = ((params["b1"] - params["mean"]) * scale
          + params["beta"]).astype(jnp.float32)                     # (1, NB)
    nb, class_num = params["w2"].shape
    np_pad = _round_up(class_num, 128)
    w2 = (jnp.zeros((nb, np_pad), jnp.bfloat16)
          .at[:, :class_num].set(params["w2"].astype(jnp.bfloat16)))
    b2 = jnp.zeros((1, np_pad), jnp.float32).at[:, :class_num].set(params["b2"])
    return dict(w1=w1, b1=b1, w2=w2, b2=b2), class_num


def ft_net_se_head(feat_nhwc, prep, *, class_num):
    """avg_pool + view + ClassBlock head of ft_net_SE.

    feat_nhwc: (B, H, W, C=2048) channels-last backbone feature map (bf16
    preferred; f32 accepted).  The se_resnext101_32x4d backbone is external;
    on TPU it emits NHWC natively, so no transpose/cast pass precedes this.
    """
    B, H, W, C = feat_nhwc.shape
    HW = H * W
    feat = feat_nhwc.reshape(B, HW, C)     # contiguous collapse; no extra HBM pass

    w1, b1, w2, b2 = prep["w1"], prep["b1"], prep["w2"], prep["b2"]
    NB = w1.shape[1]
    Np = w2.shape[1]

    vmem_limit = _vmem_limit_bytes()
    tb, hw_chunk = _select_tiles(B, HW, C, feat.dtype.itemsize, vmem_limit)
    grid = (pl.cdiv(B, tb), pl.cdiv(HW, hw_chunk))
    mask_hw = (HW % hw_chunk) != 0

    kernel = functools.partial(
        _ft_net_se_head_kernel,
        inv_hw=1.0 / HW, hw_total=HW, hw_chunk=hw_chunk, mask_hw=mask_hw)

    out = pl.pallas_call(
        kernel,
        out_shape=jax.ShapeDtypeStruct((B, Np), jnp.float32),
        grid_spec=pltpu.PrefetchScalarGridSpec(
            num_scalar_prefetch=0,
            grid=grid,
            in_specs=[
                # feat tile: streamed over batch x HW chunks (double-buffered)
                pl.BlockSpec((tb, hw_chunk, C), lambda b, k: (b, k, 0)),
                # weights/biases: constant block index -> DMA'd once, resident
                pl.BlockSpec((C, NB), lambda b, k: (0, 0)),
                pl.BlockSpec((1, NB), lambda b, k: (0, 0)),
                pl.BlockSpec((NB, Np), lambda b, k: (0, 0)),
                pl.BlockSpec((1, Np), lambda b, k: (0, 0)),
            ],
            # same output block across the HW axis -> resident output tile
            out_specs=pl.BlockSpec((tb, Np), lambda b, k: (b, 0)),
            scratch_shapes=[pltpu.VMEM((tb, C), jnp.float32)],
        ),
        compiler_params=pltpu.CompilerParams(
            dimension_semantics=("parallel", "arbitrary"),
            vmem_limit_bytes=vmem_limit,
        ),
    )(feat, w1, b1, w2, b2)

    return out[:, :class_num]


def init_params(key, input_dim=2048, num_bottleneck=512, class_num=8):
    k1, k2, k3 = jax.random.split(key, 3)
    # Linear(2048, 512): weights_init_kaiming -> kaiming_normal, a=0, mode='fan_out'
    #   torch Linear weight (out, in) => fan_out = out_features = 512
    std1 = (2.0 / num_bottleneck) ** 0.5
    w1 = std1 * jax.random.normal(k1, (input_dim, num_bottleneck), jnp.float32)
    b1 = jnp.zeros((1, num_bottleneck), jnp.float32)
    # BatchNorm1d(512): weight ~ N(1, 0.02), bias = 0, running stats (0, 1)
    gamma = 1.0 + 0.02 * jax.random.normal(k2, (1, num_bottleneck), jnp.float32)
    beta = jnp.zeros((1, num_bottleneck), jnp.float32)
    mean = jnp.zeros((1, num_bottleneck), jnp.float32)
    var = jnp.ones((1, num_bottleneck), jnp.float32)
    # classifier Linear(512, class_num): weights_init_classifier -> N(0, 0.001), bias 0
    w2 = 0.001 * jax.random.normal(k3, (num_bottleneck, class_num), jnp.float32)
    b2 = jnp.zeros((1, class_num), jnp.float32)
    return dict(w1=w1, b1=b1, gamma=gamma, beta=beta, mean=mean, var=var,
                w2=w2, b2=b2)


if __name__ == "__main__":
    key = jax.random.PRNGKey(0)
    k_feat, k_params = jax.random.split(key)

    # Small shapes consistent with the module: ClassBlock fixes C=2048; B=24
    # matches the training batch; 5x5 is a small pre-pool spatial extent and
    # exercises the partial-HW-chunk masking path.
    B, H, W, C = 24, 5, 5, 2048
    class_num = 8

    # Backbone output: channels-last bf16 feature map (what a TPU backbone
    # emits natively under the same jit -- no extra transpose/cast pass).
    feat = jax.random.normal(k_feat, (B, H, W, C), jnp.bfloat16)
    params = init_params(k_params, input_dim=C, class_num=class_num)
    prep, class_num = prepare_head_params(params)

    fwd = jax.jit(functools.partial(ft_net_se_head, class_num=class_num))
    logits = fwd(feat, prep)
    jax.block_until_ready(logits)

    # Pure-JAX reference with the same bf16-weight / f32-accumulate math.
    pooled = jnp.mean(feat.reshape(B, H * W, C).astype(jnp.float32), axis=1)
    h = jnp.dot(pooled.astype(jnp.bfloat16), prep["w1"],
                preferred_element_type=jnp.float32) + prep["b1"]
    ref = jnp.dot(h.astype(jnp.bfloat16), prep["w2"][:, :class_num],
                  preferred_element_type=jnp.float32) + prep["b2"][:, :class_num]

    assert logits.shape == (B, class_num), logits.shape
    err = float(jnp.max(jnp.abs(logits - ref)))
    assert jnp.allclose(logits, ref, atol=5e-3, rtol=5e-3), err

    print("KERNEL_OK")
</pallas_src>

<mosaic_0001>
module attributes {stable_mosaic.version = 11 : i64} {
  func.func @_ft_net_se_head_kernel(%arg0: i32, %arg1: i32, %arg2: memref<16x16x2048xbf16, #tpu.memory_space<vmem>>, %arg3: memref<2048x512xbf16, #tpu.memory_space<vmem>>, %arg4: memref<1x512xf32, #tpu.memory_space<vmem>>, %arg5: memref<512x128xbf16, #tpu.memory_space<vmem>>, %arg6: memref<1x128xf32, #tpu.memory_space<vmem>>, %arg7: memref<16x128xf32, #tpu.memory_space<vmem>>, %arg8: memref<16x2048xf32, #tpu.memory_space<vmem>>) attributes {dimension_semantics = [#tpu.dimension_semantics<parallel>, #tpu.dimension_semantics<arbitrary>], iteration_bounds = array<i64: 2, 2>, scalar_prefetch = 0 : i64, scratch_operands = 1 : i64, tpu.core_type = #tpu.core_type<tc>, window_params = [{transform_indices = @transform_0, window_bounds = array<i64: 16, 16, 2048>}, {pipeline_mode = #tpu.pipeline_mode<synchronous>, transform_indices = @transform_1, window_bounds = array<i64: 2048, 512>}, {pipeline_mode = #tpu.pipeline_mode<synchronous>, transform_indices = @transform_2, window_bounds = array<i64: 1, 512>}, {pipeline_mode = #tpu.pipeline_mode<synchronous>, transform_indices = @transform_3, window_bounds = array<i64: 512, 128>}, {pipeline_mode = #tpu.pipeline_mode<synchronous>, transform_indices = @transform_4, window_bounds = array<i64: 1, 128>}, {transform_indices = @transform_5, window_bounds = array<i64: 16, 128>}]} {
    %c0_i32 = arith.constant 0 : i32
    %0 = arith.cmpi eq, %arg1, %c0_i32 : i32
    %1 = arith.extui %0 : i1 to i32
    %c0_i32_0 = arith.constant 0 : i32
    %2 = arith.cmpi ne, %1, %c0_i32_0 : i32
    scf.if %2 {
      %cst_9 = arith.constant 0.000000e+00 : f32
      %22 = vector.broadcast %cst_9 : f32 to vector<16x2048xf32>
      %c0_10 = arith.constant 0 : index
      %c0_11 = arith.constant 0 : index
      %23 = vector.load %arg8[%c0_10, %c0_11] : memref<16x2048xf32, #tpu.memory_space<vmem>>, vector<16x2048xf32>
      tpu.vector_store %arg8[%c0_10, %c0_11], %22 {strides = array<i32>} : memref<16x2048xf32, #tpu.memory_space<vmem>>, vector<16x2048xf32>,
    } else {
    }
    %c0 = arith.constant 0 : index
    %c0_1 = arith.constant 0 : index
    %c0_2 = arith.constant 0 : index
    %3 = vector.load %arg2[%c0, %c0_1, %c0_2] : memref<16x16x2048xbf16, #tpu.memory_space<vmem>>, vector<16x16x2048xbf16>
    %4 = tpu.iota {dimensions = array<i32: 1>} : vector<1x16x1xi32>
    %c16_i32 = arith.constant 16 : i32
    %5 = arith.muli %arg1, %c16_i32 : i32
    %6 = vector.broadcast %5 : i32 to vector<1x16x1xi32>
    %7 = arith.addi %6, %4 : vector<1x16x1xi32>
    %c25_i32 = arith.constant 25 : i32
    %8 = vector.broadcast %c25_i32 : i32 to vector<1x16x1xi32>
    %9 = arith.cmpi slt, %7, %8 : vector<1x16x1xi32>
    %cst = arith.constant 0.000000e+00 : bf16
    %10 = vector.broadcast %cst : bf16 to vector<16x16x2048xbf16>
    %11 = vector.shape_cast %9 : vector<1x16x1xi1> to vector<1x16x1xi1>
    %12 = vector.broadcast %11 : vector<1x16x1xi1> to vector<16x16x2048xi1>
    %13 = arith.select %12, %3, %10 : vector<16x16x2048xi1>, vector<16x16x2048xbf16>
    %c0_3 = arith.constant 0 : index
    %c0_4 = arith.constant 0 : index
    %14 = vector.load %arg8[%c0_3, %c0_4] : memref<16x2048xf32, #tpu.memory_space<vmem>>, vector<16x2048xf32>
    %15 = arith.extf %13 : vector<16x16x2048xbf16> to vector<16x16x2048xf32>
    %cst_5 = arith.constant dense<0.000000e+00> : vector<16x2048xf32>
    %16 = vector.multi_reduction <add>, %15, %cst_5 [1] : vector<16x16x2048xf32> to vector<16x2048xf32>
    %17 = arith.addf %14, %16 : vector<16x2048xf32>
    %c0_6 = arith.constant 0 : index
    %c0_7 = arith.constant 0 : index
    %18 = vector.load %arg8[%c0_6, %c0_7] : memref<16x2048xf32, #tpu.memory_space<vmem>>, vector<16x2048xf32>
    tpu.vector_store %arg8[%c0_6, %c0_7], %17 {strides = array<i32>} : memref<16x2048xf32, #tpu.memory_space<vmem>>, vector<16x2048xf32>,
    %c1_i32 = arith.constant 1 : i32
    %19 = arith.cmpi eq, %arg1, %c1_i32 : i32
    %20 = arith.extui %19 : i1 to i32
    %c0_i32_8 = arith.constant 0 : i32
    %21 = arith.cmpi ne, %20, %c0_i32_8 : i32
    scf.if %21 {
      %c0_9 = arith.constant 0 : index
      %c0_10 = arith.constant 0 : index
      %22 = vector.load %arg8[%c0_9, %c0_10] : memref<16x2048xf32, #tpu.memory_space<vmem>>, vector<16x2048xf32>
      %cst_11 = arith.constant 4.000000e-02 : f32
      %23 = vector.broadcast %cst_11 : f32 to vector<16x2048xf32>
      %24 = arith.mulf %22, %23 : vector<16x2048xf32>
      %25 = arith.truncf %24 : vector<16x2048xf32> to vector<16x2048xbf16>
      %c0_12 = arith.constant 0 : index
      %c0_13 = arith.constant 0 : index
      %26 = vector.load %arg3[%c0_12, %c0_13] : memref<2048x512xbf16, #tpu.memory_space<vmem>>, vector<2048x512xbf16>
      %cst_14 = arith.constant dense<0.000000e+00> : vector<16x512xf32>
      %27 = tpu.matmul %25, %26, %cst_14 {dimension_numbers = #tpu.dot_dimension_numbers<[1], [0], [0], [1], [0, 0, 1, 1], [], []>} : vector<16x2048xbf16>, vector<2048x512xbf16>, vector<16x512xf32> -> vector<16x512xf32>
      %c0_15 = arith.constant 0 : index
      %c0_16 = arith.constant 0 : index
      %28 = vector.load %arg4[%c0_15, %c0_16] : memref<1x512xf32, #tpu.memory_space<vmem>>, vector<1x512xf32>
      %29 = vector.broadcast %28 : vector<1x512xf32> to vector<16x512xf32>
      %30 = arith.addf %27, %29 : vector<16x512xf32>
      %31 = arith.truncf %30 : vector<16x512xf32> to vector<16x512xbf16>
      %c0_17 = arith.constant 0 : index
      %c0_18 = arith.constant 0 : index
      %32 = vector.load %arg5[%c0_17, %c0_18] : memref<512x128xbf16, #tpu.memory_space<vmem>>, vector<512x128xbf16>
      %cst_19 = arith.constant dense<0.000000e+00> : vector<16x128xf32>
      %33 = tpu.matmul %31, %32, %cst_19 {dimension_numbers = #tpu.dot_dimension_numbers<[1], [0], [0], [1], [0, 0, 1, 1], [], []>} : vector<16x512xbf16>, vector<512x128xbf16>, vector<16x128xf32> -> vector<16x128xf32>
      %c0_20 = arith.constant 0 : index
      %c0_21 = arith.constant 0 : index
      %34 = vector.load %arg6[%c0_20, %c0_21] : memref<1x128xf32, #tpu.memory_space<vmem>>, vector<1x128xf32>
      %35 = vector.broadcast %34 : vector<1x128xf32> to vector<16x128xf32>
      %36 = arith.addf %33, %35 : vector<16x128xf32>
      %c0_22 = arith.constant 0 : index
      %c0_23 = arith.constant 0 : index
      %37 = vector.load %arg7[%c0_22, %c0_23] : memref<16x128xf32, #tpu.memory_space<vmem>>, vector<16x128xf32>
      tpu.vector_store %arg7[%c0_22, %c0_23], %36 {strides = array<i32>} : memref<16x128xf32, #tpu.memory_space<vmem>>, vector<16x128xf32>,
    } else {
    }
    return
  }
  func.func @transform_0(%arg0: i32, %arg1: i32) -> (i32, i32, i32) {
    %c0_i32 = arith.constant 0 : i32
    %c0_i32_0 = arith.constant 0 : i32
    return %arg0, %arg1, %c0_i32 : i32, i32, i32
  }
  func.func @transform_1(%arg0: i32, %arg1: i32) -> (i32, i32) {
    %c0_i32 = arith.constant 0 : i32
    %c0_i32_0 = arith.constant 0 : i32
    %c0_i32_1 = arith.constant 0 : i32
    return %c0_i32, %c0_i32_0 : i32, i32
  }
  func.func @transform_2(%arg0: i32, %arg1: i32) -> (i32, i32) {
    %c0_i32 = arith.constant 0 : i32
    %c0_i32_0 = arith.constant 0 : i32
    %c0_i32_1 = arith.constant 0 : i32
    return %c0_i32, %c0_i32_0 : i32, i32
  }
  func.func @transform_3(%arg0: i32, %arg1: i32) -> (i32, i32) {
    %c0_i32 = arith.constant 0 : i32
    %c0_i32_0 = arith.constant 0 : i32
    %c0_i32_1 = arith.constant 0 : i32
    return %c0_i32, %c0_i32_0 : i32, i32
  }
  func.func @transform_4(%arg0: i32, %arg1: i32) -> (i32, i32) {
    %c0_i32 = arith.constant 0 : i32
    %c0_i32_0 = arith.constant 0 : i32
    %c0_i32_1 = arith.constant 0 : i32
    return %c0_i32, %c0_i32_0 : i32, i32
  }
  func.func @transform_5(%arg0: i32, %arg1: i32) -> (i32, i32) {
    %c0_i32 = arith.constant 0 : i32
    %c0_i32_0 = arith.constant 0 : i32
    return %arg0, %c0_i32 : i32, i32
  }
}

</mosaic_0001>

<llo_original>
// kernel: ft_net_se_head.1
$region0: #{ft_net_se_head.1}
  #allocation0 [shape = 'u32[]', space=smem, size = 0x4, offset = 0x4, fixed_abs, tag = 'smem constant byte address 0x4 - core index']
  #allocation1 [shape = 'u32[72,128]{1,0:T(1,128)}', space=vmem, size = 0x9000, scoped, tag = 'internal scratch']
  #allocation2 [shape = 'f32[16,2048]{1,0:T(8,128)}', space=vmem, size = 0x20000, scoped, tag = 'scratch operand']
  %s0 = inlined_call_operand.vmem [shape: bf16[24,25,2048], index: 0, kind: input, shape index: {}]
  %s1 = inlined_call_operand.vmem [shape: bf16[2048,512], index: 1, kind: input, shape index: {}]
  %s2 = inlined_call_operand.vmem [shape: f32[1,512], index: 2, kind: input, shape index: {}]
  %s3 = inlined_call_operand.vmem [shape: bf16[512,128], index: 3, kind: input, shape index: {}]
  %s4 = inlined_call_operand.vmem [shape: f32[1,128], index: 4, kind: input, shape index: {}]
  %s5 = inlined_call_operand.vmem [shape: f32[24,128], index: 5, kind: output, shape index: {}]
  %s6 = sld [smem:[#allocation0]]
  $region139: #{ft_net_se_head.1} parent=0
    _
  %s8 = ssub.s32 1, %s6
  %s9 = scalar_select 0, %s8, %s6
  $region1: #{ft_net_se_head.1} parent=0
    #allocation3 [shape = 'u8[2097152]{0}', space=vmem, size = 0x200000, scoped, tag = 'input window, operand 0']
    #allocation4 [shape = 'u8[16384]{0}', space=vmem, size = 0x4000, scoped, tag = 'output window, operand 0']
    loop: start=0, step=1, limit=6
    $region2: #{ft_net_se_head.1} parent=1 // loop_pre_header
      _
    $region3: #{ft_net_se_head.1} parent=1 // loop_header
      %s11 = sphi 0, %s15
      %p12 = scmp.ge.s32.totalorder %s11, 6
      %s18 = sphi 0, %s30
      %s19 = sphi 0, %s26
      %s20 = sphi 0, %s18
      %s21 = sphi 0, %s19
      %s22 = sphi 0, %s20
      %s23 = sphi 0, %s21
      %s35 = sphi 0, %s37
      %s38 = sphi 0, %s35
      %s39 = sphi 0, %s38
      %s55 = sphi 0, %s39
      %s59 = sphi 0, %s59
      %s61 = sphi 0, %s59
      %s62 = sphi 0, %s61
      %s76 = sphi 0, %s62
      %s80 = sphi 0, %s80
      %s82 = sphi 0, %s80
      %s83 = sphi 0, %s82
      %s97 = sphi 0, %s83
      %s101 = sphi 0, %s101
      %s103 = sphi 0, %s101
      %s104 = sphi 0, %s103
      %s118 = sphi 0, %s104
      %s122 = sphi 0, %s122
      %s124 = sphi 0, %s122
      %s125 = sphi 0, %s124
      %s139 = sphi 0, %s125
      %s145 = sphi 0, %s147
      %s148 = sphi 0, %s145
      %s149 = sphi 0, %s148
      %s165 = sphi 0, %s149
    $region4: #{ft_net_se_head.1} parent=1 // loop_header_branch
      %14 = sbr.rel (%p12) target = $region8
    $region5: #{ft_net_se_head.1} parent=1 // loop_body
      %s16 = ssub.s32 %s11, 1
      %s17 = ssub.s32 %s11, 2
      %s24 = sadd.s32 1, %s19
      %p25 = scmp.ge.s32.totalorder %s24, 2
      %s26 = scalar_select %p25, 0, %s24
      %s27 = sadd.s32 1, %s18
      %s28 = scalar_select %p25, %s27, %s18
      %p29 = scmp.ge.s32.totalorder %s28, 2
      %s30 = scalar_select %p29, 0, %s28
      %s31 = ssub.s32 %s18, %s30
      %s32 = ssub.s32 %s19, %s26
      %s33 = sor.u32 %s31, %s32
      %p34 = scmp.eq.s32.totalorder %s33, 0
      %s36 = sadd.s32 %s35, 1
      %s37 = scalar_select %p34, %s35, %s36
      %p40 = pneg %p34
      %p41 = scmp.eq.s32.totalorder %s11, 3
      %p42 = por %p40, %p41
      %p43 = scmp.ne.s32.totalorder %s35, %s38
      %p44 = scmp.eq.s32.totalorder %s11, 0
      %p45 = por %p43, %p44
      %p46 = scmp.ne.s32.totalorder %s35, %s38
      %p47 = scmp.eq.s32.totalorder %s16, 3
      %p48 = por %p46, %p47
      %p49 = scmp.ne.s32.totalorder %s38, %s39
      %p50 = scmp.eq.s32.totalorder %s16, 0
      %p51 = por %p49, %p50
      %p52 = scmp.ne.s32.totalorder %s38, %s39
      %p53 = scmp.eq.s32.totalorder %s17, 3
      %p54 = por %p52, %p53
      %p56 = scmp.ne.s32.totalorder %s39, %s55
      %p57 = scmp.eq.s32.totalorder %s17, 0
      %p58 = por %p56, %p57
      %s60 = sadd.s32 %s59, 1
      %p63 = scmp.eq.s32.totalorder %s11, 3
      %p64 = scmp.ne.s32.totalorder %s59, %s61
      %p65 = scmp.eq.s32.totalorder %s11, 0
      %p66 = por %p64, %p65
      %p67 = scmp.ne.s32.totalorder %s59, %s61
      %p68 = scmp.eq.s32.totalorder %s16, 3
      %p69 = por %p67, %p68
      %p70 = scmp.ne.s32.totalorder %s61, %s62
      %p71 = scmp.eq.s32.totalorder %s16, 0
      %p72 = por %p70, %p71
      %p73 = scmp.ne.s32.totalorder %s61, %s62
      %p74 = scmp.eq.s32.totalorder %s17, 3
      %p75 = por %p73, %p74
      %p77 = scmp.ne.s32.totalorder %s62, %s76
      %p78 = scmp.eq.s32.totalorder %s17, 0
      %p79 = por %p77, %p78
      %s81 = sadd.s32 %s80, 1
      %p84 = scmp.eq.s32.totalorder %s11, 3
      %p85 = scmp.ne.s32.totalorder %s80, %s82
      %p86 = scmp.eq.s32.totalorder %s11, 0
      %p87 = por %p85, %p86
      %p88 = scmp.ne.s32.totalorder %s80, %s82
      %p89 = scmp.eq.s32.totalorder %s16, 3
      %p90 = por %p88, %p89
      %p91 = scmp.ne.s32.totalorder %s82, %s83
      %p92 = scmp.eq.s32.totalorder %s16, 0
      %p93 = por %p91, %p92
      %p94 = scmp.ne.s32.totalorder %s82, %s83
      %p95 = scmp.eq.s32.totalorder %s17, 3
      %p96 = por %p94, %p95
      %p98 = scmp.ne.s32.totalorder %s83, %s97
      %p99 = scmp.eq.s32.totalorder %s17, 0
      %p100 = por %p98, %p99
      %s102 = sadd.s32 %s101, 1
      %p105 = scmp.eq.s32.totalorder %s11, 3
      %p106 = scmp.ne.s32.totalorder %s101, %s103
      %p107 = scmp.eq.s32.totalorder %s11, 0
      %p108 = por %p106, %p107
      %p109 = scmp.ne.s32.totalorder %s101, %s103
      %p110 = scmp.eq.s32.totalorder %s16, 3
      %p111 = por %p109, %p110
      %p112 = scmp.ne.s32.totalorder %s103, %s104
      %p113 = scmp.eq.s32.totalorder %s16, 0
      %p114 = por %p112, %p113
      %p115 = scmp.ne.s32.totalorder %s103, %s104
      %p116 = scmp.eq.s32.totalorder %s17, 3
      %p117 = por %p115, %p116
      %p119 = scmp.ne.s32.totalorder %s104, %s118
      %p120 = scmp.eq.s32.totalorder %s17, 0
      %p121 = por %p119, %p120
      %s123 = sadd.s32 %s122, 1
      %p126 = scmp.eq.s32.totalorder %s11, 3
      %p127 = scmp.ne.s32.totalorder %s122, %s124
      %p128 = scmp.eq.s32.totalorder %s11, 0
      %p129 = por %p127, %p128
      %p130 = scmp.ne.s32.totalorder %s122, %s124
      %p131 = scmp.eq.s32.totalorder %s16, 3
      %p132 = por %p130, %p131
      %p133 = scmp.ne.s32.totalorder %s124, %s125
      %p134 = scmp.eq.s32.totalorder %s16, 0
      %p135 = por %p133, %p134
      %p136 = scmp.ne.s32.totalorder %s124, %s125
      %p137 = scmp.eq.s32.totalorder %s17, 3
      %p138 = por %p136, %p137
      %p140 = scmp.ne.s32.totalorder %s125, %s139
      %p141 = scmp.eq.s32.totalorder %s17, 0
      %p142 = por %p140, %p141
      %s143 = ssub.s32 %s18, %s30
      %p144 = scmp.eq.s32.totalorder %s143, 0
      %s146 = sadd.s32 %s145, 1
      %s147 = scalar_select %p144, %s145, %s146
      %p150 = pneg %p144
      %p151 = scmp.eq.s32.totalorder %s11, 3
      %p152 = por %p150, %p151
      %p153 = scmp.ne.s32.totalorder %s145, %s148
      %p154 = scmp.eq.s32.totalorder %s11, 0
      %p155 = por %p153, %p154
      %p156 = scmp.ne.s32.totalorder %s145, %s148
      %p157 = scmp.eq.s32.totalorder %s16, 3
      %p158 = por %p156, %p157
      %p159 = scmp.ne.s32.totalorder %s148, %s149
      %p160 = scmp.eq.s32.totalorder %s16, 0
      %p161 = por %p159, %p160
      %p162 = scmp.ne.s32.totalorder %s148, %s149
      %p163 = scmp.eq.s32.totalorder %s17, 3
      %p164 = por %p162, %p163
      %p166 = scmp.ne.s32.totalorder %s149, %s165
      %p167 = scmp.eq.s32.totalorder %s17, 0
      %p168 = por %p166, %p167
      %p169 = scmp.le.s32.totalorder 1, %s11
      %p170 = scmp.lt.s32.totalorder %s11, 5
      %p171 = pnand %p169, %p170
      %p172 = pneg %p171
      // Predicated region
      $region9: #{ft_net_se_head.1} parent=5 // pred_check
        _
      $region10: #{ft_net_se_head.1} parent=5 // pred_check_branch
        %174 = sbr.rel (%p171) target = $region12
      $region11: #{ft_net_se_head.1} parent=5 // pred_region
        %s175 = ssub.s32 %s11, 1
        // Predicated region
        $region13: #{ft_net_se_head.1} parent=11 // pred_check
          %p176 = pneg %p72
        $region14: #{ft_net_se_head.1} parent=11 // pred_check_branch
          %178 = sbr.rel (%p176) target = $region16
        $region15: #{ft_net_se_head.1} parent=11 // pred_region
          _
        $region16: #{ft_net_se_head.1} parent=11 // pred_fallthru
          _
        // Predicated region
        $region17: #{ft_net_se_head.1} parent=11 // pred_check
          %p179 = pneg %p93
        $region18: #{ft_net_se_head.1} parent=11 // pred_check_branch
          %181 = sbr.rel (%p179) target = $region20
        $region19: #{ft_net_se_head.1} parent=11 // pred_region
          _
        $region20: #{ft_net_se_head.1} parent=11 // pred_fallthru
          _
        // Predicated region
        $region21: #{ft_net_se_head.1} parent=11 // pred_check
          %p182 = pneg %p114
        $region22: #{ft_net_se_head.1} parent=11 // pred_check_branch
          %184 = sbr.rel (%p182) target = $region24
        $region23: #{ft_net_se_head.1} parent=11 // pred_region
          _
        $region24: #{ft_net_se_head.1} parent=11 // pred_fallthru
          _
        // Predicated region
        $region25: #{ft_net_se_head.1} parent=11 // pred_check
          %p185 = pneg %p135
        $region26: #{ft_net_se_head.1} parent=11 // pred_check_branch
          %187 = sbr.rel (%p185) target = $region28
        $region27: #{ft_net_se_head.1} parent=11 // pred_region
          _
        $region28: #{ft_net_se_head.1} parent=11 // pred_fallthru
          _
      $region12: #{ft_net_se_head.1} parent=5 // pred_fallthru
        _
      %p188 = scmp.lt.s32.totalorder %s11, 4
      // Predicated region
      $region29: #{ft_net_se_head.1} parent=5 // pred_check
        %p189 = pneg %p188
      $region30: #{ft_net_se_head.1} parent=5 // pred_check_branch
        %191 = sbr.rel (%p189) target = $region32
      $region31: #{ft_net_se_head.1} parent=5 // pred_region
        // Predicated region
        $region33: #{ft_net_se_head.1} parent=31 // pred_check
          %p192 = pneg %p45
        $region34: #{ft_net_se_head.1} parent=31 // pred_check_branch
          %194 = sbr.rel (%p192) target = $region36
        $region35: #{ft_net_se_head.1} parent=31 // pred_region
          %s195 = sand.u32 %s35, 1
          %s196 = sand.u32 %s35, 1
          %s197 = smul.addr %s196, 2048
          %s198 = scalar_lea.vmem [#allocation3], %s197
          %s199 = smul.u32 16, %s18
          %s200 = smul.u32 2, %s19
          %s201 = ssub.s32 24, %s199
          %p202 = scmp.lt.s32.totalorder %s201, 16
          %s203 = scalar_select %p202, %s201, 16
          %s204 = smul.u32 4, %s203
          %s205 = smul.u32 %s204, 2
          %s206 = smul.u32 %s205, 16
          %p207 = scmp.ne.s32.totalorder 0, %s206
          %s208 = smul.addr %s200, 16
          %s209 = smul.addr %s199, 64
          %s210 = sadd.s32 %s208, %s209
          %s211 = smul.addr %s210, 4
          %s212 = scalar_lea.vmem %s0, %s211
          // Predicated region
          $region37: #{ft_net_se_head.1} parent=35 // pred_check
            %p213 = pneg %p207
          $region38: #{ft_net_se_head.1} parent=35 // pred_check_branch
            %215 = sbr.rel (%p213) target = $region40
          $region39: #{ft_net_se_head.1} parent=35 // pred_region
            // Predicated region
            $region41: #{ft_net_se_head.1} parent=39 // pred_check
              _
            $region42: #{ft_net_se_head.1} parent=39 // pred_check_branch
              %217 = sbr.rel (0) target = $region44
            $region43: #{ft_net_se_head.1} parent=39 // pred_region
              %s218 = sshrl.u32 %s203, 1
              // While loop
              $region45: #{ft_net_se_head.1} parent=43 // loop_pre_header
                _
              $region46: #{ft_net_se_head.1} parent=43 // loop_header
                %s220 = sphi 0, %s222
                %p221 = scmp.ge.s32.totalorder %s220, %s218
                %s225 = sphi 0, %s294
                %s226 = sphi %s212, %s297
                %s227 = sphi %s198, %s298
              $region47: #{ft_net_se_head.1} parent=43 // loop_header_branch
                %224 = sbr.rel (%p221) target = $region51
              $region48: #{ft_net_se_head.1} parent=43 // loop_body
                %v228 = vld [vmem:[%s226] sm:$0xff]
                %229 = vst [vmem:[%s227] sm:$0xff] %v228
                %v230 = vld [vmem:[%s226 + $0x100] sm:$0xff]
                %231 = vst [vmem:[%s227 + $0x80] sm:$0xff] %v230
                %v232 = vld [vmem:[%s226 + $0x8] sm:$0xff]
                %233 = vst [vmem:[%s227 + $0x8] sm:$0xff] %v232
                %v234 = vld [vmem:[%s226 + $0x108] sm:$0xff]
                %235 = vst [vmem:[%s227 + $0x88] sm:$0xff] %v234
                %v236 = vld [vmem:[%s226 + $0x10] sm:$0xff]
                %237 = vst [vmem:[%s227 + $0x10] sm:$0xff] %v236
                %v238 = vld [vmem:[%s226 + $0x110] sm:$0xff]
                %239 = vst [vmem:[%s227 + $0x90] sm:$0xff] %v238
                %v240 = vld [vmem:[%s226 + $0x18] sm:$0xff]
                %241 = vst [vmem:[%s227 + $0x18] sm:$0xff] %v240
                %v242 = vld [vmem:[%s226 + $0x118] sm:$0xff]
                %243 = vst [vmem:[%s227 + $0x98] sm:$0xff] %v242
                %v244 = vld [vmem:[%s226 + $0x20] sm:$0xff]
                %245 = vst [vmem:[%s227 + $0x20] sm:$0xff] %v244
                %v246 = vld [vmem:[%s226 + $0x120] sm:$0xff]
                %247 = vst [vmem:[%s227 + $0xa0] sm:$0xff] %v246
                %v248 = vld [vmem:[%s226 + $0x28] sm:$0xff]
                %249 = vst [vmem:[%s227 + $0x28] sm:$0xff] %v248
                %v250 = vld [vmem:[%s226 + $0x128] sm:$0xff]
                %251 = vst [vmem:[%s227 + $0xa8] sm:$0xff] %v250
                %v252 = vld [vmem:[%s226 + $0x30] sm:$0xff]
                %253 = vst [vmem:[%s227 + $0x30] sm:$0xff] %v252
                %v254 = vld [vmem:[%s226 + $0x130] sm:$0xff]
                %255 = vst [vmem:[%s227 + $0xb0] sm:$0xff] %v254
                %v256 = vld [vmem:[%s226 + $0x38] sm:$0xff]
                %257 = vst [vmem:[%s227 + $0x38] sm:$0xff] %v256
                %v258 = vld [vmem:[%s226 + $0x138] sm:$0xff]
                %259 = vst [vmem:[%s227 + $0xb8] sm:$0xff] %v258
                %v260 = vld [vmem:[%s226 + $0x40] sm:$0xff]
                %261 = vst [vmem:[%s227 + $0x40] sm:$0xff] %v260
                %v262 = vld [vmem:[%s226 + $0x140] sm:$0xff]
                %263 = vst [vmem:[%s227 + $0xc0] sm:$0xff] %v262
                %v264 = vld [vmem:[%s226 + $0x48] sm:$0xff]
                %265 = vst [vmem:[%s227 + $0x48] sm:$0xff] %v264
                %v266 = vld [vmem:[%s226 + $0x148] sm:$0xff]
                %267 = vst [vmem:[%s227 + $0xc8] sm:$0xff] %v266
                %v268 = vld [vmem:[%s226 + $0x50] sm:$0xff]
                %269 = vst [vmem:[%s227 + $0x50] sm:$0xff] %v268
                %v270 = vld [vmem:[%s226 + $0x150] sm:$0xff]
                %271 = vst [vmem:[%s227 + $0xd0] sm:$0xff] %v270
                %v272 = vld [vmem:[%s226 + $0x58] sm:$0xff]
                %273 = vst [vmem:[%s227 + $0x58] sm:$0xff] %v272
                %v274 = vld [vmem:[%s226 + $0x158] sm:$0xff]
                %275 = vst [vmem:[%s227 + $0xd8] sm:$0xff] %v274
                %v276 = vld [vmem:[%s226 + $0x60] sm:$0xff]
                %277 = vst [vmem:[%s227 + $0x60] sm:$0xff] %v276
                %v278 = vld [vmem:[%s226 + $0x160] sm:$0xff]
                %279 = vst [vmem:[%s227 + $0xe0] sm:$0xff] %v278
                %v280 = vld [vmem:[%s226 + $0x68] sm:$0xff]
                %281 = vst [vmem:[%s227 + $0x68] sm:$0xff] %v280
                %v282 = vld [vmem:[%s226 + $0x168] sm:$0xff]
                %283 = vst [vmem:[%s227 + $0xe8] sm:$0xff] %v282
                %v284 = vld [vmem:[%s226 + $0x70] sm:$0xff]
                %285 = vst [vmem:[%s227 + $0x70] sm:$0xff] %v284
                %v286 = vld [vmem:[%s226 + $0x170] sm:$0xff]
                %287 = vst [vmem:[%s227 + $0xf0] sm:$0xff] %v286
                %v288 = vld [vmem:[%s226 + $0x78] sm:$0xff]
                %289 = vst [vmem:[%s227 + $0x78] sm:$0xff] %v288
                %v290 = vld [vmem:[%s226 + $0x178] sm:$0xff]
                %291 = vst [vmem:[%s227 + $0xf8] sm:$0xff] %v290
                %s292 = sadd.s32 1, %s225
                %p293 = scmp.ge.s32.totalorder %s292, %s218
                %s294 = scalar_select %p293, 0, %s292
                %s295 = smul.u32 %s294, 512
                %s296 = smul.u32 %s294, 256
                %s297 = scalar_lea.vmem %s212, %s295
                %s298 = scalar_lea.vmem %s198, %s296 [#allocation3]
              $region49: #{ft_net_se_head.1} parent=43 // loop_footer
                %s222 = sadd.s32 %s220, 1
              $region50: #{ft_net_se_head.1} parent=43 // loop_footer_branch
                %219 = sbr.rel target = $region46
              $region51: #{ft_net_se_head.1} parent=43 // loop_exit
                _
              %s299 = sshrl.u32 %s203, 1
              %s300 = sand.u32 %s203, 1
              %s301 = smul.u32 %s299, 2
              %s302 = smul.u32 256, %s301
              %s303 = scalar_lea.vmem %s212, %s302
              %s304 = smul.u32 128, %s301
              %s305 = scalar_lea.vmem %s198, %s304 [#allocation3]
              // While loop
              $region52: #{ft_net_se_head.1} parent=43 // loop_pre_header
                _
              $region53: #{ft_net_se_head.1} parent=43 // loop_header
                %s307 = sphi 0, %s309
                %p308 = scmp.ge.s32.totalorder %s307, %s300
                %s312 = sphi 0, %s349
                %s313 = sphi %s303, %s352
                %s314 = sphi %s305, %s353
              $region54: #{ft_net_se_head.1} parent=43 // loop_header_branch
                %311 = sbr.rel (%p308) target = $region58
              $region55: #{ft_net_se_head.1} parent=43 // loop_body
                %v315 = vld [vmem:[%s313] sm:$0xff]
                %316 = vst [vmem:[%s314] sm:$0xff] %v315
                %v317 = vld [vmem:[%s313 + $0x8] sm:$0xff]
                %318 = vst [vmem:[%s314 + $0x8] sm:$0xff] %v317
                %v319 = vld [vmem:[%s313 + $0x10] sm:$0xff]
                %320 = vst [vmem:[%s314 + $0x10] sm:$0xff] %v319
                %v321 = vld [vmem:[%s313 + $0x18] sm:$0xff]
                %322 = vst [vmem:[%s314 + $0x18] sm:$0xff] %v321
                %v323 = vld [vmem:[%s313 + $0x20] sm:$0xff]
                %324 = vst [vmem:[%s314 + $0x20] sm:$0xff] %v323
                %v325 = vld [vmem:[%s313 + $0x28] sm:$0xff]
                %326 = vst [vmem:[%s314 + $0x28] sm:$0xff] %v325
                %v327 = vld [vmem:[%s313 + $0x30] sm:$0xff]
                %328 = vst [vmem:[%s314 + $0x30] sm:$0xff] %v327
                %v329 = vld [vmem:[%s313 + $0x38] sm:$0xff]
                %330 = vst [vmem:[%s314 + $0x38] sm:$0xff] %v329
                %v331 = vld [vmem:[%s313 + $0x40] sm:$0xff]
                %332 = vst [vmem:[%s314 + $0x40] sm:$0xff] %v331
                %v333 = vld [vmem:[%s313 + $0x48] sm:$0xff]
                %334 = vst [vmem:[%s314 + $0x48] sm:$0xff] %v333
                %v335 = vld [vmem:[%s313 + $0x50] sm:$0xff]
                %336 = vst [vmem:[%s314 + $0x50] sm:$0xff] %v335
                %v337 = vld [vmem:[%s313 + $0x58] sm:$0xff]
                %338 = vst [vmem:[%s314 + $0x58] sm:$0xff] %v337
                %v339 = vld [vmem:[%s313 + $0x60] sm:$0xff]
                %340 = vst [vmem:[%s314 + $0x60] sm:$0xff] %v339
                %v341 = vld [vmem:[%s313 + $0x68] sm:$0xff]
                %342 = vst [vmem:[%s314 + $0x68] sm:$0xff] %v341
                %v343 = vld [vmem:[%s313 + $0x70] sm:$0xff]
                %344 = vst [vmem:[%s314 + $0x70] sm:$0xff] %v343
                %v345 = vld [vmem:[%s313 + $0x78] sm:$0xff]
                %346 = vst [vmem:[%s314 + $0x78] sm:$0xff] %v345
                %s347 = sadd.s32 1, %s312
                %p348 = scmp.ge.s32.totalorder %s347, %s300
                %s349 = scalar_select %p348, 0, %s347
                %s350 = smul.u32 %s349, 256
                %s351 = smul.u32 %s349, 128
                %s352 = scalar_lea.vmem %s303, %s350
                %s353 = scalar_lea.vmem %s305, %s351 [#allocation3]
              $region56: #{ft_net_se_head.1} parent=43 // loop_footer
                %s309 = sadd.s32 %s307, 1
              $region57: #{ft_net_se_head.1} parent=43 // loop_footer_branch
                %306 = sbr.rel target = $region53
              $region58: #{ft_net_se_head.1} parent=43 // loop_exit
                _
            $region44: #{ft_net_se_head.1} parent=39 // pred_fallthru
              _
            // Predicated region
            $region59: #{ft_net_se_head.1} parent=39 // pred_check
              _
            $region60: #{ft_net_se_head.1} parent=39 // pred_check_branch
              %355 = sbr.rel target = $region62
            $region61: #{ft_net_se_head.1} parent=39 // pred_region
              _
            $region62: #{ft_net_se_head.1} parent=39 // pred_fallthru
              _
          $region40: #{ft_net_se_head.1} parent=35 // pred_fallthru
            _
          %356 = vnop
        $region36: #{ft_net_se_head.1} parent=31 // pred_fallthru
          _
      $region32: #{ft_net_se_head.1} parent=5 // pred_fallthru
        _
      %p357 = scmp.le.s32.totalorder 1, %s11
      %p358 = scmp.lt.s32.totalorder %s11, 5
      %p359 = pnand %p357, %p358
      %p360 = pneg %p359
      // Predicated region
      $region63: #{ft_net_se_head.1} parent=5 // pred_check
        _
      $region64: #{ft_net_se_head.1} parent=5 // pred_check_branch
        %362 = sbr.rel (%p359) target = $region66
      $region65: #{ft_net_se_head.1} parent=5 // pred_region
        %s363 = ssub.s32 %s11, 1
        %s364 = sand.u32 %s38, 1
        %s365 = sand.u32 %s38, 1
        %s366 = smul.addr %s365, 2048
        %s367 = scalar_lea.vmem [#allocation3], %s366
        // Predicated region
        $region67: #{ft_net_se_head.1} parent=65 // pred_check
          %p368 = pneg %p51
        $region68: #{ft_net_se_head.1} parent=65 // pred_check_branch
          %370 = sbr.rel (%p368) target = $region70
        $region69: #{ft_net_se_head.1} parent=65 // pred_region
          _
        $region70: #{ft_net_se_head.1} parent=65 // pred_fallthru
          _
        %s371 = sand.u32 %s38, 1
        %s372 = sand.u32 %s38, 1
        %s373 = smul.addr %s372, 2048
        %s374 = scalar_lea.vmem [#allocation3], %s373
        %p375 = pneg %p51
        %p376 = pneg %p48
        %p377 = pneg %p72
        %p378 = pneg %p69
        %p379 = pneg %p93
        %p380 = pneg %p90
        %p381 = pneg %p114
        %p382 = pneg %p111
        %p383 = pneg %p135
        %p384 = pneg %p132
        %p385 = pneg %p161
        %p386 = pneg %p158
        %s387 = sand.u32 %s148, 1
        %s388 = sand.u32 %s148, 1
        %s389 = smul.addr %s388, 16
        %s390 = scalar_lea.vmem [#allocation4], %s389
        %s391 = smul.u32 16, %s20
        %s392 = smul.u32 2, %s21
        %s393 = ssub.s32 24, %s391
        %p394 = scmp.lt.s32.totalorder %s393, 16
        %s395 = scalar_select %p394, %s393, 16
        %s396 = smul.u32 4, %s395
        %s397 = smul.u32 %s396, 2
        %s398 = smul.u32 %s397, 16
        %s399 = smul.u32 2, %s20
        %s400 = ssub.s32 3, %s399
        %p401 = scmp.lt.s32.totalorder %s400, 2
        %s402 = scalar_select %p401, %s400, 2
        %s403 = smul.u32 8, %s402
        %p405 = scmp.eq.s32.totalorder %s21, 0
        // Predicated region
        $region71: #{ft_net_se_head.1} parent=65 // pred_check
          %p406 = pneg %p405
        $region72: #{ft_net_se_head.1} parent=65 // pred_check_branch
          %408 = sbr.rel (%p406) target = $region74
        $region73: #{ft_net_se_head.1} parent=65 // pred_region
          %409 = vst [vmem:[#allocation2] sm:$0xff] 0.0
          %410 = vst [vmem:[#allocation2 + $0x8] sm:$0xff] 0.0
          %411 = vst [vmem:[#allocation2 + $0x10] sm:$0xff] 0.0
          %412 = vst [vmem:[#allocation2 + $0x18] sm:$0xff] 0.0
          %413 = vst [vmem:[#allocation2 + $0x20] sm:$0xff] 0.0
          %414 = vst [vmem:[#allocation2 + $0x28] sm:$0xff] 0.0
          %415 = vst [vmem:[#allocation2 + $0x30] sm:$0xff] 0.0
          %416 = vst [vmem:[#allocation2 + $0x38] sm:$0xff] 0.0
          %417 = vst [vmem:[#allocation2 + $0x40] sm:$0xff] 0.0
          %418 = vst [vmem:[#allocation2 + $0x48] sm:$0xff] 0.0
          %419 = vst [vmem:[#allocation2 + $0x50] sm:$0xff] 0.0
          %420 = vst [vmem:[#allocation2 + $0x58] sm:$0xff] 0.0
          %421 = vst [vmem:[#allocation2 + $0x60] sm:$0xff] 0.0
          %422 = vst [vmem:[#allocation2 + $0x68] sm:$0xff] 0.0
          %423 = vst [vmem:[#allocation2 + $0x70] sm:$0xff] 0.0
          %424 = vst [vmem:[#allocation2 + $0x78] sm:$0xff] 0.0
          %425 = vst [vmem:[#allocation2 + $0x80] sm:$0xff] 0.0
          %426 = vst [vmem:[#allocation2 + $0x88] sm:$0xff] 0.0
          %427 = vst [vmem:[#allocation2 + $0x90] sm:$0xff] 0.0
          %428 = vst [vmem:[#allocation2 + $0x98] sm:$0xff] 0.0
          %429 = vst [vmem:[#allocation2 + $0xa0] sm:$0xff] 0.0
          %430 = vst [vmem:[#allocation2 + $0xa8] sm:$0xff] 0.0
          %431 = vst [vmem:[#allocation2 + $0xb0] sm:$0xff] 0.0
          %432 = vst [vmem:[#allocation2 + $0xb8] sm:$0xff] 0.0
          %433 = vst [vmem:[#allocation2 + $0xc0] sm:$0xff] 0.0
          %434 = vst [vmem:[#allocation2 + $0xc8] sm:$0xff] 0.0
          %435 = vst [vmem:[#allocation2 + $0xd0] sm:$0xff] 0.0
          %436 = vst [vmem:[#allocation2 + $0xd8] sm:$0xff] 0.0
          %437 = vst [vmem:[#allocation2 + $0xe0] sm:$0xff] 0.0
          %438 = vst [vmem:[#allocation2 + $0xe8] sm:$0xff] 0.0
          %439 = vst [vmem:[#allocation2 + $0xf0] sm:$0xff] 0.0
          %440 = vst [vmem:[#allocation2 + $0xf8] sm:$0xff] 0.0
        $region74: #{ft_net_se_head.1} parent=65 // pred_fallthru
          _
        %v441 = vld [vmem:[%s367] sm:$0xff]
        %v442 = vld [vmem:[%s367 + $0x8] sm:$0xff]
        %v443 = vld [vmem:[%s367 + $0x10] sm:$0xff]
        %v444 = vld [vmem:[%s367 + $0x18] sm:$0xff]
        %v445 = vld [vmem:[%s367 + $0x20] sm:$0xff]
        %v446 = vld [vmem:[%s367 + $0x28] sm:$0xff]
        %v447 = vld [vmem:[%s367 + $0x30] sm:$0xff]
        %v448 = vld [vmem:[%s367 + $0x38] sm:$0xff]
        %v449 = vld [vmem:[%s367 + $0x40] sm:$0xff]
        %v450 = vld [vmem:[%s367 + $0x48] sm:$0xff]
        %v451 = vld [vmem:[%s367 + $0x50] sm:$0xff]
        %v452 = vld [vmem:[%s367 + $0x58] sm:$0xff]
        %v453 = vld [vmem:[%s367 + $0x60] sm:$0xff]
        %v454 = vld [vmem:[%s367 + $0x68] sm:$0xff]
        %v455 = vld [vmem:[%s367 + $0x70] sm:$0xff]
        %v456 = vld [vmem:[%s367 + $0x78] sm:$0xff]
        %v457 = vld [vmem:[%s367 + $0x80] sm:$0xff]
        %v458 = vld [vmem:[%s367 + $0x88] sm:$0xff]
        %v459 = vld [vmem:[%s367 + $0x90] sm:$0xff]
        %v460 = vld [vmem:[%s367 + $0x98] sm:$0xff]
        %v461 = vld [vmem:[%s367 + $0xa0] sm:$0xff]
        %v462 = vld [vmem:[%s367 + $0xa8] sm:$0xff]
        %v463 = vld [vmem:[%s367 + $0xb0] sm:$0xff]
        %v464 = vld [vmem:[%s367 + $0xb8] sm:$0xff]
        %v465 = vld [vmem:[%s367 + $0xc0] sm:$0xff]
        %v466 = vld [vmem:[%s367 + $0xc8] sm:$0xff]
        %v467 = vld [vmem:[%s367 + $0xd0] sm:$0xff]
        %v468 = vld [vmem:[%s367 + $0xd8] sm:$0xff]
        %v469 = vld [vmem:[%s367 + $0xe0] sm:$0xff]
        %v470 = vld [vmem:[%s367 + $0xe8] sm:$0xff]
        %v471 = vld [vmem:[%s367 + $0xf0] sm:$0xff]
        %v472 = vld [vmem:[%s367 + $0xf8] sm:$0xff]
        %v473 = vld [vmem:[%s367 + $0x100] sm:$0xff]
        %v474 = vld [vmem:[%s367 + $0x108] sm:$0xff]
        %v475 = vld [vmem:[%s367 + $0x110] sm:$0xff]
        %v476 = vld [vmem:[%s367 + $0x118] sm:$0xff]
        %v477 = vld [vmem:[%s367 + $0x120] sm:$0xff]
        %v478 = vld [vmem:[%s367 + $0x128] sm:$0xff]
        %v479 = vld [vmem:[%s367 + $0x130] sm:$0xff]
        %v480 = vld [vmem:[%s367 + $0x138] sm:$0xff]
        %v481 = vld [vmem:[%s367 + $0x140] sm:$0xff]
        %v482 = vld [vmem:[%s367 + $0x148] sm:$0xff]
        %v483 = vld [vmem:[%s367 + $0x150] sm:$0xff]
        %v484 = vld [vmem:[%s367 + $0x158] sm:$0xff]
        %v485 = vld [vmem:[%s367 + $0x160] sm:$0xff]
        %v486 = vld [vmem:[%s367 + $0x168] sm:$0xff]
        %v487 = vld [vmem:[%s367 + $0x170] sm:$0xff]
        %v488 = vld [vmem:[%s367 + $0x178] sm:$0xff]
        %v489 = vld [vmem:[%s367 + $0x180] sm:$0xff]
        %v490 = vld [vmem:[%s367 + $0x188] sm:$0xff]
        %v491 = vld [vmem:[%s367 + $0x190] sm:$0xff]
        %v492 = vld [vmem:[%s367 + $0x198] sm:$0xff]
        %v493 = vld [vmem:[%s367 + $0x1a0] sm:$0xff]
        %v494 = vld [vmem:[%s367 + $0x1a8] sm:$0xff]
        %v495 = vld [vmem:[%s367 + $0x1b0] sm:$0xff]
        %v496 = vld [vmem:[%s367 + $0x1b8] sm:$0xff]
        %v497 = vld [vmem:[%s367 + $0x1c0] sm:$0xff]
        %v498 = vld [vmem:[%s367 + $0x1c8] sm:$0xff]
        %v499 = vld [vmem:[%s367 + $0x1d0] sm:$0xff]
        %v500 = vld [vmem:[%s367 + $0x1d8] sm:$0xff]
        %v501 = vld [vmem:[%s367 + $0x1e0] sm:$0xff]
        %v502 = vld [vmem:[%s367 + $0x1e8] sm:$0xff]
        %v503 = vld [vmem:[%s367 + $0x1f0] sm:$0xff]
        %v504 = vld [vmem:[%s367 + $0x1f8] sm:$0xff]
        %v505 = vld [vmem:[%s367 + $0x200] sm:$0xff]
        %v506 = vld [vmem:[%s367 + $0x208] sm:$0xff]
        %v507 = vld [vmem:[%s367 + $0x210] sm:$0xff]
        %v508 = vld [vmem:[%s367 + $0x218] sm:$0xff]
        %v509 = vld [vmem:[%s367 + $0x220] sm:$0xff]
        %v510 = vld [vmem:[%s367 + $0x228] sm:$0xff]
        %v511 = vld [vmem:[%s367 + $0x230] sm:$0xff]
        %v512 = vld [vmem:[%s367 + $0x238] sm:$0xff]
        %v513 = vld [vmem:[%s367 + $0x240] sm:$0xff]
        %v514 = vld [vmem:[%s367 + $0x248] sm:$0xff]
        %v515 = vld [vmem:[%s367 + $0x250] sm:$0xff]
        %v516 = vld [vmem:[%s367 + $0x258] sm:$0xff]
        %v517 = vld [vmem:[%s367 + $0x260] sm:$0xff]
        %v518 = vld [vmem:[%s367 + $0x268] sm:$0xff]
        %v519 = vld [vmem:[%s367 + $0x270] sm:$0xff]
        %v520 = vld [vmem:[%s367 + $0x278] sm:$0xff]
        %v521 = vld [vmem:[%s367 + $0x280] sm:$0xff]
        %v522 = vld [vmem:[%s367 + $0x288] sm:$0xff]
        %v523 = vld [vmem:[%s367 + $0x290] sm:$0xff]
        %v524 = vld [vmem:[%s367 + $0x298] sm:$0xff]
        %v525 = vld [vmem:[%s367 + $0x2a0] sm:$0xff]
        %v526 = vld [vmem:[%s367 + $0x2a8] sm:$0xff]
        %v527 = vld [vmem:[%s367 + $0x2b0] sm:$0xff]
        %v528 = vld [vmem:[%s367 + $0x2b8] sm:$0xff]
        %v529 = vld [vmem:[%s367 + $0x2c0] sm:$0xff]
        %v530 = vld [vmem:[%s367 + $0x2c8] sm:$0xff]
        %v531 = vld [vmem:[%s367 + $0x2d0] sm:$0xff]
        %v532 = vld [vmem:[%s367 + $0x2d8] sm:$0xff]
        %v533 = vld [vmem:[%s367 + $0x2e0] sm:$0xff]
        %v534 = vld [vmem:[%s367 + $0x2e8] sm:$0xff]
        %v535 = vld [vmem:[%s367 + $0x2f0] sm:$0xff]
        %v536 = vld [vmem:[%s367 + $0x2f8] sm:$0xff]
        %v537 = vld [vmem:[%s367 + $0x300] sm:$0xff]
        %v538 = vld [vmem:[%s367 + $0x308] sm:$0xff]
        %v539 = vld [vmem:[%s367 + $0x310] sm:$0xff]
        %v540 = vld [vmem:[%s367 + $0x318] sm:$0xff]
        %v541 = vld [vmem:[%s367 + $0x320] sm:$0xff]
        %v542 = vld [vmem:[%s367 + $0x328] sm:$0xff]
        %v543 = vld [vmem:[%s367 + $0x330] sm:$0xff]
        %v544 = vld [vmem:[%s367 + $0x338] sm:$0xff]
        %v545 = vld [vmem:[%s367 + $0x340] sm:$0xff]
        %v546 = vld [vmem:[%s367 + $0x348] sm:$0xff]
        %v547 = vld [vmem:[%s367 + $0x350] sm:$0xff]
        %v548 = vld [vmem:[%s367 + $0x358] sm:$0xff]
        %v549 = vld [vmem:[%s367 + $0x360] sm:$0xff]
        %v550 = vld [vmem:[%s367 + $0x368] sm:$0xff]
        %v551 = vld [vmem:[%s367 + $0x370] sm:$0xff]
        %v552 = vld [vmem:[%s367 + $0x378] sm:$0xff]
        %v553 = vld [vmem:[%s367 + $0x380] sm:$0xff]
        %v554 = vld [vmem:[%s367 + $0x388] sm:$0xff]
        %v555 = vld [vmem:[%s367 + $0x390] sm:$0xff]
        %v556 = vld [vmem:[%s367 + $0x398] sm:$0xff]
        %v557 = vld [vmem:[%s367 + $0x3a0] sm:$0xff]
        %v558 = vld [vmem:[%s367 + $0x3a8] sm:$0xff]
        %v559 = vld [vmem:[%s367 + $0x3b0] sm:$0xff]
        %v560 = vld [vmem:[%s367 + $0x3b8] sm:$0xff]
        %v561 = vld [vmem:[%s367 + $0x3c0] sm:$0xff]
        %v562 = vld [vmem:[%s367 + $0x3c8] sm:$0xff]
        %v563 = vld [vmem:[%s367 + $0x3d0] sm:$0xff]
        %v564 = vld [vmem:[%s367 + $0x3d8] sm:$0xff]
        %v565 = vld [vmem:[%s367 + $0x3e0] sm:$0xff]
        %v566 = vld [vmem:[%s367 + $0x3e8] sm:$0xff]
        %v567 = vld [vmem:[%s367 + $0x3f0] sm:$0xff]
        %v568 = vld [vmem:[%s367 + $0x3f8] sm:$0xff]
        %v569 = vld [vmem:[%s367 + $0x400] sm:$0xff]
        %v570 = vld [vmem:[%s367 + $0x408] sm:$0xff]
        %v571 = vld [vmem:[%s367 + $0x410] sm:$0xff]
        %v572 = vld [vmem:[%s367 + $0x418] sm:$0xff]
        %v573 = vld [vmem:[%s367 + $0x420] sm:$0xff]
        %v574 = vld [vmem:[%s367 + $0x428] sm:$0xff]
        %v575 = vld [vmem:[%s367 + $0x430] sm:$0xff]
        %v576 = vld [vmem:[%s367 + $0x438] sm:$0xff]
        %v577 = vld [vmem:[%s367 + $0x440] sm:$0xff]
        %v578 = vld [vmem:[%s367 + $0x448] sm:$0xff]
        %v579 = vld [vmem:[%s367 + $0x450] sm:$0xff]
        %v580 = vld [vmem:[%s367 + $0x458] sm:$0xff]
        %v581 = vld [vmem:[%s367 + $0x460] sm:$0xff]
        %v582 = vld [vmem:[%s367 + $0x468] sm:$0xff]
        %v583 = vld [vmem:[%s367 + $0x470] sm:$0xff]
        %v584 = vld [vmem:[%s367 + $0x478] sm:$0xff]
        %v585 = vld [vmem:[%s367 + $0x480] sm:$0xff]
        %v586 = vld [vmem:[%s367 + $0x488] sm:$0xff]
        %v587 = vld [vmem:[%s367 + $0x490] sm:$0xff]
        %v588 = vld [vmem:[%s367 + $0x498] sm:$0xff]
        %v589 = vld [vmem:[%s367 + $0x4a0] sm:$0xff]
        %v590 = vld [vmem:[%s367 + $0x4a8] sm:$0xff]
        %v591 = vld [vmem:[%s367 + $0x4b0] sm:$0xff]
        %v592 = vld [vmem:[%s367 + $0x4b8] sm:$0xff]
        %v593 = vld [vmem:[%s367 + $0x4c0] sm:$0xff]
        %v594 = vld [vmem:[%s367 + $0x4c8] sm:$0xff]
        %v595 = vld [vmem:[%s367 + $0x4d0] sm:$0xff]
        %v596 = vld [vmem:[%s367 + $0x4d8] sm:$0xff]
        %v597 = vld [vmem:[%s367 + $0x4e0] sm:$0xff]
        %v598 = vld [vmem:[%s367 + $0x4e8] sm:$0xff]
        %v599 = vld [vmem:[%s367 + $0x4f0] sm:$0xff]
        %v600 = vld [vmem:[%s367 + $0x4f8] sm:$0xff]
        %v601 = vld [vmem:[%s367 + $0x500] sm:$0xff]
        %v602 = vld [vmem:[%s367 + $0x508] sm:$0xff]
        %v603 = vld [vmem:[%s367 + $0x510] sm:$0xff]
        %v604 = vld [vmem:[%s367 + $0x518] sm:$0xff]
        %v605 = vld [vmem:[%s367 + $0x520] sm:$0xff]
        %v606 = vld [vmem:[%s367 + $0x528] sm:$0xff]
        %v607 = vld [vmem:[%s367 + $0x530] sm:$0xff]
        %v608 = vld [vmem:[%s367 + $0x538] sm:$0xff]
        %v609 = vld [vmem:[%s367 + $0x540] sm:$0xff]
        %v610 = vld [vmem:[%s367 + $0x548] sm:$0xff]
        %v611 = vld [vmem:[%s367 + $0x550] sm:$0xff]
        %v612 = vld [vmem:[%s367 + $0x558] sm:$0xff]
        %v613 = vld [vmem:[%s367 + $0x560] sm:$0xff]
        %v614 = vld [vmem:[%s367 + $0x568] sm:$0xff]
        %v615 = vld [vmem:[%s367 + $0x570] sm:$0xff]
        %v616 = vld [vmem:[%s367 + $0x578] sm:$0xff]
        %v617 = vld [vmem:[%s367 + $0x580] sm:$0xff]
        %v618 = vld [vmem:[%s367 + $0x588] sm:$0xff]
        %v619 = vld [vmem:[%s367 + $0x590] sm:$0xff]
        %v620 = vld [vmem:[%s367 + $0x598] sm:$0xff]
        %v621 = vld [vmem:[%s367 + $0x5a0] sm:$0xff]
        %v622 = vld [vmem:[%s367 + $0x5a8] sm:$0xff]
        %v623 = vld [vmem:[%s367 + $0x5b0] sm:$0xff]
        %v624 = vld [vmem:[%s367 + $0x5b8] sm:$0xff]
        %v625 = vld [vmem:[%s367 + $0x5c0] sm:$0xff]
        %v626 = vld [vmem:[%s367 + $0x5c8] sm:$0xff]
        %v627 = vld [vmem:[%s367 + $0x5d0] sm:$0xff]
        %v628 = vld [vmem:[%s367 + $0x5d8] sm:$0xff]
        %v629 = vld [vmem:[%s367 + $0x5e0] sm:$0xff]
        %v630 = vld [vmem:[%s367 + $0x5e8] sm:$0xff]
        %v631 = vld [vmem:[%s367 + $0x5f0] sm:$0xff]
        %v632 = vld [vmem:[%s367 + $0x5f8] sm:$0xff]
        %v633 = vld [vmem:[%s367 + $0x600] sm:$0xff]
        %v634 = vld [vmem:[%s367 + $0x608] sm:$0xff]
        %v635 = vld [vmem:[%s367 + $0x610] sm:$0xff]
        %v636 = vld [vmem:[%s367 + $0x618] sm:$0xff]
        %v637 = vld [vmem:[%s367 + $0x620] sm:$0xff]
        %v638 = vld [vmem:[%s367 + $0x628] sm:$0xff]
        %v639 = vld [vmem:[%s367 + $0x630] sm:$0xff]
        %v640 = vld [vmem:[%s367 + $0x638] sm:$0xff]
        %v641 = vld [vmem:[%s367 + $0x640] sm:$0xff]
        %v642 = vld [vmem:[%s367 + $0x648] sm:$0xff]
        %v643 = vld [vmem:[%s367 + $0x650] sm:$0xff]
        %v644 = vld [vmem:[%s367 + $0x658] sm:$0xff]
        %v645 = vld [vmem:[%s367 + $0x660] sm:$0xff]
        %v646 = vld [vmem:[%s367 + $0x668] sm:$0xff]
        %v647 = vld [vmem:[%s367 + $0x670] sm:$0xff]
        %v648 = vld [vmem:[%s367 + $0x678] sm:$0xff]
        %v649 = vld [vmem:[%s367 + $0x680] sm:$0xff]
        %v650 = vld [vmem:[%s367 + $0x688] sm:$0xff]
        %v651 = vld [vmem:[%s367 + $0x690] sm:$0xff]
        %v652 = vld [vmem:[%s367 + $0x698] sm:$0xff]
        %v653 = vld [vmem:[%s367 + $0x6a0] sm:$0xff]
        %v654 = vld [vmem:[%s367 + $0x6a8] sm:$0xff]
        %v655 = vld [vmem:[%s367 + $0x6b0] sm:$0xff]
        %v656 = vld [vmem:[%s367 + $0x6b8] sm:$0xff]
        %v657 = vld [vmem:[%s367 + $0x6c0] sm:$0xff]
        %v658 = vld [vmem:[%s367 + $0x6c8] sm:$0xff]
        %v659 = vld [vmem:[%s367 + $0x6d0] sm:$0xff]
        %v660 = vld [vmem:[%s367 + $0x6d8] sm:$0xff]
        %v661 = vld [vmem:[%s367 + $0x6e0] sm:$0xff]
        %v662 = vld [vmem:[%s367 + $0x6e8] sm:$0xff]
        %v663 = vld [vmem:[%s367 + $0x6f0] sm:$0xff]
        %v664 = vld [vmem:[%s367 + $0x6f8] sm:$0xff]
        %v665 = vld [vmem:[%s367 + $0x700] sm:$0xff]
        %v666 = vld [vmem:[%s367 + $0x708] sm:$0xff]
        %v667 = vld [vmem:[%s367 + $0x710] sm:$0xff]
        %v668 = vld [vmem:[%s367 + $0x718] sm:$0xff]
        %v669 = vld [vmem:[%s367 + $0x720] sm:$0xff]
        %v670 = vld [vmem:[%s367 + $0x728] sm:$0xff]
        %v671 = vld [vmem:[%s367 + $0x730] sm:$0xff]
        %v672 = vld [vmem:[%s367 + $0x738] sm:$0xff]
        %v673 = vld [vmem:[%s367 + $0x740] sm:$0xff]
        %v674 = vld [vmem:[%s367 + $0x748] sm:$0xff]
        %v675 = vld [vmem:[%s367 + $0x750] sm:$0xff]
        %v676 = vld [vmem:[%s367 + $0x758] sm:$0xff]
        %v677 = vld [vmem:[%s367 + $0x760] sm:$0xff]
        %v678 = vld [vmem:[%s367 + $0x768] sm:$0xff]
        %v679 = vld [vmem:[%s367 + $0x770] sm:$0xff]
        %v680 = vld [vmem:[%s367 + $0x778] sm:$0xff]
        %v681 = vld [vmem:[%s367 + $0x780] sm:$0xff]
        %v682 = vld [vmem:[%s367 + $0x788] sm:$0xff]
        %v683 = vld [vmem:[%s367 + $0x790] sm:$0xff]
        %v684 = vld [vmem:[%s367 + $0x798] sm:$0xff]
        %v685 = vld [vmem:[%s367 + $0x7a0] sm:$0xff]
        %v686 = vld [vmem:[%s367 + $0x7a8] sm:$0xff]
        %v687 = vld [vmem:[%s367 + $0x7b0] sm:$0xff]
        %v688 = vld [vmem:[%s367 + $0x7b8] sm:$0xff]
        %v689 = vld [vmem:[%s367 + $0x7c0] sm:$0xff]
        %v690 = vld [vmem:[%s367 + $0x7c8] sm:$0xff]
        %v691 = vld [vmem:[%s367 + $0x7d0] sm:$0xff]
        %v692 = vld [vmem:[%s367 + $0x7d8] sm:$0xff]
        %v693 = vld [vmem:[%s367 + $0x7e0] sm:$0xff]
        %v694 = vld [vmem:[%s367 + $0x7e8] sm:$0xff]
        %v695 = vld [vmem:[%s367 + $0x7f0] sm:$0xff]
        %v696 = vld [vmem:[%s367 + $0x7f8] sm:$0xff]
        %v697 = vlaneseq
        %v698 = vshrl.u32 %v697, 7
        %v699 = vadd.s32 %v698, 8
        %s700 = smul.u32 %s21, 16
        %v701 = vstv %s700
        %v702 = vadd.s32 %v701, %v698
        %v703 = vadd.s32 %v701, %v699
        %vm704 = vcmp.lt.s32.totalorder %v702, 25
        %vm705 = vcmp.lt.s32.totalorder %v703, 25
        %v706 = vsel %vm704, 1, 0
        %v707 = vsel %vm705, 1, 0
        %vm708 = vcmp.eq.s32.totalorder %v706, 1
        %vm709 = vcmp.eq.s32.totalorder %v707, 1
        %vm710 = vmpackc.low %vm708, %vm708
        %vm711 = vmpackc.low %vm709, %vm709
        %v712 = vsel %vm710, %v441, 0
        %v713 = vsel %vm710, %v442, 0
        %v714 = vsel %vm710, %v443, 0
        %v715 = vsel %vm710, %v444, 0
        %v716 = vsel %vm710, %v445, 0
        %v717 = vsel %vm710, %v446, 0
        %v718 = vsel %vm710, %v447, 0
        %v719 = vsel %vm710, %v448, 0
        %v720 = vsel %vm711, %v449, 0
        %v721 = vsel %vm711, %v450, 0
        %v722 = vsel %vm711, %v451, 0
        %v723 = vsel %vm711, %v452, 0
        %v724 = vsel %vm711, %v453, 0
        %v725 = vsel %vm711, %v454, 0
        %v726 = vsel %vm711, %v455, 0
        %v727 = vsel %vm711, %v456, 0
        %v728 = vsel %vm710, %v457, 0
        %v729 = vsel %vm710, %v458, 0
        %v730 = vsel %vm710, %v459, 0
        %v731 = vsel %vm710, %v460, 0
        %v732 = vsel %vm710, %v461, 0
        %v733 = vsel %vm710, %v462, 0
        %v734 = vsel %vm710, %v463, 0
        %v735 = vsel %vm710, %v464, 0
        %v736 = vsel %vm711, %v465, 0
        %v737 = vsel %vm711, %v466, 0
        %v738 = vsel %vm711, %v467, 0
        %v739 = vsel %vm711, %v468, 0
        %v740 = vsel %vm711, %v469, 0
        %v741 = vsel %vm711, %v470, 0
        %v742 = vsel %vm711, %v471, 0
        %v743 = vsel %vm711, %v472, 0
        %v744 = vsel %vm710, %v473, 0
        %v745 = vsel %vm710, %v474, 0
        %v746 = vsel %vm710, %v475, 0
        %v747 = vsel %vm710, %v476, 0
        %v748 = vsel %vm710, %v477, 0
        %v749 = vsel %vm710, %v478, 0
        %v750 = vsel %vm710, %v479, 0
        %v751 = vsel %vm710, %v480, 0
        %v752 = vsel %vm711, %v481, 0
        %v753 = vsel %vm711, %v482, 0
        %v754 = vsel %vm711, %v483, 0
        %v755 = vsel %vm711, %v484, 0
        %v756 = vsel %vm711, %v485, 0
        %v757 = vsel %vm711, %v486, 0
        %v758 = vsel %vm711, %v487, 0
        %v759 = vsel %vm711, %v488, 0
        %v760 = vsel %vm710, %v489, 0
        %v761 = vsel %vm710, %v490, 0
        %v762 = vsel %vm710, %v491, 0
        %v763 = vsel %vm710, %v492, 0
        %v764 = vsel %vm710, %v493, 0
        %v765 = vsel %vm710, %v494, 0
        %v766 = vsel %vm710, %v495, 0
        %v767 = vsel %vm710, %v496, 0
        %v768 = vsel %vm711, %v497, 0
        %v769 = vsel %vm711, %v498, 0
        %v770 = vsel %vm711, %v499, 0
        %v771 = vsel %vm711, %v500, 0
        %v772 = vsel %vm711, %v501, 0
        %v773 = vsel %vm711, %v502, 0
        %v774 = vsel %vm711, %v503, 0
        %v775 = vsel %vm711, %v504, 0
        %v776 = vsel %vm710, %v505, 0
        %v777 = vsel %vm710, %v506, 0
        %v778 = vsel %vm710, %v507, 0
        %v779 = vsel %vm710, %v508, 0
        %v780 = vsel %vm710, %v509, 0
        %v781 = vsel %vm710, %v510, 0
        %v782 = vsel %vm710, %v511, 0
        %v783 = vsel %vm710, %v512, 0
        %v784 = vsel %vm711, %v513, 0
        %v785 = vsel %vm711, %v514, 0
        %v786 = vsel %vm711, %v515, 0
        %v787 = vsel %vm711, %v516, 0
        %v788 = vsel %vm711, %v517, 0
        %v789 = vsel %vm711, %v518, 0
        %v790 = vsel %vm711, %v519, 0
        %v791 = vsel %vm711, %v520, 0
        %v792 = vsel %vm710, %v521, 0
        %v793 = vsel %vm710, %v522, 0
        %v794 = vsel %vm710, %v523, 0
        %v795 = vsel %vm710, %v524, 0
        %v796 = vsel %vm710, %v525, 0
        %v797 = vsel %vm710, %v526, 0
        %v798 = vsel %vm710, %v527, 0
        %v799 = vsel %vm710, %v528, 0
        %v800 = vsel %vm711, %v529, 0
        %v801 = vsel %vm711, %v530, 0
        %v802 = vsel %vm711, %v531, 0
        %v803 = vsel %vm711, %v532, 0
        %v804 = vsel %vm711, %v533, 0
        %v805 = vsel %vm711, %v534, 0
        %v806 = vsel %vm711, %v535, 0
        %v807 = vsel %vm711, %v536, 0
        %v808 = vsel %vm710, %v537, 0
        %v809 = vsel %vm710, %v538, 0
        %v810 = vsel %vm710, %v539, 0
        %v811 = vsel %vm710, %v540, 0
        %v812 = vsel %vm710, %v541, 0
        %v813 = vsel %vm710, %v542, 0
        %v814 = vsel %vm710, %v543, 0
        %v815 = vsel %vm710, %v544, 0
        %v816 = vsel %vm711, %v545, 0
        %v817 = vsel %vm711, %v546, 0
        %v818 = vsel %vm711, %v547, 0
        %v819 = vsel %vm711, %v548, 0
        %v820 = vsel %vm711, %v549, 0
        %v821 = vsel %vm711, %v550, 0
        %v822 = vsel %vm711, %v551, 0
        %v823 = vsel %vm711, %v552, 0
        %v824 = vsel %vm710, %v553, 0
        %v825 = vsel %vm710, %v554, 0
        %v826 = vsel %vm710, %v555, 0
        %v827 = vsel %vm710, %v556, 0
        %v828 = vsel %vm710, %v557, 0
        %v829 = vsel %vm710, %v558, 0
        %v830 = vsel %vm710, %v559, 0
        %v831 = vsel %vm710, %v560, 0
        %v832 = vsel %vm711, %v561, 0
        %v833 = vsel %vm711, %v562, 0
        %v834 = vsel %vm711, %v563, 0
        %v835 = vsel %vm711, %v564, 0
        %v836 = vsel %vm711, %v565, 0
        %v837 = vsel %vm711, %v566, 0
        %v838 = vsel %vm711, %v567, 0
        %v839 = vsel %vm711, %v568, 0
        %v840 = vsel %vm710, %v569, 0
        %v841 = vsel %vm710, %v570, 0
        %v842 = vsel %vm710, %v571, 0
        %v843 = vsel %vm710, %v572, 0
        %v844 = vsel %vm710, %v573, 0
        %v845 = vsel %vm710, %v574, 0
        %v846 = vsel %vm710, %v575, 0
        %v847 = vsel %vm710, %v576, 0
        %v848 = vsel %vm711, %v577, 0
        %v849 = vsel %vm711, %v578, 0
        %v850 = vsel %vm711, %v579, 0
        %v851 = vsel %vm711, %v580, 0
        %v852 = vsel %vm711, %v581, 0
        %v853 = vsel %vm711, %v582, 0
        %v854 = vsel %vm711, %v583, 0
        %v855 = vsel %vm711, %v584, 0
        %v856 = vsel %vm710, %v585, 0
        %v857 = vsel %vm710, %v586, 0
        %v858 = vsel %vm710, %v587, 0
        %v859 = vsel %vm710, %v588, 0
        %v860 = vsel %vm710, %v589, 0
        %v861 = vsel %vm710, %v590, 0
        %v862 = vsel %vm710, %v591, 0
        %v863 = vsel %vm710, %v592, 0
        %v864 = vsel %vm711, %v593, 0
        %v865 = vsel %vm711, %v594, 0
        %v866 = vsel %vm711, %v595, 0
        %v867 = vsel %vm711, %v596, 0
        %v868 = vsel %vm711, %v597, 0
        %v869 = vsel %vm711, %v598, 0
        %v870 = vsel %vm711, %v599, 0
        %v871 = vsel %vm711, %v600, 0
        %v872 = vsel %vm710, %v601, 0
        %v873 = vsel %vm710, %v602, 0
        %v874 = vsel %vm710, %v603, 0
        %v875 = vsel %vm710, %v604, 0
        %v876 = vsel %vm710, %v605, 0
        %v877 = vsel %vm710, %v606, 0
        %v878 = vsel %vm710, %v607, 0
        %v879 = vsel %vm710, %v608, 0
        %v880 = vsel %vm711, %v609, 0
        %v881 = vsel %vm711, %v610, 0
        %v882 = vsel %vm711, %v611, 0
        %v883 = vsel %vm711, %v612, 0
        %v884 = vsel %vm711, %v613, 0
        %v885 = vsel %vm711, %v614, 0
        %v886 = vsel %vm711, %v615, 0
        %v887 = vsel %vm711, %v616, 0
        %v888 = vsel %vm710, %v617, 0
        %v889 = vsel %vm710, %v618, 0
        %v890 = vsel %vm710, %v619, 0
        %v891 = vsel %vm710, %v620, 0
        %v892 = vsel %vm710, %v621, 0
        %v893 = vsel %vm710, %v622, 0
        %v894 = vsel %vm710, %v623, 0
        %v895 = vsel %vm710, %v624, 0
        %v896 = vsel %vm711, %v625, 0
        %v897 = vsel %vm711, %v626, 0
        %v898 = vsel %vm711, %v627, 0
        %v899 = vsel %vm711, %v628, 0
        %v900 = vsel %vm711, %v629, 0
        %v901 = vsel %vm711, %v630, 0
        %v902 = vsel %vm711, %v631, 0
        %v903 = vsel %vm711, %v632, 0
        %v904 = vsel %vm710, %v633, 0
        %v905 = vsel %vm710, %v634, 0
        %v906 = vsel %vm710, %v635, 0
        %v907 = vsel %vm710, %v636, 0
        %v908 = vsel %vm710, %v637, 0
        %v909 = vsel %vm710, %v638, 0
        %v910 = vsel %vm710, %v639, 0
        %v911 = vsel %vm710, %v640, 0
        %v912 = vsel %vm711, %v641, 0
        %v913 = vsel %vm711, %v642, 0
        %v914 = vsel %vm711, %v643, 0
        %v915 = vsel %vm711, %v644, 0
        %v916 = vsel %vm711, %v645, 0
        %v917 = vsel %vm711, %v646, 0
        %v918 = vsel %vm711, %v647, 0
        %v919 = vsel %vm711, %v648, 0
        %v920 = vsel %vm710, %v649, 0
        %v921 = vsel %vm710, %v650, 0
        %v922 = vsel %vm710, %v651, 0
        %v923 = vsel %vm710, %v652, 0
        %v924 = vsel %vm710, %v653, 0
        %v925 = vsel %vm710, %v654, 0
        %v926 = vsel %vm710, %v655, 0
        %v927 = vsel %vm710, %v656, 0
        %v928 = vsel %vm711, %v657, 0
        %v929 = vsel %vm711, %v658, 0
        %v930 = vsel %vm711, %v659, 0
        %v931 = vsel %vm711, %v660, 0
        %v932 = vsel %vm711, %v661, 0
        %v933 = vsel %vm711, %v662, 0
        %v934 = vsel %vm711, %v663, 0
        %v935 = vsel %vm711, %v664, 0
        %v936 = vsel %vm710, %v665, 0
        %v937 = vsel %vm710, %v666, 0
        %v938 = vsel %vm710, %v667, 0
        %v939 = vsel %vm710, %v668, 0
        %v940 = vsel %vm710, %v669, 0
        %v941 = vsel %vm710, %v670, 0
        %v942 = vsel %vm710, %v671, 0
        %v943 = vsel %vm710, %v672, 0
        %v944 = vsel %vm711, %v673, 0
        %v945 = vsel %vm711, %v674, 0
        %v946 = vsel %vm711, %v675, 0
        %v947 = vsel %vm711, %v676, 0
        %v948 = vsel %vm711, %v677, 0
        %v949 = vsel %vm711, %v678, 0
        %v950 = vsel %vm711, %v679, 0
        %v951 = vsel %vm711, %v680, 0
        %v952 = vsel %vm710, %v681, 0
        %v953 = vsel %vm710, %v682, 0
        %v954 = vsel %vm710, %v683, 0
        %v955 = vsel %vm710, %v684, 0
        %v956 = vsel %vm710, %v685, 0
        %v957 = vsel %vm710, %v686, 0
        %v958 = vsel %vm710, %v687, 0
        %v959 = vsel %vm710, %v688, 0
        %v960 = vsel %vm711, %v689, 0
        %v961 = vsel %vm711, %v690, 0
        %v962 = vsel %vm711, %v691, 0
        %v963 = vsel %vm711, %v692, 0
        %v964 = vsel %vm711, %v693, 0
        %v965 = vsel %vm711, %v694, 0
        %v966 = vsel %vm711, %v695, 0
        %v967 = vsel %vm711, %v696, 0
        %v968 = vld [vmem:[#allocation2] sm:$0xff]
        %v969 = vld [vmem:[#allocation2 + $0x8] sm:$0xff]
        %v970 = vld [vmem:[#allocation2 + $0x10] sm:$0xff]
        %v971 = vld [vmem:[#allocation2 + $0x18] sm:$0xff]
        %v972 = vld [vmem:[#allocation2 + $0x20] sm:$0xff]
        %v973 = vld [vmem:[#allocation2 + $0x28] sm:$0xff]
        %v974 = vld [vmem:[#allocation2 + $0x30] sm:$0xff]
        %v975 = vld [vmem:[#allocation2 + $0x38] sm:$0xff]
        %v976 = vld [vmem:[#allocation2 + $0x40] sm:$0xff]
        %v977 = vld [vmem:[#allocation2 + $0x48] sm:$0xff]
        %v978 = vld [vmem:[#allocation2 + $0x50] sm:$0xff]
        %v979 = vld [vmem:[#allocation2 + $0x58] sm:$0xff]
        %v980 = vld [vmem:[#allocation2 + $0x60] sm:$0xff]
        %v981 = vld [vmem:[#allocation2 + $0x68] sm:$0xff]
        %v982 = vld [vmem:[#allocation2 + $0x70] sm:$0xff]
        %v983 = vld [vmem:[#allocation2 + $0x78] sm:$0xff]
        %v984 = vld [vmem:[#allocation2 + $0x80] sm:$0xff]
        %v985 = vld [vmem:[#allocation2 + $0x88] sm:$0xff]
        %v986 = vld [vmem:[#allocation2 + $0x90] sm:$0xff]
        %v987 = vld [vmem:[#allocation2 + $0x98] sm:$0xff]
        %v988 = vld [vmem:[#allocation2 + $0xa0] sm:$0xff]
        %v989 = vld [vmem:[#allocation2 + $0xa8] sm:$0xff]
        %v990 = vld [vmem:[#allocation2 + $0xb0] sm:$0xff]
        %v991 = vld [vmem:[#allocation2 + $0xb8] sm:$0xff]
        %v992 = vld [vmem:[#allocation2 + $0xc0] sm:$0xff]
        %v993 = vld [vmem:[#allocation2 + $0xc8] sm:$0xff]
        %v994 = vld [vmem:[#allocation2 + $0xd0] sm:$0xff]
        %v995 = vld [vmem:[#allocation2 + $0xd8] sm:$0xff]
        %v996 = vld [vmem:[#allocation2 + $0xe0] sm:$0xff]
        %v997 = vld [vmem:[#allocation2 + $0xe8] sm:$0xff]
        %v998 = vld [vmem:[#allocation2 + $0xf0] sm:$0xff]
        %v999 = vld [vmem:[#allocation2 + $0xf8] sm:$0xff]
        %v1000 = vunpack.c.l.bf16 %v712
        %v1001 = vunpack.c.h.bf16 %v712
        %v1002 = vunpack.c.l.bf16 %v713
        %v1003 = vunpack.c.h.bf16 %v713
        %v1004 = vunpack.c.l.bf16 %v714
        %v1005 = vunpack.c.h.bf16 %v714
        %v1006 = vunpack.c.l.bf16 %v715
        %v1007 = vunpack.c.h.bf16 %v715
        %v1008 = vunpack.c.l.bf16 %v716
        %v1009 = vunpack.c.h.bf16 %v716
        %v1010 = vunpack.c.l.bf16 %v717
        %v1011 = vunpack.c.h.bf16 %v717
        %v1012 = vunpack.c.l.bf16 %v718
        %v1013 = vunpack.c.h.bf16 %v718
        %v1014 = vunpack.c.l.bf16 %v719
        %v1015 = vunpack.c.h.bf16 %v719
        %v1016 = vunpack.c.l.bf16 %v720
        %v1017 = vunpack.c.h.bf16 %v720
        %v1018 = vunpack.c.l.bf16 %v721
        %v1019 = vunpack.c.h.bf16 %v721
        %v1020 = vunpack.c.l.bf16 %v722
        %v1021 = vunpack.c.h.bf16 %v722
        %v1022 = vunpack.c.l.bf16 %v723
        %v1023 = vunpack.c.h.bf16 %v723
        %v1024 = vunpack.c.l.bf16 %v724
        %v1025 = vunpack.c.h.bf16 %v724
        %v1026 = vunpack.c.l.bf16 %v725
        %v1027 = vunpack.c.h.bf16 %v725
        %v1028 = vunpack.c.l.bf16 %v726
        %v1029 = vunpack.c.h.bf16 %v726
        %v1030 = vunpack.c.l.bf16 %v727
        %v1031 = vunpack.c.h.bf16 %v727
        %v1032 = vunpack.c.l.bf16 %v728
        %v1033 = vunpack.c.h.bf16 %v728
        %v1034 = vunpack.c.l.bf16 %v729
        %v1035 = vunpack.c.h.bf16 %v729
        %v1036 = vunpack.c.l.bf16 %v730
        %v1037 = vunpack.c.h.bf16 %v730
        %v1038 = vunpack.c.l.bf16 %v731
        %v1039 = vunpack.c.h.bf16 %v731
        %v1040 = vunpack.c.l.bf16 %v732
        %v1041 = vunpack.c.h.bf16 %v732
        %v1042 = vunpack.c.l.bf16 %v733
        %v1043 = vunpack.c.h.bf16 %v733
        %v1044 = vunpack.c.l.bf16 %v734
        %v1045 = vunpack.c.h.bf16 %v734
        %v1046 = vunpack.c.l.bf16 %v735
        %v1047 = vunpack.c.h.bf16 %v735
        %v1048 = vunpack.c.l.bf16 %v736
        %v1049 = vunpack.c.h.bf16 %v736
        %v1050 = vunpack.c.l.bf16 %v737
        %v1051 = vunpack.c.h.bf16 %v737
        %v1052 = vunpack.c.l.bf16 %v738
        %v1053 = vunpack.c.h.bf16 %v738
        %v1054 = vunpack.c.l.bf16 %v739
        %v1055 = vunpack.c.h.bf16 %v739
        %v1056 = vunpack.c.l.bf16 %v740
        %v1057 = vunpack.c.h.bf16 %v740
        %v1058 = vunpack.c.l.bf16 %v741
        %v1059 = vunpack.c.h.bf16 %v741
        %v1060 = vunpack.c.l.bf16 %v742
        %v1061 = vunpack.c.h.bf16 %v742
        %v1062 = vunpack.c.l.bf16 %v743
        %v1063 = vunpack.c.h.bf16 %v743
        %v1064 = vunpack.c.l.bf16 %v744
        %v1065 = vunpack.c.h.bf16 %v744
        %v1066 = vunpack.c.l.bf16 %v745
        %v1067 = vunpack.c.h.bf16 %v745
        %v1068 = vunpack.c.l.bf16 %v746
        %v1069 = vunpack.c.h.bf16 %v746
        %v1070 = vunpack.c.l.bf16 %v747
        %v1071 = vunpack.c.h.bf16 %v747
        %v1072 = vunpack.c.l.bf16 %v748
        %v1073 = vunpack.c.h.bf16 %v748
        %v1074 = vunpack.c.l.bf16 %v749
        %v1075 = vunpack.c.h.bf16 %v749
        %v1076 = vunpack.c.l.bf16 %v750
        %v1077 = vunpack.c.h.bf16 %v750
        %v1078 = vunpack.c.l.bf16 %v751
        %v1079 = vunpack.c.h.bf16 %v751
        %v1080 = vunpack.c.l.bf16 %v752
        %v1081 = vunpack.c.h.bf16 %v752
        %v1082 = vunpack.c.l.bf16 %v753
        %v1083 = vunpack.c.h.bf16 %v753
        %v1084 = vunpack.c.l.bf16 %v754
        %v1085 = vunpack.c.h.bf16 %v754
        %v1086 = vunpack.c.l.bf16 %v755
        %v1087 = vunpack.c.h.bf16 %v755
        %v1088 = vunpack.c.l.bf16 %v756
        %v1089 = vunpack.c.h.bf16 %v756
        %v1090 = vunpack.c.l.bf16 %v757
        %v1091 = vunpack.c.h.bf16 %v757
        %v1092 = vunpack.c.l.bf16 %v758
        %v1093 = vunpack.c.h.bf16 %v758
        %v1094 = vunpack.c.l.bf16 %v759
        %v1095 = vunpack.c.h.bf16 %v759
        %v1096 = vunpack.c.l.bf16 %v760
        %v1097 = vunpack.c.h.bf16 %v760
        %v1098 = vunpack.c.l.bf16 %v761
        %v1099 = vunpack.c.h.bf16 %v761
        %v1100 = vunpack.c.l.bf16 %v762
        %v1101 = vunpack.c.h.bf16 %v762
        %v1102 = vunpack.c.l.bf16 %v763
        %v1103 = vunpack.c.h.bf16 %v763
        %v1104 = vunpack.c.l.bf16 %v764
        %v1105 = vunpack.c.h.bf16 %v764
        %v1106 = vunpack.c.l.bf16 %v765
        %v1107 = vunpack.c.h.bf16 %v765
        %v1108 = vunpack.c.l.bf16 %v766
        %v1109 = vunpack.c.h.bf16 %v766
        %v1110 = vunpack.c.l.bf16 %v767
        %v1111 = vunpack.c.h.bf16 %v767
        %v1112 = vunpack.c.l.bf16 %v768
        %v1113 = vunpack.c.h.bf16 %v768
        %v1114 = vunpack.c.l.bf16 %v769
        %v1115 = vunpack.c.h.bf16 %v769
        %v1116 = vunpack.c.l.bf16 %v770
        %v1117 = vunpack.c.h.bf16 %v770
        %v1118 = vunpack.c.l.bf16 %v771
        %v1119 = vunpack.c.h.bf16 %v771
        %v1120 = vunpack.c.l.bf16 %v772
        %v1121 = vunpack.c.h.bf16 %v772
        %v1122 = vunpack.c.l.bf16 %v773
        %v1123 = vunpack.c.h.bf16 %v773
        %v1124 = vunpack.c.l.bf16 %v774
        %v1125 = vunpack.c.h.bf16 %v774
        %v1126 = vunpack.c.l.bf16 %v775
        %v1127 = vunpack.c.h.bf16 %v775
        %v1128 = vunpack.c.l.bf16 %v776
        %v1129 = vunpack.c.h.bf16 %v776
        %v1130 = vunpack.c.l.bf16 %v777
        %v1131 = vunpack.c.h.bf16 %v777
        %v1132 = vunpack.c.l.bf16 %v778
        %v1133 = vunpack.c.h.bf16 %v778
        %v1134 = vunpack.c.l.bf16 %v779
        %v1135 = vunpack.c.h.bf16 %v779
        %v1136 = vunpack.c.l.bf16 %v780
        %v1137 = vunpack.c.h.bf16 %v780
        %v1138 = vunpack.c.l.bf16 %v781
        %v1139 = vunpack.c.h.bf16 %v781
        %v1140 = vunpack.c.l.bf16 %v782
        %v1141 = vunpack.c.h.bf16 %v782
        %v1142 = vunpack.c.l.bf16 %v783
        %v1143 = vunpack.c.h.bf16 %v783
        %v1144 = vunpack.c.l.bf16 %v784
        %v1145 = vunpack.c.h.bf16 %v784
        %v1146 = vunpack.c.l.bf16 %v785
        %v1147 = vunpack.c.h.bf16 %v785
        %v1148 = vunpack.c.l.bf16 %v786
        %v1149 = vunpack.c.h.bf16 %v786
        %v1150 = vunpack.c.l.bf16 %v787
        %v1151 = vunpack.c.h.bf16 %v787
        %v1152 = vunpack.c.l.bf16 %v788
        %v1153 = vunpack.c.h.bf16 %v788
        %v1154 = vunpack.c.l.bf16 %v789
        %v1155 = vunpack.c.h.bf16 %v789
        %v1156 = vunpack.c.l.bf16 %v790
        %v1157 = vunpack.c.h.bf16 %v790
        %v1158 = vunpack.c.l.bf16 %v791
        %v1159 = vunpack.c.h.bf16 %v791
        %v1160 = vunpack.c.l.bf16 %v792
        %v1161 = vunpack.c.h.bf16 %v792
        %v1162 = vunpack.c.l.bf16 %v793
        %v1163 = vunpack.c.h.bf16 %v793
        %v1164 = vunpack.c.l.bf16 %v794
        %v1165 = vunpack.c.h.bf16 %v794
        %v1166 = vunpack.c.l.bf16 %v795
        %v1167 = vunpack.c.h.bf16 %v795
        %v1168 = vunpack.c.l.bf16 %v796
        %v1169 = vunpack.c.h.bf16 %v796
        %v1170 = vunpack.c.l.bf16 %v797
        %v1171 = vunpack.c.h.bf16 %v797
        %v1172 = vunpack.c.l.bf16 %v798
        %v1173 = vunpack.c.h.bf16 %v798
        %v1174 = vunpack.c.l.bf16 %v799
        %v1175 = vunpack.c.h.bf16 %v799
        %v1176 = vunpack.c.l.bf16 %v800
        %v1177 = vunpack.c.h.bf16 %v800
        %v1178 = vunpack.c.l.bf16 %v801
        %v1179 = vunpack.c.h.bf16 %v801
        %v1180 = vunpack.c.l.bf16 %v802
        %v1181 = vunpack.c.h.bf16 %v802
        %v1182 = vunpack.c.l.bf16 %v803
        %v1183 = vunpack.c.h.bf16 %v803
        %v1184 = vunpack.c.l.bf16 %v804
        %v1185 = vunpack.c.h.bf16 %v804
        %v1186 = vunpack.c.l.bf16 %v805
        %v1187 = vunpack.c.h.bf16 %v805
        %v1188 = vunpack.c.l.bf16 %v806
        %v1189 = vunpack.c.h.bf16 %v806
        %v1190 = vunpack.c.l.bf16 %v807
        %v1191 = vunpack.c.h.bf16 %v807
        %v1192 = vunpack.c.l.bf16 %v808
        %v1193 = vunpack.c.h.bf16 %v808
        %v1194 = vunpack.c.l.bf16 %v809
        %v1195 = vunpack.c.h.bf16 %v809
        %v1196 = vunpack.c.l.bf16 %v810
        %v1197 = vunpack.c.h.bf16 %v810
        %v1198 = vunpack.c.l.bf16 %v811
        %v1199 = vunpack.c.h.bf16 %v811
        %v1200 = vunpack.c.l.bf16 %v812
        %v1201 = vunpack.c.h.bf16 %v812
        %v1202 = vunpack.c.l.bf16 %v813
        %v1203 = vunpack.c.h.bf16 %v813
        %v1204 = vunpack.c.l.bf16 %v814
        %v1205 = vunpack.c.h.bf16 %v814
        %v1206 = vunpack.c.l.bf16 %v815
        %v1207 = vunpack.c.h.bf16 %v815
        %v1208 = vunpack.c.l.bf16 %v816
        %v1209 = vunpack.c.h.bf16 %v816
        %v1210 = vunpack.c.l.bf16 %v817
        %v1211 = vunpack.c.h.bf16 %v817
        %v1212 = vunpack.c.l.bf16 %v818
        %v1213 = vunpack.c.h.bf16 %v818
        %v1214 = vunpack.c.l.bf16 %v819
        %v1215 = vunpack.c.h.bf16 %v819
        %v1216 = vunpack.c.l.bf16 %v820
        %v1217 = vunpack.c.h.bf16 %v820
        %v1218 = vunpack.c.l.bf16 %v821
        %v1219 = vunpack.c.h.bf16 %v821
        %v1220 = vunpack.c.l.bf16 %v822
        %v1221 = vunpack.c.h.bf16 %v822
        %v1222 = vunpack.c.l.bf16 %v823
        %v1223 = vunpack.c.h.bf16 %v823
        %v1224 = vunpack.c.l.bf16 %v824
        %v1225 = vunpack.c.h.bf16 %v824
        %v1226 = vunpack.c.l.bf16 %v825
        %v1227 = vunpack.c.h.bf16 %v825
        %v1228 = vunpack.c.l.bf16 %v826
        %v1229 = vunpack.c.h.bf16 %v826
        %v1230 = vunpack.c.l.bf16 %v827
        %v1231 = vunpack.c.h.bf16 %v827
        %v1232 = vunpack.c.l.bf16 %v828
        %v1233 = vunpack.c.h.bf16 %v828
        %v1234 = vunpack.c.l.bf16 %v829
        %v1235 = vunpack.c.h.bf16 %v829
        %v1236 = vunpack.c.l.bf16 %v830
        %v1237 = vunpack.c.h.bf16 %v830
        %v1238 = vunpack.c.l.bf16 %v831
        %v1239 = vunpack.c.h.bf16 %v831
        %v1240 = vunpack.c.l.bf16 %v832
        %v1241 = vunpack.c.h.bf16 %v832
        %v1242 = vunpack.c.l.bf16 %v833
        %v1243 = vunpack.c.h.bf16 %v833
        %v1244 = vunpack.c.l.bf16 %v834
        %v1245 = vunpack.c.h.bf16 %v834
        %v1246 = vunpack.c.l.bf16 %v835
        %v1247 = vunpack.c.h.bf16 %v835
        %v1248 = vunpack.c.l.bf16 %v836
        %v1249 = vunpack.c.h.bf16 %v836
        %v1250 = vunpack.c.l.bf16 %v837
        %v1251 = vunpack.c.h.bf16 %v837
        %v1252 = vunpack.c.l.bf16 %v838
        %v1253 = vunpack.c.h.bf16 %v838
        %v1254 = vunpack.c.l.bf16 %v839
        %v1255 = vunpack.c.h.bf16 %v839
        %v1256 = vunpack.c.l.bf16 %v840
        %v1257 = vunpack.c.h.bf16 %v840
        %v1258 = vunpack.c.l.bf16 %v841
        %v1259 = vunpack.c.h.bf16 %v841
        %v1260 = vunpack.c.l.bf16 %v842
        %v1261 = vunpack.c.h.bf16 %v842
        %v1262 = vunpack.c.l.bf16 %v843
        %v1263 = vunpack.c.h.bf16 %v843
        %v1264 = vunpack.c.l.bf16 %v844
        %v1265 = vunpack.c.h.bf16 %v844
        %v1266 = vunpack.c.l.bf16 %v845
        %v1267 = vunpack.c.h.bf16 %v845
        %v1268 = vunpack.c.l.bf16 %v846
        %v1269 = vunpack.c.h.bf16 %v846
        %v1270 = vunpack.c.l.bf16 %v847
        %v1271 = vunpack.c.h.bf16 %v847
        %v1272 = vunpack.c.l.bf16 %v848
        %v1273 = vunpack.c.h.bf16 %v848
        %v1274 = vunpack.c.l.bf16 %v849
        %v1275 = vunpack.c.h.bf16 %v849
        %v1276 = vunpack.c.l.bf16 %v850
        %v1277 = vunpack.c.h.bf16 %v850
        %v1278 = vunpack.c.l.bf16 %v851
        %v1279 = vunpack.c.h.bf16 %v851
        %v1280 = vunpack.c.l.bf16 %v852
        %v1281 = vunpack.c.h.bf16 %v852
        %v1282 = vunpack.c.l.bf16 %v853
        %v1283 = vunpack.c.h.bf16 %v853
        %v1284 = vunpack.c.l.bf16 %v854
        %v1285 = vunpack.c.h.bf16 %v854
        %v1286 = vunpack.c.l.bf16 %v855
        %v1287 = vunpack.c.h.bf16 %v855
        %v1288 = vunpack.c.l.bf16 %v856
        %v1289 = vunpack.c.h.bf16 %v856
        %v1290 = vunpack.c.l.bf16 %v857
        %v1291 = vunpack.c.h.bf16 %v857
        %v1292 = vunpack.c.l.bf16 %v858
        %v1293 = vunpack.c.h.bf16 %v858
        %v1294 = vunpack.c.l.bf16 %v859
        %v1295 = vunpack.c.h.bf16 %v859
        %v1296 = vunpack.c.l.bf16 %v860
        %v1297 = vunpack.c.h.bf16 %v860
        %v1298 = vunpack.c.l.bf16 %v861
        %v1299 = vunpack.c.h.bf16 %v861
        %v1300 = vunpack.c.l.bf16 %v862
        %v1301 = vunpack.c.h.bf16 %v862
        %v1302 = vunpack.c.l.bf16 %v863
        %v1303 = vunpack.c.h.bf16 %v863
        %v1304 = vunpack.c.l.bf16 %v864
        %v1305 = vunpack.c.h.bf16 %v864
        %v1306 = vunpack.c.l.bf16 %v865
        %v1307 = vunpack.c.h.bf16 %v865
        %v1308 = vunpack.c.l.bf16 %v866
        %v1309 = vunpack.c.h.bf16 %v866
        %v1310 = vunpack.c.l.bf16 %v867
        %v1311 = vunpack.c.h.bf16 %v867
        %v1312 = vunpack.c.l.bf16 %v868
        %v1313 = vunpack.c.h.bf16 %v868
        %v1314 = vunpack.c.l.bf16 %v869
        %v1315 = vunpack.c.h.bf16 %v869
        %v1316 = vunpack.c.l.bf16 %v870
        %v1317 = vunpack.c.h.bf16 %v870
        %v1318 = vunpack.c.l.bf16 %v871
        %v1319 = vunpack.c.h.bf16 %v871
        %v1320 = vunpack.c.l.bf16 %v872
        %v1321 = vunpack.c.h.bf16 %v872
        %v1322 = vunpack.c.l.bf16 %v873
        %v1323 = vunpack.c.h.bf16 %v873
        %v1324 = vunpack.c.l.bf16 %v874
        %v1325 = vunpack.c.h.bf16 %v874
        %v1326 = vunpack.c.l.bf16 %v875
        %v1327 = vunpack.c.h.bf16 %v875
        %v1328 = vunpack.c.l.bf16 %v876
        %v1329 = vunpack.c.h.bf16 %v876
        %v1330 = vunpack.c.l.bf16 %v877
        %v1331 = vunpack.c.h.bf16 %v877
        %v1332 = vunpack.c.l.bf16 %v878
        %v1333 = vunpack.c.h.bf16 %v878
        %v1334 = vunpack.c.l.bf16 %v879
        %v1335 = vunpack.c.h.bf16 %v879
        %v1336 = vunpack.c.l.bf16 %v880
        %v1337 = vunpack.c.h.bf16 %v880
        %v1338 = vunpack.c.l.bf16 %v881
        %v1339 = vunpack.c.h.bf16 %v881
        %v1340 = vunpack.c.l.bf16 %v882
        %v1341 = vunpack.c.h.bf16 %v882
        %v1342 = vunpack.c.l.bf16 %v883
        %v1343 = vunpack.c.h.bf16 %v883
        %v1344 = vunpack.c.l.bf16 %v884
        %v1345 = vunpack.c.h.bf16 %v884
        %v1346 = vunpack.c.l.bf16 %v885
        %v1347 = vunpack.c.h.bf16 %v885
        %v1348 = vunpack.c.l.bf16 %v886
        %v1349 = vunpack.c.h.bf16 %v886
        %v1350 = vunpack.c.l.bf16 %v887
        %v1351 = vunpack.c.h.bf16 %v887
        %v1352 = vunpack.c.l.bf16 %v888
        %v1353 = vunpack.c.h.bf16 %v888
        %v1354 = vunpack.c.l.bf16 %v889
        %v1355 = vunpack.c.h.bf16 %v889
        %v1356 = vunpack.c.l.bf16 %v890
        %v1357 = vunpack.c.h.bf16 %v890
        %v1358 = vunpack.c.l.bf16 %v891
        %v1359 = vunpack.c.h.bf16 %v891
        %v1360 = vunpack.c.l.bf16 %v892
        %v1361 = vunpack.c.h.bf16 %v892
        %v1362 = vunpack.c.l.bf16 %v893
        %v1363 = vunpack.c.h.bf16 %v893
        %v1364 = vunpack.c.l.bf16 %v894
        %v1365 = vunpack.c.h.bf16 %v894
        %v1366 = vunpack.c.l.bf16 %v895
        %v1367 = vunpack.c.h.bf16 %v895
        %v1368 = vunpack.c.l.bf16 %v896
        %v1369 = vunpack.c.h.bf16 %v896
        %v1370 = vunpack.c.l.bf16 %v897
        %v1371 = vunpack.c.h.bf16 %v897
        %v1372 = vunpack.c.l.bf16 %v898
        %v1373 = vunpack.c.h.bf16 %v898
        %v1374 = vunpack.c.l.bf16 %v899
        %v1375 = vunpack.c.h.bf16 %v899
        %v1376 = vunpack.c.l.bf16 %v900
        %v1377 = vunpack.c.h.bf16 %v900
        %v1378 = vunpack.c.l.bf16 %v901
        %v1379 = vunpack.c.h.bf16 %v901
        %v1380 = vunpack.c.l.bf16 %v902
        %v1381 = vunpack.c.h.bf16 %v902
        %v1382 = vunpack.c.l.bf16 %v903
        %v1383 = vunpack.c.h.bf16 %v903
        %v1384 = vunpack.c.l.bf16 %v904
        %v1385 = vunpack.c.h.bf16 %v904
        %v1386 = vunpack.c.l.bf16 %v905
        %v1387 = vunpack.c.h.bf16 %v905
        %v1388 = vunpack.c.l.bf16 %v906
        %v1389 = vunpack.c.h.bf16 %v906
        %v1390 = vunpack.c.l.bf16 %v907
        %v1391 = vunpack.c.h.bf16 %v907
        %v1392 = vunpack.c.l.bf16 %v908
        %v1393 = vunpack.c.h.bf16 %v908
        %v1394 = vunpack.c.l.bf16 %v909
        %v1395 = vunpack.c.h.bf16 %v909
        %v1396 = vunpack.c.l.bf16 %v910
        %v1397 = vunpack.c.h.bf16 %v910
        %v1398 = vunpack.c.l.bf16 %v911
        %v1399 = vunpack.c.h.bf16 %v911
        %v1400 = vunpack.c.l.bf16 %v912
        %v1401 = vunpack.c.h.bf16 %v912
        %v1402 = vunpack.c.l.bf16 %v913
        %v1403 = vunpack.c.h.bf16 %v913
        %v1404 = vunpack.c.l.bf16 %v914
        %v1405 = vunpack.c.h.bf16 %v914
        %v1406 = vunpack.c.l.bf16 %v915
        %v1407 = vunpack.c.h.bf16 %v915
        %v1408 = vunpack.c.l.bf16 %v916
        %v1409 = vunpack.c.h.bf16 %v916
        %v1410 = vunpack.c.l.bf16 %v917
        %v1411 = vunpack.c.h.bf16 %v917
        %v1412 = vunpack.c.l.bf16 %v918
        %v1413 = vunpack.c.h.bf16 %v918
        %v1414 = vunpack.c.l.bf16 %v919
        %v1415 = vunpack.c.h.bf16 %v919
        %v1416 = vunpack.c.l.bf16 %v920
        %v1417 = vunpack.c.h.bf16 %v920
        %v1418 = vunpack.c.l.bf16 %v921
        %v1419 = vunpack.c.h.bf16 %v921
        %v1420 = vunpack.c.l.bf16 %v922
        %v1421 = vunpack.c.h.bf16 %v922
        %v1422 = vunpack.c.l.bf16 %v923
        %v1423 = vunpack.c.h.bf16 %v923
        %v1424 = vunpack.c.l.bf16 %v924
        %v1425 = vunpack.c.h.bf16 %v924
        %v1426 = vunpack.c.l.bf16 %v925
        %v1427 = vunpack.c.h.bf16 %v925
        %v1428 = vunpack.c.l.bf16 %v926
        %v1429 = vunpack.c.h.bf16 %v926
        %v1430 = vunpack.c.l.bf16 %v927
        %v1431 = vunpack.c.h.bf16 %v927
        %v1432 = vunpack.c.l.bf16 %v928
        %v1433 = vunpack.c.h.bf16 %v928
        %v1434 = vunpack.c.l.bf16 %v929
        %v1435 = vunpack.c.h.bf16 %v929
        %v1436 = vunpack.c.l.bf16 %v930
        %v1437 = vunpack.c.h.bf16 %v930
        %v1438 = vunpack.c.l.bf16 %v931
        %v1439 = vunpack.c.h.bf16 %v931
        %v1440 = vunpack.c.l.bf16 %v932
        %v1441 = vunpack.c.h.bf16 %v932
        %v1442 = vunpack.c.l.bf16 %v933
        %v1443 = vunpack.c.h.bf16 %v933
        %v1444 = vunpack.c.l.bf16 %v934
        %v1445 = vunpack.c.h.bf16 %v934
        %v1446 = vunpack.c.l.bf16 %v935
        %v1447 = vunpack.c.h.bf16 %v935
        %v1448 = vunpack.c.l.bf16 %v936
        %v1449 = vunpack.c.h.bf16 %v936
        %v1450 = vunpack.c.l.bf16 %v937
        %v1451 = vunpack.c.h.bf16 %v937
        %v1452 = vunpack.c.l.bf16 %v938
        %v1453 = vunpack.c.h.bf16 %v938
        %v1454 = vunpack.c.l.bf16 %v939
        %v1455 = vunpack.c.h.bf16 %v939
        %v1456 = vunpack.c.l.bf16 %v940
        %v1457 = vunpack.c.h.bf16 %v940
        %v1458 = vunpack.c.l.bf16 %v941
        %v1459 = vunpack.c.h.bf16 %v941
        %v1460 = vunpack.c.l.bf16 %v942
        %v1461 = vunpack.c.h.bf16 %v942
        %v1462 = vunpack.c.l.bf16 %v943
        %v1463 = vunpack.c.h.bf16 %v943
        %v1464 = vunpack.c.l.bf16 %v944
        %v1465 = vunpack.c.h.bf16 %v944
        %v1466 = vunpack.c.l.bf16 %v945
        %v1467 = vunpack.c.h.bf16 %v945
        %v1468 = vunpack.c.l.bf16 %v946
        %v1469 = vunpack.c.h.bf16 %v946
        %v1470 = vunpack.c.l.bf16 %v947
        %v1471 = vunpack.c.h.bf16 %v947
        %v1472 = vunpack.c.l.bf16 %v948
        %v1473 = vunpack.c.h.bf16 %v948
        %v1474 = vunpack.c.l.bf16 %v949
        %v1475 = vunpack.c.h.bf16 %v949
        %v1476 = vunpack.c.l.bf16 %v950
        %v1477 = vunpack.c.h.bf16 %v950
        %v1478 = vunpack.c.l.bf16 %v951
        %v1479 = vunpack.c.h.bf16 %v951
        %v1480 = vunpack.c.l.bf16 %v952
        %v1481 = vunpack.c.h.bf16 %v952
        %v1482 = vunpack.c.l.bf16 %v953
        %v1483 = vunpack.c.h.bf16 %v953
        %v1484 = vunpack.c.l.bf16 %v954
        %v1485 = vunpack.c.h.bf16 %v954
        %v1486 = vunpack.c.l.bf16 %v955
        %v1487 = vunpack.c.h.bf16 %v955
        %v1488 = vunpack.c.l.bf16 %v956
        %v1489 = vunpack.c.h.bf16 %v956
        %v1490 = vunpack.c.l.bf16 %v957
        %v1491 = vunpack.c.h.bf16 %v957
        %v1492 = vunpack.c.l.bf16 %v958
        %v1493 = vunpack.c.h.bf16 %v958
        %v1494 = vunpack.c.l.bf16 %v959
        %v1495 = vunpack.c.h.bf16 %v959
        %v1496 = vunpack.c.l.bf16 %v960
        %v1497 = vunpack.c.h.bf16 %v960
        %v1498 = vunpack.c.l.bf16 %v961
        %v1499 = vunpack.c.h.bf16 %v961
        %v1500 = vunpack.c.l.bf16 %v962
        %v1501 = vunpack.c.h.bf16 %v962
        %v1502 = vunpack.c.l.bf16 %v963
        %v1503 = vunpack.c.h.bf16 %v963
        %v1504 = vunpack.c.l.bf16 %v964
        %v1505 = vunpack.c.h.bf16 %v964
        %v1506 = vunpack.c.l.bf16 %v965
        %v1507 = vunpack.c.h.bf16 %v965
        %v1508 = vunpack.c.l.bf16 %v966
        %v1509 = vunpack.c.h.bf16 %v966
        %v1510 = vunpack.c.l.bf16 %v967
        %v1511 = vunpack.c.h.bf16 %v967
        %v1512 = vadd.f32 %v1000, %v1016
        %v1513 = vrot.slane %v1512, 4
        %v1514 = vadd.f32 %v1512, %v1513
        %v1515 = vrot.slane %v1514, 2
        %v1516 = vadd.f32 %v1514, %v1515
        %v1517 = vrot.slane %v1516, 1
        %v1518 = vadd.f32 %v1516, %v1517
        %v1519 = vadd.f32 %v1001, %v1017
        %v1520 = vrot.slane %v1519, 4
        %v1521 = vadd.f32 %v1519, %v1520
        %v1522 = vrot.slane %v1521, 2
        %v1523 = vadd.f32 %v1521, %v1522
        %v1524 = vrot.slane %v1523, 1
        %v1525 = vadd.f32 %v1523, %v1524
        %v1526 = vadd.f32 %v1002, %v1018
        %v1527 = vrot.slane %v1526, 4
        %v1528 = vadd.f32 %v1526, %v1527
        %v1529 = vrot.slane %v1528, 2
        %v1530 = vadd.f32 %v1528, %v1529
        %v1531 = vrot.slane %v1530, 1
        %v1532 = vadd.f32 %v1530, %v1531
        %v1533 = vadd.f32 %v1003, %v1019
        %v1534 = vrot.slane %v1533, 4
        %v1535 = vadd.f32 %v1533, %v1534
        %v1536 = vrot.slane %v1535, 2
        %v1537 = vadd.f32 %v1535, %v1536
        %v1538 = vrot.slane %v1537, 1
        %v1539 = vadd.f32 %v1537, %v1538
        %v1540 = vadd.f32 %v1004, %v1020
        %v1541 = vrot.slane %v1540, 4
        %v1542 = vadd.f32 %v1540, %v1541
        %v1543 = vrot.slane %v1542, 2
        %v1544 = vadd.f32 %v1542, %v1543
        %v1545 = vrot.slane %v1544, 1
        %v1546 = vadd.f32 %v1544, %v1545
        %v1547 = vadd.f32 %v1005, %v1021
        %v1548 = vrot.slane %v1547, 4
        %v1549 = vadd.f32 %v1547, %v1548
        %v1550 = vrot.slane %v1549, 2
        %v1551 = vadd.f32 %v1549, %v1550
        %v1552 = vrot.slane %v1551, 1
        %v1553 = vadd.f32 %v1551, %v1552
        %v1554 = vadd.f32 %v1006, %v1022
        %v1555 = vrot.slane %v1554, 4
        %v1556 = vadd.f32 %v1554, %v1555
        %v1557 = vrot.slane %v1556, 2
        %v1558 = vadd.f32 %v1556, %v1557
        %v1559 = vrot.slane %v1558, 1
        %v1560 = vadd.f32 %v1558, %v1559
        %v1561 = vadd.f32 %v1007, %v1023
        %v1562 = vrot.slane %v1561, 4
        %v1563 = vadd.f32 %v1561, %v1562
        %v1564 = vrot.slane %v1563, 2
        %v1565 = vadd.f32 %v1563, %v1564
        %v1566 = vrot.slane %v1565, 1
        %v1567 = vadd.f32 %v1565, %v1566
        %v1568 = vadd.f32 %v1008, %v1024
        %v1569 = vrot.slane %v1568, 4
        %v1570 = vadd.f32 %v1568, %v1569
        %v1571 = vrot.slane %v1570, 2
        %v1572 = vadd.f32 %v1570, %v1571
        %v1573 = vrot.slane %v1572, 1
        %v1574 = vadd.f32 %v1572, %v1573
        %v1575 = vadd.f32 %v1009, %v1025
        %v1576 = vrot.slane %v1575, 4
        %v1577 = vadd.f32 %v1575, %v1576
        %v1578 = vrot.slane %v1577, 2
        %v1579 = vadd.f32 %v1577, %v1578
        %v1580 = vrot.slane %v1579, 1
        %v1581 = vadd.f32 %v1579, %v1580
        %v1582 = vadd.f32 %v1010, %v1026
        %v1583 = vrot.slane %v1582, 4
        %v1584 = vadd.f32 %v1582, %v1583
        %v1585 = vrot.slane %v1584, 2
        %v1586 = vadd.f32 %v1584, %v1585
        %v1587 = vrot.slane %v1586, 1
        %v1588 = vadd.f32 %v1586, %v1587
        %v1589 = vadd.f32 %v1011, %v1027
        %v1590 = vrot.slane %v1589, 4
        %v1591 = vadd.f32 %v1589, %v1590
        %v1592 = vrot.slane %v1591, 2
        %v1593 = vadd.f32 %v1591, %v1592
        %v1594 = vrot.slane %v1593, 1
        %v1595 = vadd.f32 %v1593, %v1594
        %v1596 = vadd.f32 %v1012, %v1028
        %v1597 = vrot.slane %v1596, 4
        %v1598 = vadd.f32 %v1596, %v1597
        %v1599 = vrot.slane %v1598, 2
        %v1600 = vadd.f32 %v1598, %v1599
        %v1601 = vrot.slane %v1600, 1
        %v1602 = vadd.f32 %v1600, %v1601
        %v1603 = vadd.f32 %v1013, %v1029
        %v1604 = vrot.slane %v1603, 4
        %v1605 = vadd.f32 %v1603, %v1604
        %v1606 = vrot.slane %v1605, 2
        %v1607 = vadd.f32 %v1605, %v1606
        %v1608 = vrot.slane %v1607, 1
        %v1609 = vadd.f32 %v1607, %v1608
        %v1610 = vadd.f32 %v1014, %v1030
        %v1611 = vrot.slane %v1610, 4
        %v1612 = vadd.f32 %v1610, %v1611
        %v1613 = vrot.slane %v1612, 2
        %v1614 = vadd.f32 %v1612, %v1613
        %v1615 = vrot.slane %v1614, 1
        %v1616 = vadd.f32 %v1614, %v1615
        %v1617 = vadd.f32 %v1015, %v1031
        %v1618 = vrot.slane %v1617, 4
        %v1619 = vadd.f32 %v1617, %v1618
        %v1620 = vrot.slane %v1619, 2
        %v1621 = vadd.f32 %v1619, %v1620
        %v1622 = vrot.slane %v1621, 1
        %v1623 = vadd.f32 %v1621, %v1622
        %v1624 = vadd.f32 %v1032, %v1048
        %v1625 = vrot.slane %v1624, 4
        %v1626 = vadd.f32 %v1624, %v1625
        %v1627 = vrot.slane %v1626, 2
        %v1628 = vadd.f32 %v1626, %v1627
        %v1629 = vrot.slane %v1628, 1
        %v1630 = vadd.f32 %v1628, %v1629
        %v1631 = vadd.f32 %v1033, %v1049
        %v1632 = vrot.slane %v1631, 4
        %v1633 = vadd.f32 %v1631, %v1632
        %v1634 = vrot.slane %v1633, 2
        %v1635 = vadd.f32 %v1633, %v1634
        %v1636 = vrot.slane %v1635, 1
        %v1637 = vadd.f32 %v1635, %v1636
        %v1638 = vadd.f32 %v1034, %v1050
        %v1639 = vrot.slane %v1638, 4
        %v1640 = vadd.f32 %v1638, %v1639
        %v1641 = vrot.slane %v1640, 2
        %v1642 = vadd.f32 %v1640, %v1641
        %v1643 = vrot.slane %v1642, 1
        %v1644 = vadd.f32 %v1642, %v1643
        %v1645 = vadd.f32 %v1035, %v1051
        %v1646 = vrot.slane %v1645, 4
        %v1647 = vadd.f32 %v1645, %v1646
        %v1648 = vrot.slane %v1647, 2
        %v1649 = vadd.f32 %v1647, %v1648
        %v1650 = vrot.slane %v1649, 1
        %v1651 = vadd.f32 %v1649, %v1650
        %v1652 = vadd.f32 %v1036, %v1052
        %v1653 = vrot.slane %v1652, 4
        %v1654 = vadd.f32 %v1652, %v1653
        %v1655 = vrot.slane %v1654, 2
        %v1656 = vadd.f32 %v1654, %v1655
        %v1657 = vrot.slane %v1656, 1
        %v1658 = vadd.f32 %v1656, %v1657
        %v1659 = vadd.f32 %v1037, %v1053
        %v1660 = vrot.slane %v1659, 4
        %v1661 = vadd.f32 %v1659, %v1660
        %v1662 = vrot.slane %v1661, 2
        %v1663 = vadd.f32 %v1661, %v1662
        %v1664 = vrot.slane %v1663, 1
        %v1665 = vadd.f32 %v1663, %v1664
        %v1666 = vadd.f32 %v1038, %v1054
        %v1667 = vrot.slane %v1666, 4
        %v1668 = vadd.f32 %v1666, %v1667
        %v1669 = vrot.slane %v1668, 2
        %v1670 = vadd.f32 %v1668, %v1669
        %v1671 = vrot.slane %v1670, 1
        %v1672 = vadd.f32 %v1670, %v1671
        %v1673 = vadd.f32 %v1039, %v1055
        %v1674 = vrot.slane %v1673, 4
        %v1675 = vadd.f32 %v1673, %v1674
        %v1676 = vrot.slane %v1675, 2
        %v1677 = vadd.f32 %v1675, %v1676
        %v1678 = vrot.slane %v1677, 1
        %v1679 = vadd.f32 %v1677, %v1678
        %v1680 = vadd.f32 %v1040, %v1056
        %v1681 = vrot.slane %v1680, 4
        %v1682 = vadd.f32 %v1680, %v1681
        %v1683 = vrot.slane %v1682, 2
        %v1684 = vadd.f32 %v1682, %v1683
        %v1685 = vrot.slane %v1684, 1
        %v1686 = vadd.f32 %v1684, %v1685
        %v1687 = vadd.f32 %v1041, %v1057
        %v1688 = vrot.slane %v1687, 4
        %v1689 = vadd.f32 %v1687, %v1688
        %v1690 = vrot.slane %v1689, 2
        %v1691 = vadd.f32 %v1689, %v1690
        %v1692 = vrot.slane %v1691, 1
        %v1693 = vadd.f32 %v1691, %v1692
        %v1694 = vadd.f32 %v1042, %v1058
        %v1695 = vrot.slane %v1694, 4
        %v1696 = vadd.f32 %v1694, %v1695
        %v1697 = vrot.slane %v1696, 2
        %v1698 = vadd.f32 %v1696, %v1697
        %v1699 = vrot.slane %v1698, 1
        %v1700 = vadd.f32 %v1698, %v1699
        %v1701 = vadd.f32 %v1043, %v1059
        %v1702 = vrot.slane %v1701, 4
        %v1703 = vadd.f32 %v1701, %v1702
        %v1704 = vrot.slane %v1703, 2
        %v1705 = vadd.f32 %v1703, %v1704
        %v1706 = vrot.slane %v1705, 1
        %v1707 = vadd.f32 %v1705, %v1706
        %v1708 = vadd.f32 %v1044, %v1060
        %v1709 = vrot.slane %v1708, 4
        %v1710 = vadd.f32 %v1708, %v1709
        %v1711 = vrot.slane %v1710, 2
        %v1712 = vadd.f32 %v1710, %v1711
        %v1713 = vrot.slane %v1712, 1
        %v1714 = vadd.f32 %v1712, %v1713
        %v1715 = vadd.f32 %v1045, %v1061
        %v1716 = vrot.slane %v1715, 4
        %v1717 = vadd.f32 %v1715, %v1716
        %v1718 = vrot.slane %v1717, 2
        %v1719 = vadd.f32 %v1717, %v1718
        %v1720 = vrot.slane %v1719, 1
        %v1721 = vadd.f32 %v1719, %v1720
        %v1722 = vadd.f32 %v1046, %v1062
        %v1723 = vrot.slane %v1722, 4
        %v1724 = vadd.f32 %v1722, %v1723
        %v1725 = vrot.slane %v1724, 2
        %v1726 = vadd.f32 %v1724, %v1725
        %v1727 = vrot.slane %v1726, 1
        %v1728 = vadd.f32 %v1726, %v1727
        %v1729 = vadd.f32 %v1047, %v1063
        %v1730 = vrot.slane %v1729, 4
        %v1731 = vadd.f32 %v1729, %v1730
        %v1732 = vrot.slane %v1731, 2
        %v1733 = vadd.f32 %v1731, %v1732
        %v1734 = vrot.slane %v1733, 1
        %v1735 = vadd.f32 %v1733, %v1734
        %v1736 = vadd.f32 %v1064, %v1080
        %v1737 = vrot.slane %v1736, 4
        %v1738 = vadd.f32 %v1736, %v1737
        %v1739 = vrot.slane %v1738, 2
        %v1740 = vadd.f32 %v1738, %v1739
        %v1741 = vrot.slane %v1740, 1
        %v1742 = vadd.f32 %v1740, %v1741
        %v1743 = vadd.f32 %v1065, %v1081
        %v1744 = vrot.slane %v1743, 4
        %v1745 = vadd.f32 %v1743, %v1744
        %v1746 = vrot.slane %v1745, 2
        %v1747 = vadd.f32 %v1745, %v1746
        %v1748 = vrot.slane %v1747, 1
        %v1749 = vadd.f32 %v1747, %v1748
        %v1750 = vadd.f32 %v1066, %v1082
        %v1751 = vrot.slane %v1750, 4
        %v1752 = vadd.f32 %v1750, %v1751
        %v1753 = vrot.slane %v1752, 2
        %v1754 = vadd.f32 %v1752, %v1753
        %v1755 = vrot.slane %v1754, 1
        %v1756 = vadd.f32 %v1754, %v1755
        %v1757 = vadd.f32 %v1067, %v1083
        %v1758 = vrot.slane %v1757, 4
        %v1759 = vadd.f32 %v1757, %v1758
        %v1760 = vrot.slane %v1759, 2
        %v1761 = vadd.f32 %v1759, %v1760
        %v1762 = vrot.slane %v1761, 1
        %v1763 = vadd.f32 %v1761, %v1762
        %v1764 = vadd.f32 %v1068, %v1084
        %v1765 = vrot.slane %v1764, 4
        %v1766 = vadd.f32 %v1764, %v1765
        %v1767 = vrot.slane %v1766, 2
        %v1768 = vadd.f32 %v1766, %v1767
        %v1769 = vrot.slane %v1768, 1
        %v1770 = vadd.f32 %v1768, %v1769
        %v1771 = vadd.f32 %v1069, %v1085
        %v1772 = vrot.slane %v1771, 4
        %v1773 = vadd.f32 %v1771, %v1772
        %v1774 = vrot.slane %v1773, 2
        %v1775 = vadd.f32 %v1773, %v1774
        %v1776 = vrot.slane %v1775, 1
        %v1777 = vadd.f32 %v1775, %v1776
        %v1778 = vadd.f32 %v1070, %v1086
        %v1779 = vrot.slane %v1778, 4
        %v1780 = vadd.f32 %v1778, %v1779
        %v1781 = vrot.slane %v1780, 2
        %v1782 = vadd.f32 %v1780, %v1781
        %v1783 = vrot.slane %v1782, 1
        %v1784 = vadd.f32 %v1782, %v1783
        %v1785 = vadd.f32 %v1071, %v1087
        %v1786 = vrot.slane %v1785, 4
        %v1787 = vadd.f32 %v1785, %v1786
        %v1788 = vrot.slane %v1787, 2
        %v1789 = vadd.f32 %v1787, %v1788
        %v1790 = vrot.slane %v1789, 1
        %v1791 = vadd.f32 %v1789, %v1790
        %v1792 = vadd.f32 %v1072, %v1088
        %v1793 = vrot.slane %v1792, 4
        %v1794 = vadd.f32 %v1792, %v1793
        %v1795 = vrot.slane %v1794, 2
        %v1796 = vadd.f32 %v1794, %v1795
        %v1797 = vrot.slane %v1796, 1
        %v1798 = vadd.f32 %v1796, %v1797
        %v1799 = vadd.f32 %v1073, %v1089
        %v1800 = vrot.slane %v1799, 4
        %v1801 = vadd.f32 %v1799, %v1800
        %v1802 = vrot.slane %v1801, 2
        %v1803 = vadd.f32 %v1801, %v1802
        %v1804 = vrot.slane %v1803, 1
        %v1805 = vadd.f32 %v1803, %v1804
        %v1806 = vadd.f32 %v1074, %v1090
        %v1807 = vrot.slane %v1806, 4
        %v1808 = vadd.f32 %v1806, %v1807
        %v1809 = vrot.slane %v1808, 2
        %v1810 = vadd.f32 %v1808, %v1809
        %v1811 = vrot.slane %v1810, 1
        %v1812 = vadd.f32 %v1810, %v1811
        %v1813 = vadd.f32 %v1075, %v1091
        %v1814 = vrot.slane %v1813, 4
        %v1815 = vadd.f32 %v1813, %v1814
        %v1816 = vrot.slane %v1815, 2
        %v1817 = vadd.f32 %v1815, %v1816
        %v1818 = vrot.slane %v1817, 1
        %v1819 = vadd.f32 %v1817, %v1818
        %v1820 = vadd.f32 %v1076, %v1092
        %v1821 = vrot.slane %v1820, 4
        %v1822 = vadd.f32 %v1820, %v1821
        %v1823 = vrot.slane %v1822, 2
        %v1824 = vadd.f32 %v1822, %v1823
        %v1825 = vrot.slane %v1824, 1
        %v1826 = vadd.f32 %v1824, %v1825
        %v1827 = vadd.f32 %v1077, %v1093
        %v1828 = vrot.slane %v1827, 4
        %v1829 = vadd.f32 %v1827, %v1828
        %v1830 = vrot.slane %v1829, 2
        %v1831 = vadd.f32 %v1829, %v1830
        %v1832 = vrot.slane %v1831, 1
        %v1833 = vadd.f32 %v1831, %v1832
        %v1834 = vadd.f32 %v1078, %v1094
        %v1835 = vrot.slane %v1834, 4
        %v1836 = vadd.f32 %v1834, %v1835
        %v1837 = vrot.slane %v1836, 2
        %v1838 = vadd.f32 %v1836, %v1837
        %v1839 = vrot.slane %v1838, 1
        %v1840 = vadd.f32 %v1838, %v1839
        %v1841 = vadd.f32 %v1079, %v1095
        %v1842 = vrot.slane %v1841, 4
        %v1843 = vadd.f32 %v1841, %v1842
        %v1844 = vrot.slane %v1843, 2
        %v1845 = vadd.f32 %v1843, %v1844
        %v1846 = vrot.slane %v1845, 1
        %v1847 = vadd.f32 %v1845, %v1846
        %v1848 = vadd.f32 %v1096, %v1112
        %v1849 = vrot.slane %v1848, 4
        %v1850 = vadd.f32 %v1848, %v1849
        %v1851 = vrot.slane %v1850, 2
        %v1852 = vadd.f32 %v1850, %v1851
        %v1853 = vrot.slane %v1852, 1
        %v1854 = vadd.f32 %v1852, %v1853
        %v1855 = vadd.f32 %v1097, %v1113
        %v1856 = vrot.slane %v1855, 4
        %v1857 = vadd.f32 %v1855, %v1856
        %v1858 = vrot.slane %v1857, 2
        %v1859 = vadd.f32 %v1857, %v1858
        %v1860 = vrot.slane %v1859, 1
        %v1861 = vadd.f32 %v1859, %v1860
        %v1862 = vadd.f32 %v1098, %v1114
        %v1863 = vrot.slane %v1862, 4
        %v1864 = vadd.f32 %v1862, %v1863
        %v1865 = vrot.slane %v1864, 2
        %v1866 = vadd.f32 %v1864, %v1865
        %v1867 = vrot.slane %v1866, 1
        %v1868 = vadd.f32 %v1866, %v1867
        %v1869 = vadd.f32 %v1099, %v1115
        %v1870 = vrot.slane %v1869, 4
        %v1871 = vadd.f32 %v1869, %v1870
        %v1872 = vrot.slane %v1871, 2
        %v1873 = vadd.f32 %v1871, %v1872
        %v1874 = vrot.slane %v1873, 1
        %v1875 = vadd.f32 %v1873, %v1874
        %v1876 = vadd.f32 %v1100, %v1116
        %v1877 = vrot.slane %v1876, 4
        %v1878 = vadd.f32 %v1876, %v1877
        %v1879 = vrot.slane %v1878, 2
        %v1880 = vadd.f32 %v1878, %v1879
        %v1881 = vrot.slane %v1880, 1
        %v1882 = vadd.f32 %v1880, %v1881
        %v1883 = vadd.f32 %v1101, %v1117
        %v1884 = vrot.slane %v1883, 4
        %v1885 = vadd.f32 %v1883, %v1884
        %v1886 = vrot.slane %v1885, 2
        %v1887 = vadd.f32 %v1885, %v1886
        %v1888 = vrot.slane %v1887, 1
        %v1889 = vadd.f32 %v1887, %v1888
        %v1890 = vadd.f32 %v1102, %v1118
        %v1891 = vrot.slane %v1890, 4
        %v1892 = vadd.f32 %v1890, %v1891
        %v1893 = vrot.slane %v1892, 2
        %v1894 = vadd.f32 %v1892, %v1893
        %v1895 = vrot.slane %v1894, 1
        %v1896 = vadd.f32 %v1894, %v1895
        %v1897 = vadd.f32 %v1103, %v1119
        %v1898 = vrot.slane %v1897, 4
        %v1899 = vadd.f32 %v1897, %v1898
        %v1900 = vrot.slane %v1899, 2
        %v1901 = vadd.f32 %v1899, %v1900
        %v1902 = vrot.slane %v1901, 1
        %v1903 = vadd.f32 %v1901, %v1902
        %v1904 = vadd.f32 %v1104, %v1120
        %v1905 = vrot.slane %v1904, 4
        %v1906 = vadd.f32 %v1904, %v1905
        %v1907 = vrot.slane %v1906, 2
        %v1908 = vadd.f32 %v1906, %v1907
        %v1909 = vrot.slane %v1908, 1
        %v1910 = vadd.f32 %v1908, %v1909
        %v1911 = vadd.f32 %v1105, %v1121
        %v1912 = vrot.slane %v1911, 4
        %v1913 = vadd.f32 %v1911, %v1912
        %v1914 = vrot.slane %v1913, 2
        %v1915 = vadd.f32 %v1913, %v1914
        %v1916 = vrot.slane %v1915, 1
        %v1917 = vadd.f32 %v1915, %v1916
        %v1918 = vadd.f32 %v1106, %v1122
        %v1919 = vrot.slane %v1918, 4
        %v1920 = vadd.f32 %v1918, %v1919
        %v1921 = vrot.slane %v1920, 2
        %v1922 = vadd.f32 %v1920, %v1921
        %v1923 = vrot.slane %v1922, 1
        %v1924 = vadd.f32 %v1922, %v1923
        %v1925 = vadd.f32 %v1107, %v1123
        %v1926 = vrot.slane %v1925, 4
        %v1927 = vadd.f32 %v1925, %v1926
        %v1928 = vrot.slane %v1927, 2
        %v1929 = vadd.f32 %v1927, %v1928
        %v1930 = vrot.slane %v1929, 1
        %v1931 = vadd.f32 %v1929, %v1930
        %v1932 = vadd.f32 %v1108, %v1124
        %v1933 = vrot.slane %v1932, 4
        %v1934 = vadd.f32 %v1932, %v1933
        %v1935 = vrot.slane %v1934, 2
        %v1936 = vadd.f32 %v1934, %v1935
        %v1937 = vrot.slane %v1936, 1
        %v1938 = vadd.f32 %v1936, %v1937
        %v1939 = vadd.f32 %v1109, %v1125
        %v1940 = vrot.slane %v1939, 4
        %v1941 = vadd.f32 %v1939, %v1940
        %v1942 = vrot.slane %v1941, 2
        %v1943 = vadd.f32 %v1941, %v1942
        %v1944 = vrot.slane %v1943, 1
        %v1945 = vadd.f32 %v1943, %v1944
        %v1946 = vadd.f32 %v1110, %v1126
        %v1947 = vrot.slane %v1946, 4
        %v1948 = vadd.f32 %v1946, %v1947
        %v1949 = vrot.slane %v1948, 2
        %v1950 = vadd.f32 %v1948, %v1949
        %v1951 = vrot.slane %v1950, 1
        %v1952 = vadd.f32 %v1950, %v1951
        %v1953 = vadd.f32 %v1111, %v1127
        %v1954 = vrot.slane %v1953, 4
        %v1955 = vadd.f32 %v1953, %v1954
        %v1956 = vrot.slane %v1955, 2
        %v1957 = vadd.f32 %v1955, %v1956
        %v1958 = vrot.slane %v1957, 1
        %v1959 = vadd.f32 %v1957, %v1958
        %v1960 = vadd.f32 %v1128, %v1144
        %v1961 = vrot.slane %v1960, 4
        %v1962 = vadd.f32 %v1960, %v1961
        %v1963 = vrot.slane %v1962, 2
        %v1964 = vadd.f32 %v1962, %v1963
        %v1965 = vrot.slane %v1964, 1
        %v1966 = vadd.f32 %v1964, %v1965
        %v1967 = vadd.f32 %v1129, %v1145
        %v1968 = vrot.slane %v1967, 4
        %v1969 = vadd.f32 %v1967, %v1968
        %v1970 = vrot.slane %v1969, 2
        %v1971 = vadd.f32 %v1969, %v1970
        %v1972 = vrot.slane %v1971, 1
        %v1973 = vadd.f32 %v1971, %v1972
        %v1974 = vadd.f32 %v1130, %v1146
        %v1975 = vrot.slane %v1974, 4
        %v1976 = vadd.f32 %v1974, %v1975
        %v1977 = vrot.slane %v1976, 2
        %v1978 = vadd.f32 %v1976, %v1977
        %v1979 = vrot.slane %v1978, 1
        %v1980 = vadd.f32 %v1978, %v1979
        %v1981 = vadd.f32 %v1131, %v1147
        %v1982 = vrot.slane %v1981, 4
        %v1983 = vadd.f32 %v1981, %v1982
        %v1984 = vrot.slane %v1983, 2
        %v1985 = vadd.f32 %v1983, %v1984
        %v1986 = vrot.slane %v1985, 1
        %v1987 = vadd.f32 %v1985, %v1986
        %v1988 = vadd.f32 %v1132, %v1148
        %v1989 = vrot.slane %v1988, 4
        %v1990 = vadd.f32 %v1988, %v1989
        %v1991 = vrot.slane %v1990, 2
        %v1992 = vadd.f32 %v1990, %v1991
        %v1993 = vrot.slane %v1992, 1
        %v1994 = vadd.f32 %v1992, %v1993
        %v1995 = vadd.f32 %v1133, %v1149
        %v1996 = vrot.slane %v1995, 4
        %v1997 = vadd.f32 %v1995, %v1996
        %v1998 = vrot.slane %v1997, 2
        %v1999 = vadd.f32 %v1997, %v1998
        %v2000 = vrot.slane %v1999, 1
        %v2001 = vadd.f32 %v1999, %v2000
        %v2002 = vadd.f32 %v1134, %v1150
        %v2003 = vrot.slane %v2002, 4
        %v2004 = vadd.f32 %v2002, %v2003
        %v2005 = vrot.slane %v2004, 2
        %v2006 = vadd.f32 %v2004, %v2005
        %v2007 = vrot.slane %v2006, 1
        %v2008 = vadd.f32 %v2006, %v2007
        %v2009 = vadd.f32 %v1135, %v1151
        %v2010 = vrot.slane %v2009, 4
        %v2011 = vadd.f32 %v2009, %v2010
        %v2012 = vrot.slane %v2011, 2
        %v2013 = vadd.f32 %v2011, %v2012
        %v2014 = vrot.slane %v2013, 1
        %v2015 = vadd.f32 %v2013, %v2014
        %v2016 = vadd.f32 %v1136, %v1152
        %v2017 = vrot.slane %v2016, 4
        %v2018 = vadd.f32 %v2016, %v2017
        %v2019 = vrot.slane %v2018, 2
        %v2020 = vadd.f32 %v2018, %v2019
        %v2021 = vrot.slane %v2020, 1
        %v2022 = vadd.f32 %v2020, %v2021
        %v2023 = vadd.f32 %v1137, %v1153
        %v2024 = vrot.slane %v2023, 4
        %v2025 = vadd.f32 %v2023, %v2024
        %v2026 = vrot.slane %v2025, 2
        %v2027 = vadd.f32 %v2025, %v2026
        %v2028 = vrot.slane %v2027, 1
        %v2029 = vadd.f32 %v2027, %v2028
        %v2030 = vadd.f32 %v1138, %v1154
        %v2031 = vrot.slane %v2030, 4
        %v2032 = vadd.f32 %v2030, %v2031
        %v2033 = vrot.slane %v2032, 2
        %v2034 = vadd.f32 %v2032, %v2033
        %v2035 = vrot.slane %v2034, 1
        %v2036 = vadd.f32 %v2034, %v2035
        %v2037 = vadd.f32 %v1139, %v1155
        %v2038 = vrot.slane %v2037, 4
        %v2039 = vadd.f32 %v2037, %v2038
        %v2040 = vrot.slane %v2039, 2
        %v2041 = vadd.f32 %v2039, %v2040
        %v2042 = vrot.slane %v2041, 1
        %v2043 = vadd.f32 %v2041, %v2042
        %v2044 = vadd.f32 %v1140, %v1156
        %v2045 = vrot.slane %v2044, 4
        %v2046 = vadd.f32 %v2044, %v2045
        %v2047 = vrot.slane %v2046, 2
        %v2048 = vadd.f32 %v2046, %v2047
        %v2049 = vrot.slane %v2048, 1
        %v2050 = vadd.f32 %v2048, %v2049
        %v2051 = vadd.f32 %v1141, %v1157
        %v2052 = vrot.slane %v2051, 4
        %v2053 = vadd.f32 %v2051, %v2052
        %v2054 = vrot.slane %v2053, 2
        %v2055 = vadd.f32 %v2053, %v2054
        %v2056 = vrot.slane %v2055, 1
        %v2057 = vadd.f32 %v2055, %v2056
        %v2058 = vadd.f32 %v1142, %v1158
        %v2059 = vrot.slane %v2058, 4
        %v2060 = vadd.f32 %v2058, %v2059
        %v2061 = vrot.slane %v2060, 2
        %v2062 = vadd.f32 %v2060, %v2061
        %v2063 = vrot.slane %v2062, 1
        %v2064 = vadd.f32 %v2062, %v2063
        %v2065 = vadd.f32 %v1143, %v1159
        %v2066 = vrot.slane %v2065, 4
        %v2067 = vadd.f32 %v2065, %v2066
        %v2068 = vrot.slane %v2067, 2
        %v2069 = vadd.f32 %v2067, %v2068
        %v2070 = vrot.slane %v2069, 1
        %v2071 = vadd.f32 %v2069, %v2070
        %v2072 = vadd.f32 %v1160, %v1176
        %v2073 = vrot.slane %v2072, 4
        %v2074 = vadd.f32 %v2072, %v2073
        %v2075 = vrot.slane %v2074, 2
        %v2076 = vadd.f32 %v2074, %v2075
        %v2077 = vrot.slane %v2076, 1
        %v2078 = vadd.f32 %v2076, %v2077
        %v2079 = vadd.f32 %v1161, %v1177
        %v2080 = vrot.slane %v2079, 4
        %v2081 = vadd.f32 %v2079, %v2080
        %v2082 = vrot.slane %v2081, 2
        %v2083 = vadd.f32 %v2081, %v2082
        %v2084 = vrot.slane %v2083, 1
        %v2085 = vadd.f32 %v2083, %v2084
        %v2086 = vadd.f32 %v1162, %v1178
        %v2087 = vrot.slane %v2086, 4
        %v2088 = vadd.f32 %v2086, %v2087
        %v2089 = vrot.slane %v2088, 2
        %v2090 = vadd.f32 %v2088, %v2089
        %v2091 = vrot.slane %v2090, 1
        %v2092 = vadd.f32 %v2090, %v2091
        %v2093 = vadd.f32 %v1163, %v1179
        %v2094 = vrot.slane %v2093, 4
        %v2095 = vadd.f32 %v2093, %v2094
        %v2096 = vrot.slane %v2095, 2
        %v2097 = vadd.f32 %v2095, %v2096
        %v2098 = vrot.slane %v2097, 1
        %v2099 = vadd.f32 %v2097, %v2098
        %v2100 = vadd.f32 %v1164, %v1180
        %v2101 = vrot.slane %v2100, 4
        %v2102 = vadd.f32 %v2100, %v2101
        %v2103 = vrot.slane %v2102, 2
        %v2104 = vadd.f32 %v2102, %v2103
        %v2105 = vrot.slane %v2104, 1
        %v2106 = vadd.f32 %v2104, %v2105
        %v2107 = vadd.f32 %v1165, %v1181
        %v2108 = vrot.slane %v2107, 4
        %v2109 = vadd.f32 %v2107, %v2108
        %v2110 = vrot.slane %v2109, 2
        %v2111 = vadd.f32 %v2109, %v2110
        %v2112 = vrot.slane %v2111, 1
        %v2113 = vadd.f32 %v2111, %v2112
        %v2114 = vadd.f32 %v1166, %v1182
        %v2115 = vrot.slane %v2114, 4
        %v2116 = vadd.f32 %v2114, %v2115
        %v2117 = vrot.slane %v2116, 2
        %v2118 = vadd.f32 %v2116, %v2117
        %v2119 = vrot.slane %v2118, 1
        %v2120 = vadd.f32 %v2118, %v2119
        %v2121 = vadd.f32 %v1167, %v1183
        %v2122 = vrot.slane %v2121, 4
        %v2123 = vadd.f32 %v2121, %v2122
        %v2124 = vrot.slane %v2123, 2
        %v2125 = vadd.f32 %v2123, %v2124
        %v2126 = vrot.slane %v2125, 1
        %v2127 = vadd.f32 %v2125, %v2126
        %v2128 = vadd.f32 %v1168, %v1184
        %v2129 = vrot.slane %v2128, 4
        %v2130 = vadd.f32 %v2128, %v2129
        %v2131 = vrot.slane %v2130, 2
        %v2132 = vadd.f32 %v2130, %v2131
        %v2133 = vrot.slane %v2132, 1
        %v2134 = vadd.f32 %v2132, %v2133
        %v2135 = vadd.f32 %v1169, %v1185
        %v2136 = vrot.slane %v2135, 4
        %v2137 = vadd.f32 %v2135, %v2136
        %v2138 = vrot.slane %v2137, 2
        %v2139 = vadd.f32 %v2137, %v2138
        %v2140 = vrot.slane %v2139, 1
        %v2141 = vadd.f32 %v2139, %v2140
        %v2142 = vadd.f32 %v1170, %v1186
        %v2143 = vrot.slane %v2142, 4
        %v2144 = vadd.f32 %v2142, %v2143
        %v2145 = vrot.slane %v2144, 2
        %v2146 = vadd.f32 %v2144, %v2145
        %v2147 = vrot.slane %v2146, 1
        %v2148 = vadd.f32 %v2146, %v2147
        %v2149 = vadd.f32 %v1171, %v1187
        %v2150 = vrot.slane %v2149, 4
        %v2151 = vadd.f32 %v2149, %v2150
        %v2152 = vrot.slane %v2151, 2
        %v2153 = vadd.f32 %v2151, %v2152
        %v2154 = vrot.slane %v2153, 1
        %v2155 = vadd.f32 %v2153, %v2154
        %v2156 = vadd.f32 %v1172, %v1188
        %v2157 = vrot.slane %v2156, 4
        %v2158 = vadd.f32 %v2156, %v2157
        %v2159 = vrot.slane %v2158, 2
        %v2160 = vadd.f32 %v2158, %v2159
        %v2161 = vrot.slane %v2160, 1
        %v2162 = vadd.f32 %v2160, %v2161
        %v2163 = vadd.f32 %v1173, %v1189
        %v2164 = vrot.slane %v2163, 4
        %v2165 = vadd.f32 %v2163, %v2164
        %v2166 = vrot.slane %v2165, 2
        %v2167 = vadd.f32 %v2165, %v2166
        %v2168 = vrot.slane %v2167, 1
        %v2169 = vadd.f32 %v2167, %v2168
        %v2170 = vadd.f32 %v1174, %v1190
        %v2171 = vrot.slane %v2170, 4
        %v2172 = vadd.f32 %v2170, %v2171
        %v2173 = vrot.slane %v2172, 2
        %v2174 = vadd.f32 %v2172, %v2173
        %v2175 = vrot.slane %v2174, 1
        %v2176 = vadd.f32 %v2174, %v2175
        %v2177 = vadd.f32 %v1175, %v1191
        %v2178 = vrot.slane %v2177, 4
        %v2179 = vadd.f32 %v2177, %v2178
        %v2180 = vrot.slane %v2179, 2
        %v2181 = vadd.f32 %v2179, %v2180
        %v2182 = vrot.slane %v2181, 1
        %v2183 = vadd.f32 %v2181, %v2182
        %v2184 = vadd.f32 %v1192, %v1208
        %v2185 = vrot.slane %v2184, 4
        %v2186 = vadd.f32 %v2184, %v2185
        %v2187 = vrot.slane %v2186, 2
        %v2188 = vadd.f32 %v2186, %v2187
        %v2189 = vrot.slane %v2188, 1
        %v2190 = vadd.f32 %v2188, %v2189
        %v2191 = vadd.f32 %v1193, %v1209
        %v2192 = vrot.slane %v2191, 4
        %v2193 = vadd.f32 %v2191, %v2192
        %v2194 = vrot.slane %v2193, 2
        %v2195 = vadd.f32 %v2193, %v2194
        %v2196 = vrot.slane %v2195, 1
        %v2197 = vadd.f32 %v2195, %v2196
        %v2198 = vadd.f32 %v1194, %v1210
        %v2199 = vrot.slane %v2198, 4
        %v2200 = vadd.f32 %v2198, %v2199
        %v2201 = vrot.slane %v2200, 2
        %v2202 = vadd.f32 %v2200, %v2201
        %v2203 = vrot.slane %v2202, 1
        %v2204 = vadd.f32 %v2202, %v2203
        %v2205 = vadd.f32 %v1195, %v1211
        %v2206 = vrot.slane %v2205, 4
        %v2207 = vadd.f32 %v2205, %v2206
        %v2208 = vrot.slane %v2207, 2
        %v2209 = vadd.f32 %v2207, %v2208
        %v2210 = vrot.slane %v2209, 1
        %v2211 = vadd.f32 %v2209, %v2210
        %v2212 = vadd.f32 %v1196, %v1212
        %v2213 = vrot.slane %v2212, 4
        %v2214 = vadd.f32 %v2212, %v2213
        %v2215 = vrot.slane %v2214, 2
        %v2216 = vadd.f32 %v2214, %v2215
        %v2217 = vrot.slane %v2216, 1
        %v2218 = vadd.f32 %v2216, %v2217
        %v2219 = vadd.f32 %v1197, %v1213
        %v2220 = vrot.slane %v2219, 4
        %v2221 = vadd.f32 %v2219, %v2220
        %v2222 = vrot.slane %v2221, 2
        %v2223 = vadd.f32 %v2221, %v2222
        %v2224 = vrot.slane %v2223, 1
        %v2225 = vadd.f32 %v2223, %v2224
        %v2226 = vadd.f32 %v1198, %v1214
        %v2227 = vrot.slane %v2226, 4
        %v2228 = vadd.f32 %v2226, %v2227
        %v2229 = vrot.slane %v2228, 2
        %v2230 = vadd.f32 %v2228, %v2229
        %v2231 = vrot.slane %v2230, 1
        %v2232 = vadd.f32 %v2230, %v2231
        %v2233 = vadd.f32 %v1199, %v1215
        %v2234 = vrot.slane %v2233, 4
        %v2235 = vadd.f32 %v2233, %v2234
        %v2236 = vrot.slane %v2235, 2
        %v2237 = vadd.f32 %v2235, %v2236
        %v2238 = vrot.slane %v2237, 1
        %v2239 = vadd.f32 %v2237, %v2238
        %v2240 = vadd.f32 %v1200, %v1216
        %v2241 = vrot.slane %v2240, 4
        %v2242 = vadd.f32 %v2240, %v2241
        %v2243 = vrot.slane %v2242, 2
        %v2244 = vadd.f32 %v2242, %v2243
        %v2245 = vrot.slane %v2244, 1
        %v2246 = vadd.f32 %v2244, %v2245
        %v2247 = vadd.f32 %v1201, %v1217
        %v2248 = vrot.slane %v2247, 4
        %v2249 = vadd.f32 %v2247, %v2248
        %v2250 = vrot.slane %v2249, 2
        %v2251 = vadd.f32 %v2249, %v2250
        %v2252 = vrot.slane %v2251, 1
        %v2253 = vadd.f32 %v2251, %v2252
        %v2254 = vadd.f32 %v1202, %v1218
        %v2255 = vrot.slane %v2254, 4
        %v2256 = vadd.f32 %v2254, %v2255
        %v2257 = vrot.slane %v2256, 2
        %v2258 = vadd.f32 %v2256, %v2257
        %v2259 = vrot.slane %v2258, 1
        %v2260 = vadd.f32 %v2258, %v2259
        %v2261 = vadd.f32 %v1203, %v1219
        %v2262 = vrot.slane %v2261, 4
        %v2263 = vadd.f32 %v2261, %v2262
        %v2264 = vrot.slane %v2263, 2
        %v2265 = vadd.f32 %v2263, %v2264
        %v2266 = vrot.slane %v2265, 1
        %v2267 = vadd.f32 %v2265, %v2266
        %v2268 = vadd.f32 %v1204, %v1220
        %v2269 = vrot.slane %v2268, 4
        %v2270 = vadd.f32 %v2268, %v2269
        %v2271 = vrot.slane %v2270, 2
        %v2272 = vadd.f32 %v2270, %v2271
        %v2273 = vrot.slane %v2272, 1
        %v2274 = vadd.f32 %v2272, %v2273
        %v2275 = vadd.f32 %v1205, %v1221
        %v2276 = vrot.slane %v2275, 4
        %v2277 = vadd.f32 %v2275, %v2276
        %v2278 = vrot.slane %v2277, 2
        %v2279 = vadd.f32 %v2277, %v2278
        %v2280 = vrot.slane %v2279, 1
        %v2281 = vadd.f32 %v2279, %v2280
        %v2282 = vadd.f32 %v1206, %v1222
        %v2283 = vrot.slane %v2282, 4
        %v2284 = vadd.f32 %v2282, %v2283
        %v2285 = vrot.slane %v2284, 2
        %v2286 = vadd.f32 %v2284, %v2285
        %v2287 = vrot.slane %v2286, 1
        %v2288 = vadd.f32 %v2286, %v2287
        %v2289 = vadd.f32 %v1207, %v1223
        %v2290 = vrot.slane %v2289, 4
        %v2291 = vadd.f32 %v2289, %v2290
        %v2292 = vrot.slane %v2291, 2
        %v2293 = vadd.f32 %v2291, %v2292
        %v2294 = vrot.slane %v2293, 1
        %v2295 = vadd.f32 %v2293, %v2294
        %v2296 = vadd.f32 %v1224, %v1240
        %v2297 = vrot.slane %v2296, 4
        %v2298 = vadd.f32 %v2296, %v2297
        %v2299 = vrot.slane %v2298, 2
        %v2300 = vadd.f32 %v2298, %v2299
        %v2301 = vrot.slane %v2300, 1
        %v2302 = vadd.f32 %v2300, %v2301
        %v2303 = vadd.f32 %v1225, %v1241
        %v2304 = vrot.slane %v2303, 4
        %v2305 = vadd.f32 %v2303, %v2304
        %v2306 = vrot.slane %v2305, 2
        %v2307 = vadd.f32 %v2305, %v2306
        %v2308 = vrot.slane %v2307, 1
        %v2309 = vadd.f32 %v2307, %v2308
        %v2310 = vadd.f32 %v1226, %v1242
        %v2311 = vrot.slane %v2310, 4
        %v2312 = vadd.f32 %v2310, %v2311
        %v2313 = vrot.slane %v2312, 2
        %v2314 = vadd.f32 %v2312, %v2313
        %v2315 = vrot.slane %v2314, 1
        %v2316 = vadd.f32 %v2314, %v2315
        %v2317 = vadd.f32 %v1227, %v1243
        %v2318 = vrot.slane %v2317, 4
        %v2319 = vadd.f32 %v2317, %v2318
        %v2320 = vrot.slane %v2319, 2
        %v2321 = vadd.f32 %v2319, %v2320
        %v2322 = vrot.slane %v2321, 1
        %v2323 = vadd.f32 %v2321, %v2322
        %v2324 = vadd.f32 %v1228, %v1244
        %v2325 = vrot.slane %v2324, 4
        %v2326 = vadd.f32 %v2324, %v2325
        %v2327 = vrot.slane %v2326, 2
        %v2328 = vadd.f32 %v2326, %v2327
        %v2329 = vrot.slane %v2328, 1
        %v2330 = vadd.f32 %v2328, %v2329
        %v2331 = vadd.f32 %v1229, %v1245
        %v2332 = vrot.slane %v2331, 4
        %v2333 = vadd.f32 %v2331, %v2332
        %v2334 = vrot.slane %v2333, 2
        %v2335 = vadd.f32 %v2333, %v2334
        %v2336 = vrot.slane %v2335, 1
        %v2337 = vadd.f32 %v2335, %v2336
        %v2338 = vadd.f32 %v1230, %v1246
        %v2339 = vrot.slane %v2338, 4
        %v2340 = vadd.f32 %v2338, %v2339
        %v2341 = vrot.slane %v2340, 2
        %v2342 = vadd.f32 %v2340, %v2341
        %v2343 = vrot.slane %v2342, 1
        %v2344 = vadd.f32 %v2342, %v2343
        %v2345 = vadd.f32 %v1231, %v1247
        %v2346 = vrot.slane %v2345, 4
        %v2347 = vadd.f32 %v2345, %v2346
        %v2348 = vrot.slane %v2347, 2
        %v2349 = vadd.f32 %v2347, %v2348
        %v2350 = vrot.slane %v2349, 1
        %v2351 = vadd.f32 %v2349, %v2350
        %v2352 = vadd.f32 %v1232, %v1248
        %v2353 = vrot.slane %v2352, 4
        %v2354 = vadd.f32 %v2352, %v2353
        %v2355 = vrot.slane %v2354, 2
        %v2356 = vadd.f32 %v2354, %v2355
        %v2357 = vrot.slane %v2356, 1
        %v2358 = vadd.f32 %v2356, %v2357
        %v2359 = vadd.f32 %v1233, %v1249
        %v2360 = vrot.slane %v2359, 4
        %v2361 = vadd.f32 %v2359, %v2360
        %v2362 = vrot.slane %v2361, 2
        %v2363 = vadd.f32 %v2361, %v2362
        %v2364 = vrot.slane %v2363, 1
        %v2365 = vadd.f32 %v2363, %v2364
        %v2366 = vadd.f32 %v1234, %v1250
        %v2367 = vrot.slane %v2366, 4
        %v2368 = vadd.f32 %v2366, %v2367
        %v2369 = vrot.slane %v2368, 2
        %v2370 = vadd.f32 %v2368, %v2369
        %v2371 = vrot.slane %v2370, 1
        %v2372 = vadd.f32 %v2370, %v2371
        %v2373 = vadd.f32 %v1235, %v1251
        %v2374 = vrot.slane %v2373, 4
        %v2375 = vadd.f32 %v2373, %v2374
        %v2376 = vrot.slane %v2375, 2
        %v2377 = vadd.f32 %v2375, %v2376
        %v2378 = vrot.slane %v2377, 1
        %v2379 = vadd.f32 %v2377, %v2378
        %v2380 = vadd.f32 %v1236, %v1252
        %v2381 = vrot.slane %v2380, 4
        %v2382 = vadd.f32 %v2380, %v2381
        %v2383 = vrot.slane %v2382, 2
        %v2384 = vadd.f32 %v2382, %v2383
        %v2385 = vrot.slane %v2384, 1
        %v2386 = vadd.f32 %v2384, %v2385
        %v2387 = vadd.f32 %v1237, %v1253
        %v2388 = vrot.slane %v2387, 4
        %v2389 = vadd.f32 %v2387, %v2388
        %v2390 = vrot.slane %v2389, 2
        %v2391 = vadd.f32 %v2389, %v2390
        %v2392 = vrot.slane %v2391, 1
        %v2393 = vadd.f32 %v2391, %v2392
        %v2394 = vadd.f32 %v1238, %v1254
        %v2395 = vrot.slane %v2394, 4
        %v2396 = vadd.f32 %v2394, %v2395
        %v2397 = vrot.slane %v2396, 2
        %v2398 = vadd.f32 %v2396, %v2397
        %v2399 = vrot.slane %v2398, 1
        %v2400 = vadd.f32 %v2398, %v2399
        %v2401 = vadd.f32 %v1239, %v1255
        %v2402 = vrot.slane %v2401, 4
        %v2403 = vadd.f32 %v2401, %v2402
        %v2404 = vrot.slane %v2403, 2
        %v2405 = vadd.f32 %v2403, %v2404
        %v2406 = vrot.slane %v2405, 1
        %v2407 = vadd.f32 %v2405, %v2406
        %v2408 = vadd.f32 %v1256, %v1272
        %v2409 = vrot.slane %v2408, 4
        %v2410 = vadd.f32 %v2408, %v2409
        %v2411 = vrot.slane %v2410, 2
        %v2412 = vadd.f32 %v2410, %v2411
        %v2413 = vrot.slane %v2412, 1
        %v2414 = vadd.f32 %v2412, %v2413
        %v2415 = vadd.f32 %v1257, %v1273
        %v2416 = vrot.slane %v2415, 4
        %v2417 = vadd.f32 %v2415, %v2416
        %v2418 = vrot.slane %v2417, 2
        %v2419 = vadd.f32 %v2417, %v2418
        %v2420 = vrot.slane %v2419, 1
        %v2421 = vadd.f32 %v2419, %v2420
        %v2422 = vadd.f32 %v1258, %v1274
        %v2423 = vrot.slane %v2422, 4
        %v2424 = vadd.f32 %v2422, %v2423
        %v2425 = vrot.slane %v2424, 2
        %v2426 = vadd.f32 %v2424, %v2425
        %v2427 = vrot.slane %v2426, 1
        %v2428 = vadd.f32 %v2426, %v2427
        %v2429 = vadd.f32 %v1259, %v1275
        %v2430 = vrot.slane %v2429, 4
        %v2431 = vadd.f32 %v2429, %v2430
        %v2432 = vrot.slane %v2431, 2
        %v2433 = vadd.f32 %v2431, %v2432
        %v2434 = vrot.slane %v2433, 1
        %v2435 = vadd.f32 %v2433, %v2434
        %v2436 = vadd.f32 %v1260, %v1276
        %v2437 = vrot.slane %v2436, 4
        %v2438 = vadd.f32 %v2436, %v2437
        %v2439 = vrot.slane %v2438, 2
        %v2440 = vadd.f32 %v2438, %v2439
        %v2441 = vrot.slane %v2440, 1
        %v2442 = vadd.f32 %v2440, %v2441
        %v2443 = vadd.f32 %v1261, %v1277
        %v2444 = vrot.slane %v2443, 4
        %v2445 = vadd.f32 %v2443, %v2444
        %v2446 = vrot.slane %v2445, 2
        %v2447 = vadd.f32 %v2445, %v2446
        %v2448 = vrot.slane %v2447, 1
        %v2449 = vadd.f32 %v2447, %v2448
        %v2450 = vadd.f32 %v1262, %v1278
        %v2451 = vrot.slane %v2450, 4
        %v2452 = vadd.f32 %v2450, %v2451
        %v2453 = vrot.slane %v2452, 2
        %v2454 = vadd.f32 %v2452, %v2453
        %v2455 = vrot.slane %v2454, 1
        %v2456 = vadd.f32 %v2454, %v2455
        %v2457 = vadd.f32 %v1263, %v1279
        %v2458 = vrot.slane %v2457, 4
        %v2459 = vadd.f32 %v2457, %v2458
        %v2460 = vrot.slane %v2459, 2
        %v2461 = vadd.f32 %v2459, %v2460
        %v2462 = vrot.slane %v2461, 1
        %v2463 = vadd.f32 %v2461, %v2462
        %v2464 = vadd.f32 %v1264, %v1280
        %v2465 = vrot.slane %v2464, 4
        %v2466 = vadd.f32 %v2464, %v2465
        %v2467 = vrot.slane %v2466, 2
        %v2468 = vadd.f32 %v2466, %v2467
        %v2469 = vrot.slane %v2468, 1
        %v2470 = vadd.f32 %v2468, %v2469
        %v2471 = vadd.f32 %v1265, %v1281
        %v2472 = vrot.slane %v2471, 4
        %v2473 = vadd.f32 %v2471, %v2472
        %v2474 = vrot.slane %v2473, 2
        %v2475 = vadd.f32 %v2473, %v2474
        %v2476 = vrot.slane %v2475, 1
        %v2477 = vadd.f32 %v2475, %v2476
        %v2478 = vadd.f32 %v1266, %v1282
        %v2479 = vrot.slane %v2478, 4
        %v2480 = vadd.f32 %v2478, %v2479
        %v2481 = vrot.slane %v2480, 2
        %v2482 = vadd.f32 %v2480, %v2481
        %v2483 = vrot.slane %v2482, 1
        %v2484 = vadd.f32 %v2482, %v2483
        %v2485 = vadd.f32 %v1267, %v1283
        %v2486 = vrot.slane %v2485, 4
        %v2487 = vadd.f32 %v2485, %v2486
        %v2488 = vrot.slane %v2487, 2
        %v2489 = vadd.f32 %v2487, %v2488
        %v2490 = vrot.slane %v2489, 1
        %v2491 = vadd.f32 %v2489, %v2490
        %v2492 = vadd.f32 %v1268, %v1284
        %v2493 = vrot.slane %v2492, 4
        %v2494 = vadd.f32 %v2492, %v2493
        %v2495 = vrot.slane %v2494, 2
        %v2496 = vadd.f32 %v2494, %v2495
        %v2497 = vrot.slane %v2496, 1
        %v2498 = vadd.f32 %v2496, %v2497
        %v2499 = vadd.f32 %v1269, %v1285
        %v2500 = vrot.slane %v2499, 4
        %v2501 = vadd.f32 %v2499, %v2500
        %v2502 = vrot.slane %v2501, 2
        %v2503 = vadd.f32 %v2501, %v2502
        %v2504 = vrot.slane %v2503, 1
        %v2505 = vadd.f32 %v2503, %v2504
        %v2506 = vadd.f32 %v1270, %v1286
        %v2507 = vrot.slane %v2506, 4
        %v2508 = vadd.f32 %v2506, %v2507
        %v2509 = vrot.slane %v2508, 2
        %v2510 = vadd.f32 %v2508, %v2509
        %v2511 = vrot.slane %v2510, 1
        %v2512 = vadd.f32 %v2510, %v2511
        %v2513 = vadd.f32 %v1271, %v1287
        %v2514 = vrot.slane %v2513, 4
        %v2515 = vadd.f32 %v2513, %v2514
        %v2516 = vrot.slane %v2515, 2
        %v2517 = vadd.f32 %v2515, %v2516
        %v2518 = vrot.slane %v2517, 1
        %v2519 = vadd.f32 %v2517, %v2518
        %v2520 = vadd.f32 %v1288, %v1304
        %v2521 = vrot.slane %v2520, 4
        %v2522 = vadd.f32 %v2520, %v2521
        %v2523 = vrot.slane %v2522, 2
        %v2524 = vadd.f32 %v2522, %v2523
        %v2525 = vrot.slane %v2524, 1
        %v2526 = vadd.f32 %v2524, %v2525
        %v2527 = vadd.f32 %v1289, %v1305
        %v2528 = vrot.slane %v2527, 4
        %v2529 = vadd.f32 %v2527, %v2528
        %v2530 = vrot.slane %v2529, 2
        %v2531 = vadd.f32 %v2529, %v2530
        %v2532 = vrot.slane %v2531, 1
        %v2533 = vadd.f32 %v2531, %v2532
        %v2534 = vadd.f32 %v1290, %v1306
        %v2535 = vrot.slane %v2534, 4
        %v2536 = vadd.f32 %v2534, %v2535
        %v2537 = vrot.slane %v2536, 2
        %v2538 = vadd.f32 %v2536, %v2537
        %v2539 = vrot.slane %v2538, 1
        %v2540 = vadd.f32 %v2538, %v2539
        %v2541 = vadd.f32 %v1291, %v1307
        %v2542 = vrot.slane %v2541, 4
        %v2543 = vadd.f32 %v2541, %v2542
        %v2544 = vrot.slane %v2543, 2
        %v2545 = vadd.f32 %v2543, %v2544
        %v2546 = vrot.slane %v2545, 1
        %v2547 = vadd.f32 %v2545, %v2546
        %v2548 = vadd.f32 %v1292, %v1308
        %v2549 = vrot.slane %v2548, 4
        %v2550 = vadd.f32 %v2548, %v2549
        %v2551 = vrot.slane %v2550, 2
        %v2552 = vadd.f32 %v2550, %v2551
        %v2553 = vrot.slane %v2552, 1
        %v2554 = vadd.f32 %v2552, %v2553
        %v2555 = vadd.f32 %v1293, %v1309
        %v2556 = vrot.slane %v2555, 4
        %v2557 = vadd.f32 %v2555, %v2556
        %v2558 = vrot.slane %v2557, 2
        %v2559 = vadd.f32 %v2557, %v2558
        %v2560 = vrot.slane %v2559, 1
        %v2561 = vadd.f32 %v2559, %v2560
        %v2562 = vadd.f32 %v1294, %v1310
        %v2563 = vrot.slane %v2562, 4
        %v2564 = vadd.f32 %v2562, %v2563
        %v2565 = vrot.slane %v2564, 2
        %v2566 = vadd.f32 %v2564, %v2565
        %v2567 = vrot.slane %v2566, 1
        %v2568 = vadd.f32 %v2566, %v2567
        %v2569 = vadd.f32 %v1295, %v1311
        %v2570 = vrot.slane %v2569, 4
        %v2571 = vadd.f32 %v2569, %v2570
        %v2572 = vrot.slane %v2571, 2
        %v2573 = vadd.f32 %v2571, %v2572
        %v2574 = vrot.slane %v2573, 1
        %v2575 = vadd.f32 %v2573, %v2574
        %v2576 = vadd.f32 %v1296, %v1312
        %v2577 = vrot.slane %v2576, 4
        %v2578 = vadd.f32 %v2576, %v2577
        %v2579 = vrot.slane %v2578, 2
        %v2580 = vadd.f32 %v2578, %v2579
        %v2581 = vrot.slane %v2580, 1
        %v2582 = vadd.f32 %v2580, %v2581
        %v2583 = vadd.f32 %v1297, %v1313
        %v2584 = vrot.slane %v2583, 4
        %v2585 = vadd.f32 %v2583, %v2584
        %v2586 = vrot.slane %v2585, 2
        %v2587 = vadd.f32 %v2585, %v2586
        %v2588 = vrot.slane %v2587, 1
        %v2589 = vadd.f32 %v2587, %v2588
        %v2590 = vadd.f32 %v1298, %v1314
        %v2591 = vrot.slane %v2590, 4
        %v2592 = vadd.f32 %v2590, %v2591
        %v2593 = vrot.slane %v2592, 2
        %v2594 = vadd.f32 %v2592, %v2593
        %v2595 = vrot.slane %v2594, 1
        %v2596 = vadd.f32 %v2594, %v2595
        %v2597 = vadd.f32 %v1299, %v1315
        %v2598 = vrot.slane %v2597, 4
        %v2599 = vadd.f32 %v2597, %v2598
        %v2600 = vrot.slane %v2599, 2
        %v2601 = vadd.f32 %v2599, %v2600
        %v2602 = vrot.slane %v2601, 1
        %v2603 = vadd.f32 %v2601, %v2602
        %v2604 = vadd.f32 %v1300, %v1316
        %v2605 = vrot.slane %v2604, 4
        %v2606 = vadd.f32 %v2604, %v2605
        %v2607 = vrot.slane %v2606, 2
        %v2608 = vadd.f32 %v2606, %v2607
        %v2609 = vrot.slane %v2608, 1
        %v2610 = vadd.f32 %v2608, %v2609
        %v2611 = vadd.f32 %v1301, %v1317
        %v2612 = vrot.slane %v2611, 4
        %v2613 = vadd.f32 %v2611, %v2612
        %v2614 = vrot.slane %v2613, 2
        %v2615 = vadd.f32 %v2613, %v2614
        %v2616 = vrot.slane %v2615, 1
        %v2617 = vadd.f32 %v2615, %v2616
        %v2618 = vadd.f32 %v1302, %v1318
        %v2619 = vrot.slane %v2618, 4
        %v2620 = vadd.f32 %v2618, %v2619
        %v2621 = vrot.slane %v2620, 2
        %v2622 = vadd.f32 %v2620, %v2621
        %v2623 = vrot.slane %v2622, 1
        %v2624 = vadd.f32 %v2622, %v2623
        %v2625 = vadd.f32 %v1303, %v1319
        %v2626 = vrot.slane %v2625, 4
        %v2627 = vadd.f32 %v2625, %v2626
        %v2628 = vrot.slane %v2627, 2
        %v2629 = vadd.f32 %v2627, %v2628
        %v2630 = vrot.slane %v2629, 1
        %v2631 = vadd.f32 %v2629, %v2630
        %v2632 = vadd.f32 %v1320, %v1336
        %v2633 = vrot.slane %v2632, 4
        %v2634 = vadd.f32 %v2632, %v2633
        %v2635 = vrot.slane %v2634, 2
        %v2636 = vadd.f32 %v2634, %v2635
        %v2637 = vrot.slane %v2636, 1
        %v2638 = vadd.f32 %v2636, %v2637
        %v2639 = vadd.f32 %v1321, %v1337
        %v2640 = vrot.slane %v2639, 4
        %v2641 = vadd.f32 %v2639, %v2640
        %v2642 = vrot.slane %v2641, 2
        %v2643 = vadd.f32 %v2641, %v2642
        %v2644 = vrot.slane %v2643, 1
        %v2645 = vadd.f32 %v2643, %v2644
        %v2646 = vadd.f32 %v1322, %v1338
        %v2647 = vrot.slane %v2646, 4
        %v2648 = vadd.f32 %v2646, %v2647
        %v2649 = vrot.slane %v2648, 2
        %v2650 = vadd.f32 %v2648, %v2649
        %v2651 = vrot.slane %v2650, 1
        %v2652 = vadd.f32 %v2650, %v2651
        %v2653 = vadd.f32 %v1323, %v1339
        %v2654 = vrot.slane %v2653, 4
        %v2655 = vadd.f32 %v2653, %v2654
        %v2656 = vrot.slane %v2655, 2
        %v2657 = vadd.f32 %v2655, %v2656
        %v2658 = vrot.slane %v2657, 1
        %v2659 = vadd.f32 %v2657, %v2658
        %v2660 = vadd.f32 %v1324, %v1340
        %v2661 = vrot.slane %v2660, 4
        %v2662 = vadd.f32 %v2660, %v2661
        %v2663 = vrot.slane %v2662, 2
        %v2664 = vadd.f32 %v2662, %v2663
        %v2665 = vrot.slane %v2664, 1
        %v2666 = vadd.f32 %v2664, %v2665
        %v2667 = vadd.f32 %v1325, %v1341
        %v2668 = vrot.slane %v2667, 4
        %v2669 = vadd.f32 %v2667, %v2668
        %v2670 = vrot.slane %v2669, 2
        %v2671 = vadd.f32 %v2669, %v2670
        %v2672 = vrot.slane %v2671, 1
        %v2673 = vadd.f32 %v2671, %v2672
        %v2674 = vadd.f32 %v1326, %v1342
        %v2675 = vrot.slane %v2674, 4
        %v2676 = vadd.f32 %v2674, %v2675
        %v2677 = vrot.slane %v2676, 2
        %v2678 = vadd.f32 %v2676, %v2677
        %v2679 = vrot.slane %v2678, 1
        %v2680 = vadd.f32 %v2678, %v2679
        %v2681 = vadd.f32 %v1327, %v1343
        %v2682 = vrot.slane %v2681, 4
        %v2683 = vadd.f32 %v2681, %v2682
        %v2684 = vrot.slane %v2683, 2
        %v2685 = vadd.f32 %v2683, %v2684
        %v2686 = vrot.slane %v2685, 1
        %v2687 = vadd.f32 %v2685, %v2686
        %v2688 = vadd.f32 %v1328, %v1344
        %v2689 = vrot.slane %v2688, 4
        %v2690 = vadd.f32 %v2688, %v2689
        %v2691 = vrot.slane %v2690, 2
        %v2692 = vadd.f32 %v2690, %v2691
        %v2693 = vrot.slane %v2692, 1
        %v2694 = vadd.f32 %v2692, %v2693
        %v2695 = vadd.f32 %v1329, %v1345
        %v2696 = vrot.slane %v2695, 4
        %v2697 = vadd.f32 %v2695, %v2696
        %v2698 = vrot.slane %v2697, 2
        %v2699 = vadd.f32 %v2697, %v2698
        %v2700 = vrot.slane %v2699, 1
        %v2701 = vadd.f32 %v2699, %v2700
        %v2702 = vadd.f32 %v1330, %v1346
        %v2703 = vrot.slane %v2702, 4
        %v2704 = vadd.f32 %v2702, %v2703
        %v2705 = vrot.slane %v2704, 2
        %v2706 = vadd.f32 %v2704, %v2705
        %v2707 = vrot.slane %v2706, 1
        %v2708 = vadd.f32 %v2706, %v2707
        %v2709 = vadd.f32 %v1331, %v1347
        %v2710 = vrot.slane %v2709, 4
        %v2711 = vadd.f32 %v2709, %v2710
        %v2712 = vrot.slane %v2711, 2
        %v2713 = vadd.f32 %v2711, %v2712
        %v2714 = vrot.slane %v2713, 1
        %v2715 = vadd.f32 %v2713, %v2714
        %v2716 = vadd.f32 %v1332, %v1348
        %v2717 = vrot.slane %v2716, 4
        %v2718 = vadd.f32 %v2716, %v2717
        %v2719 = vrot.slane %v2718, 2
        %v2720 = vadd.f32 %v2718, %v2719
        %v2721 = vrot.slane %v2720, 1
        %v2722 = vadd.f32 %v2720, %v2721
        %v2723 = vadd.f32 %v1333, %v1349
        %v2724 = vrot.slane %v2723, 4
        %v2725 = vadd.f32 %v2723, %v2724
        %v2726 = vrot.slane %v2725, 2
        %v2727 = vadd.f32 %v2725, %v2726
        %v2728 = vrot.slane %v2727, 1
        %v2729 = vadd.f32 %v2727, %v2728
        %v2730 = vadd.f32 %v1334, %v1350
        %v2731 = vrot.slane %v2730, 4
        %v2732 = vadd.f32 %v2730, %v2731
        %v2733 = vrot.slane %v2732, 2
        %v2734 = vadd.f32 %v2732, %v2733
        %v2735 = vrot.slane %v2734, 1
        %v2736 = vadd.f32 %v2734, %v2735
        %v2737 = vadd.f32 %v1335, %v1351
        %v2738 = vrot.slane %v2737, 4
        %v2739 = vadd.f32 %v2737, %v2738
        %v2740 = vrot.slane %v2739, 2
        %v2741 = vadd.f32 %v2739, %v2740
        %v2742 = vrot.slane %v2741, 1
        %v2743 = vadd.f32 %v2741, %v2742
        %v2744 = vadd.f32 %v1352, %v1368
        %v2745 = vrot.slane %v2744, 4
        %v2746 = vadd.f32 %v2744, %v2745
        %v2747 = vrot.slane %v2746, 2
        %v2748 = vadd.f32 %v2746, %v2747
        %v2749 = vrot.slane %v2748, 1
        %v2750 = vadd.f32 %v2748, %v2749
        %v2751 = vadd.f32 %v1353, %v1369
        %v2752 = vrot.slane %v2751, 4
        %v2753 = vadd.f32 %v2751, %v2752
        %v2754 = vrot.slane %v2753, 2
        %v2755 = vadd.f32 %v2753, %v2754
        %v2756 = vrot.slane %v2755, 1
        %v2757 = vadd.f32 %v2755, %v2756
        %v2758 = vadd.f32 %v1354, %v1370
        %v2759 = vrot.slane %v2758, 4
        %v2760 = vadd.f32 %v2758, %v2759
        %v2761 = vrot.slane %v2760, 2
        %v2762 = vadd.f32 %v2760, %v2761
        %v2763 = vrot.slane %v2762, 1
        %v2764 = vadd.f32 %v2762, %v2763
        %v2765 = vadd.f32 %v1355, %v1371
        %v2766 = vrot.slane %v2765, 4
        %v2767 = vadd.f32 %v2765, %v2766
        %v2768 = vrot.slane %v2767, 2
        %v2769 = vadd.f32 %v2767, %v2768
        %v2770 = vrot.slane %v2769, 1
        %v2771 = vadd.f32 %v2769, %v2770
        %v2772 = vadd.f32 %v1356, %v1372
        %v2773 = vrot.slane %v2772, 4
        %v2774 = vadd.f32 %v2772, %v2773
        %v2775 = vrot.slane %v2774, 2
        %v2776 = vadd.f32 %v2774, %v2775
        %v2777 = vrot.slane %v2776, 1
        %v2778 = vadd.f32 %v2776, %v2777
        %v2779 = vadd.f32 %v1357, %v1373
        %v2780 = vrot.slane %v2779, 4
        %v2781 = vadd.f32 %v2779, %v2780
        %v2782 = vrot.slane %v2781, 2
        %v2783 = vadd.f32 %v2781, %v2782
        %v2784 = vrot.slane %v2783, 1
        %v2785 = vadd.f32 %v2783, %v2784
        %v2786 = vadd.f32 %v1358, %v1374
        %v2787 = vrot.slane %v2786, 4
        %v2788 = vadd.f32 %v2786, %v2787
        %v2789 = vrot.slane %v2788, 2
        %v2790 = vadd.f32 %v2788, %v2789
        %v2791 = vrot.slane %v2790, 1
        %v2792 = vadd.f32 %v2790, %v2791
        %v2793 = vadd.f32 %v1359, %v1375
        %v2794 = vrot.slane %v2793, 4
        %v2795 = vadd.f32 %v2793, %v2794
        %v2796 = vrot.slane %v2795, 2
        %v2797 = vadd.f32 %v2795, %v2796
        %v2798 = vrot.slane %v2797, 1
        %v2799 = vadd.f32 %v2797, %v2798
        %v2800 = vadd.f32 %v1360, %v1376
        %v2801 = vrot.slane %v2800, 4
        %v2802 = vadd.f32 %v2800, %v2801
        %v2803 = vrot.slane %v2802, 2
        %v2804 = vadd.f32 %v2802, %v2803
        %v2805 = vrot.slane %v2804, 1
        %v2806 = vadd.f32 %v2804, %v2805
        %v2807 = vadd.f32 %v1361, %v1377
        %v2808 = vrot.slane %v2807, 4
        %v2809 = vadd.f32 %v2807, %v2808
        %v2810 = vrot.slane %v2809, 2
        %v2811 = vadd.f32 %v2809, %v2810
        %v2812 = vrot.slane %v2811, 1
        %v2813 = vadd.f32 %v2811, %v2812
        %v2814 = vadd.f32 %v1362, %v1378
        %v2815 = vrot.slane %v2814, 4
        %v2816 = vadd.f32 %v2814, %v2815
        %v2817 = vrot.slane %v2816, 2
        %v2818 = vadd.f32 %v2816, %v2817
        %v2819 = vrot.slane %v2818, 1
        %v2820 = vadd.f32 %v2818, %v2819
        %v2821 = vadd.f32 %v1363, %v1379
        %v2822 = vrot.slane %v2821, 4
        %v2823 = vadd.f32 %v2821, %v2822
        %v2824 = vrot.slane %v2823, 2
        %v2825 = vadd.f32 %v2823, %v2824
        %v2826 = vrot.slane %v2825, 1
        %v2827 = vadd.f32 %v2825, %v2826
        %v2828 = vadd.f32 %v1364, %v1380
        %v2829 = vrot.slane %v2828, 4
        %v2830 = vadd.f32 %v2828, %v2829
        %v2831 = vrot.slane %v2830, 2
        %v2832 = vadd.f32 %v2830, %v2831
        %v2833 = vrot.slane %v2832, 1
        %v2834 = vadd.f32 %v2832, %v2833
        %v2835 = vadd.f32 %v1365, %v1381
        %v2836 = vrot.slane %v2835, 4
        %v2837 = vadd.f32 %v2835, %v2836
        %v2838 = vrot.slane %v2837, 2
        %v2839 = vadd.f32 %v2837, %v2838
        %v2840 = vrot.slane %v2839, 1
        %v2841 = vadd.f32 %v2839, %v2840
        %v2842 = vadd.f32 %v1366, %v1382
        %v2843 = vrot.slane %v2842, 4
        %v2844 = vadd.f32 %v2842, %v2843
        %v2845 = vrot.slane %v2844, 2
        %v2846 = vadd.f32 %v2844, %v2845
        %v2847 = vrot.slane %v2846, 1
        %v2848 = vadd.f32 %v2846, %v2847
        %v2849 = vadd.f32 %v1367, %v1383
        %v2850 = vrot.slane %v2849, 4
        %v2851 = vadd.f32 %v2849, %v2850
        %v2852 = vrot.slane %v2851, 2
        %v2853 = vadd.f32 %v2851, %v2852
        %v2854 = vrot.slane %v2853, 1
        %v2855 = vadd.f32 %v2853, %v2854
        %v2856 = vadd.f32 %v1384, %v1400
        %v2857 = vrot.slane %v2856, 4
        %v2858 = vadd.f32 %v2856, %v2857
        %v2859 = vrot.slane %v2858, 2
        %v2860 = vadd.f32 %v2858, %v2859
        %v2861 = vrot.slane %v2860, 1
        %v2862 = vadd.f32 %v2860, %v2861
        %v2863 = vadd.f32 %v1385, %v1401
        %v2864 = vrot.slane %v2863, 4
        %v2865 = vadd.f32 %v2863, %v2864
        %v2866 = vrot.slane %v2865, 2
        %v2867 = vadd.f32 %v2865, %v2866
        %v2868 = vrot.slane %v2867, 1
        %v2869 = vadd.f32 %v2867, %v2868
        %v2870 = vadd.f32 %v1386, %v1402
        %v2871 = vrot.slane %v2870, 4
        %v2872 = vadd.f32 %v2870, %v2871
        %v2873 = vrot.slane %v2872, 2
        %v2874 = vadd.f32 %v2872, %v2873
        %v2875 = vrot.slane %v2874, 1
        %v2876 = vadd.f32 %v2874, %v2875
        %v2877 = vadd.f32 %v1387, %v1403
        %v2878 = vrot.slane %v2877, 4
        %v2879 = vadd.f32 %v2877, %v2878
        %v2880 = vrot.slane %v2879, 2
        %v2881 = vadd.f32 %v2879, %v2880
        %v2882 = vrot.slane %v2881, 1
        %v2883 = vadd.f32 %v2881, %v2882
        %v2884 = vadd.f32 %v1388, %v1404
        %v2885 = vrot.slane %v2884, 4
        %v2886 = vadd.f32 %v2884, %v2885
        %v2887 = vrot.slane %v2886, 2
        %v2888 = vadd.f32 %v2886, %v2887
        %v2889 = vrot.slane %v2888, 1
        %v2890 = vadd.f32 %v2888, %v2889
        %v2891 = vadd.f32 %v1389, %v1405
        %v2892 = vrot.slane %v2891, 4
        %v2893 = vadd.f32 %v2891, %v2892
        %v2894 = vrot.slane %v2893, 2
        %v2895 = vadd.f32 %v2893, %v2894
        %v2896 = vrot.slane %v2895, 1
        %v2897 = vadd.f32 %v2895, %v2896
        %v2898 = vadd.f32 %v1390, %v1406
        %v2899 = vrot.slane %v2898, 4
        %v2900 = vadd.f32 %v2898, %v2899
        %v2901 = vrot.slane %v2900, 2
        %v2902 = vadd.f32 %v2900, %v2901
        %v2903 = vrot.slane %v2902, 1
        %v2904 = vadd.f32 %v2902, %v2903
        %v2905 = vadd.f32 %v1391, %v1407
        %v2906 = vrot.slane %v2905, 4
        %v2907 = vadd.f32 %v2905, %v2906
        %v2908 = vrot.slane %v2907, 2
        %v2909 = vadd.f32 %v2907, %v2908
        %v2910 = vrot.slane %v2909, 1
        %v2911 = vadd.f32 %v2909, %v2910
        %v2912 = vadd.f32 %v1392, %v1408
        %v2913 = vrot.slane %v2912, 4
        %v2914 = vadd.f32 %v2912, %v2913
        %v2915 = vrot.slane %v2914, 2
        %v2916 = vadd.f32 %v2914, %v2915
        %v2917 = vrot.slane %v2916, 1
        %v2918 = vadd.f32 %v2916, %v2917
        %v2919 = vadd.f32 %v1393, %v1409
        %v2920 = vrot.slane %v2919, 4
        %v2921 = vadd.f32 %v2919, %v2920
        %v2922 = vrot.slane %v2921, 2
        %v2923 = vadd.f32 %v2921, %v2922
        %v2924 = vrot.slane %v2923, 1
        %v2925 = vadd.f32 %v2923, %v2924
        %v2926 = vadd.f32 %v1394, %v1410
        %v2927 = vrot.slane %v2926, 4
        %v2928 = vadd.f32 %v2926, %v2927
        %v2929 = vrot.slane %v2928, 2
        %v2930 = vadd.f32 %v2928, %v2929
        %v2931 = vrot.slane %v2930, 1
        %v2932 = vadd.f32 %v2930, %v2931
        %v2933 = vadd.f32 %v1395, %v1411
        %v2934 = vrot.slane %v2933, 4
        %v2935 = vadd.f32 %v2933, %v2934
        %v2936 = vrot.slane %v2935, 2
        %v2937 = vadd.f32 %v2935, %v2936
        %v2938 = vrot.slane %v2937, 1
        %v2939 = vadd.f32 %v2937, %v2938
        %v2940 = vadd.f32 %v1396, %v1412
        %v2941 = vrot.slane %v2940, 4
        %v2942 = vadd.f32 %v2940, %v2941
        %v2943 = vrot.slane %v2942, 2
        %v2944 = vadd.f32 %v2942, %v2943
        %v2945 = vrot.slane %v2944, 1
        %v2946 = vadd.f32 %v2944, %v2945
        %v2947 = vadd.f32 %v1397, %v1413
        %v2948 = vrot.slane %v2947, 4
        %v2949 = vadd.f32 %v2947, %v2948
        %v2950 = vrot.slane %v2949, 2
        %v2951 = vadd.f32 %v2949, %v2950
        %v2952 = vrot.slane %v2951, 1
        %v2953 = vadd.f32 %v2951, %v2952
        %v2954 = vadd.f32 %v1398, %v1414
        %v2955 = vrot.slane %v2954, 4
        %v2956 = vadd.f32 %v2954, %v2955
        %v2957 = vrot.slane %v2956, 2
        %v2958 = vadd.f32 %v2956, %v2957
        %v2959 = vrot.slane %v2958, 1
        %v2960 = vadd.f32 %v2958, %v2959
        %v2961 = vadd.f32 %v1399, %v1415
        %v2962 = vrot.slane %v2961, 4
        %v2963 = vadd.f32 %v2961, %v2962
        %v2964 = vrot.slane %v2963, 2
        %v2965 = vadd.f32 %v2963, %v2964
        %v2966 = vrot.slane %v2965, 1
        %v2967 = vadd.f32 %v2965, %v2966
        %v2968 = vadd.f32 %v1416, %v1432
        %v2969 = vrot.slane %v2968, 4
        %v2970 = vadd.f32 %v2968, %v2969
        %v2971 = vrot.slane %v2970, 2
        %v2972 = vadd.f32 %v2970, %v2971
        %v2973 = vrot.slane %v2972, 1
        %v2974 = vadd.f32 %v2972, %v2973
        %v2975 = vadd.f32 %v1417, %v1433
        %v2976 = vrot.slane %v2975, 4
        %v2977 = vadd.f32 %v2975, %v2976
        %v2978 = vrot.slane %v2977, 2
        %v2979 = vadd.f32 %v2977, %v2978
        %v2980 = vrot.slane %v2979, 1
        %v2981 = vadd.f32 %v2979, %v2980
        %v2982 = vadd.f32 %v1418, %v1434
        %v2983 = vrot.slane %v2982, 4
        %v2984 = vadd.f32 %v2982, %v2983
        %v2985 = vrot.slane %v2984, 2
        %v2986 = vadd.f32 %v2984, %v2985
        %v2987 = vrot.slane %v2986, 1
        %v2988 = vadd.f32 %v2986, %v2987
        %v2989 = vadd.f32 %v1419, %v1435
        %v2990 = vrot.slane %v2989, 4
        %v2991 = vadd.f32 %v2989, %v2990
        %v2992 = vrot.slane %v2991, 2
        %v2993 = vadd.f32 %v2991, %v2992
        %v2994 = vrot.slane %v2993, 1
        %v2995 = vadd.f32 %v2993, %v2994
        %v2996 = vadd.f32 %v1420, %v1436
        %v2997 = vrot.slane %v2996, 4
        %v2998 = vadd.f32 %v2996, %v2997
        %v2999 = vrot.slane %v2998, 2
        %v3000 = vadd.f32 %v2998, %v2999
        %v3001 = vrot.slane %v3000, 1
        %v3002 = vadd.f32 %v3000, %v3001
        %v3003 = vadd.f32 %v1421, %v1437
        %v3004 = vrot.slane %v3003, 4
        %v3005 = vadd.f32 %v3003, %v3004
        %v3006 = vrot.slane %v3005, 2
        %v3007 = vadd.f32 %v3005, %v3006
        %v3008 = vrot.slane %v3007, 1
        %v3009 = vadd.f32 %v3007, %v3008
        %v3010 = vadd.f32 %v1422, %v1438
        %v3011 = vrot.slane %v3010, 4
        %v3012 = vadd.f32 %v3010, %v3011
        %v3013 = vrot.slane %v3012, 2
        %v3014 = vadd.f32 %v3012, %v3013
        %v3015 = vrot.slane %v3014, 1
        %v3016 = vadd.f32 %v3014, %v3015
        %v3017 = vadd.f32 %v1423, %v1439
        %v3018 = vrot.slane %v3017, 4
        %v3019 = vadd.f32 %v3017, %v3018
        %v3020 = vrot.slane %v3019, 2
        %v3021 = vadd.f32 %v3019, %v3020
        %v3022 = vrot.slane %v3021, 1
        %v3023 = vadd.f32 %v3021, %v3022
        %v3024 = vadd.f32 %v1424, %v1440
        %v3025 = vrot.slane %v3024, 4
        %v3026 = vadd.f32 %v3024, %v3025
        %v3027 = vrot.slane %v3026, 2
        %v3028 = vadd.f32 %v3026, %v3027
        %v3029 = vrot.slane %v3028, 1
        %v3030 = vadd.f32 %v3028, %v3029
        %v3031 = vadd.f32 %v1425, %v1441
        %v3032 = vrot.slane %v3031, 4
        %v3033 = vadd.f32 %v3031, %v3032
        %v3034 = vrot.slane %v3033, 2
        %v3035 = vadd.f32 %v3033, %v3034
        %v3036 = vrot.slane %v3035, 1
        %v3037 = vadd.f32 %v3035, %v3036
        %v3038 = vadd.f32 %v1426, %v1442
        %v3039 = vrot.slane %v3038, 4
        %v3040 = vadd.f32 %v3038, %v3039
        %v3041 = vrot.slane %v3040, 2
        %v3042 = vadd.f32 %v3040, %v3041
        %v3043 = vrot.slane %v3042, 1
        %v3044 = vadd.f32 %v3042, %v3043
        %v3045 = vadd.f32 %v1427, %v1443
        %v3046 = vrot.slane %v3045, 4
        %v3047 = vadd.f32 %v3045, %v3046
        %v3048 = vrot.slane %v3047, 2
        %v3049 = vadd.f32 %v3047, %v3048
        %v3050 = vrot.slane %v3049, 1
        %v3051 = vadd.f32 %v3049, %v3050
        %v3052 = vadd.f32 %v1428, %v1444
        %v3053 = vrot.slane %v3052, 4
        %v3054 = vadd.f32 %v3052, %v3053
        %v3055 = vrot.slane %v3054, 2
        %v3056 = vadd.f32 %v3054, %v3055
        %v3057 = vrot.slane %v3056, 1
        %v3058 = vadd.f32 %v3056, %v3057
        %v3059 = vadd.f32 %v1429, %v1445
        %v3060 = vrot.slane %v3059, 4
        %v3061 = vadd.f32 %v3059, %v3060
        %v3062 = vrot.slane %v3061, 2
        %v3063 = vadd.f32 %v3061, %v3062
        %v3064 = vrot.slane %v3063, 1
        %v3065 = vadd.f32 %v3063, %v3064
        %v3066 = vadd.f32 %v1430, %v1446
        %v3067 = vrot.slane %v3066, 4
        %v3068 = vadd.f32 %v3066, %v3067
        %v3069 = vrot.slane %v3068, 2
        %v3070 = vadd.f32 %v3068, %v3069
        %v3071 = vrot.slane %v3070, 1
        %v3072 = vadd.f32 %v3070, %v3071
        %v3073 = vadd.f32 %v1431, %v1447
        %v3074 = vrot.slane %v3073, 4
        %v3075 = vadd.f32 %v3073, %v3074
        %v3076 = vrot.slane %v3075, 2
        %v3077 = vadd.f32 %v3075, %v3076
        %v3078 = vrot.slane %v3077, 1
        %v3079 = vadd.f32 %v3077, %v3078
        %v3080 = vadd.f32 %v1448, %v1464
        %v3081 = vrot.slane %v3080, 4
        %v3082 = vadd.f32 %v3080, %v3081
        %v3083 = vrot.slane %v3082, 2
        %v3084 = vadd.f32 %v3082, %v3083
        %v3085 = vrot.slane %v3084, 1
        %v3086 = vadd.f32 %v3084, %v3085
        %v3087 = vadd.f32 %v1449, %v1465
        %v3088 = vrot.slane %v3087, 4
        %v3089 = vadd.f32 %v3087, %v3088
        %v3090 = vrot.slane %v3089, 2
        %v3091 = vadd.f32 %v3089, %v3090
        %v3092 = vrot.slane %v3091, 1
        %v3093 = vadd.f32 %v3091, %v3092
        %v3094 = vadd.f32 %v1450, %v1466
        %v3095 = vrot.slane %v3094, 4
        %v3096 = vadd.f32 %v3094, %v3095
        %v3097 = vrot.slane %v3096, 2
        %v3098 = vadd.f32 %v3096, %v3097
        %v3099 = vrot.slane %v3098, 1
        %v3100 = vadd.f32 %v3098, %v3099
        %v3101 = vadd.f32 %v1451, %v1467
        %v3102 = vrot.slane %v3101, 4
        %v3103 = vadd.f32 %v3101, %v3102
        %v3104 = vrot.slane %v3103, 2
        %v3105 = vadd.f32 %v3103, %v3104
        %v3106 = vrot.slane %v3105, 1
        %v3107 = vadd.f32 %v3105, %v3106
        %v3108 = vadd.f32 %v1452, %v1468
        %v3109 = vrot.slane %v3108, 4
        %v3110 = vadd.f32 %v3108, %v3109
        %v3111 = vrot.slane %v3110, 2
        %v3112 = vadd.f32 %v3110, %v3111
        %v3113 = vrot.slane %v3112, 1
        %v3114 = vadd.f32 %v3112, %v3113
        %v3115 = vadd.f32 %v1453, %v1469
        %v3116 = vrot.slane %v3115, 4
        %v3117 = vadd.f32 %v3115, %v3116
        %v3118 = vrot.slane %v3117, 2
        %v3119 = vadd.f32 %v3117, %v3118
        %v3120 = vrot.slane %v3119, 1
        %v3121 = vadd.f32 %v3119, %v3120
        %v3122 = vadd.f32 %v1454, %v1470
        %v3123 = vrot.slane %v3122, 4
        %v3124 = vadd.f32 %v3122, %v3123
        %v3125 = vrot.slane %v3124, 2
        %v3126 = vadd.f32 %v3124, %v3125
        %v3127 = vrot.slane %v3126, 1
        %v3128 = vadd.f32 %v3126, %v3127
        %v3129 = vadd.f32 %v1455, %v1471
        %v3130 = vrot.slane %v3129, 4
        %v3131 = vadd.f32 %v3129, %v3130
        %v3132 = vrot.slane %v3131, 2
        %v3133 = vadd.f32 %v3131, %v3132
        %v3134 = vrot.slane %v3133, 1
        %v3135 = vadd.f32 %v3133, %v3134
        %v3136 = vadd.f32 %v1456, %v1472
        %v3137 = vrot.slane %v3136, 4
        %v3138 = vadd.f32 %v3136, %v3137
        %v3139 = vrot.slane %v3138, 2
        %v3140 = vadd.f32 %v3138, %v3139
        %v3141 = vrot.slane %v3140, 1
        %v3142 = vadd.f32 %v3140, %v3141
        %v3143 = vadd.f32 %v1457, %v1473
        %v3144 = vrot.slane %v3143, 4
        %v3145 = vadd.f32 %v3143, %v3144
        %v3146 = vrot.slane %v3145, 2
        %v3147 = vadd.f32 %v3145, %v3146
        %v3148 = vrot.slane %v3147, 1
        %v3149 = vadd.f32 %v3147, %v3148
        %v3150 = vadd.f32 %v1458, %v1474
        %v3151 = vrot.slane %v3150, 4
        %v3152 = vadd.f32 %v3150, %v3151
        %v3153 = vrot.slane %v3152, 2
        %v3154 = vadd.f32 %v3152, %v3153
        %v3155 = vrot.slane %v3154, 1
        %v3156 = vadd.f32 %v3154, %v3155
        %v3157 = vadd.f32 %v1459, %v1475
        %v3158 = vrot.slane %v3157, 4
        %v3159 = vadd.f32 %v3157, %v3158
        %v3160 = vrot.slane %v3159, 2
        %v3161 = vadd.f32 %v3159, %v3160
        %v3162 = vrot.slane %v3161, 1
        %v3163 = vadd.f32 %v3161, %v3162
        %v3164 = vadd.f32 %v1460, %v1476
        %v3165 = vrot.slane %v3164, 4
        %v3166 = vadd.f32 %v3164, %v3165
        %v3167 = vrot.slane %v3166, 2
        %v3168 = vadd.f32 %v3166, %v3167
        %v3169 = vrot.slane %v3168, 1
        %v3170 = vadd.f32 %v3168, %v3169
        %v3171 = vadd.f32 %v1461, %v1477
        %v3172 = vrot.slane %v3171, 4
        %v3173 = vadd.f32 %v3171, %v3172
        %v3174 = vrot.slane %v3173, 2
        %v3175 = vadd.f32 %v3173, %v3174
        %v3176 = vrot.slane %v3175, 1
        %v3177 = vadd.f32 %v3175, %v3176
        %v3178 = vadd.f32 %v1462, %v1478
        %v3179 = vrot.slane %v3178, 4
        %v3180 = vadd.f32 %v3178, %v3179
        %v3181 = vrot.slane %v3180, 2
        %v3182 = vadd.f32 %v3180, %v3181
        %v3183 = vrot.slane %v3182, 1
        %v3184 = vadd.f32 %v3182, %v3183
        %v3185 = vadd.f32 %v1463, %v1479
        %v3186 = vrot.slane %v3185, 4
        %v3187 = vadd.f32 %v3185, %v3186
        %v3188 = vrot.slane %v3187, 2
        %v3189 = vadd.f32 %v3187, %v3188
        %v3190 = vrot.slane %v3189, 1
        %v3191 = vadd.f32 %v3189, %v3190
        %v3192 = vadd.f32 %v1480, %v1496
        %v3193 = vrot.slane %v3192, 4
        %v3194 = vadd.f32 %v3192, %v3193
        %v3195 = vrot.slane %v3194, 2
        %v3196 = vadd.f32 %v3194, %v3195
        %v3197 = vrot.slane %v3196, 1
        %v3198 = vadd.f32 %v3196, %v3197
        %v3199 = vadd.f32 %v1481, %v1497
        %v3200 = vrot.slane %v3199, 4
        %v3201 = vadd.f32 %v3199, %v3200
        %v3202 = vrot.slane %v3201, 2
        %v3203 = vadd.f32 %v3201, %v3202
        %v3204 = vrot.slane %v3203, 1
        %v3205 = vadd.f32 %v3203, %v3204
        %v3206 = vadd.f32 %v1482, %v1498
        %v3207 = vrot.slane %v3206, 4
        %v3208 = vadd.f32 %v3206, %v3207
        %v3209 = vrot.slane %v3208, 2
        %v3210 = vadd.f32 %v3208, %v3209
        %v3211 = vrot.slane %v3210, 1
        %v3212 = vadd.f32 %v3210, %v3211
        %v3213 = vadd.f32 %v1483, %v1499
        %v3214 = vrot.slane %v3213, 4
        %v3215 = vadd.f32 %v3213, %v3214
        %v3216 = vrot.slane %v3215, 2
        %v3217 = vadd.f32 %v3215, %v3216
        %v3218 = vrot.slane %v3217, 1
        %v3219 = vadd.f32 %v3217, %v3218
        %v3220 = vadd.f32 %v1484, %v1500
        %v3221 = vrot.slane %v3220, 4
        %v3222 = vadd.f32 %v3220, %v3221
        %v3223 = vrot.slane %v3222, 2
        %v3224 = vadd.f32 %v3222, %v3223
        %v3225 = vrot.slane %v3224, 1
        %v3226 = vadd.f32 %v3224, %v3225
        %v3227 = vadd.f32 %v1485, %v1501
        %v3228 = vrot.slane %v3227, 4
        %v3229 = vadd.f32 %v3227, %v3228
        %v3230 = vrot.slane %v3229, 2
        %v3231 = vadd.f32 %v3229, %v3230
        %v3232 = vrot.slane %v3231, 1
        %v3233 = vadd.f32 %v3231, %v3232
        %v3234 = vadd.f32 %v1486, %v1502
        %v3235 = vrot.slane %v3234, 4
        %v3236 = vadd.f32 %v3234, %v3235
        %v3237 = vrot.slane %v3236, 2
        %v3238 = vadd.f32 %v3236, %v3237
        %v3239 = vrot.slane %v3238, 1
        %v3240 = vadd.f32 %v3238, %v3239
        %v3241 = vadd.f32 %v1487, %v1503
        %v3242 = vrot.slane %v3241, 4
        %v3243 = vadd.f32 %v3241, %v3242
        %v3244 = vrot.slane %v3243, 2
        %v3245 = vadd.f32 %v3243, %v3244
        %v3246 = vrot.slane %v3245, 1
        %v3247 = vadd.f32 %v3245, %v3246
        %v3248 = vadd.f32 %v1488, %v1504
        %v3249 = vrot.slane %v3248, 4
        %v3250 = vadd.f32 %v3248, %v3249
        %v3251 = vrot.slane %v3250, 2
        %v3252 = vadd.f32 %v3250, %v3251
        %v3253 = vrot.slane %v3252, 1
        %v3254 = vadd.f32 %v3252, %v3253
        %v3255 = vadd.f32 %v1489, %v1505
        %v3256 = vrot.slane %v3255, 4
        %v3257 = vadd.f32 %v3255, %v3256
        %v3258 = vrot.slane %v3257, 2
        %v3259 = vadd.f32 %v3257, %v3258
        %v3260 = vrot.slane %v3259, 1
        %v3261 = vadd.f32 %v3259, %v3260
        %v3262 = vadd.f32 %v1490, %v1506
        %v3263 = vrot.slane %v3262, 4
        %v3264 = vadd.f32 %v3262, %v3263
        %v3265 = vrot.slane %v3264, 2
        %v3266 = vadd.f32 %v3264, %v3265
        %v3267 = vrot.slane %v3266, 1
        %v3268 = vadd.f32 %v3266, %v3267
        %v3269 = vadd.f32 %v1491, %v1507
        %v3270 = vrot.slane %v3269, 4
        %v3271 = vadd.f32 %v3269, %v3270
        %v3272 = vrot.slane %v3271, 2
        %v3273 = vadd.f32 %v3271, %v3272
        %v3274 = vrot.slane %v3273, 1
        %v3275 = vadd.f32 %v3273, %v3274
        %v3276 = vadd.f32 %v1492, %v1508
        %v3277 = vrot.slane %v3276, 4
        %v3278 = vadd.f32 %v3276, %v3277
        %v3279 = vrot.slane %v3278, 2
        %v3280 = vadd.f32 %v3278, %v3279
        %v3281 = vrot.slane %v3280, 1
        %v3282 = vadd.f32 %v3280, %v3281
        %v3283 = vadd.f32 %v1493, %v1509
        %v3284 = vrot.slane %v3283, 4
        %v3285 = vadd.f32 %v3283, %v3284
        %v3286 = vrot.slane %v3285, 2
        %v3287 = vadd.f32 %v3285, %v3286
        %v3288 = vrot.slane %v3287, 1
        %v3289 = vadd.f32 %v3287, %v3288
        %v3290 = vadd.f32 %v1494, %v1510
        %v3291 = vrot.slane %v3290, 4
        %v3292 = vadd.f32 %v3290, %v3291
        %v3293 = vrot.slane %v3292, 2
        %v3294 = vadd.f32 %v3292, %v3293
        %v3295 = vrot.slane %v3294, 1
        %v3296 = vadd.f32 %v3294, %v3295
        %v3297 = vadd.f32 %v1495, %v1511
        %v3298 = vrot.slane %v3297, 4
        %v3299 = vadd.f32 %v3297, %v3298
        %v3300 = vrot.slane %v3299, 2
        %v3301 = vadd.f32 %v3299, %v3300
        %v3302 = vrot.slane %v3301, 1
        %v3303 = vadd.f32 %v3301, %v3302
        %vm3560 = vcmask 1041409
        %v3561 = vsel %vm3560, %v1630, %v1518
        %vm3562 = vcmask 1042434
        %v3563 = vsel %vm3562, %v1742, %v3561
        %vm3564 = vcmask 1043459
        %v3565 = vsel %vm3564, %v1854, %v3563
        %vm3566 = vcmask 1044484
        %v3567 = vsel %vm3566, %v1966, %v3565
        %vm3568 = vcmask 1045509
        %v3569 = vsel %vm3568, %v2078, %v3567
        %vm3570 = vcmask 1046534
        %v3571 = vsel %vm3570, %v2190, %v3569
        %vm3572 = vcmask 1047559
        %v3573 = vsel %vm3572, %v2302, %v3571
        %v3574 = vsel %vm3560, %v1637, %v1525
        %v3575 = vsel %vm3562, %v1749, %v3574
        %v3576 = vsel %vm3564, %v1861, %v3575
        %v3577 = vsel %vm3566, %v1973, %v3576
        %v3578 = vsel %vm3568, %v2085, %v3577
        %v3579 = vsel %vm3570, %v2197, %v3578
        %v3580 = vsel %vm3572, %v2309, %v3579
        %v3581 = vsel %vm3560, %v1644, %v1532
        %v3582 = vsel %vm3562, %v1756, %v3581
        %v3583 = vsel %vm3564, %v1868, %v3582
        %v3584 = vsel %vm3566, %v1980, %v3583
        %v3585 = vsel %vm3568, %v2092, %v3584
        %v3586 = vsel %vm3570, %v2204, %v3585
        %v3587 = vsel %vm3572, %v2316, %v3586
        %v3588 = vsel %vm3560, %v1651, %v1539
        %v3589 = vsel %vm3562, %v1763, %v3588
        %v3590 = vsel %vm3564, %v1875, %v3589
        %v3591 = vsel %vm3566, %v1987, %v3590
        %v3592 = vsel %vm3568, %v2099, %v3591
        %v3593 = vsel %vm3570, %v2211, %v3592
        %v3594 = vsel %vm3572, %v2323, %v3593
        %v3595 = vsel %vm3560, %v1658, %v1546
        %v3596 = vsel %vm3562, %v1770, %v3595
        %v3597 = vsel %vm3564, %v1882, %v3596
        %v3598 = vsel %vm3566, %v1994, %v3597
        %v3599 = vsel %vm3568, %v2106, %v3598
        %v3600 = vsel %vm3570, %v2218, %v3599
        %v3601 = vsel %vm3572, %v2330, %v3600
        %v3602 = vsel %vm3560, %v1665, %v1553
        %v3603 = vsel %vm3562, %v1777, %v3602
        %v3604 = vsel %vm3564, %v1889, %v3603
        %v3605 = vsel %vm3566, %v2001, %v3604
        %v3606 = vsel %vm3568, %v2113, %v3605
        %v3607 = vsel %vm3570, %v2225, %v3606
        %v3608 = vsel %vm3572, %v2337, %v3607
        %v3609 = vsel %vm3560, %v1672, %v1560
        %v3610 = vsel %vm3562, %v1784, %v3609
        %v3611 = vsel %vm3564, %v1896, %v3610
        %v3612 = vsel %vm3566, %v2008, %v3611
        %v3613 = vsel %vm3568, %v2120, %v3612
        %v3614 = vsel %vm3570, %v2232, %v3613
        %v3615 = vsel %vm3572, %v2344, %v3614
        %v3616 = vsel %vm3560, %v1679, %v1567
        %v3617 = vsel %vm3562, %v1791, %v3616
        %v3618 = vsel %vm3564, %v1903, %v3617
        %v3619 = vsel %vm3566, %v2015, %v3618
        %v3620 = vsel %vm3568, %v2127, %v3619
        %v3621 = vsel %vm3570, %v2239, %v3620
        %v3622 = vsel %vm3572, %v2351, %v3621
        %v3623 = vsel %vm3560, %v1686, %v1574
        %v3624 = vsel %vm3562, %v1798, %v3623
        %v3625 = vsel %vm3564, %v1910, %v3624
        %v3626 = vsel %vm3566, %v2022, %v3625
        %v3627 = vsel %vm3568, %v2134, %v3626
        %v3628 = vsel %vm3570, %v2246, %v3627
        %v3629 = vsel %vm3572, %v2358, %v3628
        %v3630 = vsel %vm3560, %v1693, %v1581
        %v3631 = vsel %vm3562, %v1805, %v3630
        %v3632 = vsel %vm3564, %v1917, %v3631
        %v3633 = vsel %vm3566, %v2029, %v3632
        %v3634 = vsel %vm3568, %v2141, %v3633
        %v3635 = vsel %vm3570, %v2253, %v3634
        %v3636 = vsel %vm3572, %v2365, %v3635
        %v3637 = vsel %vm3560, %v1700, %v1588
        %v3638 = vsel %vm3562, %v1812, %v3637
        %v3639 = vsel %vm3564, %v1924, %v3638
        %v3640 = vsel %vm3566, %v2036, %v3639
        %v3641 = vsel %vm3568, %v2148, %v3640
        %v3642 = vsel %vm3570, %v2260, %v3641
        %v3643 = vsel %vm3572, %v2372, %v3642
        %v3644 = vsel %vm3560, %v1707, %v1595
        %v3645 = vsel %vm3562, %v1819, %v3644
        %v3646 = vsel %vm3564, %v1931, %v3645
        %v3647 = vsel %vm3566, %v2043, %v3646
        %v3648 = vsel %vm3568, %v2155, %v3647
        %v3649 = vsel %vm3570, %v2267, %v3648
        %v3650 = vsel %vm3572, %v2379, %v3649
        %v3651 = vsel %vm3560, %v1714, %v1602
        %v3652 = vsel %vm3562, %v1826, %v3651
        %v3653 = vsel %vm3564, %v1938, %v3652
        %v3654 = vsel %vm3566, %v2050, %v3653
        %v3655 = vsel %vm3568, %v2162, %v3654
        %v3656 = vsel %vm3570, %v2274, %v3655
        %v3657 = vsel %vm3572, %v2386, %v3656
        %v3658 = vsel %vm3560, %v1721, %v1609
        %v3659 = vsel %vm3562, %v1833, %v3658
        %v3660 = vsel %vm3564, %v1945, %v3659
        %v3661 = vsel %vm3566, %v2057, %v3660
        %v3662 = vsel %vm3568, %v2169, %v3661
        %v3663 = vsel %vm3570, %v2281, %v3662
        %v3664 = vsel %vm3572, %v2393, %v3663
        %v3665 = vsel %vm3560, %v1728, %v1616
        %v3666 = vsel %vm3562, %v1840, %v3665
        %v3667 = vsel %vm3564, %v1952, %v3666
        %v3668 = vsel %vm3566, %v2064, %v3667
        %v3669 = vsel %vm3568, %v2176, %v3668
        %v3670 = vsel %vm3570, %v2288, %v3669
        %v3671 = vsel %vm3572, %v2400, %v3670
        %v3672 = vsel %vm3560, %v1735, %v1623
        %v3673 = vsel %vm3562, %v1847, %v3672
        %v3674 = vsel %vm3564, %v1959, %v3673
        %v3675 = vsel %vm3566, %v2071, %v3674
        %v3676 = vsel %vm3568, %v2183, %v3675
        %v3677 = vsel %vm3570, %v2295, %v3676
        %v3678 = vsel %vm3572, %v2407, %v3677
        %v3679 = vsel %vm3560, %v2526, %v2414
        %v3680 = vsel %vm3562, %v2638, %v3679
        %v3681 = vsel %vm3564, %v2750, %v3680
        %v3682 = vsel %vm3566, %v2862, %v3681
        %v3683 = vsel %vm3568, %v2974, %v3682
        %v3684 = vsel %vm3570, %v3086, %v3683
        %v3685 = vsel %vm3572, %v3198, %v3684
        %v3686 = vsel %vm3560, %v2533, %v2421
        %v3687 = vsel %vm3562, %v2645, %v3686
        %v3688 = vsel %vm3564, %v2757, %v3687
        %v3689 = vsel %vm3566, %v2869, %v3688
        %v3690 = vsel %vm3568, %v2981, %v3689
        %v3691 = vsel %vm3570, %v3093, %v3690
        %v3692 = vsel %vm3572, %v3205, %v3691
        %v3693 = vsel %vm3560, %v2540, %v2428
        %v3694 = vsel %vm3562, %v2652, %v3693
        %v3695 = vsel %vm3564, %v2764, %v3694
        %v3696 = vsel %vm3566, %v2876, %v3695
        %v3697 = vsel %vm3568, %v2988, %v3696
        %v3698 = vsel %vm3570, %v3100, %v3697
        %v3699 = vsel %vm3572, %v3212, %v3698
        %v3700 = vsel %vm3560, %v2547, %v2435
        %v3701 = vsel %vm3562, %v2659, %v3700
        %v3702 = vsel %vm3564, %v2771, %v3701
        %v3703 = vsel %vm3566, %v2883, %v3702
        %v3704 = vsel %vm3568, %v2995, %v3703
        %v3705 = vsel %vm3570, %v3107, %v3704
        %v3706 = vsel %vm3572, %v3219, %v3705
        %v3707 = vsel %vm3560, %v2554, %v2442
        %v3708 = vsel %vm3562, %v2666, %v3707
        %v3709 = vsel %vm3564, %v2778, %v3708
        %v3710 = vsel %vm3566, %v2890, %v3709
        %v3711 = vsel %vm3568, %v3002, %v3710
        %v3712 = vsel %vm3570, %v3114, %v3711
        %v3713 = vsel %vm3572, %v3226, %v3712
        %v3714 = vsel %vm3560, %v2561, %v2449
        %v3715 = vsel %vm3562, %v2673, %v3714
        %v3716 = vsel %vm3564, %v2785, %v3715
        %v3717 = vsel %vm3566, %v2897, %v3716
        %v3718 = vsel %vm3568, %v3009, %v3717
        %v3719 = vsel %vm3570, %v3121, %v3718
        %v3720 = vsel %vm3572, %v3233, %v3719
        %v3721 = vsel %vm3560, %v2568, %v2456
        %v3722 = vsel %vm3562, %v2680, %v3721
        %v3723 = vsel %vm3564, %v2792, %v3722
        %v3724 = vsel %vm3566, %v2904, %v3723
        %v3725 = vsel %vm3568, %v3016, %v3724
        %v3726 = vsel %vm3570, %v3128, %v3725
        %v3727 = vsel %vm3572, %v3240, %v3726
        %v3728 = vsel %vm3560, %v2575, %v2463
        %v3729 = vsel %vm3562, %v2687, %v3728
        %v3730 = vsel %vm3564, %v2799, %v3729
        %v3731 = vsel %vm3566, %v2911, %v3730
        %v3732 = vsel %vm3568, %v3023, %v3731
        %v3733 = vsel %vm3570, %v3135, %v3732
        %v3734 = vsel %vm3572, %v3247, %v3733
        %v3735 = vsel %vm3560, %v2582, %v2470
        %v3736 = vsel %vm3562, %v2694, %v3735
        %v3737 = vsel %vm3564, %v2806, %v3736
        %v3738 = vsel %vm3566, %v2918, %v3737
        %v3739 = vsel %vm3568, %v3030, %v3738
        %v3740 = vsel %vm3570, %v3142, %v3739
        %v3741 = vsel %vm3572, %v3254, %v3740
        %v3742 = vsel %vm3560, %v2589, %v2477
        %v3743 = vsel %vm3562, %v2701, %v3742
        %v3744 = vsel %vm3564, %v2813, %v3743
        %v3745 = vsel %vm3566, %v2925, %v3744
        %v3746 = vsel %vm3568, %v3037, %v3745
        %v3747 = vsel %vm3570, %v3149, %v3746
        %v3748 = vsel %vm3572, %v3261, %v3747
        %v3749 = vsel %vm3560, %v2596, %v2484
        %v3750 = vsel %vm3562, %v2708, %v3749
        %v3751 = vsel %vm3564, %v2820, %v3750
        %v3752 = vsel %vm3566, %v2932, %v3751
        %v3753 = vsel %vm3568, %v3044, %v3752
        %v3754 = vsel %vm3570, %v3156, %v3753
        %v3755 = vsel %vm3572, %v3268, %v3754
        %v3756 = vsel %vm3560, %v2603, %v2491
        %v3757 = vsel %vm3562, %v2715, %v3756
        %v3758 = vsel %vm3564, %v2827, %v3757
        %v3759 = vsel %vm3566, %v2939, %v3758
        %v3760 = vsel %vm3568, %v3051, %v3759
        %v3761 = vsel %vm3570, %v3163, %v3760
        %v3762 = vsel %vm3572, %v3275, %v3761
        %v3763 = vsel %vm3560, %v2610, %v2498
        %v3764 = vsel %vm3562, %v2722, %v3763
        %v3765 = vsel %vm3564, %v2834, %v3764
        %v3766 = vsel %vm3566, %v2946, %v3765
        %v3767 = vsel %vm3568, %v3058, %v3766
        %v3768 = vsel %vm3570, %v3170, %v3767
        %v3769 = vsel %vm3572, %v3282, %v3768
        %v3770 = vsel %vm3560, %v2617, %v2505
        %v3771 = vsel %vm3562, %v2729, %v3770
        %v3772 = vsel %vm3564, %v2841, %v3771
        %v3773 = vsel %vm3566, %v2953, %v3772
        %v3774 = vsel %vm3568, %v3065, %v3773
        %v3775 = vsel %vm3570, %v3177, %v3774
        %v3776 = vsel %vm3572, %v3289, %v3775
        %v3777 = vsel %vm3560, %v2624, %v2512
        %v3778 = vsel %vm3562, %v2736, %v3777
        %v3779 = vsel %vm3564, %v2848, %v3778
        %v3780 = vsel %vm3566, %v2960, %v3779
        %v3781 = vsel %vm3568, %v3072, %v3780
        %v3782 = vsel %vm3570, %v3184, %v3781
        %v3783 = vsel %vm3572, %v3296, %v3782
        %v3784 = vsel %vm3560, %v2631, %v2519
        %v3785 = vsel %vm3562, %v2743, %v3784
        %v3786 = vsel %vm3564, %v2855, %v3785
        %v3787 = vsel %vm3566, %v2967, %v3786
        %v3788 = vsel %vm3568, %v3079, %v3787
        %v3789 = vsel %vm3570, %v3191, %v3788
        %v3790 = vsel %vm3572, %v3303, %v3789
        %v3823 = vadd.f32 %v968, %v3573
        %v3824 = vadd.f32 %v969, %v3580
        %v3825 = vadd.f32 %v970, %v3587
        %v3826 = vadd.f32 %v971, %v3594
        %v3827 = vadd.f32 %v972, %v3601
        %v3828 = vadd.f32 %v973, %v3608
        %v3829 = vadd.f32 %v974, %v3615
        %v3830 = vadd.f32 %v975, %v3622
        %v3831 = vadd.f32 %v976, %v3629
        %v3832 = vadd.f32 %v977, %v3636
        %v3833 = vadd.f32 %v978, %v3643
        %v3834 = vadd.f32 %v979, %v3650
        %v3835 = vadd.f32 %v980, %v3657
        %v3836 = vadd.f32 %v981, %v3664
        %v3837 = vadd.f32 %v982, %v3671
        %v3838 = vadd.f32 %v983, %v3678
        %v3839 = vadd.f32 %v984, %v3685
        %v3840 = vadd.f32 %v985, %v3692
        %v3841 = vadd.f32 %v986, %v3699
        %v3842 = vadd.f32 %v987, %v3706
        %v3843 = vadd.f32 %v988, %v3713
        %v3844 = vadd.f32 %v989, %v3720
        %v3845 = vadd.f32 %v990, %v3727
        %v3846 = vadd.f32 %v991, %v3734
        %v3847 = vadd.f32 %v992, %v3741
        %v3848 = vadd.f32 %v993, %v3748
        %v3849 = vadd.f32 %v994, %v3755
        %v3850 = vadd.f32 %v995, %v3762
        %v3851 = vadd.f32 %v996, %v3769
        %v3852 = vadd.f32 %v997, %v3776
        %v3853 = vadd.f32 %v998, %v3783
        %v3854 = vadd.f32 %v999, %v3790
        %3855 = vst [vmem:[#allocation2] sm:$0xff] %v3823
        %3856 = vst [vmem:[#allocation2 + $0x8] sm:$0xff] %v3824
        %3857 = vst [vmem:[#allocation2 + $0x10] sm:$0xff] %v3825
        %3858 = vst [vmem:[#allocation2 + $0x18] sm:$0xff] %v3826
        %3859 = vst [vmem:[#allocation2 + $0x20] sm:$0xff] %v3827
        %3860 = vst [vmem:[#allocation2 + $0x28] sm:$0xff] %v3828
        %3861 = vst [vmem:[#allocation2 + $0x30] sm:$0xff] %v3829
        %3862 = vst [vmem:[#allocation2 + $0x38] sm:$0xff] %v3830
        %3863 = vst [vmem:[#allocation2 + $0x40] sm:$0xff] %v3831
        %3864 = vst [vmem:[#allocation2 + $0x48] sm:$0xff] %v3832
        %3865 = vst [vmem:[#allocation2 + $0x50] sm:$0xff] %v3833
        %3866 = vst [vmem:[#allocation2 + $0x58] sm:$0xff] %v3834
        %3867 = vst [vmem:[#allocation2 + $0x60] sm:$0xff] %v3835
        %3868 = vst [vmem:[#allocation2 + $0x68] sm:$0xff] %v3836
        %3869 = vst [vmem:[#allocation2 + $0x70] sm:$0xff] %v3837
        %3870 = vst [vmem:[#allocation2 + $0x78] sm:$0xff] %v3838
        %3871 = vst [vmem:[#allocation2 + $0x80] sm:$0xff] %v3839
        %3872 = vst [vmem:[#allocation2 + $0x88] sm:$0xff] %v3840
        %3873 = vst [vmem:[#allocation2 + $0x90] sm:$0xff] %v3841
        %3874 = vst [vmem:[#allocation2 + $0x98] sm:$0xff] %v3842
        %3875 = vst [vmem:[#allocation2 + $0xa0] sm:$0xff] %v3843
        %3876 = vst [vmem:[#allocation2 + $0xa8] sm:$0xff] %v3844
        %3877 = vst [vmem:[#allocation2 + $0xb0] sm:$0xff] %v3845
        %3878 = vst [vmem:[#allocation2 + $0xb8] sm:$0xff] %v3846
        %3879 = vst [vmem:[#allocation2 + $0xc0] sm:$0xff] %v3847
        %3880 = vst [vmem:[#allocation2 + $0xc8] sm:$0xff] %v3848
        %3881 = vst [vmem:[#allocation2 + $0xd0] sm:$0xff] %v3849
        %3882 = vst [vmem:[#allocation2 + $0xd8] sm:$0xff] %v3850
        %3883 = vst [vmem:[#allocation2 + $0xe0] sm:$0xff] %v3851
        %3884 = vst [vmem:[#allocation2 + $0xe8] sm:$0xff] %v3852
        %3885 = vst [vmem:[#allocation2 + $0xf0] sm:$0xff] %v3853
        %3886 = vst [vmem:[#allocation2 + $0xf8] sm:$0xff] %v3854
        %p3887 = scmp.eq.s32.totalorder %s21, 1
        // Predicated region
        $region75: #{ft_net_se_head.1} parent=65 // pred_check
          %p3888 = pneg %p3887
        $region76: #{ft_net_se_head.1} parent=65 // pred_check_branch
          %3890 = sbr.rel (%p3888) target = $region78
        $region77: #{ft_net_se_head.1} parent=65 // pred_region
          %v3891 = vld [vmem:[#allocation2] sm:$0xff]
          %v3892 = vld [vmem:[#allocation2 + $0x8] sm:$0xff]
          %v3893 = vld [vmem:[#allocation2 + $0x10] sm:$0xff]
          %v3894 = vld [vmem:[#allocation2 + $0x18] sm:$0xff]
          %v3895 = vld [vmem:[#allocation2 + $0x20] sm:$0xff]
          %v3896 = vld [vmem:[#allocation2 + $0x28] sm:$0xff]
          %v3897 = vld [vmem:[#allocation2 + $0x30] sm:$0xff]
          %v3898 = vld [vmem:[#allocation2 + $0x38] sm:$0xff]
          %v3899 = vld [vmem:[#allocation2 + $0x40] sm:$0xff]
          %v3900 = vld [vmem:[#allocation2 + $0x48] sm:$0xff]
          %v3901 = vld [vmem:[#allocation2 + $0x50] sm:$0xff]
          %v3902 = vld [vmem:[#allocation2 + $0x58] sm:$0xff]
          %v3903 = vld [vmem:[#allocation2 + $0x60] sm:$0xff]
          %v3904 = vld [vmem:[#allocation2 + $0x68] sm:$0xff]
          %v3905 = vld [vmem:[#allocation2 + $0x70] sm:$0xff]
          %v3906 = vld [vmem:[#allocation2 + $0x78] sm:$0xff]
          %v3907 = vld [vmem:[#allocation2 + $0x80] sm:$0xff]
          %v3908 = vld [vmem:[#allocation2 + $0x88] sm:$0xff]
          %v3909 = vld [vmem:[#allocation2 + $0x90] sm:$0xff]
          %v3910 = vld [vmem:[#allocation2 + $0x98] sm:$0xff]
          %v3911 = vld [vmem:[#allocation2 + $0xa0] sm:$0xff]
          %v3912 = vld [vmem:[#allocation2 + $0xa8] sm:$0xff]
          %v3913 = vld [vmem:[#allocation2 + $0xb0] sm:$0xff]
          %v3914 = vld [vmem:[#allocation2 + $0xb8] sm:$0xff]
          %v3915 = vld [vmem:[#allocation2 + $0xc0] sm:$0xff]
          %v3916 = vld [vmem:[#allocation2 + $0xc8] sm:$0xff]
          %v3917 = vld [vmem:[#allocation2 + $0xd0] sm:$0xff]
          %v3918 = vld [vmem:[#allocation2 + $0xd8] sm:$0xff]
          %v3919 = vld [vmem:[#allocation2 + $0xe0] sm:$0xff]
          %v3920 = vld [vmem:[#allocation2 + $0xe8] sm:$0xff]
          %v3921 = vld [vmem:[#allocation2 + $0xf0] sm:$0xff]
          %v3922 = vld [vmem:[#allocation2 + $0xf8] sm:$0xff]
          %v3923 = vmul.f32 %v3891, 0.04
          %v3924 = vmul.f32 %v3892, 0.04
          %v3925 = vmul.f32 %v3893, 0.04
          %v3926 = vmul.f32 %v3894, 0.04
          %v3927 = vmul.f32 %v3895, 0.04
          %v3928 = vmul.f32 %v3896, 0.04
          %v3929 = vmul.f32 %v3897, 0.04
          %v3930 = vmul.f32 %v3898, 0.04
          %v3931 = vmul.f32 %v3899, 0.04
          %v3932 = vmul.f32 %v3900, 0.04
          %v3933 = vmul.f32 %v3901, 0.04
          %v3934 = vmul.f32 %v3902, 0.04
          %v3935 = vmul.f32 %v3903, 0.04
          %v3936 = vmul.f32 %v3904, 0.04
          %v3937 = vmul.f32 %v3905, 0.04
          %v3938 = vmul.f32 %v3906, 0.04
          %v3939 = vmul.f32 %v3907, 0.04
          %v3940 = vmul.f32 %v3908, 0.04
          %v3941 = vmul.f32 %v3909, 0.04
          %v3942 = vmul.f32 %v3910, 0.04
          %v3943 = vmul.f32 %v3911, 0.04
          %v3944 = vmul.f32 %v3912, 0.04
          %v3945 = vmul.f32 %v3913, 0.04
          %v3946 = vmul.f32 %v3914, 0.04
          %v3947 = vmul.f32 %v3915, 0.04
          %v3948 = vmul.f32 %v3916, 0.04
          %v3949 = vmul.f32 %v3917, 0.04
          %v3950 = vmul.f32 %v3918, 0.04
          %v3951 = vmul.f32 %v3919, 0.04
          %v3952 = vmul.f32 %v3920, 0.04
          %v3953 = vmul.f32 %v3921, 0.04
          %v3954 = vmul.f32 %v3922, 0.04
          %v3955 = vpack.c.bf16 %v3939, %v3923
          %v3956 = vpack.c.bf16 %v3940, %v3924
          %v3957 = vpack.c.bf16 %v3941, %v3925
          %v3958 = vpack.c.bf16 %v3942, %v3926
          %v3959 = vpack.c.bf16 %v3943, %v3927
          %v3960 = vpack.c.bf16 %v3944, %v3928
          %v3961 = vpack.c.bf16 %v3945, %v3929
          %v3962 = vpack.c.bf16 %v3946, %v3930
          %v3963 = vpack.c.bf16 %v3947, %v3931
          %v3964 = vpack.c.bf16 %v3948, %v3932
          %v3965 = vpack.c.bf16 %v3949, %v3933
          %v3966 = vpack.c.bf16 %v3950, %v3934
          %v3967 = vpack.c.bf16 %v3951, %v3935
          %v3968 = vpack.c.bf16 %v3952, %v3936
          %v3969 = vpack.c.bf16 %v3953, %v3937
          %v3970 = vpack.c.bf16 %v3954, %v3938
          %v3971 = vld [vmem:[%s1] sm:$0xff]
          %v3972 = vld [vmem:[%s1 + $0x8] sm:$0xff]
          %v3973 = vld [vmem:[%s1 + $0x10] sm:$0xff]
          %v3974 = vld [vmem:[%s1 + $0x18] sm:$0xff]
          %v3975 = vld [vmem:[%s1 + $0x20] sm:$0xff]
          %v3976 = vld [vmem:[%s1 + $0x28] sm:$0xff]
          %v3977 = vld [vmem:[%s1 + $0x30] sm:$0xff]
          %v3978 = vld [vmem:[%s1 + $0x38] sm:$0xff]
          %v3979 = vld [vmem:[%s1 + $0x40] sm:$0xff]
          %v3980 = vld [vmem:[%s1 + $0x48] sm:$0xff]
          %v3981 = vld [vmem:[%s1 + $0x50] sm:$0xff]
          %v3982 = vld [vmem:[%s1 + $0x58] sm:$0xff]
          %v3983 = vld [vmem:[%s1 + $0x60] sm:$0xff]
          %v3984 = vld [vmem:[%s1 + $0x68] sm:$0xff]
          %v3985 = vld [vmem:[%s1 + $0x70] sm:$0xff]
          %v3986 = vld [vmem:[%s1 + $0x78] sm:$0xff]
          %v3987 = vld [vmem:[%s1 + $0x80] sm:$0xff]
          %v3988 = vld [vmem:[%s1 + $0x88] sm:$0xff]
          %v3989 = vld [vmem:[%s1 + $0x90] sm:$0xff]
          %v3990 = vld [vmem:[%s1 + $0x98] sm:$0xff]
          %v3991 = vld [vmem:[%s1 + $0xa0] sm:$0xff]
          %v3992 = vld [vmem:[%s1 + $0xa8] sm:$0xff]
          %v3993 = vld [vmem:[%s1 + $0xb0] sm:$0xff]
          %v3994 = vld [vmem:[%s1 + $0xb8] sm:$0xff]
          %v3995 = vld [vmem:[%s1 + $0xc0] sm:$0xff]
          %v3996 = vld [vmem:[%s1 + $0xc8] sm:$0xff]
          %v3997 = vld [vmem:[%s1 + $0xd0] sm:$0xff]
          %v3998 = vld [vmem:[%s1 + $0xd8] sm:$0xff]
          %v3999 = vld [vmem:[%s1 + $0xe0] sm:$0xff]
          %v4000 = vld [vmem:[%s1 + $0xe8] sm:$0xff]
          %v4001 = vld [vmem:[%s1 + $0xf0] sm:$0xff]
          %v4002 = vld [vmem:[%s1 + $0xf8] sm:$0xff]
          %v4003 = vld [vmem:[%s1 + $0x100] sm:$0xff]
          %v4004 = vld [vmem:[%s1 + $0x108] sm:$0xff]
          %v4005 = vld [vmem:[%s1 + $0x110] sm:$0xff]
          %v4006 = vld [vmem:[%s1 + $0x118] sm:$0xff]
          %v4007 = vld [vmem:[%s1 + $0x120] sm:$0xff]
          %v4008 = vld [vmem:[%s1 + $0x128] sm:$0xff]
          %v4009 = vld [vmem:[%s1 + $0x130] sm:$0xff]
          %v4010 = vld [vmem:[%s1 + $0x138] sm:$0xff]
          %v4011 = vld [vmem:[%s1 + $0x140] sm:$0xff]
          %v4012 = vld [vmem:[%s1 + $0x148] sm:$0xff]
          %v4013 = vld [vmem:[%s1 + $0x150] sm:$0xff]
          %v4014 = vld [vmem:[%s1 + $0x158] sm:$0xff]
          %v4015 = vld [vmem:[%s1 + $0x160] sm:$0xff]
          %v4016 = vld [vmem:[%s1 + $0x168] sm:$0xff]
          %v4017 = vld [vmem:[%s1 + $0x170] sm:$0xff]
          %v4018 = vld [vmem:[%s1 + $0x178] sm:$0xff]
          %v4019 = vld [vmem:[%s1 + $0x180] sm:$0xff]
          %v4020 = vld [vmem:[%s1 + $0x188] sm:$0xff]
          %v4021 = vld [vmem:[%s1 + $0x190] sm:$0xff]
          %v4022 = vld [vmem:[%s1 + $0x198] sm:$0xff]
          %v4023 = vld [vmem:[%s1 + $0x1a0] sm:$0xff]
          %v4024 = vld [vmem:[%s1 + $0x1a8] sm:$0xff]
          %v4025 = vld [vmem:[%s1 + $0x1b0] sm:$0xff]
          %v4026 = vld [vmem:[%s1 + $0x1b8] sm:$0xff]
          %v4027 = vld [vmem:[%s1 + $0x1c0] sm:$0xff]
          %v4028 = vld [vmem:[%s1 + $0x1c8] sm:$0xff]
          %v4029 = vld [vmem:[%s1 + $0x1d0] sm:$0xff]
          %v4030 = vld [vmem:[%s1 + $0x1d8] sm:$0xff]
          %v4031 = vld [vmem:[%s1 + $0x1e0] sm:$0xff]
          %v4032 = vld [vmem:[%s1 + $0x1e8] sm:$0xff]
          %v4033 = vld [vmem:[%s1 + $0x1f0] sm:$0xff]
          %v4034 = vld [vmem:[%s1 + $0x1f8] sm:$0xff]
          %v4035 = vld [vmem:[%s1 + $0x200] sm:$0xff]
          %v4036 = vld [vmem:[%s1 + $0x208] sm:$0xff]
          %v4037 = vld [vmem:[%s1 + $0x210] sm:$0xff]
          %v4038 = vld [vmem:[%s1 + $0x218] sm:$0xff]
          %v4039 = vld [vmem:[%s1 + $0x220] sm:$0xff]
          %v4040 = vld [vmem:[%s1 + $0x228] sm:$0xff]
          %v4041 = vld [vmem:[%s1 + $0x230] sm:$0xff]
          %v4042 = vld [vmem:[%s1 + $0x238] sm:$0xff]
          %v4043 = vld [vmem:[%s1 + $0x240] sm:$0xff]
          %v4044 = vld [vmem:[%s1 + $0x248] sm:$0xff]
          %v4045 = vld [vmem:[%s1 + $0x250] sm:$0xff]
          %v4046 = vld [vmem:[%s1 + $0x258] sm:$0xff]
          %v4047 = vld [vmem:[%s1 + $0x260] sm:$0xff]
          %v4048 = vld [vmem:[%s1 + $0x268] sm:$0xff]
          %v4049 = vld [vmem:[%s1 + $0x270] sm:$0xff]
          %v4050 = vld [vmem:[%s1 + $0x278] sm:$0xff]
          %v4051 = vld [vmem:[%s1 + $0x280] sm:$0xff]
          %v4052 = vld [vmem:[%s1 + $0x288] sm:$0xff]
          %v4053 = vld [vmem:[%s1 + $0x290] sm:$0xff]
          %v4054 = vld [vmem:[%s1 + $0x298] sm:$0xff]
          %v4055 = vld [vmem:[%s1 + $0x2a0] sm:$0xff]
          %v4056 = vld [vmem:[%s1 + $0x2a8] sm:$0xff]
          %v4057 = vld [vmem:[%s1 + $0x2b0] sm:$0xff]
          %v4058 = vld [vmem:[%s1 + $0x2b8] sm:$0xff]
          %v4059 = vld [vmem:[%s1 + $0x2c0] sm:$0xff]
          %v4060 = vld [vmem:[%s1 + $0x2c8] sm:$0xff]
          %v4061 = vld [vmem:[%s1 + $0x2d0] sm:$0xff]
          %v4062 = vld [vmem:[%s1 + $0x2d8] sm:$0xff]
          %v4063 = vld [vmem:[%s1 + $0x2e0] sm:$0xff]
          %v4064 = vld [vmem:[%s1 + $0x2e8] sm:$0xff]
          %v4065 = vld [vmem:[%s1 + $0x2f0] sm:$0xff]
          %v4066 = vld [vmem:[%s1 + $0x2f8] sm:$0xff]
          %v4067 = vld [vmem:[%s1 + $0x300] sm:$0xff]
          %v4068 = vld [vmem:[%s1 + $0x308] sm:$0xff]
          %v4069 = vld [vmem:[%s1 + $0x310] sm:$0xff]
          %v4070 = vld [vmem:[%s1 + $0x318] sm:$0xff]
          %v4071 = vld [vmem:[%s1 + $0x320] sm:$0xff]
          %v4072 = vld [vmem:[%s1 + $0x328] sm:$0xff]
          %v4073 = vld [vmem:[%s1 + $0x330] sm:$0xff]
          %v4074 = vld [vmem:[%s1 + $0x338] sm:$0xff]
          %v4075 = vld [vmem:[%s1 + $0x340] sm:$0xff]
          %v4076 = vld [vmem:[%s1 + $0x348] sm:$0xff]
          %v4077 = vld [vmem:[%s1 + $0x350] sm:$0xff]
          %v4078 = vld [vmem:[%s1 + $0x358] sm:$0xff]
          %v4079 = vld [vmem:[%s1 + $0x360] sm:$0xff]
          %v4080 = vld [vmem:[%s1 + $0x368] sm:$0xff]
          %v4081 = vld [vmem:[%s1 + $0x370] sm:$0xff]
          %v4082 = vld [vmem:[%s1 + $0x378] sm:$0xff]
          %v4083 = vld [vmem:[%s1 + $0x380] sm:$0xff]
          %v4084 = vld [vmem:[%s1 + $0x388] sm:$0xff]
          %v4085 = vld [vmem:[%s1 + $0x390] sm:$0xff]
          %v4086 = vld [vmem:[%s1 + $0x398] sm:$0xff]
          %v4087 = vld [vmem:[%s1 + $0x3a0] sm:$0xff]
          %v4088 = vld [vmem:[%s1 + $0x3a8] sm:$0xff]
          %v4089 = vld [vmem:[%s1 + $0x3b0] sm:$0xff]
          %v4090 = vld [vmem:[%s1 + $0x3b8] sm:$0xff]
          %v4091 = vld [vmem:[%s1 + $0x3c0] sm:$0xff]
          %v4092 = vld [vmem:[%s1 + $0x3c8] sm:$0xff]
          %v4093 = vld [vmem:[%s1 + $0x3d0] sm:$0xff]
          %v4094 = vld [vmem:[%s1 + $0x3d8] sm:$0xff]
          %v4095 = vld [vmem:[%s1 + $0x3e0] sm:$0xff]
          %v4096 = vld [vmem:[%s1 + $0x3e8] sm:$0xff]
          %v4097 = vld [vmem:[%s1 + $0x3f0] sm:$0xff]
          %v4098 = vld [vmem:[%s1 + $0x3f8] sm:$0xff]
          %v4099 = vld [vmem:[%s1 + $0x400] sm:$0xff]
          %v4100 = vld [vmem:[%s1 + $0x408] sm:$0xff]
          %v4101 = vld [vmem:[%s1 + $0x410] sm:$0xff]
          %v4102 = vld [vmem:[%s1 + $0x418] sm:$0xff]
          %v4103 = vld [vmem:[%s1 + $0x420] sm:$0xff]
          %v4104 = vld [vmem:[%s1 + $0x428] sm:$0xff]
          %v4105 = vld [vmem:[%s1 + $0x430] sm:$0xff]
          %v4106 = vld [vmem:[%s1 + $0x438] sm:$0xff]
          %v4107 = vld [vmem:[%s1 + $0x440] sm:$0xff]
          %v4108 = vld [vmem:[%s1 + $0x448] sm:$0xff]
          %v4109 = vld [vmem:[%s1 + $0x450] sm:$0xff]
          %v4110 = vld [vmem:[%s1 + $0x458] sm:$0xff]
          %v4111 = vld [vmem:[%s1 + $0x460] sm:$0xff]
          %v4112 = vld [vmem:[%s1 + $0x468] sm:$0xff]
          %v4113 = vld [vmem:[%s1 + $0x470] sm:$0xff]
          %v4114 = vld [vmem:[%s1 + $0x478] sm:$0xff]
          %v4115 = vld [vmem:[%s1 + $0x480] sm:$0xff]
          %v4116 = vld [vmem:[%s1 + $0x488] sm:$0xff]
          %v4117 = vld [vmem:[%s1 + $0x490] sm:$0xff]
          %v4118 = vld [vmem:[%s1 + $0x498] sm:$0xff]
          %v4119 = vld [vmem:[%s1 + $0x4a0] sm:$0xff]
          %v4120 = vld [vmem:[%s1 + $0x4a8] sm:$0xff]
          %v4121 = vld [vmem:[%s1 + $0x4b0] sm:$0xff]
          %v4122 = vld [vmem:[%s1 + $0x4b8] sm:$0xff]
          %v4123 = vld [vmem:[%s1 + $0x4c0] sm:$0xff]
          %v4124 = vld [vmem:[%s1 + $0x4c8] sm:$0xff]
          %v4125 = vld [vmem:[%s1 + $0x4d0] sm:$0xff]
          %v4126 = vld [vmem:[%s1 + $0x4d8] sm:$0xff]
          %v4127 = vld [vmem:[%s1 + $0x4e0] sm:$0xff]
          %v4128 = vld [vmem:[%s1 + $0x4e8] sm:$0xff]
          %v4129 = vld [vmem:[%s1 + $0x4f0] sm:$0xff]
          %v4130 = vld [vmem:[%s1 + $0x4f8] sm:$0xff]
          %v4131 = vld [vmem:[%s1 + $0x500] sm:$0xff]
          %v4132 = vld [vmem:[%s1 + $0x508] sm:$0xff]
          %v4133 = vld [vmem:[%s1 + $0x510] sm:$0xff]
          %v4134 = vld [vmem:[%s1 + $0x518] sm:$0xff]
          %v4135 = vld [vmem:[%s1 + $0x520] sm:$0xff]
          %v4136 = vld [vmem:[%s1 + $0x528] sm:$0xff]
          %v4137 = vld [vmem:[%s1 + $0x530] sm:$0xff]
          %v4138 = vld [vmem:[%s1 + $0x538] sm:$0xff]
          %v4139 = vld [vmem:[%s1 + $0x540] sm:$0xff]
          %v4140 = vld [vmem:[%s1 + $0x548] sm:$0xff]
          %v4141 = vld [vmem:[%s1 + $0x550] sm:$0xff]
          %v4142 = vld [vmem:[%s1 + $0x558] sm:$0xff]
          %v4143 = vld [vmem:[%s1 + $0x560] sm:$0xff]
          %v4144 = vld [vmem:[%s1 + $0x568] sm:$0xff]
          %v4145 = vld [vmem:[%s1 + $0x570] sm:$0xff]
          %v4146 = vld [vmem:[%s1 + $0x578] sm:$0xff]
          %v4147 = vld [vmem:[%s1 + $0x580] sm:$0xff]
          %v4148 = vld [vmem:[%s1 + $0x588] sm:$0xff]
          %v4149 = vld [vmem:[%s1 + $0x590] sm:$0xff]
          %v4150 = vld [vmem:[%s1 + $0x598] sm:$0xff]
          %v4151 = vld [vmem:[%s1 + $0x5a0] sm:$0xff]
          %v4152 = vld [vmem:[%s1 + $0x5a8] sm:$0xff]
          %v4153 = vld [vmem:[%s1 + $0x5b0] sm:$0xff]
          %v4154 = vld [vmem:[%s1 + $0x5b8] sm:$0xff]
          %v4155 = vld [vmem:[%s1 + $0x5c0] sm:$0xff]
          %v4156 = vld [vmem:[%s1 + $0x5c8] sm:$0xff]
          %v4157 = vld [vmem:[%s1 + $0x5d0] sm:$0xff]
          %v4158 = vld [vmem:[%s1 + $0x5d8] sm:$0xff]
          %v4159 = vld [vmem:[%s1 + $0x5e0] sm:$0xff]
          %v4160 = vld [vmem:[%s1 + $0x5e8] sm:$0xff]
          %v4161 = vld [vmem:[%s1 + $0x5f0] sm:$0xff]
          %v4162 = vld [vmem:[%s1 + $0x5f8] sm:$0xff]
          %v4163 = vld [vmem:[%s1 + $0x600] sm:$0xff]
          %v4164 = vld [vmem:[%s1 + $0x608] sm:$0xff]
          %v4165 = vld [vmem:[%s1 + $0x610] sm:$0xff]
          %v4166 = vld [vmem:[%s1 + $0x618] sm:$0xff]
          %v4167 = vld [vmem:[%s1 + $0x620] sm:$0xff]
          %v4168 = vld [vmem:[%s1 + $0x628] sm:$0xff]
          %v4169 = vld [vmem:[%s1 + $0x630] sm:$0xff]
          %v4170 = vld [vmem:[%s1 + $0x638] sm:$0xff]
          %v4171 = vld [vmem:[%s1 + $0x640] sm:$0xff]
          %v4172 = vld [vmem:[%s1 + $0x648] sm:$0xff]
          %v4173 = vld [vmem:[%s1 + $0x650] sm:$0xff]
          %v4174 = vld [vmem:[%s1 + $0x658] sm:$0xff]
          %v4175 = vld [vmem:[%s1 + $0x660] sm:$0xff]
          %v4176 = vld [vmem:[%s1 + $0x668] sm:$0xff]
          %v4177 = vld [vmem:[%s1 + $0x670] sm:$0xff]
          %v4178 = vld [vmem:[%s1 + $0x678] sm:$0xff]
          %v4179 = vld [vmem:[%s1 + $0x680] sm:$0xff]
          %v4180 = vld [vmem:[%s1 + $0x688] sm:$0xff]
          %v4181 = vld [vmem:[%s1 + $0x690] sm:$0xff]
          %v4182 = vld [vmem:[%s1 + $0x698] sm:$0xff]
          %v4183 = vld [vmem:[%s1 + $0x6a0] sm:$0xff]
          %v4184 = vld [vmem:[%s1 + $0x6a8] sm:$0xff]
          %v4185 = vld [vmem:[%s1 + $0x6b0] sm:$0xff]
          %v4186 = vld [vmem:[%s1 + $0x6b8] sm:$0xff]
          %v4187 = vld [vmem:[%s1 + $0x6c0] sm:$0xff]
          %v4188 = vld [vmem:[%s1 + $0x6c8] sm:$0xff]
          %v4189 = vld [vmem:[%s1 + $0x6d0] sm:$0xff]
          %v4190 = vld [vmem:[%s1 + $0x6d8] sm:$0xff]
          %v4191 = vld [vmem:[%s1 + $0x6e0] sm:$0xff]
          %v4192 = vld [vmem:[%s1 + $0x6e8] sm:$0xff]
          %v4193 = vld [vmem:[%s1 + $0x6f0] sm:$0xff]
          %v4194 = vld [vmem:[%s1 + $0x6f8] sm:$0xff]
          %v4195 = vld [vmem:[%s1 + $0x700] sm:$0xff]
          %v4196 = vld [vmem:[%s1 + $0x708] sm:$0xff]
          %v4197 = vld [vmem:[%s1 + $0x710] sm:$0xff]
          %v4198 = vld [vmem:[%s1 + $0x718] sm:$0xff]
          %v4199 = vld [vmem:[%s1 + $0x720] sm:$0xff]
          %v4200 = vld [vmem:[%s1 + $0x728] sm:$0xff]
          %v4201 = vld [vmem:[%s1 + $0x730] sm:$0xff]
          %v4202 = vld [vmem:[%s1 + $0x738] sm:$0xff]
          %v4203 = vld [vmem:[%s1 + $0x740] sm:$0xff]
          %v4204 = vld [vmem:[%s1 + $0x748] sm:$0xff]
          %v4205 = vld [vmem:[%s1 + $0x750] sm:$0xff]
          %v4206 = vld [vmem:[%s1 + $0x758] sm:$0xff]
          %v4207 = vld [vmem:[%s1 + $0x760] sm:$0xff]
          %v4208 = vld [vmem:[%s1 + $0x768] sm:$0xff]
          %v4209 = vld [vmem:[%s1 + $0x770] sm:$0xff]
          %v4210 = vld [vmem:[%s1 + $0x778] sm:$0xff]
          %v4211 = vld [vmem:[%s1 + $0x780] sm:$0xff]
          %v4212 = vld [vmem:[%s1 + $0x788] sm:$0xff]
          %v4213 = vld [vmem:[%s1 + $0x790] sm:$0xff]
          %v4214 = vld [vmem:[%s1 + $0x798] sm:$0xff]
          %v4215 = vld [vmem:[%s1 + $0x7a0] sm:$0xff]
          %v4216 = vld [vmem:[%s1 + $0x7a8] sm:$0xff]
          %v4217 = vld [vmem:[%s1 + $0x7b0] sm:$0xff]
          %v4218 = vld [vmem:[%s1 + $0x7b8] sm:$0xff]
          %v4219 = vld [vmem:[%s1 + $0x7c0] sm:$0xff]
          %v4220 = vld [vmem:[%s1 + $0x7c8] sm:$0xff]
          %v4221 = vld [vmem:[%s1 + $0x7d0] sm:$0xff]
          %v4222 = vld [vmem:[%s1 + $0x7d8] sm:$0xff]
          %v4223 = vld [vmem:[%s1 + $0x7e0] sm:$0xff]
          %v4224 = vld [vmem:[%s1 + $0x7e8] sm:$0xff]
          %v4225 = vld [vmem:[%s1 + $0x7f0] sm:$0xff]
          %v4226 = vld [vmem:[%s1 + $0x7f8] sm:$0xff]
          %v4227 = vld [vmem:[%s1 + $0x800] sm:$0xff]
          %v4228 = vld [vmem:[%s1 + $0x808] sm:$0xff]
          %v4229 = vld [vmem:[%s1 + $0x810] sm:$0xff]
          %v4230 = vld [vmem:[%s1 + $0x818] sm:$0xff]
          %v4231 = vld [vmem:[%s1 + $0x820] sm:$0xff]
          %v4232 = vld [vmem:[%s1 + $0x828] sm:$0xff]
          %v4233 = vld [vmem:[%s1 + $0x830] sm:$0xff]
          %v4234 = vld [vmem:[%s1 + $0x838] sm:$0xff]
          %v4235 = vld [vmem:[%s1 + $0x840] sm:$0xff]
          %v4236 = vld [vmem:[%s1 + $0x848] sm:$0xff]
          %v4237 = vld [vmem:[%s1 + $0x850] sm:$0xff]
          %v4238 = vld [vmem:[%s1 + $0x858] sm:$0xff]
          %v4239 = vld [vmem:[%s1 + $0x860] sm:$0xff]
          %v4240 = vld [vmem:[%s1 + $0x868] sm:$0xff]
          %v4241 = vld [vmem:[%s1 + $0x870] sm:$0xff]
          %v4242 = vld [vmem:[%s1 + $0x878] sm:$0xff]
          %v4243 = vld [vmem:[%s1 + $0x880] sm:$0xff]
          %v4244 = vld [vmem:[%s1 + $0x888] sm:$0xff]
          %v4245 = vld [vmem:[%s1 + $0x890] sm:$0xff]
          %v4246 = vld [vmem:[%s1 + $0x898] sm:$0xff]
          %v4247 = vld [vmem:[%s1 + $0x8a0] sm:$0xff]
          %v4248 = vld [vmem:[%s1 + $0x8a8] sm:$0xff]
          %v4249 = vld [vmem:[%s1 + $0x8b0] sm:$0xff]
          %v4250 = vld [vmem:[%s1 + $0x8b8] sm:$0xff]
          %v4251 = vld [vmem:[%s1 + $0x8c0] sm:$0xff]
          %v4252 = vld [vmem:[%s1 + $0x8c8] sm:$0xff]
          %v4253 = vld [vmem:[%s1 + $0x8d0] sm:$0xff]
          %v4254 = vld [vmem:[%s1 + $0x8d8] sm:$0xff]
          %v4255 = vld [vmem:[%s1 + $0x8e0] sm:$0xff]
          %v4256 = vld [vmem:[%s1 + $0x8e8] sm:$0xff]
          %v4257 = vld [vmem:[%s1 + $0x8f0] sm:$0xff]
          %v4258 = vld [vmem:[%s1 + $0x8f8] sm:$0xff]
          %v4259 = vld [vmem:[%s1 + $0x900] sm:$0xff]
          %v4260 = vld [vmem:[%s1 + $0x908] sm:$0xff]
          %v4261 = vld [vmem:[%s1 + $0x910] sm:$0xff]
          %v4262 = vld [vmem:[%s1 + $0x918] sm:$0xff]
          %v4263 = vld [vmem:[%s1 + $0x920] sm:$0xff]
          %v4264 = vld [vmem:[%s1 + $0x928] sm:$0xff]
          %v4265 = vld [vmem:[%s1 + $0x930] sm:$0xff]
          %v4266 = vld [vmem:[%s1 + $0x938] sm:$0xff]
          %v4267 = vld [vmem:[%s1 + $0x940] sm:$0xff]
          %v4268 = vld [vmem:[%s1 + $0x948] sm:$0xff]
          %v4269 = vld [vmem:[%s1 + $0x950] sm:$0xff]
          %v4270 = vld [vmem:[%s1 + $0x958] sm:$0xff]
          %v4271 = vld [vmem:[%s1 + $0x960] sm:$0xff]
          %v4272 = vld [vmem:[%s1 + $0x968] sm:$0xff]
          %v4273 = vld [vmem:[%s1 + $0x970] sm:$0xff]
          %v4274 = vld [vmem:[%s1 + $0x978] sm:$0xff]
          %v4275 = vld [vmem:[%s1 + $0x980] sm:$0xff]
          %v4276 = vld [vmem:[%s1 + $0x988] sm:$0xff]
          %v4277 = vld [vmem:[%s1 + $0x990] sm:$0xff]
          %v4278 = vld [vmem:[%s1 + $0x998] sm:$0xff]
          %v4279 = vld [vmem:[%s1 + $0x9a0] sm:$0xff]
          %v4280 = vld [vmem:[%s1 + $0x9a8] sm:$0xff]
          %v4281 = vld [vmem:[%s1 + $0x9b0] sm:$0xff]
          %v4282 = vld [vmem:[%s1 + $0x9b8] sm:$0xff]
          %v4283 = vld [vmem:[%s1 + $0x9c0] sm:$0xff]
          %v4284 = vld [vmem:[%s1 + $0x9c8] sm:$0xff]
          %v4285 = vld [vmem:[%s1 + $0x9d0] sm:$0xff]
          %v4286 = vld [vmem:[%s1 + $0x9d8] sm:$0xff]
          %v4287 = vld [vmem:[%s1 + $0x9e0] sm:$0xff]
          %v4288 = vld [vmem:[%s1 + $0x9e8] sm:$0xff]
          %v4289 = vld [vmem:[%s1 + $0x9f0] sm:$0xff]
          %v4290 = vld [vmem:[%s1 + $0x9f8] sm:$0xff]
          %v4291 = vld [vmem:[%s1 + $0xa00] sm:$0xff]
          %v4292 = vld [vmem:[%s1 + $0xa08] sm:$0xff]
          %v4293 = vld [vmem:[%s1 + $0xa10] sm:$0xff]
          %v4294 = vld [vmem:[%s1 + $0xa18] sm:$0xff]
          %v4295 = vld [vmem:[%s1 + $0xa20] sm:$0xff]
          %v4296 = vld [vmem:[%s1 + $0xa28] sm:$0xff]
          %v4297 = vld [vmem:[%s1 + $0xa30] sm:$0xff]
          %v4298 = vld [vmem:[%s1 + $0xa38] sm:$0xff]
          %v4299 = vld [vmem:[%s1 + $0xa40] sm:$0xff]
          %v4300 = vld [vmem:[%s1 + $0xa48] sm:$0xff]
          %v4301 = vld [vmem:[%s1 + $0xa50] sm:$0xff]
          %v4302 = vld [vmem:[%s1 + $0xa58] sm:$0xff]
          %v4303 = vld [vmem:[%s1 + $0xa60] sm:$0xff]
          %v4304 = vld [vmem:[%s1 + $0xa68] sm:$0xff]
          %v4305 = vld [vmem:[%s1 + $0xa70] sm:$0xff]
          %v4306 = vld [vmem:[%s1 + $0xa78] sm:$0xff]
          %v4307 = vld [vmem:[%s1 + $0xa80] sm:$0xff]
          %v4308 = vld [vmem:[%s1 + $0xa88] sm:$0xff]
          %v4309 = vld [vmem:[%s1 + $0xa90] sm:$0xff]
          %v4310 = vld [vmem:[%s1 + $0xa98] sm:$0xff]
          %v4311 = vld [vmem:[%s1 + $0xaa0] sm:$0xff]
          %v4312 = vld [vmem:[%s1 + $0xaa8] sm:$0xff]
          %v4313 = vld [vmem:[%s1 + $0xab0] sm:$0xff]
          %v4314 = vld [vmem:[%s1 + $0xab8] sm:$0xff]
          %v4315 = vld [vmem:[%s1 + $0xac0] sm:$0xff]
          %v4316 = vld [vmem:[%s1 + $0xac8] sm:$0xff]
          %v4317 = vld [vmem:[%s1 + $0xad0] sm:$0xff]
          %v4318 = vld [vmem:[%s1 + $0xad8] sm:$0xff]
          %v4319 = vld [vmem:[%s1 + $0xae0] sm:$0xff]
          %v4320 = vld [vmem:[%s1 + $0xae8] sm:$0xff]
          %v4321 = vld [vmem:[%s1 + $0xaf0] sm:$0xff]
          %v4322 = vld [vmem:[%s1 + $0xaf8] sm:$0xff]
          %v4323 = vld [vmem:[%s1 + $0xb00] sm:$0xff]
          %v4324 = vld [vmem:[%s1 + $0xb08] sm:$0xff]
          %v4325 = vld [vmem:[%s1 + $0xb10] sm:$0xff]
          %v4326 = vld [vmem:[%s1 + $0xb18] sm:$0xff]
          %v4327 = vld [vmem:[%s1 + $0xb20] sm:$0xff]
          %v4328 = vld [vmem:[%s1 + $0xb28] sm:$0xff]
          %v4329 = vld [vmem:[%s1 + $0xb30] sm:$0xff]
          %v4330 = vld [vmem:[%s1 + $0xb38] sm:$0xff]
          %v4331 = vld [vmem:[%s1 + $0xb40] sm:$0xff]
          %v4332 = vld [vmem:[%s1 + $0xb48] sm:$0xff]
          %v4333 = vld [vmem:[%s1 + $0xb50] sm:$0xff]
          %v4334 = vld [vmem:[%s1 + $0xb58] sm:$0xff]
          %v4335 = vld [vmem:[%s1 + $0xb60] sm:$0xff]
          %v4336 = vld [vmem:[%s1 + $0xb68] sm:$0xff]
          %v4337 = vld [vmem:[%s1 + $0xb70] sm:$0xff]
          %v4338 = vld [vmem:[%s1 + $0xb78] sm:$0xff]
          %v4339 = vld [vmem:[%s1 + $0xb80] sm:$0xff]
          %v4340 = vld [vmem:[%s1 + $0xb88] sm:$0xff]
          %v4341 = vld [vmem:[%s1 + $0xb90] sm:$0xff]
          %v4342 = vld [vmem:[%s1 + $0xb98] sm:$0xff]
          %v4343 = vld [vmem:[%s1 + $0xba0] sm:$0xff]
          %v4344 = vld [vmem:[%s1 + $0xba8] sm:$0xff]
          %v4345 = vld [vmem:[%s1 + $0xbb0] sm:$0xff]
          %v4346 = vld [vmem:[%s1 + $0xbb8] sm:$0xff]
          %v4347 = vld [vmem:[%s1 + $0xbc0] sm:$0xff]
          %v4348 = vld [vmem:[%s1 + $0xbc8] sm:$0xff]
          %v4349 = vld [vmem:[%s1 + $0xbd0] sm:$0xff]
          %v4350 = vld [vmem:[%s1 + $0xbd8] sm:$0xff]
          %v4351 = vld [vmem:[%s1 + $0xbe0] sm:$0xff]
          %v4352 = vld [vmem:[%s1 + $0xbe8] sm:$0xff]
          %v4353 = vld [vmem:[%s1 + $0xbf0] sm:$0xff]
          %v4354 = vld [vmem:[%s1 + $0xbf8] sm:$0xff]
          %v4355 = vld [vmem:[%s1 + $0xc00] sm:$0xff]
          %v4356 = vld [vmem:[%s1 + $0xc08] sm:$0xff]
          %v4357 = vld [vmem:[%s1 + $0xc10] sm:$0xff]
          %v4358 = vld [vmem:[%s1 + $0xc18] sm:$0xff]
          %v4359 = vld [vmem:[%s1 + $0xc20] sm:$0xff]
          %v4360 = vld [vmem:[%s1 + $0xc28] sm:$0xff]
          %v4361 = vld [vmem:[%s1 + $0xc30] sm:$0xff]
          %v4362 = vld [vmem:[%s1 + $0xc38] sm:$0xff]
          %v4363 = vld [vmem:[%s1 + $0xc40] sm:$0xff]
          %v4364 = vld [vmem:[%s1 + $0xc48] sm:$0xff]
          %v4365 = vld [vmem:[%s1 + $0xc50] sm:$0xff]
          %v4366 = vld [vmem:[%s1 + $0xc58] sm:$0xff]
          %v4367 = vld [vmem:[%s1 + $0xc60] sm:$0xff]
          %v4368 = vld [vmem:[%s1 + $0xc68] sm:$0xff]
          %v4369 = vld [vmem:[%s1 + $0xc70] sm:$0xff]
          %v4370 = vld [vmem:[%s1 + $0xc78] sm:$0xff]
          %v4371 = vld [vmem:[%s1 + $0xc80] sm:$0xff]
          %v4372 = vld [vmem:[%s1 + $0xc88] sm:$0xff]
          %v4373 = vld [vmem:[%s1 + $0xc90] sm:$0xff]
          %v4374 = vld [vmem:[%s1 + $0xc98] sm:$0xff]
          %v4375 = vld [vmem:[%s1 + $0xca0] sm:$0xff]
          %v4376 = vld [vmem:[%s1 + $0xca8] sm:$0xff]
          %v4377 = vld [vmem:[%s1 + $0xcb0] sm:$0xff]
          %v4378 = vld [vmem:[%s1 + $0xcb8] sm:$0xff]
          %v4379 = vld [vmem:[%s1 + $0xcc0] sm:$0xff]
          %v4380 = vld [vmem:[%s1 + $0xcc8] sm:$0xff]
          %v4381 = vld [vmem:[%s1 + $0xcd0] sm:$0xff]
          %v4382 = vld [vmem:[%s1 + $0xcd8] sm:$0xff]
          %v4383 = vld [vmem:[%s1 + $0xce0] sm:$0xff]
          %v4384 = vld [vmem:[%s1 + $0xce8] sm:$0xff]
          %v4385 = vld [vmem:[%s1 + $0xcf0] sm:$0xff]
          %v4386 = vld [vmem:[%s1 + $0xcf8] sm:$0xff]
          %v4387 = vld [vmem:[%s1 + $0xd00] sm:$0xff]
          %v4388 = vld [vmem:[%s1 + $0xd08] sm:$0xff]
          %v4389 = vld [vmem:[%s1 + $0xd10] sm:$0xff]
          %v4390 = vld [vmem:[%s1 + $0xd18] sm:$0xff]
          %v4391 = vld [vmem:[%s1 + $0xd20] sm:$0xff]
          %v4392 = vld [vmem:[%s1 + $0xd28] sm:$0xff]
          %v4393 = vld [vmem:[%s1 + $0xd30] sm:$0xff]
          %v4394 = vld [vmem:[%s1 + $0xd38] sm:$0xff]
          %v4395 = vld [vmem:[%s1 + $0xd40] sm:$0xff]
          %v4396 = vld [vmem:[%s1 + $0xd48] sm:$0xff]
          %v4397 = vld [vmem:[%s1 + $0xd50] sm:$0xff]
          %v4398 = vld [vmem:[%s1 + $0xd58] sm:$0xff]
          %v4399 = vld [vmem:[%s1 + $0xd60] sm:$0xff]
          %v4400 = vld [vmem:[%s1 + $0xd68] sm:$0xff]
          %v4401 = vld [vmem:[%s1 + $0xd70] sm:$0xff]
          %v4402 = vld [vmem:[%s1 + $0xd78] sm:$0xff]
          %v4403 = vld [vmem:[%s1 + $0xd80] sm:$0xff]
          %v4404 = vld [vmem:[%s1 + $0xd88] sm:$0xff]
          %v4405 = vld [vmem:[%s1 + $0xd90] sm:$0xff]
          %v4406 = vld [vmem:[%s1 + $0xd98] sm:$0xff]
          %v4407 = vld [vmem:[%s1 + $0xda0] sm:$0xff]
          %v4408 = vld [vmem:[%s1 + $0xda8] sm:$0xff]
          %v4409 = vld [vmem:[%s1 + $0xdb0] sm:$0xff]
          %v4410 = vld [vmem:[%s1 + $0xdb8] sm:$0xff]
          %v4411 = vld [vmem:[%s1 + $0xdc0] sm:$0xff]
          %v4412 = vld [vmem:[%s1 + $0xdc8] sm:$0xff]
          %v4413 = vld [vmem:[%s1 + $0xdd0] sm:$0xff]
          %v4414 = vld [vmem:[%s1 + $0xdd8] sm:$0xff]
          %v4415 = vld [vmem:[%s1 + $0xde0] sm:$0xff]
          %v4416 = vld [vmem:[%s1 + $0xde8] sm:$0xff]
          %v4417 = vld [vmem:[%s1 + $0xdf0] sm:$0xff]
          %v4418 = vld [vmem:[%s1 + $0xdf8] sm:$0xff]
          %v4419 = vld [vmem:[%s1 + $0xe00] sm:$0xff]
          %v4420 = vld [vmem:[%s1 + $0xe08] sm:$0xff]
          %v4421 = vld [vmem:[%s1 + $0xe10] sm:$0xff]
          %v4422 = vld [vmem:[%s1 + $0xe18] sm:$0xff]
          %v4423 = vld [vmem:[%s1 + $0xe20] sm:$0xff]
          %v4424 = vld [vmem:[%s1 + $0xe28] sm:$0xff]
          %v4425 = vld [vmem:[%s1 + $0xe30] sm:$0xff]
          %v4426 = vld [vmem:[%s1 + $0xe38] sm:$0xff]
          %v4427 = vld [vmem:[%s1 + $0xe40] sm:$0xff]
          %v4428 = vld [vmem:[%s1 + $0xe48] sm:$0xff]
          %v4429 = vld [vmem:[%s1 + $0xe50] sm:$0xff]
          %v4430 = vld [vmem:[%s1 + $0xe58] sm:$0xff]
          %v4431 = vld [vmem:[%s1 + $0xe60] sm:$0xff]
          %v4432 = vld [vmem:[%s1 + $0xe68] sm:$0xff]
          %v4433 = vld [vmem:[%s1 + $0xe70] sm:$0xff]
          %v4434 = vld [vmem:[%s1 + $0xe78] sm:$0xff]
          %v4435 = vld [vmem:[%s1 + $0xe80] sm:$0xff]
          %v4436 = vld [vmem:[%s1 + $0xe88] sm:$0xff]
          %v4437 = vld [vmem:[%s1 + $0xe90] sm:$0xff]
          %v4438 = vld [vmem:[%s1 + $0xe98] sm:$0xff]
          %v4439 = vld [vmem:[%s1 + $0xea0] sm:$0xff]
          %v4440 = vld [vmem:[%s1 + $0xea8] sm:$0xff]
          %v4441 = vld [vmem:[%s1 + $0xeb0] sm:$0xff]
          %v4442 = vld [vmem:[%s1 + $0xeb8] sm:$0xff]
          %v4443 = vld [vmem:[%s1 + $0xec0] sm:$0xff]
          %v4444 = vld [vmem:[%s1 + $0xec8] sm:$0xff]
          %v4445 = vld [vmem:[%s1 + $0xed0] sm:$0xff]
          %v4446 = vld [vmem:[%s1 + $0xed8] sm:$0xff]
          %v4447 = vld [vmem:[%s1 + $0xee0] sm:$0xff]
          %v4448 = vld [vmem:[%s1 + $0xee8] sm:$0xff]
          %v4449 = vld [vmem:[%s1 + $0xef0] sm:$0xff]
          %v4450 = vld [vmem:[%s1 + $0xef8] sm:$0xff]
          %v4451 = vld [vmem:[%s1 + $0xf00] sm:$0xff]
          %v4452 = vld [vmem:[%s1 + $0xf08] sm:$0xff]
          %v4453 = vld [vmem:[%s1 + $0xf10] sm:$0xff]
          %v4454 = vld [vmem:[%s1 + $0xf18] sm:$0xff]
          %v4455 = vld [vmem:[%s1 + $0xf20] sm:$0xff]
          %v4456 = vld [vmem:[%s1 + $0xf28] sm:$0xff]
          %v4457 = vld [vmem:[%s1 + $0xf30] sm:$0xff]
          %v4458 = vld [vmem:[%s1 + $0xf38] sm:$0xff]
          %v4459 = vld [vmem:[%s1 + $0xf40] sm:$0xff]
          %v4460 = vld [vmem:[%s1 + $0xf48] sm:$0xff]
          %v4461 = vld [vmem:[%s1 + $0xf50] sm:$0xff]
          %v4462 = vld [vmem:[%s1 + $0xf58] sm:$0xff]
          %v4463 = vld [vmem:[%s1 + $0xf60] sm:$0xff]
          %v4464 = vld [vmem:[%s1 + $0xf68] sm:$0xff]
          %v4465 = vld [vmem:[%s1 + $0xf70] sm:$0xff]
          %v4466 = vld [vmem:[%s1 + $0xf78] sm:$0xff]
          %v4467 = vld [vmem:[%s1 + $0xf80] sm:$0xff]
          %v4468 = vld [vmem:[%s1 + $0xf88] sm:$0xff]
          %v4469 = vld [vmem:[%s1 + $0xf90] sm:$0xff]
          %v4470 = vld [vmem:[%s1 + $0xf98] sm:$0xff]
          %v4471 = vld [vmem:[%s1 + $0xfa0] sm:$0xff]
          %v4472 = vld [vmem:[%s1 + $0xfa8] sm:$0xff]
          %v4473 = vld [vmem:[%s1 + $0xfb0] sm:$0xff]
          %v4474 = vld [vmem:[%s1 + $0xfb8] sm:$0xff]
          %v4475 = vld [vmem:[%s1 + $0xfc0] sm:$0xff]
          %v4476 = vld [vmem:[%s1 + $0xfc8] sm:$0xff]
          %v4477 = vld [vmem:[%s1 + $0xfd0] sm:$0xff]
          %v4478 = vld [vmem:[%s1 + $0xfd8] sm:$0xff]
          %v4479 = vld [vmem:[%s1 + $0xfe0] sm:$0xff]
          %v4480 = vld [vmem:[%s1 + $0xfe8] sm:$0xff]
          %v4481 = vld [vmem:[%s1 + $0xff0] sm:$0xff]
          %v4482 = vld [vmem:[%s1 + $0xff8] sm:$0xff]
          %v4483 = vld [vmem:[%s2] sm:$0xf]
          %v4485 = vperm.slane %v4483, 0
          %v4486 = vperm.slane %v4483, 1
          %v4487 = vperm.slane %v4483, 2
          %v4488 = vperm.slane %v4483, 3
          %v5005 = vunpack.c.l.b16 %v3971
          %v5006 = vunpack.c.h.b16 %v3971
          %v5007 = vunpack.c.l.b16 %v3972
          %v5008 = vunpack.c.h.b16 %v3972
          %v5009 = vunpack.c.l.b16 %v3973
          %v5010 = vunpack.c.h.b16 %v3973
          %v5011 = vunpack.c.l.b16 %v3974
          %v5012 = vunpack.c.h.b16 %v3974
          %v5013 = vunpack.c.l.b16 %v3975
          %v5014 = vunpack.c.h.b16 %v3975
          %v5015 = vunpack.c.l.b16 %v3976
          %v5016 = vunpack.c.h.b16 %v3976
          %v5017 = vunpack.c.l.b16 %v3977
          %v5018 = vunpack.c.h.b16 %v3977
          %v5019 = vunpack.c.l.b16 %v3978
          %v5020 = vunpack.c.h.b16 %v3978
          %v5021 = vunpack.c.l.b16 %v3979
          %v5022 = vunpack.c.h.b16 %v3979
          %v5023 = vunpack.c.l.b16 %v3980
          %v5024 = vunpack.c.h.b16 %v3980
          %v5025 = vunpack.c.l.b16 %v3981
          %v5026 = vunpack.c.h.b16 %v3981
          %v5027 = vunpack.c.l.b16 %v3982
          %v5028 = vunpack.c.h.b16 %v3982
          %v5029 = vunpack.c.l.b16 %v3983
          %v5030 = vunpack.c.h.b16 %v3983
          %v5031 = vunpack.c.l.b16 %v3984
          %v5032 = vunpack.c.h.b16 %v3984
          %v5033 = vunpack.c.l.b16 %v3985
          %v5034 = vunpack.c.h.b16 %v3985
          %v5035 = vunpack.c.l.b16 %v3986
          %v5036 = vunpack.c.h.b16 %v3986
          %v5037 = vunpack.c.l.b16 %v3987
          %v5038 = vunpack.c.h.b16 %v3987
          %v5039 = vunpack.c.l.b16 %v3988
          %v5040 = vunpack.c.h.b16 %v3988
          %v5041 = vunpack.c.l.b16 %v3989
          %v5042 = vunpack.c.h.b16 %v3989
          %v5043 = vunpack.c.l.b16 %v3990
          %v5044 = vunpack.c.h.b16 %v3990
          %v5045 = vunpack.c.l.b16 %v3991
          %v5046 = vunpack.c.h.b16 %v3991
          %v5047 = vunpack.c.l.b16 %v3992
          %v5048 = vunpack.c.h.b16 %v3992
          %v5049 = vunpack.c.l.b16 %v3993
          %v5050 = vunpack.c.h.b16 %v3993
          %v5051 = vunpack.c.l.b16 %v3994
          %v5052 = vunpack.c.h.b16 %v3994
          %v5053 = vunpack.c.l.b16 %v3995
          %v5054 = vunpack.c.h.b16 %v3995
          %v5055 = vunpack.c.l.b16 %v3996
          %v5056 = vunpack.c.h.b16 %v3996
          %v5057 = vunpack.c.l.b16 %v3997
          %v5058 = vunpack.c.h.b16 %v3997
          %v5059 = vunpack.c.l.b16 %v3998
          %v5060 = vunpack.c.h.b16 %v3998
          %v5061 = vunpack.c.l.b16 %v3999
          %v5062 = vunpack.c.h.b16 %v3999
          %v5063 = vunpack.c.l.b16 %v4000
          %v5064 = vunpack.c.h.b16 %v4000
          %v5065 = vunpack.c.l.b16 %v4001
          %v5066 = vunpack.c.h.b16 %v4001
          %v5067 = vunpack.c.l.b16 %v4002
          %v5068 = vunpack.c.h.b16 %v4002
          %v5069 = vunpack.c.l.b16 %v4003
          %v5070 = vunpack.c.h.b16 %v4003
          %v5071 = vunpack.c.l.b16 %v4004
          %v5072 = vunpack.c.h.b16 %v4004
          %v5073 = vunpack.c.l.b16 %v4005
          %v5074 = vunpack.c.h.b16 %v4005
          %v5075 = vunpack.c.l.b16 %v4006
          %v5076 = vunpack.c.h.b16 %v4006
          %v5077 = vunpack.c.l.b16 %v4007
          %v5078 = vunpack.c.h.b16 %v4007
          %v5079 = vunpack.c.l.b16 %v4008
          %v5080 = vunpack.c.h.b16 %v4008
          %v5081 = vunpack.c.l.b16 %v4009
          %v5082 = vunpack.c.h.b16 %v4009
          %v5083 = vunpack.c.l.b16 %v4010
          %v5084 = vunpack.c.h.b16 %v4010
          %v5085 = vunpack.c.l.b16 %v4011
          %v5086 = vunpack.c.h.b16 %v4011
          %v5087 = vunpack.c.l.b16 %v4012
          %v5088 = vunpack.c.h.b16 %v4012
          %v5089 = vunpack.c.l.b16 %v4013
          %v5090 = vunpack.c.h.b16 %v4013
          %v5091 = vunpack.c.l.b16 %v4014
          %v5092 = vunpack.c.h.b16 %v4014
          %v5093 = vunpack.c.l.b16 %v4015
          %v5094 = vunpack.c.h.b16 %v4015
          %v5095 = vunpack.c.l.b16 %v4016
          %v5096 = vunpack.c.h.b16 %v4016
          %v5097 = vunpack.c.l.b16 %v4017
          %v5098 = vunpack.c.h.b16 %v4017
          %v5099 = vunpack.c.l.b16 %v4018
          %v5100 = vunpack.c.h.b16 %v4018
          %v5101 = vunpack.c.l.b16 %v4019
          %v5102 = vunpack.c.h.b16 %v4019
          %v5103 = vunpack.c.l.b16 %v4020
          %v5104 = vunpack.c.h.b16 %v4020
          %v5105 = vunpack.c.l.b16 %v4021
          %v5106 = vunpack.c.h.b16 %v4021
          %v5107 = vunpack.c.l.b16 %v4022
          %v5108 = vunpack.c.h.b16 %v4022
          %v5109 = vunpack.c.l.b16 %v4023
          %v5110 = vunpack.c.h.b16 %v4023
          %v5111 = vunpack.c.l.b16 %v4024
          %v5112 = vunpack.c.h.b16 %v4024
          %v5113 = vunpack.c.l.b16 %v4025
          %v5114 = vunpack.c.h.b16 %v4025
          %v5115 = vunpack.c.l.b16 %v4026
          %v5116 = vunpack.c.h.b16 %v4026
          %v5117 = vunpack.c.l.b16 %v4027
          %v5118 = vunpack.c.h.b16 %v4027
          %v5119 = vunpack.c.l.b16 %v4028
          %v5120 = vunpack.c.h.b16 %v4028
          %v5121 = vunpack.c.l.b16 %v4029
          %v5122 = vunpack.c.h.b16 %v4029
          %v5123 = vunpack.c.l.b16 %v4030
          %v5124 = vunpack.c.h.b16 %v4030
          %v5125 = vunpack.c.l.b16 %v4031
          %v5126 = vunpack.c.h.b16 %v4031
          %v5127 = vunpack.c.l.b16 %v4032
          %v5128 = vunpack.c.h.b16 %v4032
          %v5129 = vunpack.c.l.b16 %v4033
          %v5130 = vunpack.c.h.b16 %v4033
          %v5131 = vunpack.c.l.b16 %v4034
          %v5132 = vunpack.c.h.b16 %v4034
          %v5133 = vunpack.c.l.b16 %v4035
          %v5134 = vunpack.c.h.b16 %v4035
          %v5135 = vunpack.c.l.b16 %v4036
          %v5136 = vunpack.c.h.b16 %v4036
          %v5137 = vunpack.c.l.b16 %v4037
          %v5138 = vunpack.c.h.b16 %v4037
          %v5139 = vunpack.c.l.b16 %v4038
          %v5140 = vunpack.c.h.b16 %v4038
          %v5141 = vunpack.c.l.b16 %v4039
          %v5142 = vunpack.c.h.b16 %v4039
          %v5143 = vunpack.c.l.b16 %v4040
          %v5144 = vunpack.c.h.b16 %v4040
          %v5145 = vunpack.c.l.b16 %v4041
          %v5146 = vunpack.c.h.b16 %v4041
          %v5147 = vunpack.c.l.b16 %v4042
          %v5148 = vunpack.c.h.b16 %v4042
          %v5149 = vunpack.c.l.b16 %v4043
          %v5150 = vunpack.c.h.b16 %v4043
          %v5151 = vunpack.c.l.b16 %v4044
          %v5152 = vunpack.c.h.b16 %v4044
          %v5153 = vunpack.c.l.b16 %v4045
          %v5154 = vunpack.c.h.b16 %v4045
          %v5155 = vunpack.c.l.b16 %v4046
          %v5156 = vunpack.c.h.b16 %v4046
          %v5157 = vunpack.c.l.b16 %v4047
          %v5158 = vunpack.c.h.b16 %v4047
          %v5159 = vunpack.c.l.b16 %v4048
          %v5160 = vunpack.c.h.b16 %v4048
          %v5161 = vunpack.c.l.b16 %v4049
          %v5162 = vunpack.c.h.b16 %v4049
          %v5163 = vunpack.c.l.b16 %v4050
          %v5164 = vunpack.c.h.b16 %v4050
          %v5165 = vunpack.c.l.b16 %v4051
          %v5166 = vunpack.c.h.b16 %v4051
          %v5167 = vunpack.c.l.b16 %v4052
          %v5168 = vunpack.c.h.b16 %v4052
          %v5169 = vunpack.c.l.b16 %v4053
          %v5170 = vunpack.c.h.b16 %v4053
          %v5171 = vunpack.c.l.b16 %v4054
          %v5172 = vunpack.c.h.b16 %v4054
          %v5173 = vunpack.c.l.b16 %v4055
          %v5174 = vunpack.c.h.b16 %v4055
          %v5175 = vunpack.c.l.b16 %v4056
          %v5176 = vunpack.c.h.b16 %v4056
          %v5177 = vunpack.c.l.b16 %v4057
          %v5178 = vunpack.c.h.b16 %v4057
          %v5179 = vunpack.c.l.b16 %v4058
          %v5180 = vunpack.c.h.b16 %v4058
          %v5181 = vunpack.c.l.b16 %v4059
          %v5182 = vunpack.c.h.b16 %v4059
          %v5183 = vunpack.c.l.b16 %v4060
          %v5184 = vunpack.c.h.b16 %v4060
          %v5185 = vunpack.c.l.b16 %v4061
          %v5186 = vunpack.c.h.b16 %v4061
          %v5187 = vunpack.c.l.b16 %v4062
          %v5188 = vunpack.c.h.b16 %v4062
          %v5189 = vunpack.c.l.b16 %v4063
          %v5190 = vunpack.c.h.b16 %v4063
          %v5191 = vunpack.c.l.b16 %v4064
          %v5192 = vunpack.c.h.b16 %v4064
          %v5193 = vunpack.c.l.b16 %v4065
          %v5194 = vunpack.c.h.b16 %v4065
          %v5195 = vunpack.c.l.b16 %v4066
          %v5196 = vunpack.c.h.b16 %v4066
          %v5197 = vunpack.c.l.b16 %v4067
          %v5198 = vunpack.c.h.b16 %v4067
          %v5199 = vunpack.c.l.b16 %v4068
          %v5200 = vunpack.c.h.b16 %v4068
          %v5201 = vunpack.c.l.b16 %v4069
          %v5202 = vunpack.c.h.b16 %v4069
          %v5203 = vunpack.c.l.b16 %v4070
          %v5204 = vunpack.c.h.b16 %v4070
          %v5205 = vunpack.c.l.b16 %v4071
          %v5206 = vunpack.c.h.b16 %v4071
          %v5207 = vunpack.c.l.b16 %v4072
          %v5208 = vunpack.c.h.b16 %v4072
          %v5209 = vunpack.c.l.b16 %v4073
          %v5210 = vunpack.c.h.b16 %v4073
          %v5211 = vunpack.c.l.b16 %v4074
          %v5212 = vunpack.c.h.b16 %v4074
          %v5213 = vunpack.c.l.b16 %v4075
          %v5214 = vunpack.c.h.b16 %v4075
          %v5215 = vunpack.c.l.b16 %v4076
          %v5216 = vunpack.c.h.b16 %v4076
          %v5217 = vunpack.c.l.b16 %v4077
          %v5218 = vunpack.c.h.b16 %v4077
          %v5219 = vunpack.c.l.b16 %v4078
          %v5220 = vunpack.c.h.b16 %v4078
          %v5221 = vunpack.c.l.b16 %v4079
          %v5222 = vunpack.c.h.b16 %v4079
          %v5223 = vunpack.c.l.b16 %v4080
          %v5224 = vunpack.c.h.b16 %v4080
          %v5225 = vunpack.c.l.b16 %v4081
          %v5226 = vunpack.c.h.b16 %v4081
          %v5227 = vunpack.c.l.b16 %v4082
          %v5228 = vunpack.c.h.b16 %v4082
          %v5229 = vunpack.c.l.b16 %v4083
          %v5230 = vunpack.c.h.b16 %v4083
          %v5231 = vunpack.c.l.b16 %v4084
          %v5232 = vunpack.c.h.b16 %v4084
          %v5233 = vunpack.c.l.b16 %v4085
          %v5234 = vunpack.c.h.b16 %v4085
          %v5235 = vunpack.c.l.b16 %v4086
          %v5236 = vunpack.c.h.b16 %v4086
          %v5237 = vunpack.c.l.b16 %v4087
          %v5238 = vunpack.c.h.b16 %v4087
          %v5239 = vunpack.c.l.b16 %v4088
          %v5240 = vunpack.c.h.b16 %v4088
          %v5241 = vunpack.c.l.b16 %v4089
          %v5242 = vunpack.c.h.b16 %v4089
          %v5243 = vunpack.c.l.b16 %v4090
          %v5244 = vunpack.c.h.b16 %v4090
          %v5245 = vunpack.c.l.b16 %v4091
          %v5246 = vunpack.c.h.b16 %v4091
          %v5247 = vunpack.c.l.b16 %v4092
          %v5248 = vunpack.c.h.b16 %v4092
          %v5249 = vunpack.c.l.b16 %v4093
          %v5250 = vunpack.c.h.b16 %v4093
          %v5251 = vunpack.c.l.b16 %v4094
          %v5252 = vunpack.c.h.b16 %v4094
          %v5253 = vunpack.c.l.b16 %v4095
          %v5254 = vunpack.c.h.b16 %v4095
          %v5255 = vunpack.c.l.b16 %v4096
          %v5256 = vunpack.c.h.b16 %v4096
          %v5257 = vunpack.c.l.b16 %v4097
          %v5258 = vunpack.c.h.b16 %v4097
          %v5259 = vunpack.c.l.b16 %v4098
          %v5260 = vunpack.c.h.b16 %v4098
          %v5261 = vunpack.c.l.b16 %v4099
          %v5262 = vunpack.c.h.b16 %v4099
          %v5263 = vunpack.c.l.b16 %v4100
          %v5264 = vunpack.c.h.b16 %v4100
          %v5265 = vunpack.c.l.b16 %v4101
          %v5266 = vunpack.c.h.b16 %v4101
          %v5267 = vunpack.c.l.b16 %v4102
          %v5268 = vunpack.c.h.b16 %v4102
          %v5269 = vunpack.c.l.b16 %v4103
          %v5270 = vunpack.c.h.b16 %v4103
          %v5271 = vunpack.c.l.b16 %v4104
          %v5272 = vunpack.c.h.b16 %v4104
          %v5273 = vunpack.c.l.b16 %v4105
          %v5274 = vunpack.c.h.b16 %v4105
          %v5275 = vunpack.c.l.b16 %v4106
          %v5276 = vunpack.c.h.b16 %v4106
          %v5277 = vunpack.c.l.b16 %v4107
          %v5278 = vunpack.c.h.b16 %v4107
          %v5279 = vunpack.c.l.b16 %v4108
          %v5280 = vunpack.c.h.b16 %v4108
          %v5281 = vunpack.c.l.b16 %v4109
          %v5282 = vunpack.c.h.b16 %v4109
          %v5283 = vunpack.c.l.b16 %v4110
          %v5284 = vunpack.c.h.b16 %v4110
          %v5285 = vunpack.c.l.b16 %v4111
          %v5286 = vunpack.c.h.b16 %v4111
          %v5287 = vunpack.c.l.b16 %v4112
          %v5288 = vunpack.c.h.b16 %v4112
          %v5289 = vunpack.c.l.b16 %v4113
          %v5290 = vunpack.c.h.b16 %v4113
          %v5291 = vunpack.c.l.b16 %v4114
          %v5292 = vunpack.c.h.b16 %v4114
          %v5293 = vunpack.c.l.b16 %v4115
          %v5294 = vunpack.c.h.b16 %v4115
          %v5295 = vunpack.c.l.b16 %v4116
          %v5296 = vunpack.c.h.b16 %v4116
          %v5297 = vunpack.c.l.b16 %v4117
          %v5298 = vunpack.c.h.b16 %v4117
          %v5299 = vunpack.c.l.b16 %v4118
          %v5300 = vunpack.c.h.b16 %v4118
          %v5301 = vunpack.c.l.b16 %v4119
          %v5302 = vunpack.c.h.b16 %v4119
          %v5303 = vunpack.c.l.b16 %v4120
          %v5304 = vunpack.c.h.b16 %v4120
          %v5305 = vunpack.c.l.b16 %v4121
          %v5306 = vunpack.c.h.b16 %v4121
          %v5307 = vunpack.c.l.b16 %v4122
          %v5308 = vunpack.c.h.b16 %v4122
          %v5309 = vunpack.c.l.b16 %v4123
          %v5310 = vunpack.c.h.b16 %v4123
          %v5311 = vunpack.c.l.b16 %v4124
          %v5312 = vunpack.c.h.b16 %v4124
          %v5313 = vunpack.c.l.b16 %v4125
          %v5314 = vunpack.c.h.b16 %v4125
          %v5315 = vunpack.c.l.b16 %v4126
          %v5316 = vunpack.c.h.b16 %v4126
          %v5317 = vunpack.c.l.b16 %v4127
          %v5318 = vunpack.c.h.b16 %v4127
          %v5319 = vunpack.c.l.b16 %v4128
          %v5320 = vunpack.c.h.b16 %v4128
          %v5321 = vunpack.c.l.b16 %v4129
          %v5322 = vunpack.c.h.b16 %v4129
          %v5323 = vunpack.c.l.b16 %v4130
          %v5324 = vunpack.c.h.b16 %v4130
          %v5325 = vunpack.c.l.b16 %v4131
          %v5326 = vunpack.c.h.b16 %v4131
          %v5327 = vunpack.c.l.b16 %v4132
          %v5328 = vunpack.c.h.b16 %v4132
          %v5329 = vunpack.c.l.b16 %v4133
          %v5330 = vunpack.c.h.b16 %v4133
          %v5331 = vunpack.c.l.b16 %v4134
          %v5332 = vunpack.c.h.b16 %v4134
          %v5333 = vunpack.c.l.b16 %v4135
          %v5334 = vunpack.c.h.b16 %v4135
          %v5335 = vunpack.c.l.b16 %v4136
          %v5336 = vunpack.c.h.b16 %v4136
          %v5337 = vunpack.c.l.b16 %v4137
          %v5338 = vunpack.c.h.b16 %v4137
          %v5339 = vunpack.c.l.b16 %v4138
          %v5340 = vunpack.c.h.b16 %v4138
          %v5341 = vunpack.c.l.b16 %v4139
          %v5342 = vunpack.c.h.b16 %v4139
          %v5343 = vunpack.c.l.b16 %v4140
          %v5344 = vunpack.c.h.b16 %v4140
          %v5345 = vunpack.c.l.b16 %v4141
          %v5346 = vunpack.c.h.b16 %v4141
          %v5347 = vunpack.c.l.b16 %v4142
          %v5348 = vunpack.c.h.b16 %v4142
          %v5349 = vunpack.c.l.b16 %v4143
          %v5350 = vunpack.c.h.b16 %v4143
          %v5351 = vunpack.c.l.b16 %v4144
          %v5352 = vunpack.c.h.b16 %v4144
          %v5353 = vunpack.c.l.b16 %v4145
          %v5354 = vunpack.c.h.b16 %v4145
          %v5355 = vunpack.c.l.b16 %v4146
          %v5356 = vunpack.c.h.b16 %v4146
          %v5357 = vunpack.c.l.b16 %v4147
          %v5358 = vunpack.c.h.b16 %v4147
          %v5359 = vunpack.c.l.b16 %v4148
          %v5360 = vunpack.c.h.b16 %v4148
          %v5361 = vunpack.c.l.b16 %v4149
          %v5362 = vunpack.c.h.b16 %v4149
          %v5363 = vunpack.c.l.b16 %v4150
          %v5364 = vunpack.c.h.b16 %v4150
          %v5365 = vunpack.c.l.b16 %v4151
          %v5366 = vunpack.c.h.b16 %v4151
          %v5367 = vunpack.c.l.b16 %v4152
          %v5368 = vunpack.c.h.b16 %v4152
          %v5369 = vunpack.c.l.b16 %v4153
          %v5370 = vunpack.c.h.b16 %v4153
          %v5371 = vunpack.c.l.b16 %v4154
          %v5372 = vunpack.c.h.b16 %v4154
          %v5373 = vunpack.c.l.b16 %v4155
          %v5374 = vunpack.c.h.b16 %v4155
          %v5375 = vunpack.c.l.b16 %v4156
          %v5376 = vunpack.c.h.b16 %v4156
          %v5377 = vunpack.c.l.b16 %v4157
          %v5378 = vunpack.c.h.b16 %v4157
          %v5379 = vunpack.c.l.b16 %v4158
          %v5380 = vunpack.c.h.b16 %v4158
          %v5381 = vunpack.c.l.b16 %v4159
          %v5382 = vunpack.c.h.b16 %v4159
          %v5383 = vunpack.c.l.b16 %v4160
          %v5384 = vunpack.c.h.b16 %v4160
          %v5385 = vunpack.c.l.b16 %v4161
          %v5386 = vunpack.c.h.b16 %v4161
          %v5387 = vunpack.c.l.b16 %v4162
          %v5388 = vunpack.c.h.b16 %v4162
          %v5389 = vunpack.c.l.b16 %v4163
          %v5390 = vunpack.c.h.b16 %v4163
          %v5391 = vunpack.c.l.b16 %v4164
          %v5392 = vunpack.c.h.b16 %v4164
          %v5393 = vunpack.c.l.b16 %v4165
          %v5394 = vunpack.c.h.b16 %v4165
          %v5395 = vunpack.c.l.b16 %v4166
          %v5396 = vunpack.c.h.b16 %v4166
          %v5397 = vunpack.c.l.b16 %v4167
          %v5398 = vunpack.c.h.b16 %v4167
          %v5399 = vunpack.c.l.b16 %v4168
          %v5400 = vunpack.c.h.b16 %v4168
          %v5401 = vunpack.c.l.b16 %v4169
          %v5402 = vunpack.c.h.b16 %v4169
          %v5403 = vunpack.c.l.b16 %v4170
          %v5404 = vunpack.c.h.b16 %v4170
          %v5405 = vunpack.c.l.b16 %v4171
          %v5406 = vunpack.c.h.b16 %v4171
          %v5407 = vunpack.c.l.b16 %v4172
          %v5408 = vunpack.c.h.b16 %v4172
          %v5409 = vunpack.c.l.b16 %v4173
          %v5410 = vunpack.c.h.b16 %v4173
          %v5411 = vunpack.c.l.b16 %v4174
          %v5412 = vunpack.c.h.b16 %v4174
          %v5413 = vunpack.c.l.b16 %v4175
          %v5414 = vunpack.c.h.b16 %v4175
          %v5415 = vunpack.c.l.b16 %v4176
          %v5416 = vunpack.c.h.b16 %v4176
          %v5417 = vunpack.c.l.b16 %v4177
          %v5418 = vunpack.c.h.b16 %v4177
          %v5419 = vunpack.c.l.b16 %v4178
          %v5420 = vunpack.c.h.b16 %v4178
          %v5421 = vunpack.c.l.b16 %v4179
          %v5422 = vunpack.c.h.b16 %v4179
          %v5423 = vunpack.c.l.b16 %v4180
          %v5424 = vunpack.c.h.b16 %v4180
          %v5425 = vunpack.c.l.b16 %v4181
          %v5426 = vunpack.c.h.b16 %v4181
          %v5427 = vunpack.c.l.b16 %v4182
          %v5428 = vunpack.c.h.b16 %v4182
          %v5429 = vunpack.c.l.b16 %v4183
          %v5430 = vunpack.c.h.b16 %v4183
          %v5431 = vunpack.c.l.b16 %v4184
          %v5432 = vunpack.c.h.b16 %v4184
          %v5433 = vunpack.c.l.b16 %v4185
          %v5434 = vunpack.c.h.b16 %v4185
          %v5435 = vunpack.c.l.b16 %v4186
          %v5436 = vunpack.c.h.b16 %v4186
          %v5437 = vunpack.c.l.b16 %v4187
          %v5438 = vunpack.c.h.b16 %v4187
          %v5439 = vunpack.c.l.b16 %v4188
          %v5440 = vunpack.c.h.b16 %v4188
          %v5441 = vunpack.c.l.b16 %v4189
          %v5442 = vunpack.c.h.b16 %v4189
          %v5443 = vunpack.c.l.b16 %v4190
          %v5444 = vunpack.c.h.b16 %v4190
          %v5445 = vunpack.c.l.b16 %v4191
          %v5446 = vunpack.c.h.b16 %v4191
          %v5447 = vunpack.c.l.b16 %v4192
          %v5448 = vunpack.c.h.b16 %v4192
          %v5449 = vunpack.c.l.b16 %v4193
          %v5450 = vunpack.c.h.b16 %v4193
          %v5451 = vunpack.c.l.b16 %v4194
          %v5452 = vunpack.c.h.b16 %v4194
          %v5453 = vunpack.c.l.b16 %v4195
          %v5454 = vunpack.c.h.b16 %v4195
          %v5455 = vunpack.c.l.b16 %v4196
          %v5456 = vunpack.c.h.b16 %v4196
          %v5457 = vunpack.c.l.b16 %v4197
          %v5458 = vunpack.c.h.b16 %v4197
          %v5459 = vunpack.c.l.b16 %v4198
          %v5460 = vunpack.c.h.b16 %v4198
          %v5461 = vunpack.c.l.b16 %v4199
          %v5462 = vunpack.c.h.b16 %v4199
          %v5463 = vunpack.c.l.b16 %v4200
          %v5464 = vunpack.c.h.b16 %v4200
          %v5465 = vunpack.c.l.b16 %v4201
          %v5466 = vunpack.c.h.b16 %v4201
          %v5467 = vunpack.c.l.b16 %v4202
          %v5468 = vunpack.c.h.b16 %v4202
          %v5469 = vunpack.c.l.b16 %v4203
          %v5470 = vunpack.c.h.b16 %v4203
          %v5471 = vunpack.c.l.b16 %v4204
          %v5472 = vunpack.c.h.b16 %v4204
          %v5473 = vunpack.c.l.b16 %v4205
          %v5474 = vunpack.c.h.b16 %v4205
          %v5475 = vunpack.c.l.b16 %v4206
          %v5476 = vunpack.c.h.b16 %v4206
          %v5477 = vunpack.c.l.b16 %v4207
          %v5478 = vunpack.c.h.b16 %v4207
          %v5479 = vunpack.c.l.b16 %v4208
          %v5480 = vunpack.c.h.b16 %v4208
          %v5481 = vunpack.c.l.b16 %v4209
          %v5482 = vunpack.c.h.b16 %v4209
          %v5483 = vunpack.c.l.b16 %v4210
          %v5484 = vunpack.c.h.b16 %v4210
          %v5485 = vunpack.c.l.b16 %v4211
          %v5486 = vunpack.c.h.b16 %v4211
          %v5487 = vunpack.c.l.b16 %v4212
          %v5488 = vunpack.c.h.b16 %v4212
          %v5489 = vunpack.c.l.b16 %v4213
          %v5490 = vunpack.c.h.b16 %v4213
          %v5491 = vunpack.c.l.b16 %v4214
          %v5492 = vunpack.c.h.b16 %v4214
          %v5493 = vunpack.c.l.b16 %v4215
          %v5494 = vunpack.c.h.b16 %v4215
          %v5495 = vunpack.c.l.b16 %v4216
          %v5496 = vunpack.c.h.b16 %v4216
          %v5497 = vunpack.c.l.b16 %v4217
          %v5498 = vunpack.c.h.b16 %v4217
          %v5499 = vunpack.c.l.b16 %v4218
          %v5500 = vunpack.c.h.b16 %v4218
          %v5501 = vunpack.c.l.b16 %v4219
          %v5502 = vunpack.c.h.b16 %v4219
          %v5503 = vunpack.c.l.b16 %v4220
          %v5504 = vunpack.c.h.b16 %v4220
          %v5505 = vunpack.c.l.b16 %v4221
          %v5506 = vunpack.c.h.b16 %v4221
          %v5507 = vunpack.c.l.b16 %v4222
          %v5508 = vunpack.c.h.b16 %v4222
          %v5509 = vunpack.c.l.b16 %v4223
          %v5510 = vunpack.c.h.b16 %v4223
          %v5511 = vunpack.c.l.b16 %v4224
          %v5512 = vunpack.c.h.b16 %v4224
          %v5513 = vunpack.c.l.b16 %v4225
          %v5514 = vunpack.c.h.b16 %v4225
          %v5515 = vunpack.c.l.b16 %v4226
          %v5516 = vunpack.c.h.b16 %v4226
          %v5517 = vunpack.c.l.b16 %v4227
          %v5518 = vunpack.c.h.b16 %v4227
          %v5519 = vunpack.c.l.b16 %v4228
          %v5520 = vunpack.c.h.b16 %v4228
          %v5521 = vunpack.c.l.b16 %v4229
          %v5522 = vunpack.c.h.b16 %v4229
          %v5523 = vunpack.c.l.b16 %v4230
          %v5524 = vunpack.c.h.b16 %v4230
          %v5525 = vunpack.c.l.b16 %v4231
          %v5526 = vunpack.c.h.b16 %v4231
          %v5527 = vunpack.c.l.b16 %v4232
          %v5528 = vunpack.c.h.b16 %v4232
          %v5529 = vunpack.c.l.b16 %v4233
          %v5530 = vunpack.c.h.b16 %v4233
          %v5531 = vunpack.c.l.b16 %v4234
          %v5532 = vunpack.c.h.b16 %v4234
          %v5533 = vunpack.c.l.b16 %v4235
          %v5534 = vunpack.c.h.b16 %v4235
          %v5535 = vunpack.c.l.b16 %v4236
          %v5536 = vunpack.c.h.b16 %v4236
          %v5537 = vunpack.c.l.b16 %v4237
          %v5538 = vunpack.c.h.b16 %v4237
          %v5539 = vunpack.c.l.b16 %v4238
          %v5540 = vunpack.c.h.b16 %v4238
          %v5541 = vunpack.c.l.b16 %v4239
          %v5542 = vunpack.c.h.b16 %v4239
          %v5543 = vunpack.c.l.b16 %v4240
          %v5544 = vunpack.c.h.b16 %v4240
          %v5545 = vunpack.c.l.b16 %v4241
          %v5546 = vunpack.c.h.b16 %v4241
          %v5547 = vunpack.c.l.b16 %v4242
          %v5548 = vunpack.c.h.b16 %v4242
          %v5549 = vunpack.c.l.b16 %v4243
          %v5550 = vunpack.c.h.b16 %v4243
          %v5551 = vunpack.c.l.b16 %v4244
          %v5552 = vunpack.c.h.b16 %v4244
          %v5553 = vunpack.c.l.b16 %v4245
          %v5554 = vunpack.c.h.b16 %v4245
          %v5555 = vunpack.c.l.b16 %v4246
          %v5556 = vunpack.c.h.b16 %v4246
          %v5557 = vunpack.c.l.b16 %v4247
          %v5558 = vunpack.c.h.b16 %v4247
          %v5559 = vunpack.c.l.b16 %v4248
          %v5560 = vunpack.c.h.b16 %v4248
          %v5561 = vunpack.c.l.b16 %v4249
          %v5562 = vunpack.c.h.b16 %v4249
          %v5563 = vunpack.c.l.b16 %v4250
          %v5564 = vunpack.c.h.b16 %v4250
          %v5565 = vunpack.c.l.b16 %v4251
          %v5566 = vunpack.c.h.b16 %v4251
          %v5567 = vunpack.c.l.b16 %v4252
          %v5568 = vunpack.c.h.b16 %v4252
          %v5569 = vunpack.c.l.b16 %v4253
          %v5570 = vunpack.c.h.b16 %v4253
          %v5571 = vunpack.c.l.b16 %v4254
          %v5572 = vunpack.c.h.b16 %v4254
          %v5573 = vunpack.c.l.b16 %v4255
          %v5574 = vunpack.c.h.b16 %v4255
          %v5575 = vunpack.c.l.b16 %v4256
          %v5576 = vunpack.c.h.b16 %v4256
          %v5577 = vunpack.c.l.b16 %v4257
          %v5578 = vunpack.c.h.b16 %v4257
          %v5579 = vunpack.c.l.b16 %v4258
          %v5580 = vunpack.c.h.b16 %v4258
          %v5581 = vunpack.c.l.b16 %v4259
          %v5582 = vunpack.c.h.b16 %v4259
          %v5583 = vunpack.c.l.b16 %v4260
          %v5584 = vunpack.c.h.b16 %v4260
          %v5585 = vunpack.c.l.b16 %v4261
          %v5586 = vunpack.c.h.b16 %v4261
          %v5587 = vunpack.c.l.b16 %v4262
          %v5588 = vunpack.c.h.b16 %v4262
          %v5589 = vunpack.c.l.b16 %v4263
          %v5590 = vunpack.c.h.b16 %v4263
          %v5591 = vunpack.c.l.b16 %v4264
          %v5592 = vunpack.c.h.b16 %v4264
          %v5593 = vunpack.c.l.b16 %v4265
          %v5594 = vunpack.c.h.b16 %v4265
          %v5595 = vunpack.c.l.b16 %v4266
          %v5596 = vunpack.c.h.b16 %v4266
          %v5597 = vunpack.c.l.b16 %v4267
          %v5598 = vunpack.c.h.b16 %v4267
          %v5599 = vunpack.c.l.b16 %v4268
          %v5600 = vunpack.c.h.b16 %v4268
          %v5601 = vunpack.c.l.b16 %v4269
          %v5602 = vunpack.c.h.b16 %v4269
          %v5603 = vunpack.c.l.b16 %v4270
          %v5604 = vunpack.c.h.b16 %v4270
          %v5605 = vunpack.c.l.b16 %v4271
          %v5606 = vunpack.c.h.b16 %v4271
          %v5607 = vunpack.c.l.b16 %v4272
          %v5608 = vunpack.c.h.b16 %v4272
          %v5609 = vunpack.c.l.b16 %v4273
          %v5610 = vunpack.c.h.b16 %v4273
          %v5611 = vunpack.c.l.b16 %v4274
          %v5612 = vunpack.c.h.b16 %v4274
          %v5613 = vunpack.c.l.b16 %v4275
          %v5614 = vunpack.c.h.b16 %v4275
          %v5615 = vunpack.c.l.b16 %v4276
          %v5616 = vunpack.c.h.b16 %v4276
          %v5617 = vunpack.c.l.b16 %v4277
          %v5618 = vunpack.c.h.b16 %v4277
          %v5619 = vunpack.c.l.b16 %v4278
          %v5620 = vunpack.c.h.b16 %v4278
          %v5621 = vunpack.c.l.b16 %v4279
          %v5622 = vunpack.c.h.b16 %v4279
          %v5623 = vunpack.c.l.b16 %v4280
          %v5624 = vunpack.c.h.b16 %v4280
          %v5625 = vunpack.c.l.b16 %v4281
          %v5626 = vunpack.c.h.b16 %v4281
          %v5627 = vunpack.c.l.b16 %v4282
          %v5628 = vunpack.c.h.b16 %v4282
          %v5629 = vunpack.c.l.b16 %v4283
          %v5630 = vunpack.c.h.b16 %v4283
          %v5631 = vunpack.c.l.b16 %v4284
          %v5632 = vunpack.c.h.b16 %v4284
          %v5633 = vunpack.c.l.b16 %v4285
          %v5634 = vunpack.c.h.b16 %v4285
          %v5635 = vunpack.c.l.b16 %v4286
          %v5636 = vunpack.c.h.b16 %v4286
          %v5637 = vunpack.c.l.b16 %v4287
          %v5638 = vunpack.c.h.b16 %v4287
          %v5639 = vunpack.c.l.b16 %v4288
          %v5640 = vunpack.c.h.b16 %v4288
          %v5641 = vunpack.c.l.b16 %v4289
          %v5642 = vunpack.c.h.b16 %v4289
          %v5643 = vunpack.c.l.b16 %v4290
          %v5644 = vunpack.c.h.b16 %v4290
          %v5645 = vunpack.c.l.b16 %v4291
          %v5646 = vunpack.c.h.b16 %v4291
          %v5647 = vunpack.c.l.b16 %v4292
          %v5648 = vunpack.c.h.b16 %v4292
          %v5649 = vunpack.c.l.b16 %v4293
          %v5650 = vunpack.c.h.b16 %v4293
          %v5651 = vunpack.c.l.b16 %v4294
          %v5652 = vunpack.c.h.b16 %v4294
          %v5653 = vunpack.c.l.b16 %v4295
          %v5654 = vunpack.c.h.b16 %v4295
          %v5655 = vunpack.c.l.b16 %v4296
          %v5656 = vunpack.c.h.b16 %v4296
          %v5657 = vunpack.c.l.b16 %v4297
          %v5658 = vunpack.c.h.b16 %v4297
          %v5659 = vunpack.c.l.b16 %v4298
          %v5660 = vunpack.c.h.b16 %v4298
          %v5661 = vunpack.c.l.b16 %v4299
          %v5662 = vunpack.c.h.b16 %v4299
          %v5663 = vunpack.c.l.b16 %v4300
          %v5664 = vunpack.c.h.b16 %v4300
          %v5665 = vunpack.c.l.b16 %v4301
          %v5666 = vunpack.c.h.b16 %v4301
          %v5667 = vunpack.c.l.b16 %v4302
          %v5668 = vunpack.c.h.b16 %v4302
          %v5669 = vunpack.c.l.b16 %v4303
          %v5670 = vunpack.c.h.b16 %v4303
          %v5671 = vunpack.c.l.b16 %v4304
          %v5672 = vunpack.c.h.b16 %v4304
          %v5673 = vunpack.c.l.b16 %v4305
          %v5674 = vunpack.c.h.b16 %v4305
          %v5675 = vunpack.c.l.b16 %v4306
          %v5676 = vunpack.c.h.b16 %v4306
          %v5677 = vunpack.c.l.b16 %v4307
          %v5678 = vunpack.c.h.b16 %v4307
          %v5679 = vunpack.c.l.b16 %v4308
          %v5680 = vunpack.c.h.b16 %v4308
          %v5681 = vunpack.c.l.b16 %v4309
          %v5682 = vunpack.c.h.b16 %v4309
          %v5683 = vunpack.c.l.b16 %v4310
          %v5684 = vunpack.c.h.b16 %v4310
          %v5685 = vunpack.c.l.b16 %v4311
          %v5686 = vunpack.c.h.b16 %v4311
          %v5687 = vunpack.c.l.b16 %v4312
          %v5688 = vunpack.c.h.b16 %v4312
          %v5689 = vunpack.c.l.b16 %v4313
          %v5690 = vunpack.c.h.b16 %v4313
          %v5691 = vunpack.c.l.b16 %v4314
          %v5692 = vunpack.c.h.b16 %v4314
          %v5693 = vunpack.c.l.b16 %v4315
          %v5694 = vunpack.c.h.b16 %v4315
          %v5695 = vunpack.c.l.b16 %v4316
          %v5696 = vunpack.c.h.b16 %v4316
          %v5697 = vunpack.c.l.b16 %v4317
          %v5698 = vunpack.c.h.b16 %v4317
          %v5699 = vunpack.c.l.b16 %v4318
          %v5700 = vunpack.c.h.b16 %v4318
          %v5701 = vunpack.c.l.b16 %v4319
          %v5702 = vunpack.c.h.b16 %v4319
          %v5703 = vunpack.c.l.b16 %v4320
          %v5704 = vunpack.c.h.b16 %v4320
          %v5705 = vunpack.c.l.b16 %v4321
          %v5706 = vunpack.c.h.b16 %v4321
          %v5707 = vunpack.c.l.b16 %v4322
          %v5708 = vunpack.c.h.b16 %v4322
          %v5709 = vunpack.c.l.b16 %v4323
          %v5710 = vunpack.c.h.b16 %v4323
          %v5711 = vunpack.c.l.b16 %v4324
          %v5712 = vunpack.c.h.b16 %v4324
          %v5713 = vunpack.c.l.b16 %v4325
          %v5714 = vunpack.c.h.b16 %v4325
          %v5715 = vunpack.c.l.b16 %v4326
          %v5716 = vunpack.c.h.b16 %v4326
          %v5717 = vunpack.c.l.b16 %v4327
          %v5718 = vunpack.c.h.b16 %v4327
          %v5719 = vunpack.c.l.b16 %v4328
          %v5720 = vunpack.c.h.b16 %v4328
          %v5721 = vunpack.c.l.b16 %v4329
          %v5722 = vunpack.c.h.b16 %v4329
          %v5723 = vunpack.c.l.b16 %v4330
          %v5724 = vunpack.c.h.b16 %v4330
          %v5725 = vunpack.c.l.b16 %v4331
          %v5726 = vunpack.c.h.b16 %v4331
          %v5727 = vunpack.c.l.b16 %v4332
          %v5728 = vunpack.c.h.b16 %v4332
          %v5729 = vunpack.c.l.b16 %v4333
          %v5730 = vunpack.c.h.b16 %v4333
          %v5731 = vunpack.c.l.b16 %v4334
          %v5732 = vunpack.c.h.b16 %v4334
          %v5733 = vunpack.c.l.b16 %v4335
          %v5734 = vunpack.c.h.b16 %v4335
          %v5735 = vunpack.c.l.b16 %v4336
          %v5736 = vunpack.c.h.b16 %v4336
          %v5737 = vunpack.c.l.b16 %v4337
          %v5738 = vunpack.c.h.b16 %v4337
          %v5739 = vunpack.c.l.b16 %v4338
          %v5740 = vunpack.c.h.b16 %v4338
          %v5741 = vunpack.c.l.b16 %v4339
          %v5742 = vunpack.c.h.b16 %v4339
          %v5743 = vunpack.c.l.b16 %v4340
          %v5744 = vunpack.c.h.b16 %v4340
          %v5745 = vunpack.c.l.b16 %v4341
          %v5746 = vunpack.c.h.b16 %v4341
          %v5747 = vunpack.c.l.b16 %v4342
          %v5748 = vunpack.c.h.b16 %v4342
          %v5749 = vunpack.c.l.b16 %v4343
          %v5750 = vunpack.c.h.b16 %v4343
          %v5751 = vunpack.c.l.b16 %v4344
          %v5752 = vunpack.c.h.b16 %v4344
          %v5753 = vunpack.c.l.b16 %v4345
          %v5754 = vunpack.c.h.b16 %v4345
          %v5755 = vunpack.c.l.b16 %v4346
          %v5756 = vunpack.c.h.b16 %v4346
          %v5757 = vunpack.c.l.b16 %v4347
          %v5758 = vunpack.c.h.b16 %v4347
          %v5759 = vunpack.c.l.b16 %v4348
          %v5760 = vunpack.c.h.b16 %v4348
          %v5761 = vunpack.c.l.b16 %v4349
          %v5762 = vunpack.c.h.b16 %v4349
          %v5763 = vunpack.c.l.b16 %v4350
          %v5764 = vunpack.c.h.b16 %v4350
          %v5765 = vunpack.c.l.b16 %v4351
          %v5766 = vunpack.c.h.b16 %v4351
          %v5767 = vunpack.c.l.b16 %v4352
          %v5768 = vunpack.c.h.b16 %v4352
          %v5769 = vunpack.c.l.b16 %v4353
          %v5770 = vunpack.c.h.b16 %v4353
          %v5771 = vunpack.c.l.b16 %v4354
          %v5772 = vunpack.c.h.b16 %v4354
          %v5773 = vunpack.c.l.b16 %v4355
          %v5774 = vunpack.c.h.b16 %v4355
          %v5775 = vunpack.c.l.b16 %v4356
          %v5776 = vunpack.c.h.b16 %v4356
          %v5777 = vunpack.c.l.b16 %v4357
          %v5778 = vunpack.c.h.b16 %v4357
          %v5779 = vunpack.c.l.b16 %v4358
          %v5780 = vunpack.c.h.b16 %v4358
          %v5781 = vunpack.c.l.b16 %v4359
          %v5782 = vunpack.c.h.b16 %v4359
          %v5783 = vunpack.c.l.b16 %v4360
          %v5784 = vunpack.c.h.b16 %v4360
          %v5785 = vunpack.c.l.b16 %v4361
          %v5786 = vunpack.c.h.b16 %v4361
          %v5787 = vunpack.c.l.b16 %v4362
          %v5788 = vunpack.c.h.b16 %v4362
          %v5789 = vunpack.c.l.b16 %v4363
          %v5790 = vunpack.c.h.b16 %v4363
          %v5791 = vunpack.c.l.b16 %v4364
          %v5792 = vunpack.c.h.b16 %v4364
          %v5793 = vunpack.c.l.b16 %v4365
          %v5794 = vunpack.c.h.b16 %v4365
          %v5795 = vunpack.c.l.b16 %v4366
          %v5796 = vunpack.c.h.b16 %v4366
          %v5797 = vunpack.c.l.b16 %v4367
          %v5798 = vunpack.c.h.b16 %v4367
          %v5799 = vunpack.c.l.b16 %v4368
          %v5800 = vunpack.c.h.b16 %v4368
          %v5801 = vunpack.c.l.b16 %v4369
          %v5802 = vunpack.c.h.b16 %v4369
          %v5803 = vunpack.c.l.b16 %v4370
          %v5804 = vunpack.c.h.b16 %v4370
          %v5805 = vunpack.c.l.b16 %v4371
          %v5806 = vunpack.c.h.b16 %v4371
          %v5807 = vunpack.c.l.b16 %v4372
          %v5808 = vunpack.c.h.b16 %v4372
          %v5809 = vunpack.c.l.b16 %v4373
          %v5810 = vunpack.c.h.b16 %v4373
          %v5811 = vunpack.c.l.b16 %v4374
          %v5812 = vunpack.c.h.b16 %v4374
          %v5813 = vunpack.c.l.b16 %v4375
          %v5814 = vunpack.c.h.b16 %v4375
          %v5815 = vunpack.c.l.b16 %v4376
          %v5816 = vunpack.c.h.b16 %v4376
          %v5817 = vunpack.c.l.b16 %v4377
          %v5818 = vunpack.c.h.b16 %v4377
          %v5819 = vunpack.c.l.b16 %v4378
          %v5820 = vunpack.c.h.b16 %v4378
          %v5821 = vunpack.c.l.b16 %v4379
          %v5822 = vunpack.c.h.b16 %v4379
          %v5823 = vunpack.c.l.b16 %v4380
          %v5824 = vunpack.c.h.b16 %v4380
          %v5825 = vunpack.c.l.b16 %v4381
          %v5826 = vunpack.c.h.b16 %v4381
          %v5827 = vunpack.c.l.b16 %v4382
          %v5828 = vunpack.c.h.b16 %v4382
          %v5829 = vunpack.c.l.b16 %v4383
          %v5830 = vunpack.c.h.b16 %v4383
          %v5831 = vunpack.c.l.b16 %v4384
          %v5832 = vunpack.c.h.b16 %v4384
          %v5833 = vunpack.c.l.b16 %v4385
          %v5834 = vunpack.c.h.b16 %v4385
          %v5835 = vunpack.c.l.b16 %v4386
          %v5836 = vunpack.c.h.b16 %v4386
          %v5837 = vunpack.c.l.b16 %v4387
          %v5838 = vunpack.c.h.b16 %v4387
          %v5839 = vunpack.c.l.b16 %v4388
          %v5840 = vunpack.c.h.b16 %v4388
          %v5841 = vunpack.c.l.b16 %v4389
          %v5842 = vunpack.c.h.b16 %v4389
          %v5843 = vunpack.c.l.b16 %v4390
          %v5844 = vunpack.c.h.b16 %v4390
          %v5845 = vunpack.c.l.b16 %v4391
          %v5846 = vunpack.c.h.b16 %v4391
          %v5847 = vunpack.c.l.b16 %v4392
          %v5848 = vunpack.c.h.b16 %v4392
          %v5849 = vunpack.c.l.b16 %v4393
          %v5850 = vunpack.c.h.b16 %v4393
          %v5851 = vunpack.c.l.b16 %v4394
          %v5852 = vunpack.c.h.b16 %v4394
          %v5853 = vunpack.c.l.b16 %v4395
          %v5854 = vunpack.c.h.b16 %v4395
          %v5855 = vunpack.c.l.b16 %v4396
          %v5856 = vunpack.c.h.b16 %v4396
          %v5857 = vunpack.c.l.b16 %v4397
          %v5858 = vunpack.c.h.b16 %v4397
          %v5859 = vunpack.c.l.b16 %v4398
          %v5860 = vunpack.c.h.b16 %v4398
          %v5861 = vunpack.c.l.b16 %v4399
          %v5862 = vunpack.c.h.b16 %v4399
          %v5863 = vunpack.c.l.b16 %v4400
          %v5864 = vunpack.c.h.b16 %v4400
          %v5865 = vunpack.c.l.b16 %v4401
          %v5866 = vunpack.c.h.b16 %v4401
          %v5867 = vunpack.c.l.b16 %v4402
          %v5868 = vunpack.c.h.b16 %v4402
          %v5869 = vunpack.c.l.b16 %v4403
          %v5870 = vunpack.c.h.b16 %v4403
          %v5871 = vunpack.c.l.b16 %v4404
          %v5872 = vunpack.c.h.b16 %v4404
          %v5873 = vunpack.c.l.b16 %v4405
          %v5874 = vunpack.c.h.b16 %v4405
          %v5875 = vunpack.c.l.b16 %v4406
          %v5876 = vunpack.c.h.b16 %v4406
          %v5877 = vunpack.c.l.b16 %v4407
          %v5878 = vunpack.c.h.b16 %v4407
          %v5879 = vunpack.c.l.b16 %v4408
          %v5880 = vunpack.c.h.b16 %v4408
          %v5881 = vunpack.c.l.b16 %v4409
          %v5882 = vunpack.c.h.b16 %v4409
          %v5883 = vunpack.c.l.b16 %v4410
          %v5884 = vunpack.c.h.b16 %v4410
          %v5885 = vunpack.c.l.b16 %v4411
          %v5886 = vunpack.c.h.b16 %v4411
          %v5887 = vunpack.c.l.b16 %v4412
          %v5888 = vunpack.c.h.b16 %v4412
          %v5889 = vunpack.c.l.b16 %v4413
          %v5890 = vunpack.c.h.b16 %v4413
          %v5891 = vunpack.c.l.b16 %v4414
          %v5892 = vunpack.c.h.b16 %v4414
          %v5893 = vunpack.c.l.b16 %v4415
          %v5894 = vunpack.c.h.b16 %v4415
          %v5895 = vunpack.c.l.b16 %v4416
          %v5896 = vunpack.c.h.b16 %v4416
          %v5897 = vunpack.c.l.b16 %v4417
          %v5898 = vunpack.c.h.b16 %v4417
          %v5899 = vunpack.c.l.b16 %v4418
          %v5900 = vunpack.c.h.b16 %v4418
          %v5901 = vunpack.c.l.b16 %v4419
          %v5902 = vunpack.c.h.b16 %v4419
          %v5903 = vunpack.c.l.b16 %v4420
          %v5904 = vunpack.c.h.b16 %v4420
          %v5905 = vunpack.c.l.b16 %v4421
          %v5906 = vunpack.c.h.b16 %v4421
          %v5907 = vunpack.c.l.b16 %v4422
          %v5908 = vunpack.c.h.b16 %v4422
          %v5909 = vunpack.c.l.b16 %v4423
          %v5910 = vunpack.c.h.b16 %v4423
          %v5911 = vunpack.c.l.b16 %v4424
          %v5912 = vunpack.c.h.b16 %v4424
          %v5913 = vunpack.c.l.b16 %v4425
          %v5914 = vunpack.c.h.b16 %v4425
          %v5915 = vunpack.c.l.b16 %v4426
          %v5916 = vunpack.c.h.b16 %v4426
          %v5917 = vunpack.c.l.b16 %v4427
          %v5918 = vunpack.c.h.b16 %v4427
          %v5919 = vunpack.c.l.b16 %v4428
          %v5920 = vunpack.c.h.b16 %v4428
          %v5921 = vunpack.c.l.b16 %v4429
          %v5922 = vunpack.c.h.b16 %v4429
          %v5923 = vunpack.c.l.b16 %v4430
          %v5924 = vunpack.c.h.b16 %v4430
          %v5925 = vunpack.c.l.b16 %v4431
          %v5926 = vunpack.c.h.b16 %v4431
          %v5927 = vunpack.c.l.b16 %v4432
          %v5928 = vunpack.c.h.b16 %v4432
          %v5929 = vunpack.c.l.b16 %v4433
          %v5930 = vunpack.c.h.b16 %v4433
          %v5931 = vunpack.c.l.b16 %v4434
          %v5932 = vunpack.c.h.b16 %v4434
          %v5933 = vunpack.c.l.b16 %v4435
          %v5934 = vunpack.c.h.b16 %v4435
          %v5935 = vunpack.c.l.b16 %v4436
          %v5936 = vunpack.c.h.b16 %v4436
          %v5937 = vunpack.c.l.b16 %v4437
          %v5938 = vunpack.c.h.b16 %v4437
          %v5939 = vunpack.c.l.b16 %v4438
          %v5940 = vunpack.c.h.b16 %v4438
          %v5941 = vunpack.c.l.b16 %v4439
          %v5942 = vunpack.c.h.b16 %v4439
          %v5943 = vunpack.c.l.b16 %v4440
          %v5944 = vunpack.c.h.b16 %v4440
          %v5945 = vunpack.c.l.b16 %v4441
          %v5946 = vunpack.c.h.b16 %v4441
          %v5947 = vunpack.c.l.b16 %v4442
          %v5948 = vunpack.c.h.b16 %v4442
          %v5949 = vunpack.c.l.b16 %v4443
          %v5950 = vunpack.c.h.b16 %v4443
          %v5951 = vunpack.c.l.b16 %v4444
          %v5952 = vunpack.c.h.b16 %v4444
          %v5953 = vunpack.c.l.b16 %v4445
          %v5954 = vunpack.c.h.b16 %v4445
          %v5955 = vunpack.c.l.b16 %v4446
          %v5956 = vunpack.c.h.b16 %v4446
          %v5957 = vunpack.c.l.b16 %v4447
          %v5958 = vunpack.c.h.b16 %v4447
          %v5959 = vunpack.c.l.b16 %v4448
          %v5960 = vunpack.c.h.b16 %v4448
          %v5961 = vunpack.c.l.b16 %v4449
          %v5962 = vunpack.c.h.b16 %v4449
          %v5963 = vunpack.c.l.b16 %v4450
          %v5964 = vunpack.c.h.b16 %v4450
          %v5965 = vunpack.c.l.b16 %v4451
          %v5966 = vunpack.c.h.b16 %v4451
          %v5967 = vunpack.c.l.b16 %v4452
          %v5968 = vunpack.c.h.b16 %v4452
          %v5969 = vunpack.c.l.b16 %v4453
          %v5970 = vunpack.c.h.b16 %v4453
          %v5971 = vunpack.c.l.b16 %v4454
          %v5972 = vunpack.c.h.b16 %v4454
          %v5973 = vunpack.c.l.b16 %v4455
          %v5974 = vunpack.c.h.b16 %v4455
          %v5975 = vunpack.c.l.b16 %v4456
          %v5976 = vunpack.c.h.b16 %v4456
          %v5977 = vunpack.c.l.b16 %v4457
          %v5978 = vunpack.c.h.b16 %v4457
          %v5979 = vunpack.c.l.b16 %v4458
          %v5980 = vunpack.c.h.b16 %v4458
          %v5981 = vunpack.c.l.b16 %v4459
          %v5982 = vunpack.c.h.b16 %v4459
          %v5983 = vunpack.c.l.b16 %v4460
          %v5984 = vunpack.c.h.b16 %v4460
          %v5985 = vunpack.c.l.b16 %v4461
          %v5986 = vunpack.c.h.b16 %v4461
          %v5987 = vunpack.c.l.b16 %v4462
          %v5988 = vunpack.c.h.b16 %v4462
          %v5989 = vunpack.c.l.b16 %v4463
          %v5990 = vunpack.c.h.b16 %v4463
          %v5991 = vunpack.c.l.b16 %v4464
          %v5992 = vunpack.c.h.b16 %v4464
          %v5993 = vunpack.c.l.b16 %v4465
          %v5994 = vunpack.c.h.b16 %v4465
          %v5995 = vunpack.c.l.b16 %v4466
          %v5996 = vunpack.c.h.b16 %v4466
          %v5997 = vunpack.c.l.b16 %v4467
          %v5998 = vunpack.c.h.b16 %v4467
          %v5999 = vunpack.c.l.b16 %v4468
          %v6000 = vunpack.c.h.b16 %v4468
          %v6001 = vunpack.c.l.b16 %v4469
          %v6002 = vunpack.c.h.b16 %v4469
          %v6003 = vunpack.c.l.b16 %v4470
          %v6004 = vunpack.c.h.b16 %v4470
          %v6005 = vunpack.c.l.b16 %v4471
          %v6006 = vunpack.c.h.b16 %v4471
          %v6007 = vunpack.c.l.b16 %v4472
          %v6008 = vunpack.c.h.b16 %v4472
          %v6009 = vunpack.c.l.b16 %v4473
          %v6010 = vunpack.c.h.b16 %v4473
          %v6011 = vunpack.c.l.b16 %v4474
          %v6012 = vunpack.c.h.b16 %v4474
          %v6013 = vunpack.c.l.b16 %v4475
          %v6014 = vunpack.c.h.b16 %v4475
          %v6015 = vunpack.c.l.b16 %v4476
          %v6016 = vunpack.c.h.b16 %v4476
          %v6017 = vunpack.c.l.b16 %v4477
          %v6018 = vunpack.c.h.b16 %v4477
          %v6019 = vunpack.c.l.b16 %v4478
          %v6020 = vunpack.c.h.b16 %v4478
          %v6021 = vunpack.c.l.b16 %v4479
          %v6022 = vunpack.c.h.b16 %v4479
          %v6023 = vunpack.c.l.b16 %v4480
          %v6024 = vunpack.c.h.b16 %v4480
          %v6025 = vunpack.c.l.b16 %v4481
          %v6026 = vunpack.c.h.b16 %v4481
          %v6027 = vunpack.c.l.b16 %v4482
          %v6028 = vunpack.c.h.b16 %v4482
          %v6029 = vpack.c.b16 %v5009, %v5005
          %v6030 = vpack.c.b16 %v5010, %v5006
          %v6031 = vpack.c.b16 %v5011, %v5007
          %v6032 = vpack.c.b16 %v5012, %v5008
          %v6033 = vpack.c.b16 %v5017, %v5013
          %v6034 = vpack.c.b16 %v5018, %v5014
          %v6035 = vpack.c.b16 %v5019, %v5015
          %v6036 = vpack.c.b16 %v5020, %v5016
          %v6037 = vpack.c.b16 %v5025, %v5021
          %v6038 = vpack.c.b16 %v5026, %v5022
          %v6039 = vpack.c.b16 %v5027, %v5023
          %v6040 = vpack.c.b16 %v5028, %v5024
          %v6041 = vpack.c.b16 %v5033, %v5029
          %v6042 = vpack.c.b16 %v5034, %v5030
          %v6043 = vpack.c.b16 %v5035, %v5031
          %v6044 = vpack.c.b16 %v5036, %v5032
          %v6045 = vpack.c.b16 %v5041, %v5037
          %v6046 = vpack.c.b16 %v5042, %v5038
          %v6047 = vpack.c.b16 %v5043, %v5039
          %v6048 = vpack.c.b16 %v5044, %v5040
          %v6049 = vpack.c.b16 %v5049, %v5045
          %v6050 = vpack.c.b16 %v5050, %v5046
          %v6051 = vpack.c.b16 %v5051, %v5047
          %v6052 = vpack.c.b16 %v5052, %v5048
          %v6053 = vpack.c.b16 %v5057, %v5053
          %v6054 = vpack.c.b16 %v5058, %v5054
          %v6055 = vpack.c.b16 %v5059, %v5055
          %v6056 = vpack.c.b16 %v5060, %v5056
          %v6057 = vpack.c.b16 %v5065, %v5061
          %v6058 = vpack.c.b16 %v5066, %v5062
          %v6059 = vpack.c.b16 %v5067, %v5063
          %v6060 = vpack.c.b16 %v5068, %v5064
          %v6061 = vpack.c.b16 %v5073, %v5069
          %v6062 = vpack.c.b16 %v5074, %v5070
          %v6063 = vpack.c.b16 %v5075, %v5071
          %v6064 = vpack.c.b16 %v5076, %v5072
          %v6065 = vpack.c.b16 %v5081, %v5077
          %v6066 = vpack.c.b16 %v5082, %v5078
          %v6067 = vpack.c.b16 %v5083, %v5079
          %v6068 = vpack.c.b16 %v5084, %v5080
          %v6069 = vpack.c.b16 %v5089, %v5085
          %v6070 = vpack.c.b16 %v5090, %v5086
          %v6071 = vpack.c.b16 %v5091, %v5087
          %v6072 = vpack.c.b16 %v5092, %v5088
          %v6073 = vpack.c.b16 %v5097, %v5093
          %v6074 = vpack.c.b16 %v5098, %v5094
          %v6075 = vpack.c.b16 %v5099, %v5095
          %v6076 = vpack.c.b16 %v5100, %v5096
          %v6077 = vpack.c.b16 %v5105, %v5101
          %v6078 = vpack.c.b16 %v5106, %v5102
          %v6079 = vpack.c.b16 %v5107, %v5103
          %v6080 = vpack.c.b16 %v5108, %v5104
          %v6081 = vpack.c.b16 %v5113, %v5109
          %v6082 = vpack.c.b16 %v5114, %v5110
          %v6083 = vpack.c.b16 %v5115, %v5111
          %v6084 = vpack.c.b16 %v5116, %v5112
          %v6085 = vpack.c.b16 %v5121, %v5117
          %v6086 = vpack.c.b16 %v5122, %v5118
          %v6087 = vpack.c.b16 %v5123, %v5119
          %v6088 = vpack.c.b16 %v5124, %v5120
          %v6089 = vpack.c.b16 %v5129, %v5125
          %v6090 = vpack.c.b16 %v5130, %v5126
          %v6091 = vpack.c.b16 %v5131, %v5127
          %v6092 = vpack.c.b16 %v5132, %v5128
          %v6093 = vpack.c.b16 %v5137, %v5133
          %v6094 = vpack.c.b16 %v5138, %v5134
          %v6095 = vpack.c.b16 %v5139, %v5135
          %v6096 = vpack.c.b16 %v5140, %v5136
          %v6097 = vpack.c.b16 %v5145, %v5141
          %v6098 = vpack.c.b16 %v5146, %v5142
          %v6099 = vpack.c.b16 %v5147, %v5143
          %v6100 = vpack.c.b16 %v5148, %v5144
          %v6101 = vpack.c.b16 %v5153, %v5149
          %v6102 = vpack.c.b16 %v5154, %v5150
          %v6103 = vpack.c.b16 %v5155, %v5151
          %v6104 = vpack.c.b16 %v5156, %v5152
          %v6105 = vpack.c.b16 %v5161, %v5157
          %v6106 = vpack.c.b16 %v5162, %v5158
          %v6107 = vpack.c.b16 %v5163, %v5159
          %v6108 = vpack.c.b16 %v5164, %v5160
          %v6109 = vpack.c.b16 %v5169, %v5165
          %v6110 = vpack.c.b16 %v5170, %v5166
          %v6111 = vpack.c.b16 %v5171, %v5167
          %v6112 = vpack.c.b16 %v5172, %v5168
          %v6113 = vpack.c.b16 %v5177, %v5173
          %v6114 = vpack.c.b16 %v5178, %v5174
          %v6115 = vpack.c.b16 %v5179, %v5175
          %v6116 = vpack.c.b16 %v5180, %v5176
          %v6117 = vpack.c.b16 %v5185, %v5181
          %v6118 = vpack.c.b16 %v5186, %v5182
          %v6119 = vpack.c.b16 %v5187, %v5183
          %v6120 = vpack.c.b16 %v5188, %v5184
          %v6121 = vpack.c.b16 %v5193, %v5189
          %v6122 = vpack.c.b16 %v5194, %v5190
          %v6123 = vpack.c.b16 %v5195, %v5191
          %v6124 = vpack.c.b16 %v5196, %v5192
          %v6125 = vpack.c.b16 %v5201, %v5197
          %v6126 = vpack.c.b16 %v5202, %v5198
          %v6127 = vpack.c.b16 %v5203, %v5199
          %v6128 = vpack.c.b16 %v5204, %v5200
          %v6129 = vpack.c.b16 %v5209, %v5205
          %v6130 = vpack.c.b16 %v5210, %v5206
          %v6131 = vpack.c.b16 %v5211, %v5207
          %v6132 = vpack.c.b16 %v5212, %v5208
          %v6133 = vpack.c.b16 %v5217, %v5213
          %v6134 = vpack.c.b16 %v5218, %v5214
          %v6135 = vpack.c.b16 %v5219, %v5215
          %v6136 = vpack.c.b16 %v5220, %v5216
          %v6137 = vpack.c.b16 %v5225, %v5221
          %v6138 = vpack.c.b16 %v5226, %v5222
          %v6139 = vpack.c.b16 %v5227, %v5223
          %v6140 = vpack.c.b16 %v5228, %v5224
          %v6141 = vpack.c.b16 %v5233, %v5229
          %v6142 = vpack.c.b16 %v5234, %v5230
          %v6143 = vpack.c.b16 %v5235, %v5231
          %v6144 = vpack.c.b16 %v5236, %v5232
          %v6145 = vpack.c.b16 %v5241, %v5237
          %v6146 = vpack.c.b16 %v5242, %v5238
          %v6147 = vpack.c.b16 %v5243, %v5239
          %v6148 = vpack.c.b16 %v5244, %v5240
          %v6149 = vpack.c.b16 %v5249, %v5245
          %v6150 = vpack.c.b16 %v5250, %v5246
          %v6151 = vpack.c.b16 %v5251, %v5247
          %v6152 = vpack.c.b16 %v5252, %v5248
          %v6153 = vpack.c.b16 %v5257, %v5253
          %v6154 = vpack.c.b16 %v5258, %v5254
          %v6155 = vpack.c.b16 %v5259, %v5255
          %v6156 = vpack.c.b16 %v5260, %v5256
          %v6157 = vpack.c.b16 %v5265, %v5261
          %v6158 = vpack.c.b16 %v5266, %v5262
          %v6159 = vpack.c.b16 %v5267, %v5263
          %v6160 = vpack.c.b16 %v5268, %v5264
          %v6161 = vpack.c.b16 %v5273, %v5269
          %v6162 = vpack.c.b16 %v5274, %v5270
          %v6163 = vpack.c.b16 %v5275, %v5271
          %v6164 = vpack.c.b16 %v5276, %v5272
          %v6165 = vpack.c.b16 %v5281, %v5277
          %v6166 = vpack.c.b16 %v5282, %v5278
          %v6167 = vpack.c.b16 %v5283, %v5279
          %v6168 = vpack.c.b16 %v5284, %v5280
          %v6169 = vpack.c.b16 %v5289, %v5285
          %v6170 = vpack.c.b16 %v5290, %v5286
          %v6171 = vpack.c.b16 %v5291, %v5287
          %v6172 = vpack.c.b16 %v5292, %v5288
          %v6173 = vpack.c.b16 %v5297, %v5293
          %v6174 = vpack.c.b16 %v5298, %v5294
          %v6175 = vpack.c.b16 %v5299, %v5295
          %v6176 = vpack.c.b16 %v5300, %v5296
          %v6177 = vpack.c.b16 %v5305, %v5301
          %v6178 = vpack.c.b16 %v5306, %v5302
          %v6179 = vpack.c.b16 %v5307, %v5303
          %v6180 = vpack.c.b16 %v5308, %v5304
          %v6181 = vpack.c.b16 %v5313, %v5309
          %v6182 = vpack.c.b16 %v5314, %v5310
          %v6183 = vpack.c.b16 %v5315, %v5311
          %v6184 = vpack.c.b16 %v5316, %v5312
          %v6185 = vpack.c.b16 %v5321, %v5317
          %v6186 = vpack.c.b16 %v5322, %v5318
          %v6187 = vpack.c.b16 %v5323, %v5319
          %v6188 = vpack.c.b16 %v5324, %v5320
          %v6189 = vpack.c.b16 %v5329, %v5325
          %v6190 = vpack.c.b16 %v5330, %v5326
          %v6191 = vpack.c.b16 %v5331, %v5327
          %v6192 = vpack.c.b16 %v5332, %v5328
          %v6193 = vpack.c.b16 %v5337, %v5333
          %v6194 = vpack.c.b16 %v5338, %v5334
          %v6195 = vpack.c.b16 %v5339, %v5335
          %v6196 = vpack.c.b16 %v5340, %v5336
          %v6197 = vpack.c.b16 %v5345, %v5341
          %v6198 = vpack.c.b16 %v5346, %v5342
          %v6199 = vpack.c.b16 %v5347, %v5343
          %v6200 = vpack.c.b16 %v5348, %v5344
          %v6201 = vpack.c.b16 %v5353, %v5349
          %v6202 = vpack.c.b16 %v5354, %v5350
          %v6203 = vpack.c.b16 %v5355, %v5351
          %v6204 = vpack.c.b16 %v5356, %v5352
          %v6205 = vpack.c.b16 %v5361, %v5357
          %v6206 = vpack.c.b16 %v5362, %v5358
          %v6207 = vpack.c.b16 %v5363, %v5359
          %v6208 = vpack.c.b16 %v5364, %v5360
          %v6209 = vpack.c.b16 %v5369, %v5365
          %v6210 = vpack.c.b16 %v5370, %v5366
          %v6211 = vpack.c.b16 %v5371, %v5367
          %v6212 = vpack.c.b16 %v5372, %v5368
          %v6213 = vpack.c.b16 %v5377, %v5373
          %v6214 = vpack.c.b16 %v5378, %v5374
          %v6215 = vpack.c.b16 %v5379, %v5375
          %v6216 = vpack.c.b16 %v5380, %v5376
          %v6217 = vpack.c.b16 %v5385, %v5381
          %v6218 = vpack.c.b16 %v5386, %v5382
          %v6219 = vpack.c.b16 %v5387, %v5383
          %v6220 = vpack.c.b16 %v5388, %v5384
          %v6221 = vpack.c.b16 %v5393, %v5389
          %v6222 = vpack.c.b16 %v5394, %v5390
          %v6223 = vpack.c.b16 %v5395, %v5391
          %v6224 = vpack.c.b16 %v5396, %v5392
          %v6225 = vpack.c.b16 %v5401, %v5397
          %v6226 = vpack.c.b16 %v5402, %v5398
          %v6227 = vpack.c.b16 %v5403, %v5399
          %v6228 = vpack.c.b16 %v5404, %v5400
          %v6229 = vpack.c.b16 %v5409, %v5405
          %v6230 = vpack.c.b16 %v5410, %v5406
          %v6231 = vpack.c.b16 %v5411, %v5407
          %v6232 = vpack.c.b16 %v5412, %v5408
          %v6233 = vpack.c.b16 %v5417, %v5413
          %v6234 = vpack.c.b16 %v5418, %v5414
          %v6235 = vpack.c.b16 %v5419, %v5415
          %v6236 = vpack.c.b16 %v5420, %v5416
          %v6237 = vpack.c.b16 %v5425, %v5421
          %v6238 = vpack.c.b16 %v5426, %v5422
          %v6239 = vpack.c.b16 %v5427, %v5423
          %v6240 = vpack.c.b16 %v5428, %v5424
          %v6241 = vpack.c.b16 %v5433, %v5429
          %v6242 = vpack.c.b16 %v5434, %v5430
          %v6243 = vpack.c.b16 %v5435, %v5431
          %v6244 = vpack.c.b16 %v5436, %v5432
          %v6245 = vpack.c.b16 %v5441, %v5437
          %v6246 = vpack.c.b16 %v5442, %v5438
          %v6247 = vpack.c.b16 %v5443, %v5439
          %v6248 = vpack.c.b16 %v5444, %v5440
          %v6249 = vpack.c.b16 %v5449, %v5445
          %v6250 = vpack.c.b16 %v5450, %v5446
          %v6251 = vpack.c.b16 %v5451, %v5447
          %v6252 = vpack.c.b16 %v5452, %v5448
          %v6253 = vpack.c.b16 %v5457, %v5453
          %v6254 = vpack.c.b16 %v5458, %v5454
          %v6255 = vpack.c.b16 %v5459, %v5455
          %v6256 = vpack.c.b16 %v5460, %v5456
          %v6257 = vpack.c.b16 %v5465, %v5461
          %v6258 = vpack.c.b16 %v5466, %v5462
          %v6259 = vpack.c.b16 %v5467, %v5463
          %v6260 = vpack.c.b16 %v5468, %v5464
          %v6261 = vpack.c.b16 %v5473, %v5469
          %v6262 = vpack.c.b16 %v5474, %v5470
          %v6263 = vpack.c.b16 %v5475, %v5471
          %v6264 = vpack.c.b16 %v5476, %v5472
          %v6265 = vpack.c.b16 %v5481, %v5477
          %v6266 = vpack.c.b16 %v5482, %v5478
          %v6267 = vpack.c.b16 %v5483, %v5479
          %v6268 = vpack.c.b16 %v5484, %v5480
          %v6269 = vpack.c.b16 %v5489, %v5485
          %v6270 = vpack.c.b16 %v5490, %v5486
          %v6271 = vpack.c.b16 %v5491, %v5487
          %v6272 = vpack.c.b16 %v5492, %v5488
          %v6273 = vpack.c.b16 %v5497, %v5493
          %v6274 = vpack.c.b16 %v5498, %v5494
          %v6275 = vpack.c.b16 %v5499, %v5495
          %v6276 = vpack.c.b16 %v5500, %v5496
          %v6277 = vpack.c.b16 %v5505, %v5501
          %v6278 = vpack.c.b16 %v5506, %v5502
          %v6279 = vpack.c.b16 %v5507, %v5503
          %v6280 = vpack.c.b16 %v5508, %v5504
          %v6281 = vpack.c.b16 %v5513, %v5509
          %v6282 = vpack.c.b16 %v5514, %v5510
          %v6283 = vpack.c.b16 %v5515, %v5511
          %v6284 = vpack.c.b16 %v5516, %v5512
          %v6285 = vpack.c.b16 %v5521, %v5517
          %v6286 = vpack.c.b16 %v5522, %v5518
          %v6287 = vpack.c.b16 %v5523, %v5519
          %v6288 = vpack.c.b16 %v5524, %v5520
          %v6289 = vpack.c.b16 %v5529, %v5525
          %v6290 = vpack.c.b16 %v5530, %v5526
          %v6291 = vpack.c.b16 %v5531, %v5527
          %v6292 = vpack.c.b16 %v5532, %v5528
          %v6293 = vpack.c.b16 %v5537, %v5533
          %v6294 = vpack.c.b16 %v5538, %v5534
          %v6295 = vpack.c.b16 %v5539, %v5535
          %v6296 = vpack.c.b16 %v5540, %v5536
          %v6297 = vpack.c.b16 %v5545, %v5541
          %v6298 = vpack.c.b16 %v5546, %v5542
          %v6299 = vpack.c.b16 %v5547, %v5543
          %v6300 = vpack.c.b16 %v5548, %v5544
          %v6301 = vpack.c.b16 %v5553, %v5549
          %v6302 = vpack.c.b16 %v5554, %v5550
          %v6303 = vpack.c.b16 %v5555, %v5551
          %v6304 = vpack.c.b16 %v5556, %v5552
          %v6305 = vpack.c.b16 %v5561, %v5557
          %v6306 = vpack.c.b16 %v5562, %v5558
          %v6307 = vpack.c.b16 %v5563, %v5559
          %v6308 = vpack.c.b16 %v5564, %v5560
          %v6309 = vpack.c.b16 %v5569, %v5565
          %v6310 = vpack.c.b16 %v5570, %v5566
          %v6311 = vpack.c.b16 %v5571, %v5567
          %v6312 = vpack.c.b16 %v5572, %v5568
          %v6313 = vpack.c.b16 %v5577, %v5573
          %v6314 = vpack.c.b16 %v5578, %v5574
          %v6315 = vpack.c.b16 %v5579, %v5575
          %v6316 = vpack.c.b16 %v5580, %v5576
          %v6317 = vpack.c.b16 %v5585, %v5581
          %v6318 = vpack.c.b16 %v5586, %v5582
          %v6319 = vpack.c.b16 %v5587, %v5583
          %v6320 = vpack.c.b16 %v5588, %v5584
          %v6321 = vpack.c.b16 %v5593, %v5589
          %v6322 = vpack.c.b16 %v5594, %v5590
          %v6323 = vpack.c.b16 %v5595, %v5591
          %v6324 = vpack.c.b16 %v5596, %v5592
          %v6325 = vpack.c.b16 %v5601, %v5597
          %v6326 = vpack.c.b16 %v5602, %v5598
          %v6327 = vpack.c.b16 %v5603, %v5599
          %v6328 = vpack.c.b16 %v5604, %v5600
          %v6329 = vpack.c.b16 %v5609, %v5605
          %v6330 = vpack.c.b16 %v5610, %v5606
          %v6331 = vpack.c.b16 %v5611, %v5607
          %v6332 = vpack.c.b16 %v5612, %v5608
          %v6333 = vpack.c.b16 %v5617, %v5613
          %v6334 = vpack.c.b16 %v5618, %v5614
          %v6335 = vpack.c.b16 %v5619, %v5615
          %v6336 = vpack.c.b16 %v5620, %v5616
          %v6337 = vpack.c.b16 %v5625, %v5621
          %v6338 = vpack.c.b16 %v5626, %v5622
          %v6339 = vpack.c.b16 %v5627, %v5623
          %v6340 = vpack.c.b16 %v5628, %v5624
          %v6341 = vpack.c.b16 %v5633, %v5629
          %v6342 = vpack.c.b16 %v5634, %v5630
          %v6343 = vpack.c.b16 %v5635, %v5631
          %v6344 = vpack.c.b16 %v5636, %v5632
          %v6345 = vpack.c.b16 %v5641, %v5637
          %v6346 = vpack.c.b16 %v5642, %v5638
          %v6347 = vpack.c.b16 %v5643, %v5639
          %v6348 = vpack.c.b16 %v5644, %v5640
          %v6349 = vpack.c.b16 %v5649, %v5645
          %v6350 = vpack.c.b16 %v5650, %v5646
          %v6351 = vpack.c.b16 %v5651, %v5647
          %v6352 = vpack.c.b16 %v5652, %v5648
          %v6353 = vpack.c.b16 %v5657, %v5653
          %v6354 = vpack.c.b16 %v5658, %v5654
          %v6355 = vpack.c.b16 %v5659, %v5655
          %v6356 = vpack.c.b16 %v5660, %v5656
          %v6357 = vpack.c.b16 %v5665, %v5661
          %v6358 = vpack.c.b16 %v5666, %v5662
          %v6359 = vpack.c.b16 %v5667, %v5663
          %v6360 = vpack.c.b16 %v5668, %v5664
          %v6361 = vpack.c.b16 %v5673, %v5669
          %v6362 = vpack.c.b16 %v5674, %v5670
          %v6363 = vpack.c.b16 %v5675, %v5671
          %v6364 = vpack.c.b16 %v5676, %v5672
          %v6365 = vpack.c.b16 %v5681, %v5677
          %v6366 = vpack.c.b16 %v5682, %v5678
          %v6367 = vpack.c.b16 %v5683, %v5679
          %v6368 = vpack.c.b16 %v5684, %v5680
          %v6369 = vpack.c.b16 %v5689, %v5685
          %v6370 = vpack.c.b16 %v5690, %v5686
          %v6371 = vpack.c.b16 %v5691, %v5687
          %v6372 = vpack.c.b16 %v5692, %v5688
          %v6373 = vpack.c.b16 %v5697, %v5693
          %v6374 = vpack.c.b16 %v5698, %v5694
          %v6375 = vpack.c.b16 %v5699, %v5695
          %v6376 = vpack.c.b16 %v5700, %v5696
          %v6377 = vpack.c.b16 %v5705, %v5701
          %v6378 = vpack.c.b16 %v5706, %v5702
          %v6379 = vpack.c.b16 %v5707, %v5703
          %v6380 = vpack.c.b16 %v5708, %v5704
          %v6381 = vpack.c.b16 %v5713, %v5709
          %v6382 = vpack.c.b16 %v5714, %v5710
          %v6383 = vpack.c.b16 %v5715, %v5711
          %v6384 = vpack.c.b16 %v5716, %v5712
          %v6385 = vpack.c.b16 %v5721, %v5717
          %v6386 = vpack.c.b16 %v5722, %v5718
          %v6387 = vpack.c.b16 %v5723, %v5719
          %v6388 = vpack.c.b16 %v5724, %v5720
          %v6389 = vpack.c.b16 %v5729, %v5725
          %v6390 = vpack.c.b16 %v5730, %v5726
          %v6391 = vpack.c.b16 %v5731, %v5727
          %v6392 = vpack.c.b16 %v5732, %v5728
          %v6393 = vpack.c.b16 %v5737, %v5733
          %v6394 = vpack.c.b16 %v5738, %v5734
          %v6395 = vpack.c.b16 %v5739, %v5735
          %v6396 = vpack.c.b16 %v5740, %v5736
          %v6397 = vpack.c.b16 %v5745, %v5741
          %v6398 = vpack.c.b16 %v5746, %v5742
          %v6399 = vpack.c.b16 %v5747, %v5743
          %v6400 = vpack.c.b16 %v5748, %v5744
          %v6401 = vpack.c.b16 %v5753, %v5749
          %v6402 = vpack.c.b16 %v5754, %v5750
          %v6403 = vpack.c.b16 %v5755, %v5751
          %v6404 = vpack.c.b16 %v5756, %v5752
          %v6405 = vpack.c.b16 %v5761, %v5757
          %v6406 = vpack.c.b16 %v5762, %v5758
          %v6407 = vpack.c.b16 %v5763, %v5759
          %v6408 = vpack.c.b16 %v5764, %v5760
          %v6409 = vpack.c.b16 %v5769, %v5765
          %v6410 = vpack.c.b16 %v5770, %v5766
          %v6411 = vpack.c.b16 %v5771, %v5767
          %v6412 = vpack.c.b16 %v5772, %v5768
          %v6413 = vpack.c.b16 %v5777, %v5773
          %v6414 = vpack.c.b16 %v5778, %v5774
          %v6415 = vpack.c.b16 %v5779, %v5775
          %v6416 = vpack.c.b16 %v5780, %v5776
          %v6417 = vpack.c.b16 %v5785, %v5781
          %v6418 = vpack.c.b16 %v5786, %v5782
          %v6419 = vpack.c.b16 %v5787, %v5783
          %v6420 = vpack.c.b16 %v5788, %v5784
          %v6421 = vpack.c.b16 %v5793, %v5789
          %v6422 = vpack.c.b16 %v5794, %v5790
          %v6423 = vpack.c.b16 %v5795, %v5791
          %v6424 = vpack.c.b16 %v5796, %v5792
          %v6425 = vpack.c.b16 %v5801, %v5797
          %v6426 = vpack.c.b16 %v5802, %v5798
          %v6427 = vpack.c.b16 %v5803, %v5799
          %v6428 = vpack.c.b16 %v5804, %v5800
          %v6429 = vpack.c.b16 %v5809, %v5805
          %v6430 = vpack.c.b16 %v5810, %v5806
          %v6431 = vpack.c.b16 %v5811, %v5807
          %v6432 = vpack.c.b16 %v5812, %v5808
          %v6433 = vpack.c.b16 %v5817, %v5813
          %v6434 = vpack.c.b16 %v5818, %v5814
          %v6435 = vpack.c.b16 %v5819, %v5815
          %v6436 = vpack.c.b16 %v5820, %v5816
          %v6437 = vpack.c.b16 %v5825, %v5821
          %v6438 = vpack.c.b16 %v5826, %v5822
          %v6439 = vpack.c.b16 %v5827, %v5823
          %v6440 = vpack.c.b16 %v5828, %v5824
          %v6441 = vpack.c.b16 %v5833, %v5829
          %v6442 = vpack.c.b16 %v5834, %v5830
          %v6443 = vpack.c.b16 %v5835, %v5831
          %v6444 = vpack.c.b16 %v5836, %v5832
          %v6445 = vpack.c.b16 %v5841, %v5837
          %v6446 = vpack.c.b16 %v5842, %v5838
          %v6447 = vpack.c.b16 %v5843, %v5839
          %v6448 = vpack.c.b16 %v5844, %v5840
          %v6449 = vpack.c.b16 %v5849, %v5845
          %v6450 = vpack.c.b16 %v5850, %v5846
          %v6451 = vpack.c.b16 %v5851, %v5847
          %v6452 = vpack.c.b16 %v5852, %v5848
          %v6453 = vpack.c.b16 %v5857, %v5853
          %v6454 = vpack.c.b16 %v5858, %v5854
          %v6455 = vpack.c.b16 %v5859, %v5855
          %v6456 = vpack.c.b16 %v5860, %v5856
          %v6457 = vpack.c.b16 %v5865, %v5861
          %v6458 = vpack.c.b16 %v5866, %v5862
          %v6459 = vpack.c.b16 %v5867, %v5863
          %v6460 = vpack.c.b16 %v5868, %v5864
          %v6461 = vpack.c.b16 %v5873, %v5869
          %v6462 = vpack.c.b16 %v5874, %v5870
          %v6463 = vpack.c.b16 %v5875, %v5871
          %v6464 = vpack.c.b16 %v5876, %v5872
          %v6465 = vpack.c.b16 %v5881, %v5877
          %v6466 = vpack.c.b16 %v5882, %v5878
          %v6467 = vpack.c.b16 %v5883, %v5879
          %v6468 = vpack.c.b16 %v5884, %v5880
          %v6469 = vpack.c.b16 %v5889, %v5885
          %v6470 = vpack.c.b16 %v5890, %v5886
          %v6471 = vpack.c.b16 %v5891, %v5887
          %v6472 = vpack.c.b16 %v5892, %v5888
          %v6473 = vpack.c.b16 %v5897, %v5893
          %v6474 = vpack.c.b16 %v5898, %v5894
          %v6475 = vpack.c.b16 %v5899, %v5895
          %v6476 = vpack.c.b16 %v5900, %v5896
          %v6477 = vpack.c.b16 %v5905, %v5901
          %v6478 = vpack.c.b16 %v5906, %v5902
          %v6479 = vpack.c.b16 %v5907, %v5903
          %v6480 = vpack.c.b16 %v5908, %v5904
          %v6481 = vpack.c.b16 %v5913, %v5909
          %v6482 = vpack.c.b16 %v5914, %v5910
          %v6483 = vpack.c.b16 %v5915, %v5911
          %v6484 = vpack.c.b16 %v5916, %v5912
          %v6485 = vpack.c.b16 %v5921, %v5917
          %v6486 = vpack.c.b16 %v5922, %v5918
          %v6487 = vpack.c.b16 %v5923, %v5919
          %v6488 = vpack.c.b16 %v5924, %v5920
          %v6489 = vpack.c.b16 %v5929, %v5925
          %v6490 = vpack.c.b16 %v5930, %v5926
          %v6491 = vpack.c.b16 %v5931, %v5927
          %v6492 = vpack.c.b16 %v5932, %v5928
          %v6493 = vpack.c.b16 %v5937, %v5933
          %v6494 = vpack.c.b16 %v5938, %v5934
          %v6495 = vpack.c.b16 %v5939, %v5935
          %v6496 = vpack.c.b16 %v5940, %v5936
          %v6497 = vpack.c.b16 %v5945, %v5941
          %v6498 = vpack.c.b16 %v5946, %v5942
          %v6499 = vpack.c.b16 %v5947, %v5943
          %v6500 = vpack.c.b16 %v5948, %v5944
          %v6501 = vpack.c.b16 %v5953, %v5949
          %v6502 = vpack.c.b16 %v5954, %v5950
          %v6503 = vpack.c.b16 %v5955, %v5951
          %v6504 = vpack.c.b16 %v5956, %v5952
          %v6505 = vpack.c.b16 %v5961, %v5957
          %v6506 = vpack.c.b16 %v5962, %v5958
          %v6507 = vpack.c.b16 %v5963, %v5959
          %v6508 = vpack.c.b16 %v5964, %v5960
          %v6509 = vpack.c.b16 %v5969, %v5965
          %v6510 = vpack.c.b16 %v5970, %v5966
          %v6511 = vpack.c.b16 %v5971, %v5967
          %v6512 = vpack.c.b16 %v5972, %v5968
          %v6513 = vpack.c.b16 %v5977, %v5973
          %v6514 = vpack.c.b16 %v5978, %v5974
          %v6515 = vpack.c.b16 %v5979, %v5975
          %v6516 = vpack.c.b16 %v5980, %v5976
          %v6517 = vpack.c.b16 %v5985, %v5981
          %v6518 = vpack.c.b16 %v5986, %v5982
          %v6519 = vpack.c.b16 %v5987, %v5983
          %v6520 = vpack.c.b16 %v5988, %v5984
          %v6521 = vpack.c.b16 %v5993, %v5989
          %v6522 = vpack.c.b16 %v5994, %v5990
          %v6523 = vpack.c.b16 %v5995, %v5991
          %v6524 = vpack.c.b16 %v5996, %v5992
          %v6525 = vpack.c.b16 %v6001, %v5997
          %v6526 = vpack.c.b16 %v6002, %v5998
          %v6527 = vpack.c.b16 %v6003, %v5999
          %v6528 = vpack.c.b16 %v6004, %v6000
          %v6529 = vpack.c.b16 %v6009, %v6005
          %v6530 = vpack.c.b16 %v6010, %v6006
          %v6531 = vpack.c.b16 %v6011, %v6007
          %v6532 = vpack.c.b16 %v6012, %v6008
          %v6533 = vpack.c.b16 %v6017, %v6013
          %v6534 = vpack.c.b16 %v6018, %v6014
          %v6535 = vpack.c.b16 %v6019, %v6015
          %v6536 = vpack.c.b16 %v6020, %v6016
          %v6537 = vpack.c.b16 %v6025, %v6021
          %v6538 = vpack.c.b16 %v6026, %v6022
          %v6539 = vpack.c.b16 %v6027, %v6023
          %v6540 = vpack.c.b16 %v6028, %v6024
          %7053 = vmatpush.bf16.msra.mxu0 %v6057
          %7054 = vmatpush.bf16.msra.mxu0 %v6053
          %7055 = vmatpush.bf16.msra.mxu0 %v6049
          %7056 = vmatpush.bf16.msra.mxu0 %v6045
          %7057 = vmatpush.bf16.msra.mxu0 %v6041
          %7058 = vmatpush.bf16.msra.mxu0 %v6037
          %7059 = vmatpush.bf16.msra.mxu0 %v6033
          %7060 = vmatpush.bf16.msra.mxu0 %v6029
          %7061 = vmatmul.bf16.gmra.mxu0 %v3955
          %v7062 = vpop.f32.mrf.mxu0
          %v7063 = vadd.f32 %v4485, %v7062
          %v7064 = vpop.f32.mrf.mxu0
          %v7065 = vadd.f32 %v4485, %v7064
          %7066 = vdwg.mxu0
          %7067 = vmatpush.bf16.msra.mxu0 %v6089
          %7068 = vmatpush.bf16.msra.mxu0 %v6085
          %7069 = vmatpush.bf16.msra.mxu0 %v6081
          %7070 = vmatpush.bf16.msra.mxu0 %v6077
          %7071 = vmatpush.bf16.msra.mxu0 %v6073
          %7072 = vmatpush.bf16.msra.mxu0 %v6069
          %7073 = vmatpush.bf16.msra.mxu0 %v6065
          %7074 = vmatpush.bf16.msra.mxu0 %v6061
          %7075 = vmatmul.bf16.gmra.mxu0 %v3956
          %v7076 = vpop.f32.mrf.mxu0
          %v7077 = vadd.f32 %v7063, %v7076
          %v7078 = vpop.f32.mrf.mxu0
          %v7079 = vadd.f32 %v7065, %v7078
          %7080 = vdwg.mxu0
          %7081 = vmatpush.bf16.msra.mxu0 %v6121
          %7082 = vmatpush.bf16.msra.mxu0 %v6117
          %7083 = vmatpush.bf16.msra.mxu0 %v6113
          %7084 = vmatpush.bf16.msra.mxu0 %v6109
          %7085 = vmatpush.bf16.msra.mxu0 %v6105
          %7086 = vmatpush.bf16.msra.mxu0 %v6101
          %7087 = vmatpush.bf16.msra.mxu0 %v6097
          %7088 = vmatpush.bf16.msra.mxu0 %v6093
          %7089 = vmatmul.bf16.gmra.mxu0 %v3957
          %v7090 = vpop.f32.mrf.mxu0
          %v7091 = vadd.f32 %v7077, %v7090
          %v7092 = vpop.f32.mrf.mxu0
          %v7093 = vadd.f32 %v7079, %v7092
          %7094 = vdwg.mxu0
          %7095 = vmatpush.bf16.msra.mxu0 %v6153
          %7096 = vmatpush.bf16.msra.mxu0 %v6149
          %7097 = vmatpush.bf16.msra.mxu0 %v6145
          %7098 = vmatpush.bf16.msra.mxu0 %v6141
          %7099 = vmatpush.bf16.msra.mxu0 %v6137
          %7100 = vmatpush.bf16.msra.mxu0 %v6133
          %7101 = vmatpush.bf16.msra.mxu0 %v6129
          %7102 = vmatpush.bf16.msra.mxu0 %v6125
          %7103 = vmatmul.bf16.gmra.mxu0 %v3958
          %v7104 = vpop.f32.mrf.mxu0
          %v7105 = vadd.f32 %v7091, %v7104
          %v7106 = vpop.f32.mrf.mxu0
          %v7107 = vadd.f32 %v7093, %v7106
          %7108 = vdwg.mxu0
          %7109 = vmatpush.bf16.msra.mxu0 %v6185
          %7110 = vmatpush.bf16.msra.mxu0 %v6181
          %7111 = vmatpush.bf16.msra.mxu0 %v6177
          %7112 = vmatpush.bf16.msra.mxu0 %v6173
          %7113 = vmatpush.bf16.msra.mxu0 %v6169
          %7114 = vmatpush.bf16.msra.mxu0 %v6165
          %7115 = vmatpush.bf16.msra.mxu0 %v6161
          %7116 = vmatpush.bf16.msra.mxu0 %v6157
          %7117 = vmatmul.bf16.gmra.mxu0 %v3959
          %v7118 = vpop.f32.mrf.mxu0
          %v7119 = vadd.f32 %v7105, %v7118
          %v7120 = vpop.f32.mrf.mxu0
          %v7121 = vadd.f32 %v7107, %v7120
          %7122 = vdwg.mxu0
          %7123 = vmatpush.bf16.msra.mxu0 %v6217
          %7124 = vmatpush.bf16.msra.mxu0 %v6213
          %7125 = vmatpush.bf16.msra.mxu0 %v6209
          %7126 = vmatpush.bf16.msra.mxu0 %v6205
          %7127 = vmatpush.bf16.msra.mxu0 %v6201
          %7128 = vmatpush.bf16.msra.mxu0 %v6197
          %7129 = vmatpush.bf16.msra.mxu0 %v6193
          %7130 = vmatpush.bf16.msra.mxu0 %v6189
          %7131 = vmatmul.bf16.gmra.mxu0 %v3960
          %v7132 = vpop.f32.mrf.mxu0
          %v7133 = vadd.f32 %v7119, %v7132
          %v7134 = vpop.f32.mrf.mxu0
          %v7135 = vadd.f32 %v7121, %v7134
          %7136 = vdwg.mxu0
          %7137 = vmatpush.bf16.msra.mxu0 %v6249
          %7138 = vmatpush.bf16.msra.mxu0 %v6245
          %7139 = vmatpush.bf16.msra.mxu0 %v6241
          %7140 = vmatpush.bf16.msra.mxu0 %v6237
          %7141 = vmatpush.bf16.msra.mxu0 %v6233
          %7142 = vmatpush.bf16.msra.mxu0 %v6229
          %7143 = vmatpush.bf16.msra.mxu0 %v6225
          %7144 = vmatpush.bf16.msra.mxu0 %v6221
          %7145 = vmatmul.bf16.gmra.mxu0 %v3961
          %v7146 = vpop.f32.mrf.mxu0
          %v7147 = vadd.f32 %v7133, %v7146
          %v7148 = vpop.f32.mrf.mxu0
          %v7149 = vadd.f32 %v7135, %v7148
          %7150 = vdwg.mxu0
          %7151 = vmatpush.bf16.msra.mxu0 %v6281
          %7152 = vmatpush.bf16.msra.mxu0 %v6277
          %7153 = vmatpush.bf16.msra.mxu0 %v6273
          %7154 = vmatpush.bf16.msra.mxu0 %v6269
          %7155 = vmatpush.bf16.msra.mxu0 %v6265
          %7156 = vmatpush.bf16.msra.mxu0 %v6261
          %7157 = vmatpush.bf16.msra.mxu0 %v6257
          %7158 = vmatpush.bf16.msra.mxu0 %v6253
          %7159 = vmatmul.bf16.gmra.mxu0 %v3962
          %v7160 = vpop.f32.mrf.mxu0
          %v7161 = vadd.f32 %v7147, %v7160
          %v7162 = vpop.f32.mrf.mxu0
          %v7163 = vadd.f32 %v7149, %v7162
          %7164 = vdwg.mxu0
          %7165 = vmatpush.bf16.msra.mxu0 %v6313
          %7166 = vmatpush.bf16.msra.mxu0 %v6309
          %7167 = vmatpush.bf16.msra.mxu0 %v6305
          %7168 = vmatpush.bf16.msra.mxu0 %v6301
          %7169 = vmatpush.bf16.msra.mxu0 %v6297
          %7170 = vmatpush.bf16.msra.mxu0 %v6293
          %7171 = vmatpush.bf16.msra.mxu0 %v6289
          %7172 = vmatpush.bf16.msra.mxu0 %v6285
          %7173 = vmatmul.bf16.gmra.mxu0 %v3963
          %v7174 = vpop.f32.mrf.mxu0
          %v7175 = vadd.f32 %v7161, %v7174
          %v7176 = vpop.f32.mrf.mxu0
          %v7177 = vadd.f32 %v7163, %v7176
          %7178 = vdwg.mxu0
          %7179 = vmatpush.bf16.msra.mxu0 %v6345
          %7180 = vmatpush.bf16.msra.mxu0 %v6341
          %7181 = vmatpush.bf16.msra.mxu0 %v6337
          %7182 = vmatpush.bf16.msra.mxu0 %v6333
          %7183 = vmatpush.bf16.msra.mxu0 %v6329
          %7184 = vmatpush.bf16.msra.mxu0 %v6325
          %7185 = vmatpush.bf16.msra.mxu0 %v6321
          %7186 = vmatpush.bf16.msra.mxu0 %v6317
          %7187 = vmatmul.bf16.gmra.mxu0 %v3964
          %v7188 = vpop.f32.mrf.mxu0
          %v7189 = vadd.f32 %v7175, %v7188
          %v7190 = vpop.f32.mrf.mxu0
          %v7191 = vadd.f32 %v7177, %v7190
          %7192 = vdwg.mxu0
          %7193 = vmatpush.bf16.msra.mxu0 %v6377
          %7194 = vmatpush.bf16.msra.mxu0 %v6373
          %7195 = vmatpush.bf16.msra.mxu0 %v6369
          %7196 = vmatpush.bf16.msra.mxu0 %v6365
          %7197 = vmatpush.bf16.msra.mxu0 %v6361
          %7198 = vmatpush.bf16.msra.mxu0 %v6357
          %7199 = vmatpush.bf16.msra.mxu0 %v6353
          %7200 = vmatpush.bf16.msra.mxu0 %v6349
          %7201 = vmatmul.bf16.gmra.mxu0 %v3965
          %v7202 = vpop.f32.mrf.mxu0
          %v7203 = vadd.f32 %v7189, %v7202
          %v7204 = vpop.f32.mrf.mxu0
          %v7205 = vadd.f32 %v7191, %v7204
          %7206 = vdwg.mxu0
          %7207 = vmatpush.bf16.msra.mxu0 %v6409
          %7208 = vmatpush.bf16.msra.mxu0 %v6405
          %7209 = vmatpush.bf16.msra.mxu0 %v6401
          %7210 = vmatpush.bf16.msra.mxu0 %v6397
          %7211 = vmatpush.bf16.msra.mxu0 %v6393
          %7212 = vmatpush.bf16.msra.mxu0 %v6389
          %7213 = vmatpush.bf16.msra.mxu0 %v6385
          %7214 = vmatpush.bf16.msra.mxu0 %v6381
          %7215 = vmatmul.bf16.gmra.mxu0 %v3966
          %v7216 = vpop.f32.mrf.mxu0
          %v7217 = vadd.f32 %v7203, %v7216
          %v7218 = vpop.f32.mrf.mxu0
          %v7219 = vadd.f32 %v7205, %v7218
          %7220 = vdwg.mxu0
          %7221 = vmatpush.bf16.msra.mxu0 %v6441
          %7222 = vmatpush.bf16.msra.mxu0 %v6437
          %7223 = vmatpush.bf16.msra.mxu0 %v6433
          %7224 = vmatpush.bf16.msra.mxu0 %v6429
          %7225 = vmatpush.bf16.msra.mxu0 %v6425
          %7226 = vmatpush.bf16.msra.mxu0 %v6421
          %7227 = vmatpush.bf16.msra.mxu0 %v6417
          %7228 = vmatpush.bf16.msra.mxu0 %v6413
          %7229 = vmatmul.bf16.gmra.mxu0 %v3967
          %v7230 = vpop.f32.mrf.mxu0
          %v7231 = vadd.f32 %v7217, %v7230
          %v7232 = vpop.f32.mrf.mxu0
          %v7233 = vadd.f32 %v7219, %v7232
          %7234 = vdwg.mxu0
          %7235 = vmatpush.bf16.msra.mxu0 %v6473
          %7236 = vmatpush.bf16.msra.mxu0 %v6469
          %7237 = vmatpush.bf16.msra.mxu0 %v6465
          %7238 = vmatpush.bf16.msra.mxu0 %v6461
          %7239 = vmatpush.bf16.msra.mxu0 %v6457
          %7240 = vmatpush.bf16.msra.mxu0 %v6453
          %7241 = vmatpush.bf16.msra.mxu0 %v6449
          %7242 = vmatpush.bf16.msra.mxu0 %v6445
          %7243 = vmatmul.bf16.gmra.mxu0 %v3968
          %v7244 = vpop.f32.mrf.mxu0
          %v7245 = vadd.f32 %v7231, %v7244
          %v7246 = vpop.f32.mrf.mxu0
          %v7247 = vadd.f32 %v7233, %v7246
          %7248 = vdwg.mxu0
          %7249 = vmatpush.bf16.msra.mxu0 %v6505
          %7250 = vmatpush.bf16.msra.mxu0 %v6501
          %7251 = vmatpush.bf16.msra.mxu0 %v6497
          %7252 = vmatpush.bf16.msra.mxu0 %v6493
          %7253 = vmatpush.bf16.msra.mxu0 %v6489
          %7254 = vmatpush.bf16.msra.mxu0 %v6485
          %7255 = vmatpush.bf16.msra.mxu0 %v6481
          %7256 = vmatpush.bf16.msra.mxu0 %v6477
          %7257 = vmatmul.bf16.gmra.mxu0 %v3969
          %v7258 = vpop.f32.mrf.mxu0
          %v7259 = vadd.f32 %v7245, %v7258
          %v7260 = vpop.f32.mrf.mxu0
          %v7261 = vadd.f32 %v7247, %v7260
          %7262 = vdwg.mxu0
          %7263 = vmatpush.bf16.msra.mxu0 %v6537
          %7264 = vmatpush.bf16.msra.mxu0 %v6533
          %7265 = vmatpush.bf16.msra.mxu0 %v6529
          %7266 = vmatpush.bf16.msra.mxu0 %v6525
          %7267 = vmatpush.bf16.msra.mxu0 %v6521
          %7268 = vmatpush.bf16.msra.mxu0 %v6517
          %7269 = vmatpush.bf16.msra.mxu0 %v6513
          %7270 = vmatpush.bf16.msra.mxu0 %v6509
          %7271 = vmatmul.bf16.gmra.mxu0 %v3970
          %v7272 = vpop.f32.mrf.mxu0
          %v7273 = vadd.f32 %v7259, %v7272
          %v7274 = vpop.f32.mrf.mxu0
          %v7275 = vadd.f32 %v7261, %v7274
          %7276 = vdwg.mxu0
          %7277 = vmatpush.bf16.msra.mxu0 %v6058
          %7278 = vmatpush.bf16.msra.mxu0 %v6054
          %7279 = vmatpush.bf16.msra.mxu0 %v6050
          %7280 = vmatpush.bf16.msra.mxu0 %v6046
          %7281 = vmatpush.bf16.msra.mxu0 %v6042
          %7282 = vmatpush.bf16.msra.mxu0 %v6038
          %7283 = vmatpush.bf16.msra.mxu0 %v6034
          %7284 = vmatpush.bf16.msra.mxu0 %v6030
          %7285 = vmatmul.bf16.gmra.mxu0 %v3955
          %v7286 = vpop.f32.mrf.mxu0
          %v7287 = vadd.f32 %v4486, %v7286
          %v7288 = vpop.f32.mrf.mxu0
          %v7289 = vadd.f32 %v4486, %v7288
          %7290 = vdwg.mxu0
          %7291 = vmatpush.bf16.msra.mxu0 %v6090
          %7292 = vmatpush.bf16.msra.mxu0 %v6086
          %7293 = vmatpush.bf16.msra.mxu0 %v6082
          %7294 = vmatpush.bf16.msra.mxu0 %v6078
          %7295 = vmatpush.bf16.msra.mxu0 %v6074
          %7296 = vmatpush.bf16.msra.mxu0 %v6070
          %7297 = vmatpush.bf16.msra.mxu0 %v6066
          %7298 = vmatpush.bf16.msra.mxu0 %v6062
          %7299 = vmatmul.bf16.gmra.mxu0 %v3956
          %v7300 = vpop.f32.mrf.mxu0
          %v7301 = vadd.f32 %v7287, %v7300
          %v7302 = vpop.f32.mrf.mxu0
          %v7303 = vadd.f32 %v7289, %v7302
          %7304 = vdwg.mxu0
          %7305 = vmatpush.bf16.msra.mxu0 %v6122
          %7306 = vmatpush.bf16.msra.mxu0 %v6118
          %7307 = vmatpush.bf16.msra.mxu0 %v6114
          %7308 = vmatpush.bf16.msra.mxu0 %v6110
          %7309 = vmatpush.bf16.msra.mxu0 %v6106
          %7310 = vmatpush.bf16.msra.mxu0 %v6102
          %7311 = vmatpush.bf16.msra.mxu0 %v6098
          %7312 = vmatpush.bf16.msra.mxu0 %v6094
          %7313 = vmatmul.bf16.gmra.mxu0 %v3957
          %v7314 = vpop.f32.mrf.mxu0
          %v7315 = vadd.f32 %v7301, %v7314
          %v7316 = vpop.f32.mrf.mxu0
          %v7317 = vadd.f32 %v7303, %v7316
          %7318 = vdwg.mxu0
          %7319 = vmatpush.bf16.msra.mxu0 %v6154
          %7320 = vmatpush.bf16.msra.mxu0 %v6150
          %7321 = vmatpush.bf16.msra.mxu0 %v6146
          %7322 = vmatpush.bf16.msra.mxu0 %v6142
          %7323 = vmatpush.bf16.msra.mxu0 %v6138
          %7324 = vmatpush.bf16.msra.mxu0 %v6134
          %7325 = vmatpush.bf16.msra.mxu0 %v6130
          %7326 = vmatpush.bf16.msra.mxu0 %v6126
          %7327 = vmatmul.bf16.gmra.mxu0 %v3958
          %v7328 = vpop.f32.mrf.mxu0
          %v7329 = vadd.f32 %v7315, %v7328
          %v7330 = vpop.f32.mrf.mxu0
          %v7331 = vadd.f32 %v7317, %v7330
          %7332 = vdwg.mxu0
          %7333 = vmatpush.bf16.msra.mxu0 %v6186
          %7334 = vmatpush.bf16.msra.mxu0 %v6182
          %7335 = vmatpush.bf16.msra.mxu0 %v6178
          %7336 = vmatpush.bf16.msra.mxu0 %v6174
          %7337 = vmatpush.bf16.msra.mxu0 %v6170
          %7338 = vmatpush.bf16.msra.mxu0 %v6166
          %7339 = vmatpush.bf16.msra.mxu0 %v6162
          %7340 = vmatpush.bf16.msra.mxu0 %v6158
          %7341 = vmatmul.bf16.gmra.mxu0 %v3959
          %v7342 = vpop.f32.mrf.mxu0
          %v7343 = vadd.f32 %v7329, %v7342
          %v7344 = vpop.f32.mrf.mxu0
          %v7345 = vadd.f32 %v7331, %v7344
          %7346 = vdwg.mxu0
          %7347 = vmatpush.bf16.msra.mxu0 %v6218
          %7348 = vmatpush.bf16.msra.mxu0 %v6214
          %7349 = vmatpush.bf16.msra.mxu0 %v6210
          %7350 = vmatpush.bf16.msra.mxu0 %v6206
          %7351 = vmatpush.bf16.msra.mxu0 %v6202
          %7352 = vmatpush.bf16.msra.mxu0 %v6198
          %7353 = vmatpush.bf16.msra.mxu0 %v6194
          %7354 = vmatpush.bf16.msra.mxu0 %v6190
          %7355 = vmatmul.bf16.gmra.mxu0 %v3960
          %v7356 = vpop.f32.mrf.mxu0
          %v7357 = vadd.f32 %v7343, %v7356
          %v7358 = vpop.f32.mrf.mxu0
          %v7359 = vadd.f32 %v7345, %v7358
          %7360 = vdwg.mxu0
          %7361 = vmatpush.bf16.msra.mxu0 %v6250
          %7362 = vmatpush.bf16.msra.mxu0 %v6246
          %7363 = vmatpush.bf16.msra.mxu0 %v6242
          %7364 = vmatpush.bf16.msra.mxu0 %v6238
          %7365 = vmatpush.bf16.msra.mxu0 %v6234
          %7366 = vmatpush.bf16.msra.mxu0 %v6230
          %7367 = vmatpush.bf16.msra.mxu0 %v6226
          %7368 = vmatpush.bf16.msra.mxu0 %v6222
          %7369 = vmatmul.bf16.gmra.mxu0 %v3961
          %v7370 = vpop.f32.mrf.mxu0
          %v7371 = vadd.f32 %v7357, %v7370
          %v7372 = vpop.f32.mrf.mxu0
          %v7373 = vadd.f32 %v7359, %v7372
          %7374 = vdwg.mxu0
          %7375 = vmatpush.bf16.msra.mxu0 %v6282
          %7376 = vmatpush.bf16.msra.mxu0 %v6278
          %7377 = vmatpush.bf16.msra.mxu0 %v6274
          %7378 = vmatpush.bf16.msra.mxu0 %v6270
          %7379 = vmatpush.bf16.msra.mxu0 %v6266
          %7380 = vmatpush.bf16.msra.mxu0 %v6262
          %7381 = vmatpush.bf16.msra.mxu0 %v6258
          %7382 = vmatpush.bf16.msra.mxu0 %v6254
          %7383 = vmatmul.bf16.gmra.mxu0 %v3962
          %v7384 = vpop.f32.mrf.mxu0
          %v7385 = vadd.f32 %v7371, %v7384
          %v7386 = vpop.f32.mrf.mxu0
          %v7387 = vadd.f32 %v7373, %v7386
          %7388 = vdwg.mxu0
          %7389 = vmatpush.bf16.msra.mxu0 %v6314
          %7390 = vmatpush.bf16.msra.mxu0 %v6310
          %7391 = vmatpush.bf16.msra.mxu0 %v6306
          %7392 = vmatpush.bf16.msra.mxu0 %v6302
          %7393 = vmatpush.bf16.msra.mxu0 %v6298
          %7394 = vmatpush.bf16.msra.mxu0 %v6294
          %7395 = vmatpush.bf16.msra.mxu0 %v6290
          %7396 = vmatpush.bf16.msra.mxu0 %v6286
          %7397 = vmatmul.bf16.gmra.mxu0 %v3963
          %v7398 = vpop.f32.mrf.mxu0
          %v7399 = vadd.f32 %v7385, %v7398
          %v7400 = vpop.f32.mrf.mxu0
          %v7401 = vadd.f32 %v7387, %v7400
          %7402 = vdwg.mxu0
          %7403 = vmatpush.bf16.msra.mxu0 %v6346
          %7404 = vmatpush.bf16.msra.mxu0 %v6342
          %7405 = vmatpush.bf16.msra.mxu0 %v6338
          %7406 = vmatpush.bf16.msra.mxu0 %v6334
          %7407 = vmatpush.bf16.msra.mxu0 %v6330
          %7408 = vmatpush.bf16.msra.mxu0 %v6326
          %7409 = vmatpush.bf16.msra.mxu0 %v6322
          %7410 = vmatpush.bf16.msra.mxu0 %v6318
          %7411 = vmatmul.bf16.gmra.mxu0 %v3964
          %v7412 = vpop.f32.mrf.mxu0
          %v7413 = vadd.f32 %v7399, %v7412
          %v7414 = vpop.f32.mrf.mxu0
          %v7415 = vadd.f32 %v7401, %v7414
          %7416 = vdwg.mxu0
          %7417 = vmatpush.bf16.msra.mxu0 %v6378
          %7418 = vmatpush.bf16.msra.mxu0 %v6374
          %7419 = vmatpush.bf16.msra.mxu0 %v6370
          %7420 = vmatpush.bf16.msra.mxu0 %v6366
          %7421 = vmatpush.bf16.msra.mxu0 %v6362
          %7422 = vmatpush.bf16.msra.mxu0 %v6358
          %7423 = vmatpush.bf16.msra.mxu0 %v6354
          %7424 = vmatpush.bf16.msra.mxu0 %v6350
          %7425 = vmatmul.bf16.gmra.mxu0 %v3965
          %v7426 = vpop.f32.mrf.mxu0
          %v7427 = vadd.f32 %v7413, %v7426
          %v7428 = vpop.f32.mrf.mxu0
          %v7429 = vadd.f32 %v7415, %v7428
          %7430 = vdwg.mxu0
          %7431 = vmatpush.bf16.msra.mxu0 %v6410
          %7432 = vmatpush.bf16.msra.mxu0 %v6406
          %7433 = vmatpush.bf16.msra.mxu0 %v6402
          %7434 = vmatpush.bf16.msra.mxu0 %v6398
          %7435 = vmatpush.bf16.msra.mxu0 %v6394
          %7436 = vmatpush.bf16.msra.mxu0 %v6390
          %7437 = vmatpush.bf16.msra.mxu0 %v6386
          %7438 = vmatpush.bf16.msra.mxu0 %v6382
          %7439 = vmatmul.bf16.gmra.mxu0 %v3966
          %v7440 = vpop.f32.mrf.mxu0
          %v7441 = vadd.f32 %v7427, %v7440
          %v7442 = vpop.f32.mrf.mxu0
          %v7443 = vadd.f32 %v7429, %v7442
          %7444 = vdwg.mxu0
          %7445 = vmatpush.bf16.msra.mxu0 %v6442
          %7446 = vmatpush.bf16.msra.mxu0 %v6438
          %7447 = vmatpush.bf16.msra.mxu0 %v6434
          %7448 = vmatpush.bf16.msra.mxu0 %v6430
          %7449 = vmatpush.bf16.msra.mxu0 %v6426
          %7450 = vmatpush.bf16.msra.mxu0 %v6422
          %7451 = vmatpush.bf16.msra.mxu0 %v6418
          %7452 = vmatpush.bf16.msra.mxu0 %v6414
          %7453 = vmatmul.bf16.gmra.mxu0 %v3967
          %v7454 = vpop.f32.mrf.mxu0
          %v7455 = vadd.f32 %v7441, %v7454
          %v7456 = vpop.f32.mrf.mxu0
          %v7457 = vadd.f32 %v7443, %v7456
          %7458 = vdwg.mxu0
          %7459 = vmatpush.bf16.msra.mxu0 %v6474
          %7460 = vmatpush.bf16.msra.mxu0 %v6470
          %7461 = vmatpush.bf16.msra.mxu0 %v6466
          %7462 = vmatpush.bf16.msra.mxu0 %v6462
          %7463 = vmatpush.bf16.msra.mxu0 %v6458
          %7464 = vmatpush.bf16.msra.mxu0 %v6454
          %7465 = vmatpush.bf16.msra.mxu0 %v6450
          %7466 = vmatpush.bf16.msra.mxu0 %v6446
          %7467 = vmatmul.bf16.gmra.mxu0 %v3968
          %v7468 = vpop.f32.mrf.mxu0
          %v7469 = vadd.f32 %v7455, %v7468
          %v7470 = vpop.f32.mrf.mxu0
          %v7471 = vadd.f32 %v7457, %v7470
          %7472 = vdwg.mxu0
          %7473 = vmatpush.bf16.msra.mxu0 %v6506
          %7474 = vmatpush.bf16.msra.mxu0 %v6502
          %7475 = vmatpush.bf16.msra.mxu0 %v6498
          %7476 = vmatpush.bf16.msra.mxu0 %v6494
          %7477 = vmatpush.bf16.msra.mxu0 %v6490
          %7478 = vmatpush.bf16.msra.mxu0 %v6486
          %7479 = vmatpush.bf16.msra.mxu0 %v6482
          %7480 = vmatpush.bf16.msra.mxu0 %v6478
          %7481 = vmatmul.bf16.gmra.mxu0 %v3969
          %v7482 = vpop.f32.mrf.mxu0
          %v7483 = vadd.f32 %v7469, %v7482
          %v7484 = vpop.f32.mrf.mxu0
          %v7485 = vadd.f32 %v7471, %v7484
          %7486 = vdwg.mxu0
          %7487 = vmatpush.bf16.msra.mxu0 %v6538
          %7488 = vmatpush.bf16.msra.mxu0 %v6534
          %7489 = vmatpush.bf16.msra.mxu0 %v6530
          %7490 = vmatpush.bf16.msra.mxu0 %v6526
          %7491 = vmatpush.bf16.msra.mxu0 %v6522
          %7492 = vmatpush.bf16.msra.mxu0 %v6518
          %7493 = vmatpush.bf16.msra.mxu0 %v6514
          %7494 = vmatpush.bf16.msra.mxu0 %v6510
          %7495 = vmatmul.bf16.gmra.mxu0 %v3970
          %v7496 = vpop.f32.mrf.mxu0
          %v7497 = vadd.f32 %v7483, %v7496
          %v7498 = vpop.f32.mrf.mxu0
          %v7499 = vadd.f32 %v7485, %v7498
          %7500 = vdwg.mxu0
          %7501 = vmatpush.bf16.msra.mxu0 %v6059
          %7502 = vmatpush.bf16.msra.mxu0 %v6055
          %7503 = vmatpush.bf16.msra.mxu0 %v6051
          %7504 = vmatpush.bf16.msra.mxu0 %v6047
          %7505 = vmatpush.bf16.msra.mxu0 %v6043
          %7506 = vmatpush.bf16.msra.mxu0 %v6039
          %7507 = vmatpush.bf16.msra.mxu0 %v6035
          %7508 = vmatpush.bf16.msra.mxu0 %v6031
          %7509 = vmatmul.bf16.gmra.mxu0 %v3955
          %v7510 = vpop.f32.mrf.mxu0
          %v7511 = vadd.f32 %v4487, %v7510
          %v7512 = vpop.f32.mrf.mxu0
          %v7513 = vadd.f32 %v4487, %v7512
          %7514 = vdwg.mxu0
          %7515 = vmatpush.bf16.msra.mxu0 %v6091
          %7516 = vmatpush.bf16.msra.mxu0 %v6087
          %7517 = vmatpush.bf16.msra.mxu0 %v6083
          %7518 = vmatpush.bf16.msra.mxu0 %v6079
          %7519 = vmatpush.bf16.msra.mxu0 %v6075
          %7520 = vmatpush.bf16.msra.mxu0 %v6071
          %7521 = vmatpush.bf16.msra.mxu0 %v6067
          %7522 = vmatpush.bf16.msra.mxu0 %v6063
          %7523 = vmatmul.bf16.gmra.mxu0 %v3956
          %v7524 = vpop.f32.mrf.mxu0
          %v7525 = vadd.f32 %v7511, %v7524
          %v7526 = vpop.f32.mrf.mxu0
          %v7527 = vadd.f32 %v7513, %v7526
          %7528 = vdwg.mxu0
          %7529 = vmatpush.bf16.msra.mxu0 %v6123
          %7530 = vmatpush.bf16.msra.mxu0 %v6119
          %7531 = vmatpush.bf16.msra.mxu0 %v6115
          %7532 = vmatpush.bf16.msra.mxu0 %v6111
          %7533 = vmatpush.bf16.msra.mxu0 %v6107
          %7534 = vmatpush.bf16.msra.mxu0 %v6103
          %7535 = vmatpush.bf16.msra.mxu0 %v6099
          %7536 = vmatpush.bf16.msra.mxu0 %v6095
          %7537 = vmatmul.bf16.gmra.mxu0 %v3957
          %v7538 = vpop.f32.mrf.mxu0
          %v7539 = vadd.f32 %v7525, %v7538
          %v7540 = vpop.f32.mrf.mxu0
          %v7541 = vadd.f32 %v7527, %v7540
          %7542 = vdwg.mxu0
          %7543 = vmatpush.bf16.msra.mxu0 %v6155
          %7544 = vmatpush.bf16.msra.mxu0 %v6151
          %7545 = vmatpush.bf16.msra.mxu0 %v6147
          %7546 = vmatpush.bf16.msra.mxu0 %v6143
          %7547 = vmatpush.bf16.msra.mxu0 %v6139
          %7548 = vmatpush.bf16.msra.mxu0 %v6135
          %7549 = vmatpush.bf16.msra.mxu0 %v6131
          %7550 = vmatpush.bf16.msra.mxu0 %v6127
          %7551 = vmatmul.bf16.gmra.mxu0 %v3958
          %v7552 = vpop.f32.mrf.mxu0
          %v7553 = vadd.f32 %v7539, %v7552
          %v7554 = vpop.f32.mrf.mxu0
          %v7555 = vadd.f32 %v7541, %v7554
          %7556 = vdwg.mxu0
          %7557 = vmatpush.bf16.msra.mxu0 %v6187
          %7558 = vmatpush.bf16.msra.mxu0 %v6183
          %7559 = vmatpush.bf16.msra.mxu0 %v6179
          %7560 = vmatpush.bf16.msra.mxu0 %v6175
          %7561 = vmatpush.bf16.msra.mxu0 %v6171
          %7562 = vmatpush.bf16.msra.mxu0 %v6167
          %7563 = vmatpush.bf16.msra.mxu0 %v6163
          %7564 = vmatpush.bf16.msra.mxu0 %v6159
          %7565 = vmatmul.bf16.gmra.mxu0 %v3959
          %v7566 = vpop.f32.mrf.mxu0
          %v7567 = vadd.f32 %v7553, %v7566
          %v7568 = vpop.f32.mrf.mxu0
          %v7569 = vadd.f32 %v7555, %v7568
          %7570 = vdwg.mxu0
          %7571 = vmatpush.bf16.msra.mxu0 %v6219
          %7572 = vmatpush.bf16.msra.mxu0 %v6215
          %7573 = vmatpush.bf16.msra.mxu0 %v6211
          %7574 = vmatpush.bf16.msra.mxu0 %v6207
          %7575 = vmatpush.bf16.msra.mxu0 %v6203
          %7576 = vmatpush.bf16.msra.mxu0 %v6199
          %7577 = vmatpush.bf16.msra.mxu0 %v6195
          %7578 = vmatpush.bf16.msra.mxu0 %v6191
          %7579 = vmatmul.bf16.gmra.mxu0 %v3960
          %v7580 = vpop.f32.mrf.mxu0
          %v7581 = vadd.f32 %v7567, %v7580
          %v7582 = vpop.f32.mrf.mxu0
          %v7583 = vadd.f32 %v7569, %v7582
          %7584 = vdwg.mxu0
          %7585 = vmatpush.bf16.msra.mxu0 %v6251
          %7586 = vmatpush.bf16.msra.mxu0 %v6247
          %7587 = vmatpush.bf16.msra.mxu0 %v6243
          %7588 = vmatpush.bf16.msra.mxu0 %v6239
          %7589 = vmatpush.bf16.msra.mxu0 %v6235
          %7590 = vmatpush.bf16.msra.mxu0 %v6231
          %7591 = vmatpush.bf16.msra.mxu0 %v6227
          %7592 = vmatpush.bf16.msra.mxu0 %v6223
          %7593 = vmatmul.bf16.gmra.mxu0 %v3961
          %v7594 = vpop.f32.mrf.mxu0
          %v7595 = vadd.f32 %v7581, %v7594
          %v7596 = vpop.f32.mrf.mxu0
          %v7597 = vadd.f32 %v7583, %v7596
          %7598 = vdwg.mxu0
          %7599 = vmatpush.bf16.msra.mxu0 %v6283
          %7600 = vmatpush.bf16.msra.mxu0 %v6279
          %7601 = vmatpush.bf16.msra.mxu0 %v6275
          %7602 = vmatpush.bf16.msra.mxu0 %v6271
          %7603 = vmatpush.bf16.msra.mxu0 %v6267
          %7604 = vmatpush.bf16.msra.mxu0 %v6263
          %7605 = vmatpush.bf16.msra.mxu0 %v6259
          %7606 = vmatpush.bf16.msra.mxu0 %v6255
          %7607 = vmatmul.bf16.gmra.mxu0 %v3962
          %v7608 = vpop.f32.mrf.mxu0
          %v7609 = vadd.f32 %v7595, %v7608
          %v7610 = vpop.f32.mrf.mxu0
          %v7611 = vadd.f32 %v7597, %v7610
          %7612 = vdwg.mxu0
          %7613 = vmatpush.bf16.msra.mxu0 %v6315
          %7614 = vmatpush.bf16.msra.mxu0 %v6311
          %7615 = vmatpush.bf16.msra.mxu0 %v6307
          %7616 = vmatpush.bf16.msra.mxu0 %v6303
          %7617 = vmatpush.bf16.msra.mxu0 %v6299
          %7618 = vmatpush.bf16.msra.mxu0 %v6295
          %7619 = vmatpush.bf16.msra.mxu0 %v6291
          %7620 = vmatpush.bf16.msra.mxu0 %v6287
          %7621 = vmatmul.bf16.gmra.mxu0 %v3963
          %v7622 = vpop.f32.mrf.mxu0
          %v7623 = vadd.f32 %v7609, %v7622
          %v7624 = vpop.f32.mrf.mxu0
          %v7625 = vadd.f32 %v7611, %v7624
          %7626 = vdwg.mxu0
          %7627 = vmatpush.bf16.msra.mxu0 %v6347
          %7628 = vmatpush.bf16.msra.mxu0 %v6343
          %7629 = vmatpush.bf16.msra.mxu0 %v6339
          %7630 = vmatpush.bf16.msra.mxu0 %v6335
          %7631 = vmatpush.bf16.msra.mxu0 %v6331
          %7632 = vmatpush.bf16.msra.mxu0 %v6327
          %7633 = vmatpush.bf16.msra.mxu0 %v6323
          %7634 = vmatpush.bf16.msra.mxu0 %v6319
          %7635 = vmatmul.bf16.gmra.mxu0 %v3964
          %v7636 = vpop.f32.mrf.mxu0
          %v7637 = vadd.f32 %v7623, %v7636
          %v7638 = vpop.f32.mrf.mxu0
          %v7639 = vadd.f32 %v7625, %v7638
          %7640 = vdwg.mxu0
          %7641 = vmatpush.bf16.msra.mxu0 %v6379
          %7642 = vmatpush.bf16.msra.mxu0 %v6375
          %7643 = vmatpush.bf16.msra.mxu0 %v6371
          %7644 = vmatpush.bf16.msra.mxu0 %v6367
          %7645 = vmatpush.bf16.msra.mxu0 %v6363
          %7646 = vmatpush.bf16.msra.mxu0 %v6359
          %7647 = vmatpush.bf16.msra.mxu0 %v6355
          %7648 = vmatpush.bf16.msra.mxu0 %v6351
          %7649 = vmatmul.bf16.gmra.mxu0 %v3965
          %v7650 = vpop.f32.mrf.mxu0
          %v7651 = vadd.f32 %v7637, %v7650
          %v7652 = vpop.f32.mrf.mxu0
          %v7653 = vadd.f32 %v7639, %v7652
          %7654 = vdwg.mxu0
          %7655 = vmatpush.bf16.msra.mxu0 %v6411
          %7656 = vmatpush.bf16.msra.mxu0 %v6407
          %7657 = vmatpush.bf16.msra.mxu0 %v6403
          %7658 = vmatpush.bf16.msra.mxu0 %v6399
          %7659 = vmatpush.bf16.msra.mxu0 %v6395
          %7660 = vmatpush.bf16.msra.mxu0 %v6391
          %7661 = vmatpush.bf16.msra.mxu0 %v6387
          %7662 = vmatpush.bf16.msra.mxu0 %v6383
          %7663 = vmatmul.bf16.gmra.mxu0 %v3966
          %v7664 = vpop.f32.mrf.mxu0
          %v7665 = vadd.f32 %v7651, %v7664
          %v7666 = vpop.f32.mrf.mxu0
          %v7667 = vadd.f32 %v7653, %v7666
          %7668 = vdwg.mxu0
          %7669 = vmatpush.bf16.msra.mxu0 %v6443
          %7670 = vmatpush.bf16.msra.mxu0 %v6439
          %7671 = vmatpush.bf16.msra.mxu0 %v6435
          %7672 = vmatpush.bf16.msra.mxu0 %v6431
          %7673 = vmatpush.bf16.msra.mxu0 %v6427
          %7674 = vmatpush.bf16.msra.mxu0 %v6423
          %7675 = vmatpush.bf16.msra.mxu0 %v6419
          %7676 = vmatpush.bf16.msra.mxu0 %v6415
          %7677 = vmatmul.bf16.gmra.mxu0 %v3967
          %v7678 = vpop.f32.mrf.mxu0
          %v7679 = vadd.f32 %v7665, %v7678
          %v7680 = vpop.f32.mrf.mxu0
          %v7681 = vadd.f32 %v7667, %v7680
          %7682 = vdwg.mxu0
          %7683 = vmatpush.bf16.msra.mxu0 %v6475
          %7684 = vmatpush.bf16.msra.mxu0 %v6471
          %7685 = vmatpush.bf16.msra.mxu0 %v6467
          %7686 = vmatpush.bf16.msra.mxu0 %v6463
          %7687 = vmatpush.bf16.msra.mxu0 %v6459
          %7688 = vmatpush.bf16.msra.mxu0 %v6455
          %7689 = vmatpush.bf16.msra.mxu0 %v6451
          %7690 = vmatpush.bf16.msra.mxu0 %v6447
          %7691 = vmatmul.bf16.gmra.mxu0 %v3968
          %v7692 = vpop.f32.mrf.mxu0
          %v7693 = vadd.f32 %v7679, %v7692
          %v7694 = vpop.f32.mrf.mxu0
          %v7695 = vadd.f32 %v7681, %v7694
          %7696 = vdwg.mxu0
          %7697 = vmatpush.bf16.msra.mxu0 %v6507
          %7698 = vmatpush.bf16.msra.mxu0 %v6503
          %7699 = vmatpush.bf16.msra.mxu0 %v6499
          %7700 = vmatpush.bf16.msra.mxu0 %v6495
          %7701 = vmatpush.bf16.msra.mxu0 %v6491
          %7702 = vmatpush.bf16.msra.mxu0 %v6487
          %7703 = vmatpush.bf16.msra.mxu0 %v6483
          %7704 = vmatpush.bf16.msra.mxu0 %v6479
          %7705 = vmatmul.bf16.gmra.mxu0 %v3969
          %v7706 = vpop.f32.mrf.mxu0
          %v7707 = vadd.f32 %v7693, %v7706
          %v7708 = vpop.f32.mrf.mxu0
          %v7709 = vadd.f32 %v7695, %v7708
          %7710 = vdwg.mxu0
          %7711 = vmatpush.bf16.msra.mxu0 %v6539
          %7712 = vmatpush.bf16.msra.mxu0 %v6535
          %7713 = vmatpush.bf16.msra.mxu0 %v6531
          %7714 = vmatpush.bf16.msra.mxu0 %v6527
          %7715 = vmatpush.bf16.msra.mxu0 %v6523
          %7716 = vmatpush.bf16.msra.mxu0 %v6519
          %7717 = vmatpush.bf16.msra.mxu0 %v6515
          %7718 = vmatpush.bf16.msra.mxu0 %v6511
          %7719 = vmatmul.bf16.gmra.mxu0 %v3970
          %v7720 = vpop.f32.mrf.mxu0
          %v7721 = vadd.f32 %v7707, %v7720
          %v7722 = vpop.f32.mrf.mxu0
          %v7723 = vadd.f32 %v7709, %v7722
          %7724 = vdwg.mxu0
          %7725 = vmatpush.bf16.msra.mxu0 %v6060
          %7726 = vmatpush.bf16.msra.mxu0 %v6056
          %7727 = vmatpush.bf16.msra.mxu0 %v6052
          %7728 = vmatpush.bf16.msra.mxu0 %v6048
          %7729 = vmatpush.bf16.msra.mxu0 %v6044
          %7730 = vmatpush.bf16.msra.mxu0 %v6040
          %7731 = vmatpush.bf16.msra.mxu0 %v6036
          %7732 = vmatpush.bf16.msra.mxu0 %v6032
          %7733 = vmatmul.bf16.gmra.mxu0 %v3955
          %v7734 = vpop.f32.mrf.mxu0
          %v7735 = vadd.f32 %v4488, %v7734
          %v7736 = vpop.f32.mrf.mxu0
          %v7737 = vadd.f32 %v4488, %v7736
          %7738 = vdwg.mxu0
          %7739 = vmatpush.bf16.msra.mxu0 %v6092
          %7740 = vmatpush.bf16.msra.mxu0 %v6088
          %7741 = vmatpush.bf16.msra.mxu0 %v6084
          %7742 = vmatpush.bf16.msra.mxu0 %v6080
          %7743 = vmatpush.bf16.msra.mxu0 %v6076
          %7744 = vmatpush.bf16.msra.mxu0 %v6072
          %7745 = vmatpush.bf16.msra.mxu0 %v6068
          %7746 = vmatpush.bf16.msra.mxu0 %v6064
          %7747 = vmatmul.bf16.gmra.mxu0 %v3956
          %v7748 = vpop.f32.mrf.mxu0
          %v7749 = vadd.f32 %v7735, %v7748
          %v7750 = vpop.f32.mrf.mxu0
          %v7751 = vadd.f32 %v7737, %v7750
          %7752 = vdwg.mxu0
          %7753 = vmatpush.bf16.msra.mxu0 %v6124
          %7754 = vmatpush.bf16.msra.mxu0 %v6120
          %7755 = vmatpush.bf16.msra.mxu0 %v6116
          %7756 = vmatpush.bf16.msra.mxu0 %v6112
          %7757 = vmatpush.bf16.msra.mxu0 %v6108
          %7758 = vmatpush.bf16.msra.mxu0 %v6104
          %7759 = vmatpush.bf16.msra.mxu0 %v6100
          %7760 = vmatpush.bf16.msra.mxu0 %v6096
          %7761 = vmatmul.bf16.gmra.mxu0 %v3957
          %v7762 = vpop.f32.mrf.mxu0
          %v7763 = vadd.f32 %v7749, %v7762
          %v7764 = vpop.f32.mrf.mxu0
          %v7765 = vadd.f32 %v7751, %v7764
          %7766 = vdwg.mxu0
          %7767 = vmatpush.bf16.msra.mxu0 %v6156
          %7768 = vmatpush.bf16.msra.mxu0 %v6152
          %7769 = vmatpush.bf16.msra.mxu0 %v6148
          %7770 = vmatpush.bf16.msra.mxu0 %v6144
          %7771 = vmatpush.bf16.msra.mxu0 %v6140
          %7772 = vmatpush.bf16.msra.mxu0 %v6136
          %7773 = vmatpush.bf16.msra.mxu0 %v6132
          %7774 = vmatpush.bf16.msra.mxu0 %v6128
          %7775 = vmatmul.bf16.gmra.mxu0 %v3958
          %v7776 = vpop.f32.mrf.mxu0
          %v7777 = vadd.f32 %v7763, %v7776
          %v7778 = vpop.f32.mrf.mxu0
          %v7779 = vadd.f32 %v7765, %v7778
          %7780 = vdwg.mxu0
          %7781 = vmatpush.bf16.msra.mxu0 %v6188
          %7782 = vmatpush.bf16.msra.mxu0 %v6184
          %7783 = vmatpush.bf16.msra.mxu0 %v6180
          %7784 = vmatpush.bf16.msra.mxu0 %v6176
          %7785 = vmatpush.bf16.msra.mxu0 %v6172
          %7786 = vmatpush.bf16.msra.mxu0 %v6168
          %7787 = vmatpush.bf16.msra.mxu0 %v6164
          %7788 = vmatpush.bf16.msra.mxu0 %v6160
          %7789 = vmatmul.bf16.gmra.mxu0 %v3959
          %v7790 = vpop.f32.mrf.mxu0
          %v7791 = vadd.f32 %v7777, %v7790
          %v7792 = vpop.f32.mrf.mxu0
          %v7793 = vadd.f32 %v7779, %v7792
          %7794 = vdwg.mxu0
          %7795 = vmatpush.bf16.msra.mxu0 %v6220
          %7796 = vmatpush.bf16.msra.mxu0 %v6216
          %7797 = vmatpush.bf16.msra.mxu0 %v6212
          %7798 = vmatpush.bf16.msra.mxu0 %v6208
          %7799 = vmatpush.bf16.msra.mxu0 %v6204
          %7800 = vmatpush.bf16.msra.mxu0 %v6200
          %7801 = vmatpush.bf16.msra.mxu0 %v6196
          %7802 = vmatpush.bf16.msra.mxu0 %v6192
          %7803 = vmatmul.bf16.gmra.mxu0 %v3960
          %v7804 = vpop.f32.mrf.mxu0
          %v7805 = vadd.f32 %v7791, %v7804
          %v7806 = vpop.f32.mrf.mxu0
          %v7807 = vadd.f32 %v7793, %v7806
          %7808 = vdwg.mxu0
          %7809 = vmatpush.bf16.msra.mxu0 %v6252
          %7810 = vmatpush.bf16.msra.mxu0 %v6248
          %7811 = vmatpush.bf16.msra.mxu0 %v6244
          %7812 = vmatpush.bf16.msra.mxu0 %v6240
          %7813 = vmatpush.bf16.msra.mxu0 %v6236
          %7814 = vmatpush.bf16.msra.mxu0 %v6232
          %7815 = vmatpush.bf16.msra.mxu0 %v6228
          %7816 = vmatpush.bf16.msra.mxu0 %v6224
          %7817 = vmatmul.bf16.gmra.mxu0 %v3961
          %v7818 = vpop.f32.mrf.mxu0
          %v7819 = vadd.f32 %v7805, %v7818
          %v7820 = vpop.f32.mrf.mxu0
          %v7821 = vadd.f32 %v7807, %v7820
          %7822 = vdwg.mxu0
          %7823 = vmatpush.bf16.msra.mxu0 %v6284
          %7824 = vmatpush.bf16.msra.mxu0 %v6280
          %7825 = vmatpush.bf16.msra.mxu0 %v6276
          %7826 = vmatpush.bf16.msra.mxu0 %v6272
          %7827 = vmatpush.bf16.msra.mxu0 %v6268
          %7828 = vmatpush.bf16.msra.mxu0 %v6264
          %7829 = vmatpush.bf16.msra.mxu0 %v6260
          %7830 = vmatpush.bf16.msra.mxu0 %v6256
          %7831 = vmatmul.bf16.gmra.mxu0 %v3962
          %v7832 = vpop.f32.mrf.mxu0
          %v7833 = vadd.f32 %v7819, %v7832
          %v7834 = vpop.f32.mrf.mxu0
          %v7835 = vadd.f32 %v7821, %v7834
          %7836 = vdwg.mxu0
          %7837 = vmatpush.bf16.msra.mxu0 %v6316
          %7838 = vmatpush.bf16.msra.mxu0 %v6312
          %7839 = vmatpush.bf16.msra.mxu0 %v6308
          %7840 = vmatpush.bf16.msra.mxu0 %v6304
          %7841 = vmatpush.bf16.msra.mxu0 %v6300
          %7842 = vmatpush.bf16.msra.mxu0 %v6296
          %7843 = vmatpush.bf16.msra.mxu0 %v6292
          %7844 = vmatpush.bf16.msra.mxu0 %v6288
          %7845 = vmatmul.bf16.gmra.mxu0 %v3963
          %v7846 = vpop.f32.mrf.mxu0
          %v7847 = vadd.f32 %v7833, %v7846
          %v7848 = vpop.f32.mrf.mxu0
          %v7849 = vadd.f32 %v7835, %v7848
          %7850 = vdwg.mxu0
          %7851 = vmatpush.bf16.msra.mxu0 %v6348
          %7852 = vmatpush.bf16.msra.mxu0 %v6344
          %7853 = vmatpush.bf16.msra.mxu0 %v6340
          %7854 = vmatpush.bf16.msra.mxu0 %v6336
          %7855 = vmatpush.bf16.msra.mxu0 %v6332
          %7856 = vmatpush.bf16.msra.mxu0 %v6328
          %7857 = vmatpush.bf16.msra.mxu0 %v6324
          %7858 = vmatpush.bf16.msra.mxu0 %v6320
          %7859 = vmatmul.bf16.gmra.mxu0 %v3964
          %v7860 = vpop.f32.mrf.mxu0
          %v7861 = vadd.f32 %v7847, %v7860
          %v7862 = vpop.f32.mrf.mxu0
          %v7863 = vadd.f32 %v7849, %v7862
          %7864 = vdwg.mxu0
          %7865 = vmatpush.bf16.msra.mxu0 %v6380
          %7866 = vmatpush.bf16.msra.mxu0 %v6376
          %7867 = vmatpush.bf16.msra.mxu0 %v6372
          %7868 = vmatpush.bf16.msra.mxu0 %v6368
          %7869 = vmatpush.bf16.msra.mxu0 %v6364
          %7870 = vmatpush.bf16.msra.mxu0 %v6360
          %7871 = vmatpush.bf16.msra.mxu0 %v6356
          %7872 = vmatpush.bf16.msra.mxu0 %v6352
          %7873 = vmatmul.bf16.gmra.mxu0 %v3965
          %v7874 = vpop.f32.mrf.mxu0
          %v7875 = vadd.f32 %v7861, %v7874
          %v7876 = vpop.f32.mrf.mxu0
          %v7877 = vadd.f32 %v7863, %v7876
          %7878 = vdwg.mxu0
          %7879 = vmatpush.bf16.msra.mxu0 %v6412
          %7880 = vmatpush.bf16.msra.mxu0 %v6408
          %7881 = vmatpush.bf16.msra.mxu0 %v6404
          %7882 = vmatpush.bf16.msra.mxu0 %v6400
          %7883 = vmatpush.bf16.msra.mxu0 %v6396
          %7884 = vmatpush.bf16.msra.mxu0 %v6392
          %7885 = vmatpush.bf16.msra.mxu0 %v6388
          %7886 = vmatpush.bf16.msra.mxu0 %v6384
          %7887 = vmatmul.bf16.gmra.mxu0 %v3966
          %v7888 = vpop.f32.mrf.mxu0
          %v7889 = vadd.f32 %v7875, %v7888
          %v7890 = vpop.f32.mrf.mxu0
          %v7891 = vadd.f32 %v7877, %v7890
          %7892 = vdwg.mxu0
          %7893 = vmatpush.bf16.msra.mxu0 %v6444
          %7894 = vmatpush.bf16.msra.mxu0 %v6440
          %7895 = vmatpush.bf16.msra.mxu0 %v6436
          %7896 = vmatpush.bf16.msra.mxu0 %v6432
          %7897 = vmatpush.bf16.msra.mxu0 %v6428
          %7898 = vmatpush.bf16.msra.mxu0 %v6424
          %7899 = vmatpush.bf16.msra.mxu0 %v6420
          %7900 = vmatpush.bf16.msra.mxu0 %v6416
          %7901 = vmatmul.bf16.gmra.mxu0 %v3967
          %v7902 = vpop.f32.mrf.mxu0
          %v7903 = vadd.f32 %v7889, %v7902
          %v7904 = vpop.f32.mrf.mxu0
          %v7905 = vadd.f32 %v7891, %v7904
          %7906 = vdwg.mxu0
          %7907 = vmatpush.bf16.msra.mxu0 %v6476
          %7908 = vmatpush.bf16.msra.mxu0 %v6472
          %7909 = vmatpush.bf16.msra.mxu0 %v6468
          %7910 = vmatpush.bf16.msra.mxu0 %v6464
          %7911 = vmatpush.bf16.msra.mxu0 %v6460
          %7912 = vmatpush.bf16.msra.mxu0 %v6456
          %7913 = vmatpush.bf16.msra.mxu0 %v6452
          %7914 = vmatpush.bf16.msra.mxu0 %v6448
          %7915 = vmatmul.bf16.gmra.mxu0 %v3968
          %v7916 = vpop.f32.mrf.mxu0
          %v7917 = vadd.f32 %v7903, %v7916
          %v7918 = vpop.f32.mrf.mxu0
          %v7919 = vadd.f32 %v7905, %v7918
          %7920 = vdwg.mxu0
          %7921 = vmatpush.bf16.msra.mxu0 %v6508
          %7922 = vmatpush.bf16.msra.mxu0 %v6504
          %7923 = vmatpush.bf16.msra.mxu0 %v6500
          %7924 = vmatpush.bf16.msra.mxu0 %v6496
          %7925 = vmatpush.bf16.msra.mxu0 %v6492
          %7926 = vmatpush.bf16.msra.mxu0 %v6488
          %7927 = vmatpush.bf16.msra.mxu0 %v6484
          %7928 = vmatpush.bf16.msra.mxu0 %v6480
          %7929 = vmatmul.bf16.gmra.mxu0 %v3969
          %v7930 = vpop.f32.mrf.mxu0
          %v7931 = vadd.f32 %v7917, %v7930
          %v7932 = vpop.f32.mrf.mxu0
          %v7933 = vadd.f32 %v7919, %v7932
          %7934 = vdwg.mxu0
          %7935 = vmatpush.bf16.msra.mxu0 %v6540
          %7936 = vmatpush.bf16.msra.mxu0 %v6536
          %7937 = vmatpush.bf16.msra.mxu0 %v6532
          %7938 = vmatpush.bf16.msra.mxu0 %v6528
          %7939 = vmatpush.bf16.msra.mxu0 %v6524
          %7940 = vmatpush.bf16.msra.mxu0 %v6520
          %7941 = vmatpush.bf16.msra.mxu0 %v6516
          %7942 = vmatpush.bf16.msra.mxu0 %v6512
          %7943 = vmatmul.bf16.gmra.mxu0 %v3970
          %v7944 = vpop.f32.mrf.mxu0
          %v7945 = vadd.f32 %v7931, %v7944
          %v7946 = vpop.f32.mrf.mxu0
          %v7947 = vadd.f32 %v7933, %v7946
          %7948 = vdwg.mxu0
          %v7949 = vpack.c.bf16 %v7275, %v7273
          %v7950 = vpack.c.bf16 %v7499, %v7497
          %v7951 = vpack.c.bf16 %v7723, %v7721
          %v7952 = vpack.c.bf16 %v7947, %v7945
          %v7953 = vld [vmem:[%s3] sm:$0xf]
          %v7954 = vld [vmem:[%s3 + $0x4] sm:$0xf]
          %v7955 = vld [vmem:[%s3 + $0x8] sm:$0xf]
          %v7956 = vld [vmem:[%s3 + $0xc] sm:$0xf]
          %v7957 = vld [vmem:[%s3 + $0x10] sm:$0xf]
          %v7958 = vld [vmem:[%s3 + $0x14] sm:$0xf]
          %v7959 = vld [vmem:[%s3 + $0x18] sm:$0xf]
          %v7960 = vld [vmem:[%s3 + $0x1c] sm:$0xf]
          %v7961 = vld [vmem:[%s3 + $0x20] sm:$0xf]
          %v7962 = vld [vmem:[%s3 + $0x24] sm:$0xf]
          %v7963 = vld [vmem:[%s3 + $0x28] sm:$0xf]
          %v7964 = vld [vmem:[%s3 + $0x2c] sm:$0xf]
          %v7965 = vld [vmem:[%s3 + $0x30] sm:$0xf]
          %v7966 = vld [vmem:[%s3 + $0x34] sm:$0xf]
          %v7967 = vld [vmem:[%s3 + $0x38] sm:$0xf]
          %v7968 = vld [vmem:[%s3 + $0x3c] sm:$0xf]
          %v7969 = vld [vmem:[%s3 + $0x40] sm:$0xf]
          %v7970 = vld [vmem:[%s3 + $0x44] sm:$0xf]
          %v7971 = vld [vmem:[%s3 + $0x48] sm:$0xf]
          %v7972 = vld [vmem:[%s3 + $0x4c] sm:$0xf]
          %v7973 = vld [vmem:[%s3 + $0x50] sm:$0xf]
          %v7974 = vld [vmem:[%s3 + $0x54] sm:$0xf]
          %v7975 = vld [vmem:[%s3 + $0x58] sm:$0xf]
          %v7976 = vld [vmem:[%s3 + $0x5c] sm:$0xf]
          %v7977 = vld [vmem:[%s3 + $0x60] sm:$0xf]
          %v7978 = vld [vmem:[%s3 + $0x64] sm:$0xf]
          %v7979 = vld [vmem:[%s3 + $0x68] sm:$0xf]
          %v7980 = vld [vmem:[%s3 + $0x6c] sm:$0xf]
          %v7981 = vld [vmem:[%s3 + $0x70] sm:$0xf]
          %v7982 = vld [vmem:[%s3 + $0x74] sm:$0xf]
          %v7983 = vld [vmem:[%s3 + $0x78] sm:$0xf]
          %v7984 = vld [vmem:[%s3 + $0x7c] sm:$0xf]
          %v7985 = vld [vmem:[%s3 + $0x80] sm:$0xf]
          %v7986 = vld [vmem:[%s3 + $0x84] sm:$0xf]
          %v7987 = vld [vmem:[%s3 + $0x88] sm:$0xf]
          %v7988 = vld [vmem:[%s3 + $0x8c] sm:$0xf]
          %v7989 = vld [vmem:[%s3 + $0x90] sm:$0xf]
          %v7990 = vld [vmem:[%s3 + $0x94] sm:$0xf]
          %v7991 = vld [vmem:[%s3 + $0x98] sm:$0xf]
          %v7992 = vld [vmem:[%s3 + $0x9c] sm:$0xf]
          %v7993 = vld [vmem:[%s3 + $0xa0] sm:$0xf]
          %v7994 = vld [vmem:[%s3 + $0xa4] sm:$0xf]
          %v7995 = vld [vmem:[%s3 + $0xa8] sm:$0xf]
          %v7996 = vld [vmem:[%s3 + $0xac] sm:$0xf]
          %v7997 = vld [vmem:[%s3 + $0xb0] sm:$0xf]
          %v7998 = vld [vmem:[%s3 + $0xb4] sm:$0xf]
          %v7999 = vld [vmem:[%s3 + $0xb8] sm:$0xf]
          %v8000 = vld [vmem:[%s3 + $0xbc] sm:$0xf]
          %v8001 = vld [vmem:[%s3 + $0xc0] sm:$0xf]
          %v8002 = vld [vmem:[%s3 + $0xc4] sm:$0xf]
          %v8003 = vld [vmem:[%s3 + $0xc8] sm:$0xf]
          %v8004 = vld [vmem:[%s3 + $0xcc] sm:$0xf]
          %v8005 = vld [vmem:[%s3 + $0xd0] sm:$0xf]
          %v8006 = vld [vmem:[%s3 + $0xd4] sm:$0xf]
          %v8007 = vld [vmem:[%s3 + $0xd8] sm:$0xf]
          %v8008 = vld [vmem:[%s3 + $0xdc] sm:$0xf]
          %v8009 = vld [vmem:[%s3 + $0xe0] sm:$0xf]
          %v8010 = vld [vmem:[%s3 + $0xe4] sm:$0xf]
          %v8011 = vld [vmem:[%s3 + $0xe8] sm:$0xf]
          %v8012 = vld [vmem:[%s3 + $0xec] sm:$0xf]
          %v8013 = vld [vmem:[%s3 + $0xf0] sm:$0xf]
          %v8014 = vld [vmem:[%s3 + $0xf4] sm:$0xf]
          %v8015 = vld [vmem:[%s3 + $0xf8] sm:$0xf]
          %v8016 = vld [vmem:[%s3 + $0xfc] sm:$0xf]
          %v8017 = vld [vmem:[%s4] sm:$0x1]
          %v8019 = vperm.slane %v8017, 0
          %v8085 = vunpack.c.l.b16 %v7953
          %v8086 = vunpack.c.l.b16 %v7954
          %v8087 = vunpack.c.l.b16 %v7955
          %v8088 = vunpack.c.l.b16 %v7956
          %v8089 = vunpack.c.l.b16 %v7957
          %v8090 = vunpack.c.l.b16 %v7958
          %v8091 = vunpack.c.l.b16 %v7959
          %v8092 = vunpack.c.l.b16 %v7960
          %v8093 = vunpack.c.l.b16 %v7961
          %v8094 = vunpack.c.l.b16 %v7962
          %v8095 = vunpack.c.l.b16 %v7963
          %v8096 = vunpack.c.l.b16 %v7964
          %v8097 = vunpack.c.l.b16 %v7965
          %v8098 = vunpack.c.l.b16 %v7966
          %v8099 = vunpack.c.l.b16 %v7967
          %v8100 = vunpack.c.l.b16 %v7968
          %v8101 = vunpack.c.l.b16 %v7969
          %v8102 = vunpack.c.l.b16 %v7970
          %v8103 = vunpack.c.l.b16 %v7971
          %v8104 = vunpack.c.l.b16 %v7972
          %v8105 = vunpack.c.l.b16 %v7973
          %v8106 = vunpack.c.l.b16 %v7974
          %v8107 = vunpack.c.l.b16 %v7975
          %v8108 = vunpack.c.l.b16 %v7976
          %v8109 = vunpack.c.l.b16 %v7977
          %v8110 = vunpack.c.l.b16 %v7978
          %v8111 = vunpack.c.l.b16 %v7979
          %v8112 = vunpack.c.l.b16 %v7980
          %v8113 = vunpack.c.l.b16 %v7981
          %v8114 = vunpack.c.l.b16 %v7982
          %v8115 = vunpack.c.l.b16 %v7983
          %v8116 = vunpack.c.l.b16 %v7984
          %v8117 = vunpack.c.l.b16 %v7985
          %v8118 = vunpack.c.l.b16 %v7986
          %v8119 = vunpack.c.l.b16 %v7987
          %v8120 = vunpack.c.l.b16 %v7988
          %v8121 = vunpack.c.l.b16 %v7989
          %v8122 = vunpack.c.l.b16 %v7990
          %v8123 = vunpack.c.l.b16 %v7991
          %v8124 = vunpack.c.l.b16 %v7992
          %v8125 = vunpack.c.l.b16 %v7993
          %v8126 = vunpack.c.l.b16 %v7994
          %v8127 = vunpack.c.l.b16 %v7995
          %v8128 = vunpack.c.l.b16 %v7996
          %v8129 = vunpack.c.l.b16 %v7997
          %v8130 = vunpack.c.l.b16 %v7998
          %v8131 = vunpack.c.l.b16 %v7999
          %v8132 = vunpack.c.l.b16 %v8000
          %v8133 = vunpack.c.l.b16 %v8001
          %v8134 = vunpack.c.l.b16 %v8002
          %v8135 = vunpack.c.l.b16 %v8003
          %v8136 = vunpack.c.l.b16 %v8004
          %v8137 = vunpack.c.l.b16 %v8005
          %v8138 = vunpack.c.l.b16 %v8006
          %v8139 = vunpack.c.l.b16 %v8007
          %v8140 = vunpack.c.l.b16 %v8008
          %v8141 = vunpack.c.l.b16 %v8009
          %v8142 = vunpack.c.l.b16 %v8010
          %v8143 = vunpack.c.l.b16 %v8011
          %v8144 = vunpack.c.l.b16 %v8012
          %v8145 = vunpack.c.l.b16 %v8013
          %v8146 = vunpack.c.l.b16 %v8014
          %v8147 = vunpack.c.l.b16 %v8015
          %v8148 = vunpack.c.l.b16 %v8016
          %v8149 = vpack.c.b16 %v8086, %v8085
          %v8150 = vpack.c.b16 %v8088, %v8087
          %v8151 = vpack.c.b16 %v8090, %v8089
          %v8152 = vpack.c.b16 %v8092, %v8091
          %v8153 = vpack.c.b16 %v8094, %v8093
          %v8154 = vpack.c.b16 %v8096, %v8095
          %v8155 = vpack.c.b16 %v8098, %v8097
          %v8156 = vpack.c.b16 %v8100, %v8099
          %v8157 = vpack.c.b16 %v8102, %v8101
          %v8158 = vpack.c.b16 %v8104, %v8103
          %v8159 = vpack.c.b16 %v8106, %v8105
          %v8160 = vpack.c.b16 %v8108, %v8107
          %v8161 = vpack.c.b16 %v8110, %v8109
          %v8162 = vpack.c.b16 %v8112, %v8111
          %v8163 = vpack.c.b16 %v8114, %v8113
          %v8164 = vpack.c.b16 %v8116, %v8115
          %v8165 = vpack.c.b16 %v8118, %v8117
          %v8166 = vpack.c.b16 %v8120, %v8119
          %v8167 = vpack.c.b16 %v8122, %v8121
          %v8168 = vpack.c.b16 %v8124, %v8123
          %v8169 = vpack.c.b16 %v8126, %v8125
          %v8170 = vpack.c.b16 %v8128, %v8127
          %v8171 = vpack.c.b16 %v8130, %v8129
          %v8172 = vpack.c.b16 %v8132, %v8131
          %v8173 = vpack.c.b16 %v8134, %v8133
          %v8174 = vpack.c.b16 %v8136, %v8135
          %v8175 = vpack.c.b16 %v8138, %v8137
          %v8176 = vpack.c.b16 %v8140, %v8139
          %v8177 = vpack.c.b16 %v8142, %v8141
          %v8178 = vpack.c.b16 %v8144, %v8143
          %v8179 = vpack.c.b16 %v8146, %v8145
          %v8180 = vpack.c.b16 %v8148, %v8147
          %8213 = vmatpush.bf16.msra.mxu0 %v8156
          %8214 = vmatpush.bf16.msra.mxu0 %v8155
          %8215 = vmatpush.bf16.msra.mxu0 %v8154
          %8216 = vmatpush.bf16.msra.mxu0 %v8153
          %8217 = vmatpush.bf16.msra.mxu0 %v8152
          %8218 = vmatpush.bf16.msra.mxu0 %v8151
          %8219 = vmatpush.bf16.msra.mxu0 %v8150
          %8220 = vmatpush.bf16.msra.mxu0 %v8149
          %8221 = vmatmul.bf16.gmra.mxu0 %v7949
          %v8222 = vpop.f32.mrf.mxu0
          %v8223 = vadd.f32 %v8019, %v8222
          %v8224 = vpop.f32.mrf.mxu0
          %v8225 = vadd.f32 %v8019, %v8224
          %8226 = vdwg.mxu0
          %8227 = vmatpush.bf16.msra.mxu0 %v8164
          %8228 = vmatpush.bf16.msra.mxu0 %v8163
          %8229 = vmatpush.bf16.msra.mxu0 %v8162
          %8230 = vmatpush.bf16.msra.mxu0 %v8161
          %8231 = vmatpush.bf16.msra.mxu0 %v8160
          %8232 = vmatpush.bf16.msra.mxu0 %v8159
          %8233 = vmatpush.bf16.msra.mxu0 %v8158
          %8234 = vmatpush.bf16.msra.mxu0 %v8157
          %8235 = vmatmul.bf16.gmra.mxu0 %v7950
          %v8236 = vpop.f32.mrf.mxu0
          %v8237 = vadd.f32 %v8223, %v8236
          %v8238 = vpop.f32.mrf.mxu0
          %v8239 = vadd.f32 %v8225, %v8238
          %8240 = vdwg.mxu0
          %8241 = vmatpush.bf16.msra.mxu0 %v8172
          %8242 = vmatpush.bf16.msra.mxu0 %v8171
          %8243 = vmatpush.bf16.msra.mxu0 %v8170
          %8244 = vmatpush.bf16.msra.mxu0 %v8169
          %8245 = vmatpush.bf16.msra.mxu0 %v8168
          %8246 = vmatpush.bf16.msra.mxu0 %v8167
          %8247 = vmatpush.bf16.msra.mxu0 %v8166
          %8248 = vmatpush.bf16.msra.mxu0 %v8165
          %8249 = vmatmul.bf16.gmra.mxu0 %v7951
          %v8250 = vpop.f32.mrf.mxu0
          %v8251 = vadd.f32 %v8237, %v8250
          %v8252 = vpop.f32.mrf.mxu0
          %v8253 = vadd.f32 %v8239, %v8252
          %8254 = vdwg.mxu0
          %8255 = vmatpush.bf16.msra.mxu0 %v8180
          %8256 = vmatpush.bf16.msra.mxu0 %v8179
          %8257 = vmatpush.bf16.msra.mxu0 %v8178
          %8258 = vmatpush.bf16.msra.mxu0 %v8177
          %8259 = vmatpush.bf16.msra.mxu0 %v8176
          %8260 = vmatpush.bf16.msra.mxu0 %v8175
          %8261 = vmatpush.bf16.msra.mxu0 %v8174
          %8262 = vmatpush.bf16.msra.mxu0 %v8173
          %8263 = vmatmul.bf16.gmra.mxu0 %v7952
          %v8264 = vpop.f32.mrf.mxu0
          %v8265 = vadd.f32 %v8251, %v8264
          %v8266 = vpop.f32.mrf.mxu0
          %v8267 = vadd.f32 %v8253, %v8266
          %8268 = vdwg.mxu0
          %8269 = vst [vmem:[%s390] sm:$0xff] %v8265
          %8270 = vst [vmem:[%s390 + $0x8] sm:$0xff] %v8267
        $region78: #{ft_net_se_head.1} parent=65 // pred_fallthru
          _
        %s8271 = sand.u32 %s148, 1
        %s8272 = sand.u32 %s148, 1
        %s8273 = smul.addr %s8272, 16
        %s8274 = scalar_lea.vmem [#allocation4], %s8273
        // Predicated region
        $region79: #{ft_net_se_head.1} parent=65 // pred_check
          %p8275 = pneg %p158
        $region80: #{ft_net_se_head.1} parent=65 // pred_check_branch
          %8277 = sbr.rel (%p8275) target = $region82
        $region81: #{ft_net_se_head.1} parent=65 // pred_region
          %s8278 = smul.u32 2, %s20
          %s8279 = ssub.s32 3, %s8278
          %p8280 = scmp.lt.s32.totalorder %s8279, 2
          %s8281 = scalar_select %p8280, %s8279, 2
          %s8282 = smul.u32 8, %s8281
          %p8283 = scmp.ne.s32.totalorder 0, %s8282
          %s8284 = smul.addr %s8278, 8
          %s8285 = scalar_lea.vmem %s5, %s8284
          // Predicated region
          $region83: #{ft_net_se_head.1} parent=81 // pred_check
            %p8286 = pneg %p8283
          $region84: #{ft_net_se_head.1} parent=81 // pred_check_branch
            %8288 = sbr.rel (%p8286) target = $region86
          $region85: #{ft_net_se_head.1} parent=81 // pred_region
            // Predicated region
            $region87: #{ft_net_se_head.1} parent=85 // pred_check
              _
            $region88: #{ft_net_se_head.1} parent=85 // pred_check_branch
              %8290 = sbr.rel (0) target = $region90
            $region89: #{ft_net_se_head.1} parent=85 // pred_region
              // Predicated region
              $region109: #{ft_net_se_head.1} parent=89 // pred_check
                _
              $region110: #{ft_net_se_head.1} parent=89 // pred_check_branch
                %8342 = sbr.rel (0) target = $region112
              $region111: #{ft_net_se_head.1} parent=89 // pred_region
                %s8343 = sshrl.u32 %s8281, 1
                // While loop
                $region113: #{ft_net_se_head.1} parent=111 // loop_pre_header
                  _
                $region114: #{ft_net_se_head.1} parent=111 // loop_header
                  %s8345 = sphi 0, %s8347
                  %p8346 = scmp.ge.s32.totalorder %s8345, %s8343
                  %s8350 = sphi 0, %s8359
                  %s8351 = sphi %s8274, %s8362
                  %s8352 = sphi %s8285, %s8363
                $region115: #{ft_net_se_head.1} parent=111 // loop_header_branch
                  %8349 = sbr.rel (%p8346) target = $region119
                $region116: #{ft_net_se_head.1} parent=111 // loop_body
                  %v8353 = vld [vmem:[%s8351] sm:$0xff]
                  %8354 = vst [vmem:[%s8352] sm:$0xff] %v8353
                  %v8355 = vld [vmem:[%s8351 + $0x8] sm:$0xff]
                  %8356 = vst [vmem:[%s8352 + $0x8] sm:$0xff] %v8355
                  %s8357 = sadd.s32 1, %s8350
                  %p8358 = scmp.ge.s32.totalorder %s8357, %s8343
                  %s8359 = scalar_select %p8358, 0, %s8357
                  %s8360 = smul.u32 %s8359, 16
                  %s8361 = smul.u32 %s8359, 16
                  %s8362 = scalar_lea.vmem %s8274, %s8360 [#allocation4]
                  %s8363 = scalar_lea.vmem %s8285, %s8361
                $region117: #{ft_net_se_head.1} parent=111 // loop_footer
                  %s8347 = sadd.s32 %s8345, 1
                $region118: #{ft_net_se_head.1} parent=111 // loop_footer_branch
                  %8344 = sbr.rel target = $region114
                $region119: #{ft_net_se_head.1} parent=111 // loop_exit
                  _
                %s8364 = sshrl.u32 %s8281, 1
                %s8365 = sand.u32 %s8281, 1
                %s8366 = smul.u32 %s8364, 2
                %s8367 = smul.u32 8, %s8366
                %s8368 = scalar_lea.vmem %s8274, %s8367 [#allocation4]
                %s8369 = smul.u32 8, %s8366
                %s8370 = scalar_lea.vmem %s8285, %s8369
                // While loop
                $region120: #{ft_net_se_head.1} parent=111 // loop_pre_header
                  _
                $region121: #{ft_net_se_head.1} parent=111 // loop_header
                  %s8372 = sphi 0, %s8374
                  %p8373 = scmp.ge.s32.totalorder %s8372, %s8365
                  %s8377 = sphi 0, %s8384
                  %s8378 = sphi %s8368, %s8387
                  %s8379 = sphi %s8370, %s8388
                $region122: #{ft_net_se_head.1} parent=111 // loop_header_branch
                  %8376 = sbr.rel (%p8373) target = $region126
                $region123: #{ft_net_se_head.1} parent=111 // loop_body
                  %v8380 = vld [vmem:[%s8378] sm:$0xff]
                  %8381 = vst [vmem:[%s8379] sm:$0xff] %v8380
                  %s8382 = sadd.s32 1, %s8377
                  %p8383 = scmp.ge.s32.totalorder %s8382, %s8365
                  %s8384 = scalar_select %p8383, 0, %s8382
                  %s8385 = smul.u32 %s8384, 8
                  %s8386 = smul.u32 %s8384, 8
                  %s8387 = scalar_lea.vmem %s8368, %s8385 [#allocation4]
                  %s8388 = scalar_lea.vmem %s8370, %s8386
                $region124: #{ft_net_se_head.1} parent=111 // loop_footer
                  %s8374 = sadd.s32 %s8372, 1
                $region125: #{ft_net_se_head.1} parent=111 // loop_footer_branch
                  %8371 = sbr.rel target = $region121
                $region126: #{ft_net_se_head.1} parent=111 // loop_exit
                  _
              $region112: #{ft_net_se_head.1} parent=89 // pred_fallthru
                _
              // Predicated region
              $region127: #{ft_net_se_head.1} parent=89 // pred_check
                _
              $region128: #{ft_net_se_head.1} parent=89 // pred_check_branch
                %8390 = sbr.rel target = $region130
              $region129: #{ft_net_se_head.1} parent=89 // pred_region
                _
              $region130: #{ft_net_se_head.1} parent=89 // pred_fallthru
                _
            $region90: #{ft_net_se_head.1} parent=85 // pred_fallthru
              _
            // Predicated region
            $region91: #{ft_net_se_head.1} parent=85 // pred_check
              _
            $region92: #{ft_net_se_head.1} parent=85 // pred_check_branch
              %8292 = sbr.rel target = $region94
            $region93: #{ft_net_se_head.1} parent=85 // pred_region
              %s8294 = ssub.s32 256, 1
              %s8295 = sshrl.u32 %s8281, 1
              // While loop
              $region95: #{ft_net_se_head.1} parent=93 // loop_pre_header
                _
              $region96: #{ft_net_se_head.1} parent=93 // loop_header
                %s8297 = sphi 0, %s8299
                %p8298 = scmp.ge.s32.totalorder %s8297, %s8295
                %s8302 = sphi 0, %s8311
                %s8303 = sphi %s8274, %s8314
                %s8304 = sphi %s8285, %s8315
              $region97: #{ft_net_se_head.1} parent=93 // loop_header_branch
                %8301 = sbr.rel (%p8298) target = $region101
              $region98: #{ft_net_se_head.1} parent=93 // loop_body
                %v8305 = vld [vmem:[%s8303] sm:%s8294]
                %8306 = vst [vmem:[%s8304] sm:%s8294] %v8305
                %v8307 = vld [vmem:[%s8303 + $0x8] sm:%s8294]
                %8308 = vst [vmem:[%s8304 + $0x8] sm:%s8294] %v8307
                %s8309 = sadd.s32 1, %s8302
                %p8310 = scmp.ge.s32.totalorder %s8309, %s8295
                %s8311 = scalar_select %p8310, 0, %s8309
                %s8312 = smul.u32 %s8311, 16
                %s8313 = smul.u32 %s8311, 16
                %s8314 = scalar_lea.vmem %s8274, %s8312 [#allocation4]
                %s8315 = scalar_lea.vmem %s8285, %s8313
              $region99: #{ft_net_se_head.1} parent=93 // loop_footer
                %s8299 = sadd.s32 %s8297, 1
              $region100: #{ft_net_se_head.1} parent=93 // loop_footer_branch
                %8296 = sbr.rel target = $region96
              $region101: #{ft_net_se_head.1} parent=93 // loop_exit
                _
              %s8316 = sshrl.u32 %s8281, 1
              %s8317 = sand.u32 %s8281, 1
              %s8318 = smul.u32 %s8316, 2
              %s8319 = smul.u32 8, %s8318
              %s8320 = scalar_lea.vmem %s8274, %s8319 [#allocation4]
              %s8321 = smul.u32 8, %s8318
              %s8322 = scalar_lea.vmem %s8285, %s8321
              // While loop
              $region102: #{ft_net_se_head.1} parent=93 // loop_pre_header
                _
              $region103: #{ft_net_se_head.1} parent=93 // loop_header
                %s8324 = sphi 0, %s8326
                %p8325 = scmp.ge.s32.totalorder %s8324, %s8317
                %s8329 = sphi 0, %s8336
                %s8330 = sphi %s8320, %s8339
                %s8331 = sphi %s8322, %s8340
              $region104: #{ft_net_se_head.1} parent=93 // loop_header_branch
                %8328 = sbr.rel (%p8325) target = $region108
              $region105: #{ft_net_se_head.1} parent=93 // loop_body
                %v8332 = vld [vmem:[%s8330] sm:%s8294]
                %8333 = vst [vmem:[%s8331] sm:%s8294] %v8332
                %s8334 = sadd.s32 1, %s8329
                %p8335 = scmp.ge.s32.totalorder %s8334, %s8317
                %s8336 = scalar_select %p8335, 0, %s8334
                %s8337 = smul.u32 %s8336, 8
                %s8338 = smul.u32 %s8336, 8
                %s8339 = scalar_lea.vmem %s8320, %s8337 [#allocation4]
                %s8340 = scalar_lea.vmem %s8322, %s8338
              $region106: #{ft_net_se_head.1} parent=93 // loop_footer
                %s8326 = sadd.s32 %s8324, 1
              $region107: #{ft_net_se_head.1} parent=93 // loop_footer_branch
                %8323 = sbr.rel target = $region103
              $region108: #{ft_net_se_head.1} parent=93 // loop_exit
                _
            $region94: #{ft_net_se_head.1} parent=85 // pred_fallthru
              _
          $region86: #{ft_net_se_head.1} parent=81 // pred_fallthru
            _
          %8391 = vnop
        $region82: #{ft_net_se_head.1} parent=65 // pred_fallthru
          _
      $region66: #{ft_net_se_head.1} parent=5 // pred_fallthru
        _
      %p8392 = scmp.le.s32.totalorder 2, %s11
      // Predicated region
      $region131: #{ft_net_se_head.1} parent=5 // pred_check
        %p8393 = pneg %p8392
      $region132: #{ft_net_se_head.1} parent=5 // pred_check_branch
        %8395 = sbr.rel (%p8393) target = $region134
      $region133: #{ft_net_se_head.1} parent=5 // pred_region
        %s8396 = ssub.s32 %s11, 2
        // Predicated region
        $region135: #{ft_net_se_head.1} parent=133 // pred_check
          %p8397 = pneg %p164
        $region136: #{ft_net_se_head.1} parent=133 // pred_check_branch
          %8399 = sbr.rel (%p8397) target = $region138
        $region137: #{ft_net_se_head.1} parent=133 // pred_region
          %s8400 = sand.u32 %s149, 1
          %s8401 = sand.u32 %s149, 1
          %s8402 = smul.addr %s8401, 16
          %s8403 = scalar_lea.vmem [#allocation4], %s8402
        $region138: #{ft_net_se_head.1} parent=133 // pred_fallthru
          _
      $region134: #{ft_net_se_head.1} parent=5 // pred_fallthru
        _
    $region6: #{ft_net_se_head.1} parent=1 // loop_footer
      %s15 = sadd.s32 1, %s11
    $region7: #{ft_net_se_head.1} parent=1 // loop_footer_branch
      %10 = sbr.rel target = $region3
    $region8: #{ft_net_se_head.1} parent=1 // loop_exit
      _

</llo_original>
